<compile_context>
chip_gen: v7x
topology: tpu7x:2x2x1
jax: 0.10.0
libtpu: 0.0.40
codegen_flags: <defaults>
</compile_context>

<pallas_src>
import functools

import jax
import jax.numpy as jnp
from jax.experimental import pallas as pl
from jax.experimental.pallas import tpu as pltpu

# ----------------------------- model dimensions --------------------------------
K = 10
N = 20                        # number of categorical groups
IN_DIM = 784
HID = 400
HALF = N * (K - 1)            # 180  (one loc / log_scale half of an h2 row)
HALF_PAD = 256                # 180 -> 2*128 lanes
HID_PAD = 512                 # 400 -> 4*128 lanes
NG_PAD = 128                  # 20 groups -> 128 lanes
ENC_PAD = 2 * HALF_PAD        # packed fc2 output width (512)

_TH_CANDIDATES = (64, 32, 16, 8)       # samples-per-half per grid step (tb = 2*th z-rows)
_VMEM_LIMIT = 32 * 1024 * 1024


def _round_up(n, m):
    return ((n + m - 1) // m) * m


def _resident(shape):
    nd = len(shape)
    return pl.BlockSpec(shape, lambda i, _nd=nd: (0,) * _nd)


# ----------------------------- fused kernel ------------------------------------
def _vae_fused_kernel(x_loc_ref, x_scl_ref, eps_ref,
                      w1_ref, b1_ref, w2_ref, b2_ref,
                      pe_ref, po_ref, smat_ref, smat_t_ref,
                      w3a_ref, w3b_ref, b3_ref, w4_ref, b4_ref,
                      lmask_ref, gpad_ref,
                      recon_ref, loc_ref, scale_ref, *, inv_temp):
    # ---------------- encoder on the two sample sub-tiles (h2 stays in VMEM) ----
    w1 = w1_ref[...]
    b1 = b1_ref[...]
    w2 = w2_ref[...]
    b2 = b2_ref[...]

    def encode(x_ref):
        # h1 = relu(x @ W1 + b1); x is cast to bf16 in-kernel (no wrapper pad/cast).
        h1 = jnp.dot(x_ref[...].astype(jnp.bfloat16), w1,
                     preferred_element_type=jnp.float32) + b1
        h1 = jnp.maximum(h1, 0.0)
        # h2 = h1 @ W2 + b2, columns packed as [loc half | pad | log_scale half | pad].
        return jnp.dot(h1.astype(jnp.bfloat16), w2,
                       preferred_element_type=jnp.float32) + b2          # (th, 512)

    h2_a = encode(x_loc_ref)      # samples feeding the 'loc'       chunk (torch chunk(2)[0])
    h2_b = encode(x_scl_ref)      # samples feeding the 'log_scale' chunk (torch chunk(2)[1])

    # torch reshape(-1,N,K-1).chunk(2): z-row 2j / 2j+1 are the two 180-wide halves of
    # sample j.  Interleave (th,512) -> (tb,256) in VMEM via 0/1 permutation matmuls.
    pe = pe_ref[...]
    po = po_ref[...]

    def interleave(h2):
        return (jnp.dot(pe, h2[:, :HALF_PAD], preferred_element_type=jnp.float32) +
                jnp.dot(po, h2[:, HALF_PAD:], preferred_element_type=jnp.float32))

    loc = interleave(h2_a)                                               # (tb, 256)
    logs = interleave(h2_b)                                              # (tb, 256)
    scale = jnp.exp(logs)                                                # q_z scale

    loc_ref[...] = loc[:, :HALF]                                         # (tb, 180) outputs
    scale_ref[...] = scale[:, :HALF]

    # ------------- InvertibleGaussian.rsample(): y = loc + scale*eps; softmax++ -------------
    eps = eps_ref[...] * lmask_ref[...]          # zero the 76 pad lanes of the noise
    yt = (loc + scale * eps) * inv_temp
    # Row-wise shift clipped at 0 (the implicit extra logit): all exps <= 1.
    m = jnp.maximum(jnp.max(yt, axis=-1, keepdims=True), 0.0)            # (tb, 1)
    e = jnp.exp(yt - m)                                                  # (tb, 256)
    e0 = jnp.exp(-m)                                                     # exp(0 - m)

    # Per-group-of-9 denominators via a bf16 0/1 block-sum matmul (exact 0/1 weights).
    gs = jnp.dot(e.astype(jnp.bfloat16), smat_ref[...],
                 preferred_element_type=jnp.float32)                     # (tb, 128)
    inv = pl.reciprocal(gs + e0 + gpad_ref[...], approx=True)            # (tb, 128)
    inv_l = jnp.dot(inv.astype(jnp.bfloat16), smat_t_ref[...],
                    preferred_element_type=jnp.float32)                  # (tb, 256)

    z_first = e * inv_l           # components 0..K-2 per group (0 on pad lanes)
    z_last = e0 * inv             # component K-1 per group (pad groups hit zero W3b rows)

    # ---------------- decoder: sigmoid(relu(z @ W3 + b3) @ W4 + b4) ----------------
    h3 = (jnp.dot(z_first.astype(jnp.bfloat16), w3a_ref[...],
                  preferred_element_type=jnp.float32)
          + jnp.dot(z_last.astype(jnp.bfloat16), w3b_ref[...],
                    preferred_element_type=jnp.float32)
          + b3_ref[...])
    h3 = jnp.maximum(h3, 0.0)
    logits = jnp.dot(h3.astype(jnp.bfloat16), w4_ref[...],
                     preferred_element_type=jnp.float32) + b4_ref[...]
    recon_ref[...] = 0.5 * jnp.tanh(0.5 * logits) + 0.5                  # stable sigmoid (EUP)


def _fused_call(xp, epsp, p_even, p_odd, params, *, th, n_steps, inv_temp):
    tb = 2 * th
    rows_out = tb * n_steps

    in_specs = [
        pl.BlockSpec((th, IN_DIM), lambda i: (i, 0)),                         # x (loc samples)
        pl.BlockSpec((th, IN_DIM), lambda i, _o=n_steps: (i + _o, 0)),        # x (scale samples)
        pl.BlockSpec((tb, HALF_PAD), lambda i: (i, 0)),                       # eps (packed)
        _resident((IN_DIM, HID_PAD)), _resident((1, HID_PAD)),                # w1, b1
        _resident((HID_PAD, ENC_PAD)), _resident((1, ENC_PAD)),               # w2, b2
        _resident((tb, th)), _resident((tb, th)),                             # p_even, p_odd
        _resident((HALF_PAD, NG_PAD)), _resident((NG_PAD, HALF_PAD)),         # smat, smat_t
        _resident((HALF_PAD, HID_PAD)), _resident((NG_PAD, HID_PAD)),         # w3a, w3b
        _resident((1, HID_PAD)),                                              # b3
        _resident((HID_PAD, IN_DIM)), _resident((1, IN_DIM)),                 # w4, b4
        _resident((1, HALF_PAD)), _resident((1, NG_PAD)),                     # lane_mask, grp_pad
    ]
    out_specs = (pl.BlockSpec((tb, IN_DIM), lambda i: (i, 0)),
                 pl.BlockSpec((tb, HALF), lambda i: (i, 0)),
                 pl.BlockSpec((tb, HALF), lambda i: (i, 0)))
    out_shape = (jax.ShapeDtypeStruct((rows_out, IN_DIM), jnp.float32),
                 jax.ShapeDtypeStruct((rows_out, HALF), jnp.float32),
                 jax.ShapeDtypeStruct((rows_out, HALF), jnp.float32))

    return pl.pallas_call(
        functools.partial(_vae_fused_kernel, inv_temp=inv_temp),
        out_shape=out_shape,
        grid=(n_steps,),
        in_specs=in_specs,
        out_specs=out_specs,
        compiler_params=pltpu.CompilerParams(
            dimension_semantics=("parallel",), vmem_limit_bytes=_VMEM_LIMIT),
    )(xp, xp, epsp,
      params["w1"], params["b1"], params["w2"], params["b2"],
      p_even, p_odd, params["smat"], params["smat_t"],
      params["w3a"], params["w3b"], params["b3"], params["w4"], params["b4"],
      params["lane_mask"], params["grp_pad"])


# ----------------------------- parameter init ----------------------------------
def init_params(key):
    """PyTorch nn.Linear-style init, then pad / repack once for the TPU kernel."""
    def linear(kw, kb, fan_in, fan_out):
        bound = 1.0 / (fan_in ** 0.5)
        w = jax.random.uniform(kw, (fan_out, fan_in), jnp.float32, -bound, bound)
        b = jax.random.uniform(kb, (fan_out,), jnp.float32, -bound, bound)
        return w, b

    ks = jax.random.split(key, 8)
    w1, b1 = linear(ks[0], ks[1], IN_DIM, HID)        # fc1: 784 -> 400
    w2, b2 = linear(ks[2], ks[3], HID, N * 2 * (K - 1))  # fc2: 400 -> 360
    w3, b3 = linear(ks[4], ks[5], N * K, HID)         # fc3: 200 -> 400
    w4, b4 = linear(ks[6], ks[7], HID, IN_DIM)        # fc4: 400 -> 784

    # fc1 / fc4: pad only the hidden dim to 512 lanes; the 784 dim stays unpadded.
    w1p = jnp.zeros((IN_DIM, HID_PAD), jnp.float32).at[:, :HID].set(w1.T)
    b1p = jnp.zeros((1, HID_PAD), jnp.float32).at[0, :HID].set(b1)
    w4p = jnp.zeros((HID_PAD, IN_DIM), jnp.float32).at[:HID, :].set(w4.T)
    b4p = b4.reshape(1, IN_DIM)

    # fc2: output columns repacked so each 180-wide half starts on a 128-lane boundary:
    # h2 row layout = [loc half (180) | 0 pad (76) | log_scale half (180) | 0 pad (76)].
    w2t = w2.T
    w2p = (jnp.zeros((HID_PAD, ENC_PAD), jnp.float32)
           .at[:HID, :HALF].set(w2t[:, :HALF])
           .at[:HID, HALF_PAD:HALF_PAD + HALF].set(w2t[:, HALF:]))
    b2p = (jnp.zeros((1, ENC_PAD), jnp.float32)
           .at[0, :HALF].set(b2[:HALF])
           .at[0, HALF_PAD:HALF_PAD + HALF].set(b2[HALF:]))

    # fc3: rows permuted / split to match the packed-z layout built in the kernel:
    #   z_first lane n*(K-1)+j <-> original z index n*K + j   (j < K-1)
    #   z_last  lane n         <-> original z index n*K + (K-1)
    w3t = w3.T
    lane = jnp.arange(HALF)
    first_rows = (lane // (K - 1)) * K + (lane % (K - 1))
    last_rows = jnp.arange(N) * K + (K - 1)
    w3a = jnp.zeros((HALF_PAD, HID_PAD), jnp.float32).at[:HALF, :HID].set(w3t[first_rows])
    w3b = jnp.zeros((NG_PAD, HID_PAD), jnp.float32).at[:N, :HID].set(w3t[last_rows])
    b3p = jnp.zeros((1, HID_PAD), jnp.float32).at[0, :HID].set(b3)

    # 0/1 group-sum matrix (lane j belongs to group j // (K-1)) and its transpose.
    # Stored in bf16 (exact for 0/1) so the small softmax matmuls avoid f32 MXU emulation.
    lanes = jnp.arange(HALF_PAD)
    groups = jnp.arange(NG_PAD)
    smat = (((lanes[:, None] // (K - 1)) == groups[None, :]) &
            (lanes[:, None] < HALF)).astype(jnp.float32)                 # (256, 128)

    lane_mask = (lanes < HALF).astype(jnp.float32).reshape(1, HALF_PAD)  # real logit lanes
    grp_pad = (groups >= N).astype(jnp.float32).reshape(1, NG_PAD)       # +1 on pad groups

    bf16 = jnp.bfloat16
    return {
        "w1": w1p.astype(bf16), "b1": b1p,
        "w2": w2p.astype(bf16), "b2": b2p,
        "w3a": w3a.astype(bf16), "w3b": w3b.astype(bf16), "b3": b3p,
        "w4": w4p.astype(bf16), "b4": b4p,
        "smat": smat.astype(bf16), "smat_t": smat.T.astype(bf16),
        "lane_mask": lane_mask, "grp_pad": grp_pad,
    }


# ----------------------------- forward (glue) ----------------------------------
def vae_forward(params, x, eps, temp=1.0):
    """Faithful forward of the PyTorch VAE: returns (recon, (loc, scale)).

    eps is the reparameterization noise; preferred layout is (B, 256) with only the
    first 180 lanes used (generated that way => zero wrapper-side pad passes).
    """
    x2d = x.reshape(-1, IN_DIM).astype(jnp.float32)        # x.view(-1, 784)
    B = x2d.shape[0]
    if B % 2 != 0:
        raise ValueError("torch chunk(2) along dim 0 requires an even batch size")
    Bh = B // 2
    inv_temp = 1.0 / float(temp)

    th = next((c for c in _TH_CANDIDATES if Bh % c == 0), _TH_CANDIDATES[-1])
    Bhp = _round_up(Bh, th)
    n_steps = Bhp // th
    tb = 2 * th

    # eps in the packed (rows, 256) layout (only the first 180 lanes are used).
    if eps.shape == (B, HALF_PAD):
        eps2d = eps.astype(jnp.float32)
    else:
        eps2d = eps.reshape(B, -1).astype(jnp.float32)
        eps2d = jnp.pad(eps2d, ((0, 0), (0, HALF_PAD - eps2d.shape[1])))

    if Bhp == Bh:
        xp, epsp = x2d, eps2d           # fast path: no wrapper-side copies at all
    else:
        # Fallback only when the batch does not tile evenly: relocate the second half
        # of the samples to start on a tile boundary (one small copy).
        xp = (jnp.zeros((2 * Bhp, IN_DIM), jnp.float32)
              .at[:Bh].set(x2d[:Bh]).at[Bhp:Bhp + Bh].set(x2d[Bh:]))
        epsp = jnp.pad(eps2d, ((0, 2 * Bhp - B), (0, 0)))

    # 0/1 row-interleave matrices (tiny, tile-size dependent -> built here; constants under jit).
    r = jnp.arange(tb)[:, None]
    c = jnp.arange(th)[None, :]
    p_even = (r == 2 * c).astype(jnp.float32)
    p_odd = (r == 2 * c + 1).astype(jnp.float32)

    recon_p, loc_p, scale_p = _fused_call(
        xp, epsp, p_even, p_odd, params, th=th, n_steps=n_steps, inv_temp=inv_temp)

    rows_out = tb * n_steps
    recon = recon_p if rows_out == B else recon_p[:B]
    loc = (loc_p if rows_out == B else loc_p[:B]).reshape(B, N, K - 1)
    scale = (scale_p if rows_out == B else scale_p[:B]).reshape(B, N, K - 1)
    # TODO(synk): the InvertibleGaussian distribution class is not defined in the reference
    # file; we return its parameters (loc, scale) in place of the q_z object.
    return recon, (loc, scale)


if __name__ == "__main__":
    key = jax.random.PRNGKey(0)
    kp, kx, ke = jax.random.split(key, 3)

    params = init_params(kp)

    B = 512                                                    # 4 grid steps at tb=128
    x = jax.random.uniform(kx, (B, 1, 28, 28), jnp.float32)    # MNIST-like NCHW input
    eps = jax.random.normal(ke, (B, HALF_PAD), jnp.float32)    # packed noise; lanes >=180 ignored

    fwd = jax.jit(vae_forward)
    recon, (loc, scale) = fwd(params, x, eps)
    jax.block_until_ready((recon, loc, scale))

    assert recon.shape == (B, IN_DIM) and recon.dtype == jnp.float32
    assert loc.shape == (B, N, K - 1) and scale.shape == (B, N, K - 1)
    assert bool(jnp.all(jnp.isfinite(recon)))
    assert bool(jnp.all((recon >= 0.0) & (recon <= 1.0)))
    assert bool(jnp.all(scale > 0.0))
    print("KERNEL_OK")
</pallas_src>

<mosaic_0001>
module attributes {stable_mosaic.version = 11 : i64} {
  func.func @_vae_fused_kernel(%arg0: i32, %arg1: memref<64x784xf32, #tpu.memory_space<vmem>>, %arg2: memref<64x784xf32, #tpu.memory_space<vmem>>, %arg3: memref<128x256xf32, #tpu.memory_space<vmem>>, %arg4: memref<784x512xbf16, #tpu.memory_space<vmem>>, %arg5: memref<1x512xf32, #tpu.memory_space<vmem>>, %arg6: memref<512x512xbf16, #tpu.memory_space<vmem>>, %arg7: memref<1x512xf32, #tpu.memory_space<vmem>>, %arg8: memref<128x64xf32, #tpu.memory_space<vmem>>, %arg9: memref<128x64xf32, #tpu.memory_space<vmem>>, %arg10: memref<256x128xbf16, #tpu.memory_space<vmem>>, %arg11: memref<128x256xbf16, #tpu.memory_space<vmem>>, %arg12: memref<256x512xbf16, #tpu.memory_space<vmem>>, %arg13: memref<128x512xbf16, #tpu.memory_space<vmem>>, %arg14: memref<1x512xf32, #tpu.memory_space<vmem>>, %arg15: memref<512x784xbf16, #tpu.memory_space<vmem>>, %arg16: memref<1x784xf32, #tpu.memory_space<vmem>>, %arg17: memref<1x256xf32, #tpu.memory_space<vmem>>, %arg18: memref<1x128xf32, #tpu.memory_space<vmem>>, %arg19: memref<128x784xf32, #tpu.memory_space<vmem>>, %arg20: memref<128x180xf32, #tpu.memory_space<vmem>>, %arg21: memref<128x180xf32, #tpu.memory_space<vmem>>) attributes {dimension_semantics = [#tpu.dimension_semantics<parallel>], iteration_bounds = array<i64: 4>, scalar_prefetch = 0 : i64, scratch_operands = 0 : i64, tpu.core_type = #tpu.core_type<tc>, window_params = [{transform_indices = @transform_0, window_bounds = array<i64: 64, 784>}, {transform_indices = @transform_1, window_bounds = array<i64: 64, 784>}, {transform_indices = @transform_2, window_bounds = array<i64: 128, 256>}, {pipeline_mode = #tpu.pipeline_mode<synchronous>, transform_indices = @transform_3, window_bounds = array<i64: 784, 512>}, {pipeline_mode = #tpu.pipeline_mode<synchronous>, transform_indices = @transform_4, window_bounds = array<i64: 1, 512>}, {pipeline_mode = #tpu.pipeline_mode<synchronous>, transform_indices = @transform_5, window_bounds = array<i64: 512, 512>}, {pipeline_mode = #tpu.pipeline_mode<synchronous>, transform_indices = @transform_6, window_bounds = array<i64: 1, 512>}, {pipeline_mode = #tpu.pipeline_mode<synchronous>, transform_indices = @transform_7, window_bounds = array<i64: 128, 64>}, {pipeline_mode = #tpu.pipeline_mode<synchronous>, transform_indices = @transform_8, window_bounds = array<i64: 128, 64>}, {pipeline_mode = #tpu.pipeline_mode<synchronous>, transform_indices = @transform_9, window_bounds = array<i64: 256, 128>}, {pipeline_mode = #tpu.pipeline_mode<synchronous>, transform_indices = @transform_10, window_bounds = array<i64: 128, 256>}, {pipeline_mode = #tpu.pipeline_mode<synchronous>, transform_indices = @transform_11, window_bounds = array<i64: 256, 512>}, {pipeline_mode = #tpu.pipeline_mode<synchronous>, transform_indices = @transform_12, window_bounds = array<i64: 128, 512>}, {pipeline_mode = #tpu.pipeline_mode<synchronous>, transform_indices = @transform_13, window_bounds = array<i64: 1, 512>}, {pipeline_mode = #tpu.pipeline_mode<synchronous>, transform_indices = @transform_14, window_bounds = array<i64: 512, 784>}, {pipeline_mode = #tpu.pipeline_mode<synchronous>, transform_indices = @transform_15, window_bounds = array<i64: 1, 784>}, {pipeline_mode = #tpu.pipeline_mode<synchronous>, transform_indices = @transform_16, window_bounds = array<i64: 1, 256>}, {pipeline_mode = #tpu.pipeline_mode<synchronous>, transform_indices = @transform_17, window_bounds = array<i64: 1, 128>}, {transform_indices = @transform_18, window_bounds = array<i64: 128, 784>}, {transform_indices = @transform_19, window_bounds = array<i64: 128, 180>}, {transform_indices = @transform_20, window_bounds = array<i64: 128, 180>}]} {
    %c0 = arith.constant 0 : index
    %c0_0 = arith.constant 0 : index
    %0 = vector.load %arg4[%c0, %c0_0] : memref<784x512xbf16, #tpu.memory_space<vmem>>, vector<784x512xbf16>
    %c0_1 = arith.constant 0 : index
    %c0_2 = arith.constant 0 : index
    %1 = vector.load %arg5[%c0_1, %c0_2] : memref<1x512xf32, #tpu.memory_space<vmem>>, vector<1x512xf32>
    %c0_3 = arith.constant 0 : index
    %c0_4 = arith.constant 0 : index
    %2 = vector.load %arg6[%c0_3, %c0_4] : memref<512x512xbf16, #tpu.memory_space<vmem>>, vector<512x512xbf16>
    %c0_5 = arith.constant 0 : index
    %c0_6 = arith.constant 0 : index
    %3 = vector.load %arg7[%c0_5, %c0_6] : memref<1x512xf32, #tpu.memory_space<vmem>>, vector<1x512xf32>
    %c0_7 = arith.constant 0 : index
    %c0_8 = arith.constant 0 : index
    %4 = vector.load %arg1[%c0_7, %c0_8] : memref<64x784xf32, #tpu.memory_space<vmem>>, vector<64x784xf32>
    %5 = arith.truncf %4 : vector<64x784xf32> to vector<64x784xbf16>
    %cst = arith.constant dense<0.000000e+00> : vector<64x512xf32>
    %6 = tpu.matmul %5, %0, %cst {dimension_numbers = #tpu.dot_dimension_numbers<[1], [0], [0], [1], [0, 0, 1, 1], [], []>} : vector<64x784xbf16>, vector<784x512xbf16>, vector<64x512xf32> -> vector<64x512xf32>
    %7 = vector.broadcast %1 : vector<1x512xf32> to vector<64x512xf32>
    %8 = arith.addf %6, %7 : vector<64x512xf32>
    %cst_9 = arith.constant 0.000000e+00 : f32
    %9 = vector.broadcast %cst_9 : f32 to vector<64x512xf32>
    %10 = arith.maximumf %8, %9 : vector<64x512xf32>
    %11 = arith.truncf %10 : vector<64x512xf32> to vector<64x512xbf16>
    %cst_10 = arith.constant dense<0.000000e+00> : vector<64x512xf32>
    %12 = tpu.matmul %11, %2, %cst_10 {dimension_numbers = #tpu.dot_dimension_numbers<[1], [0], [0], [1], [0, 0, 1, 1], [], []>} : vector<64x512xbf16>, vector<512x512xbf16>, vector<64x512xf32> -> vector<64x512xf32>
    %13 = vector.broadcast %3 : vector<1x512xf32> to vector<64x512xf32>
    %14 = arith.addf %12, %13 : vector<64x512xf32>
    %c0_11 = arith.constant 0 : index
    %c0_12 = arith.constant 0 : index
    %15 = vector.load %arg2[%c0_11, %c0_12] : memref<64x784xf32, #tpu.memory_space<vmem>>, vector<64x784xf32>
    %16 = arith.truncf %15 : vector<64x784xf32> to vector<64x784xbf16>
    %cst_13 = arith.constant dense<0.000000e+00> : vector<64x512xf32>
    %17 = tpu.matmul %16, %0, %cst_13 {dimension_numbers = #tpu.dot_dimension_numbers<[1], [0], [0], [1], [0, 0, 1, 1], [], []>} : vector<64x784xbf16>, vector<784x512xbf16>, vector<64x512xf32> -> vector<64x512xf32>
    %18 = vector.broadcast %1 : vector<1x512xf32> to vector<64x512xf32>
    %19 = arith.addf %17, %18 : vector<64x512xf32>
    %cst_14 = arith.constant 0.000000e+00 : f32
    %20 = vector.broadcast %cst_14 : f32 to vector<64x512xf32>
    %21 = arith.maximumf %19, %20 : vector<64x512xf32>
    %22 = arith.truncf %21 : vector<64x512xf32> to vector<64x512xbf16>
    %cst_15 = arith.constant dense<0.000000e+00> : vector<64x512xf32>
    %23 = tpu.matmul %22, %2, %cst_15 {dimension_numbers = #tpu.dot_dimension_numbers<[1], [0], [0], [1], [0, 0, 1, 1], [], []>} : vector<64x512xbf16>, vector<512x512xbf16>, vector<64x512xf32> -> vector<64x512xf32>
    %24 = vector.broadcast %3 : vector<1x512xf32> to vector<64x512xf32>
    %25 = arith.addf %23, %24 : vector<64x512xf32>
    %c0_16 = arith.constant 0 : index
    %c0_17 = arith.constant 0 : index
    %26 = vector.load %arg8[%c0_16, %c0_17] : memref<128x64xf32, #tpu.memory_space<vmem>>, vector<128x64xf32>
    %c0_18 = arith.constant 0 : index
    %c0_19 = arith.constant 0 : index
    %27 = vector.load %arg9[%c0_18, %c0_19] : memref<128x64xf32, #tpu.memory_space<vmem>>, vector<128x64xf32>
    %28 = vector.extract_strided_slice %14 {offsets = [0, 0], sizes = [64, 256], strides = [1, 1]} : vector<64x512xf32> to vector<64x256xf32>
    %cst_20 = arith.constant dense<0.000000e+00> : vector<128x256xf32>
    %29 = tpu.matmul %26, %28, %cst_20 {dimension_numbers = #tpu.dot_dimension_numbers<[1], [0], [0], [1], [0, 0, 1, 1], [], []>} : vector<128x64xf32>, vector<64x256xf32>, vector<128x256xf32> -> vector<128x256xf32>
    %30 = vector.extract_strided_slice %14 {offsets = [0, 256], sizes = [64, 256], strides = [1, 1]} : vector<64x512xf32> to vector<64x256xf32>
    %cst_21 = arith.constant dense<0.000000e+00> : vector<128x256xf32>
    %31 = tpu.matmul %27, %30, %cst_21 {dimension_numbers = #tpu.dot_dimension_numbers<[1], [0], [0], [1], [0, 0, 1, 1], [], []>} : vector<128x64xf32>, vector<64x256xf32>, vector<128x256xf32> -> vector<128x256xf32>
    %32 = arith.addf %29, %31 : vector<128x256xf32>
    %33 = vector.extract_strided_slice %25 {offsets = [0, 0], sizes = [64, 256], strides = [1, 1]} : vector<64x512xf32> to vector<64x256xf32>
    %cst_22 = arith.constant dense<0.000000e+00> : vector<128x256xf32>
    %34 = tpu.matmul %26, %33, %cst_22 {dimension_numbers = #tpu.dot_dimension_numbers<[1], [0], [0], [1], [0, 0, 1, 1], [], []>} : vector<128x64xf32>, vector<64x256xf32>, vector<128x256xf32> -> vector<128x256xf32>
    %35 = vector.extract_strided_slice %25 {offsets = [0, 256], sizes = [64, 256], strides = [1, 1]} : vector<64x512xf32> to vector<64x256xf32>
    %cst_23 = arith.constant dense<0.000000e+00> : vector<128x256xf32>
    %36 = tpu.matmul %27, %35, %cst_23 {dimension_numbers = #tpu.dot_dimension_numbers<[1], [0], [0], [1], [0, 0, 1, 1], [], []>} : vector<128x64xf32>, vector<64x256xf32>, vector<128x256xf32> -> vector<128x256xf32>
    %37 = arith.addf %34, %36 : vector<128x256xf32>
    %38 = math.exp %37 : vector<128x256xf32>
    %39 = vector.extract_strided_slice %32 {offsets = [0, 0], sizes = [128, 180], strides = [1, 1]} : vector<128x256xf32> to vector<128x180xf32>
    %c0_24 = arith.constant 0 : index
    %c0_25 = arith.constant 0 : index
    %40 = vector.load %arg20[%c0_24, %c0_25] : memref<128x180xf32, #tpu.memory_space<vmem>>, vector<128x180xf32>
    tpu.vector_store %arg20[%c0_24, %c0_25], %39 {strides = array<i32>} : memref<128x180xf32, #tpu.memory_space<vmem>>, vector<128x180xf32>,
    %41 = vector.extract_strided_slice %38 {offsets = [0, 0], sizes = [128, 180], strides = [1, 1]} : vector<128x256xf32> to vector<128x180xf32>
    %c0_26 = arith.constant 0 : index
    %c0_27 = arith.constant 0 : index
    %42 = vector.load %arg21[%c0_26, %c0_27] : memref<128x180xf32, #tpu.memory_space<vmem>>, vector<128x180xf32>
    tpu.vector_store %arg21[%c0_26, %c0_27], %41 {strides = array<i32>} : memref<128x180xf32, #tpu.memory_space<vmem>>, vector<128x180xf32>,
    %c0_28 = arith.constant 0 : index
    %c0_29 = arith.constant 0 : index
    %43 = vector.load %arg3[%c0_28, %c0_29] : memref<128x256xf32, #tpu.memory_space<vmem>>, vector<128x256xf32>
    %c0_30 = arith.constant 0 : index
    %c0_31 = arith.constant 0 : index
    %44 = vector.load %arg17[%c0_30, %c0_31] : memref<1x256xf32, #tpu.memory_space<vmem>>, vector<1x256xf32>
    %45 = vector.broadcast %44 : vector<1x256xf32> to vector<128x256xf32>
    %46 = arith.mulf %43, %45 : vector<128x256xf32>
    %47 = arith.mulf %38, %46 : vector<128x256xf32>
    %48 = arith.addf %32, %47 : vector<128x256xf32>
    %cst_32 = arith.constant 1.000000e+00 : f32
    %49 = vector.broadcast %cst_32 : f32 to vector<128x256xf32>
    %50 = arith.mulf %48, %49 : vector<128x256xf32>
    %cst_33 = arith.constant dense<0xFF800000> : vector<128xf32>
    %51 = vector.multi_reduction <maximumf>, %50, %cst_33 [1] : vector<128x256xf32> to vector<128xf32>
    %52 = vector.shape_cast %51 : vector<128xf32> to vector<128x1xf32>
    %cst_34 = arith.constant 0.000000e+00 : f32
    %53 = vector.broadcast %cst_34 : f32 to vector<128x1xf32>
    %54 = arith.maximumf %52, %53 : vector<128x1xf32>
    %55 = vector.broadcast %54 : vector<128x1xf32> to vector<128x256xf32>
    %56 = arith.subf %50, %55 : vector<128x256xf32>
    %57 = math.exp %56 : vector<128x256xf32>
    %cst_35 = arith.constant 0.000000e+00 : f32
    %58 = vector.broadcast %cst_35 : f32 to vector<128x1xf32>
    %59 = arith.subf %58, %54 : vector<128x1xf32>
    %60 = math.exp %59 : vector<128x1xf32>
    %61 = arith.truncf %57 : vector<128x256xf32> to vector<128x256xbf16>
    %c0_36 = arith.constant 0 : index
    %c0_37 = arith.constant 0 : index
    %62 = vector.load %arg10[%c0_36, %c0_37] : memref<256x128xbf16, #tpu.memory_space<vmem>>, vector<256x128xbf16>
    %cst_38 = arith.constant dense<0.000000e+00> : vector<128x128xf32>
    %63 = tpu.matmul %61, %62, %cst_38 {dimension_numbers = #tpu.dot_dimension_numbers<[1], [0], [0], [1], [0, 0, 1, 1], [], []>} : vector<128x256xbf16>, vector<256x128xbf16>, vector<128x128xf32> -> vector<128x128xf32>
    %64 = vector.broadcast %60 : vector<128x1xf32> to vector<128x128xf32>
    %65 = arith.addf %63, %64 : vector<128x128xf32>
    %c0_39 = arith.constant 0 : index
    %c0_40 = arith.constant 0 : index
    %66 = vector.load %arg18[%c0_39, %c0_40] : memref<1x128xf32, #tpu.memory_space<vmem>>, vector<1x128xf32>
    %67 = vector.broadcast %66 : vector<1x128xf32> to vector<128x128xf32>
    %68 = arith.addf %65, %67 : vector<128x128xf32>
    %69 = tpu.reciprocal %68 {approx = true} : vector<128x128xf32> -> vector<128x128xf32>
    %70 = arith.truncf %69 : vector<128x128xf32> to vector<128x128xbf16>
    %c0_41 = arith.constant 0 : index
    %c0_42 = arith.constant 0 : index
    %71 = vector.load %arg11[%c0_41, %c0_42] : memref<128x256xbf16, #tpu.memory_space<vmem>>, vector<128x256xbf16>
    %cst_43 = arith.constant dense<0.000000e+00> : vector<128x256xf32>
    %72 = tpu.matmul %70, %71, %cst_43 {dimension_numbers = #tpu.dot_dimension_numbers<[1], [0], [0], [1], [0, 0, 1, 1], [], []>} : vector<128x128xbf16>, vector<128x256xbf16>, vector<128x256xf32> -> vector<128x256xf32>
    %73 = arith.mulf %57, %72 : vector<128x256xf32>
    %74 = vector.broadcast %60 : vector<128x1xf32> to vector<128x128xf32>
    %75 = arith.mulf %74, %69 : vector<128x128xf32>
    %76 = arith.truncf %73 : vector<128x256xf32> to vector<128x256xbf16>
    %c0_44 = arith.constant 0 : index
    %c0_45 = arith.constant 0 : index
    %77 = vector.load %arg12[%c0_44, %c0_45] : memref<256x512xbf16, #tpu.memory_space<vmem>>, vector<256x512xbf16>
    %cst_46 = arith.constant dense<0.000000e+00> : vector<128x512xf32>
    %78 = tpu.matmul %76, %77, %cst_46 {dimension_numbers = #tpu.dot_dimension_numbers<[1], [0], [0], [1], [0, 0, 1, 1], [], []>} : vector<128x256xbf16>, vector<256x512xbf16>, vector<128x512xf32> -> vector<128x512xf32>
    %79 = arith.truncf %75 : vector<128x128xf32> to vector<128x128xbf16>
    %c0_47 = arith.constant 0 : index
    %c0_48 = arith.constant 0 : index
    %80 = vector.load %arg13[%c0_47, %c0_48] : memref<128x512xbf16, #tpu.memory_space<vmem>>, vector<128x512xbf16>
    %cst_49 = arith.constant dense<0.000000e+00> : vector<128x512xf32>
    %81 = tpu.matmul %79, %80, %cst_49 {dimension_numbers = #tpu.dot_dimension_numbers<[1], [0], [0], [1], [0, 0, 1, 1], [], []>} : vector<128x128xbf16>, vector<128x512xbf16>, vector<128x512xf32> -> vector<128x512xf32>
    %82 = arith.addf %78, %81 : vector<128x512xf32>
    %c0_50 = arith.constant 0 : index
    %c0_51 = arith.constant 0 : index
    %83 = vector.load %arg14[%c0_50, %c0_51] : memref<1x512xf32, #tpu.memory_space<vmem>>, vector<1x512xf32>
    %84 = vector.broadcast %83 : vector<1x512xf32> to vector<128x512xf32>
    %85 = arith.addf %82, %84 : vector<128x512xf32>
    %cst_52 = arith.constant 0.000000e+00 : f32
    %86 = vector.broadcast %cst_52 : f32 to vector<128x512xf32>
    %87 = arith.maximumf %85, %86 : vector<128x512xf32>
    %88 = arith.truncf %87 : vector<128x512xf32> to vector<128x512xbf16>
    %c0_53 = arith.constant 0 : index
    %c0_54 = arith.constant 0 : index
    %89 = vector.load %arg15[%c0_53, %c0_54] : memref<512x784xbf16, #tpu.memory_space<vmem>>, vector<512x784xbf16>
    %cst_55 = arith.constant dense<0.000000e+00> : vector<128x784xf32>
    %90 = tpu.matmul %88, %89, %cst_55 {dimension_numbers = #tpu.dot_dimension_numbers<[1], [0], [0], [1], [0, 0, 1, 1], [], []>} : vector<128x512xbf16>, vector<512x784xbf16>, vector<128x784xf32> -> vector<128x784xf32>
    %c0_56 = arith.constant 0 : index
    %c0_57 = arith.constant 0 : index
    %91 = vector.load %arg16[%c0_56, %c0_57] : memref<1x784xf32, #tpu.memory_space<vmem>>, vector<1x784xf32>
    %92 = vector.broadcast %91 : vector<1x784xf32> to vector<128x784xf32>
    %93 = arith.addf %90, %92 : vector<128x784xf32>
    %cst_58 = arith.constant 5.000000e-01 : f32
    %94 = vector.broadcast %cst_58 : f32 to vector<128x784xf32>
    %95 = arith.mulf %94, %93 : vector<128x784xf32>
    %96 = math.tanh %95 : vector<128x784xf32>
    %cst_59 = arith.constant 5.000000e-01 : f32
    %97 = vector.broadcast %cst_59 : f32 to vector<128x784xf32>
    %98 = arith.mulf %97, %96 : vector<128x784xf32>
    %cst_60 = arith.constant 5.000000e-01 : f32
    %99 = vector.broadcast %cst_60 : f32 to vector<128x784xf32>
    %100 = arith.addf %98, %99 : vector<128x784xf32>
    %c0_61 = arith.constant 0 : index
    %c0_62 = arith.constant 0 : index
    %101 = vector.load %arg19[%c0_61, %c0_62] : memref<128x784xf32, #tpu.memory_space<vmem>>, vector<128x784xf32>
    tpu.vector_store %arg19[%c0_61, %c0_62], %100 {strides = array<i32>} : memref<128x784xf32, #tpu.memory_space<vmem>>, vector<128x784xf32>,
    return
  }
  func.func @transform_0(%arg0: i32) -> (i32, i32) {
    %c0_i32 = arith.constant 0 : i32
    %c0_i32_0 = arith.constant 0 : i32
    return %arg0, %c0_i32 : i32, i32
  }
  func.func @transform_1(%arg0: i32) -> (i32, i32) {
    %c4_i32 = arith.constant 4 : i32
    %0 = arith.addi %arg0, %c4_i32 : i32
    %c0_i32 = arith.constant 0 : i32
    %c0_i32_0 = arith.constant 0 : i32
    return %0, %c0_i32 : i32, i32
  }
  func.func @transform_2(%arg0: i32) -> (i32, i32) {
    %c0_i32 = arith.constant 0 : i32
    %c0_i32_0 = arith.constant 0 : i32
    return %arg0, %c0_i32 : i32, i32
  }
  func.func @transform_3(%arg0: i32) -> (i32, i32) {
    %c0_i32 = arith.constant 0 : i32
    %c0_i32_0 = arith.constant 0 : i32
    %c0_i32_1 = arith.constant 0 : i32
    return %c0_i32, %c0_i32_0 : i32, i32
  }
  func.func @transform_4(%arg0: i32) -> (i32, i32) {
    %c0_i32 = arith.constant 0 : i32
    %c0_i32_0 = arith.constant 0 : i32
    %c0_i32_1 = arith.constant 0 : i32
    return %c0_i32, %c0_i32_0 : i32, i32
  }
  func.func @transform_5(%arg0: i32) -> (i32, i32) {
    %c0_i32 = arith.constant 0 : i32
    %c0_i32_0 = arith.constant 0 : i32
    %c0_i32_1 = arith.constant 0 : i32
    return %c0_i32, %c0_i32_0 : i32, i32
  }
  func.func @transform_6(%arg0: i32) -> (i32, i32) {
    %c0_i32 = arith.constant 0 : i32
    %c0_i32_0 = arith.constant 0 : i32
    %c0_i32_1 = arith.constant 0 : i32
    return %c0_i32, %c0_i32_0 : i32, i32
  }
  func.func @transform_7(%arg0: i32) -> (i32, i32) {
    %c0_i32 = arith.constant 0 : i32
    %c0_i32_0 = arith.constant 0 : i32
    %c0_i32_1 = arith.constant 0 : i32
    return %c0_i32, %c0_i32_0 : i32, i32
  }
  func.func @transform_8(%arg0: i32) -> (i32, i32) {
    %c0_i32 = arith.constant 0 : i32
    %c0_i32_0 = arith.constant 0 : i32
    %c0_i32_1 = arith.constant 0 : i32
    return %c0_i32, %c0_i32_0 : i32, i32
  }
  func.func @transform_9(%arg0: i32) -> (i32, i32) {
    %c0_i32 = arith.constant 0 : i32
    %c0_i32_0 = arith.constant 0 : i32
    %c0_i32_1 = arith.constant 0 : i32
    return %c0_i32, %c0_i32_0 : i32, i32
  }
  func.func @transform_10(%arg0: i32) -> (i32, i32) {
    %c0_i32 = arith.constant 0 : i32
    %c0_i32_0 = arith.constant 0 : i32
    %c0_i32_1 = arith.constant 0 : i32
    return %c0_i32, %c0_i32_0 : i32, i32
  }
  func.func @transform_11(%arg0: i32) -> (i32, i32) {
    %c0_i32 = arith.constant 0 : i32
    %c0_i32_0 = arith.constant 0 : i32
    %c0_i32_1 = arith.constant 0 : i32
    return %c0_i32, %c0_i32_0 : i32, i32
  }
  func.func @transform_12(%arg0: i32) -> (i32, i32) {
    %c0_i32 = arith.constant 0 : i32
    %c0_i32_0 = arith.constant 0 : i32
    %c0_i32_1 = arith.constant 0 : i32
    return %c0_i32, %c0_i32_0 : i32, i32
  }
  func.func @transform_13(%arg0: i32) -> (i32, i32) {
    %c0_i32 = arith.constant 0 : i32
    %c0_i32_0 = arith.constant 0 : i32
    %c0_i32_1 = arith.constant 0 : i32
    return %c0_i32, %c0_i32_0 : i32, i32
  }
  func.func @transform_14(%arg0: i32) -> (i32, i32) {
    %c0_i32 = arith.constant 0 : i32
    %c0_i32_0 = arith.constant 0 : i32
    %c0_i32_1 = arith.constant 0 : i32
    return %c0_i32, %c0_i32_0 : i32, i32
  }
  func.func @transform_15(%arg0: i32) -> (i32, i32) {
    %c0_i32 = arith.constant 0 : i32
    %c0_i32_0 = arith.constant 0 : i32
    %c0_i32_1 = arith.constant 0 : i32
    return %c0_i32, %c0_i32_0 : i32, i32
  }
  func.func @transform_16(%arg0: i32) -> (i32, i32) {
    %c0_i32 = arith.constant 0 : i32
    %c0_i32_0 = arith.constant 0 : i32
    %c0_i32_1 = arith.constant 0 : i32
    return %c0_i32, %c0_i32_0 : i32, i32
  }
  func.func @transform_17(%arg0: i32) -> (i32, i32) {
    %c0_i32 = arith.constant 0 : i32
    %c0_i32_0 = arith.constant 0 : i32
    %c0_i32_1 = arith.constant 0 : i32
    return %c0_i32, %c0_i32_0 : i32, i32
  }
  func.func @transform_18(%arg0: i32) -> (i32, i32) {
    %c0_i32 = arith.constant 0 : i32
    %c0_i32_0 = arith.constant 0 : i32
    return %arg0, %c0_i32 : i32, i32
  }
  func.func @transform_19(%arg0: i32) -> (i32, i32) {
    %c0_i32 = arith.constant 0 : i32
    %c0_i32_0 = arith.constant 0 : i32
    return %arg0, %c0_i32 : i32, i32
  }
  func.func @transform_20(%arg0: i32) -> (i32, i32) {
    %c0_i32 = arith.constant 0 : i32
    %c0_i32_0 = arith.constant 0 : i32
    return %arg0, %c0_i32 : i32, i32
  }
}

</mosaic_0001>

<llo_original>
// kernel: vae_forward.1
$region0: #{vae_forward.1}
  #allocation0 [shape = 'u32[]', space=smem, size = 0x4, offset = 0x4, fixed_abs, tag = 'smem constant byte address 0x4 - core index']
  #allocation1 [shape = 'u32[144,128]{1,0:T(1,128)}', space=vmem, size = 0x12000, scoped, tag = 'internal scratch']
  %s0 = inlined_call_operand.vmem [shape: f32[512,784], index: 0, kind: input, shape index: {}, may-alias: {0,1}]
  %s1 = inlined_call_operand.vmem [shape: f32[512,784], index: 1, kind: input, shape index: {}, may-alias: {0,1}]
  %s2 = inlined_call_operand.vmem [shape: f32[512,256], index: 2, kind: input, shape index: {}]
  %s3 = inlined_call_operand.vmem [shape: bf16[784,512], index: 3, kind: input, shape index: {}]
  %s4 = inlined_call_operand.vmem [shape: f32[1,512], index: 4, kind: input, shape index: {}]
  %s5 = inlined_call_operand.vmem [shape: bf16[512,512], index: 5, kind: input, shape index: {}]
  %s6 = inlined_call_operand.vmem [shape: f32[1,512], index: 6, kind: input, shape index: {}]
  %s7 = inlined_call_operand.vmem [shape: f32[128,64], index: 7, kind: input, shape index: {}]
  %s8 = inlined_call_operand.vmem [shape: f32[128,64], index: 8, kind: input, shape index: {}]
  %s9 = inlined_call_operand.vmem [shape: bf16[256,128], index: 9, kind: input, shape index: {}]
  %s10 = inlined_call_operand.vmem [shape: bf16[128,256], index: 10, kind: input, shape index: {}]
  %s11 = inlined_call_operand.vmem [shape: bf16[256,512], index: 11, kind: input, shape index: {}]
  %s12 = inlined_call_operand.vmem [shape: bf16[128,512], index: 12, kind: input, shape index: {}]
  %s13 = inlined_call_operand.vmem [shape: f32[1,512], index: 13, kind: input, shape index: {}]
  %s14 = inlined_call_operand.vmem [shape: bf16[512,784], index: 14, kind: input, shape index: {}]
  %s15 = inlined_call_operand.vmem [shape: f32[1,784], index: 15, kind: input, shape index: {}]
  %s16 = inlined_call_operand.vmem [shape: f32[1,256], index: 16, kind: input, shape index: {}]
  %s17 = inlined_call_operand.vmem [shape: f32[1,128], index: 17, kind: input, shape index: {}]
  %s18 = inlined_call_operand.vmem [shape: f32[512,784], index: 18, kind: output, shape index: {0}]
  %s19 = inlined_call_operand.vmem [shape: f32[512,180], index: 19, kind: output, shape index: {1}]
  %s20 = inlined_call_operand.vmem [shape: f32[512,180], index: 20, kind: output, shape index: {2}]
  %21 = xla_tuple %s18, %s19, %s20
  %s22 = sld [smem:[#allocation0]]
  $region121: #{vae_forward.1} parent=0
    _
  %s24 = ssub.s32 1, %s22
  %s25 = scalar_select 0, %s24, %s22
  loop: start=0, step=1, limit=6
  $region2: #{vae_forward.1} parent=0 // loop_pre_header
    _
  $region3: #{vae_forward.1} parent=0 // loop_header
    %s27 = sphi 0, %s31
    %p28 = scmp.ge.s32.totalorder %s27, 6
    %s37 = sphi 0, %s39
    %s40 = sphi 0, %s37
    %s41 = sphi 0, %s40
    %s57 = sphi 0, %s41
    %s65 = sphi 0, %s67
    %s68 = sphi 0, %s65
    %s69 = sphi 0, %s68
    %s85 = sphi 0, %s69
    %s91 = sphi 0, %s93
    %s94 = sphi 0, %s91
    %s95 = sphi 0, %s94
    %s111 = sphi 0, %s95
    %s115 = sphi 0, %s115
    %s117 = sphi 0, %s115
    %s118 = sphi 0, %s117
    %s132 = sphi 0, %s118
    %s136 = sphi 0, %s136
    %s138 = sphi 0, %s136
    %s139 = sphi 0, %s138
    %s153 = sphi 0, %s139
    %s157 = sphi 0, %s157
    %s159 = sphi 0, %s157
    %s160 = sphi 0, %s159
    %s174 = sphi 0, %s160
    %s178 = sphi 0, %s178
    %s180 = sphi 0, %s178
    %s181 = sphi 0, %s180
    %s195 = sphi 0, %s181
    %s199 = sphi 0, %s199
    %s201 = sphi 0, %s199
    %s202 = sphi 0, %s201
    %s216 = sphi 0, %s202
    %s220 = sphi 0, %s220
    %s222 = sphi 0, %s220
    %s223 = sphi 0, %s222
    %s237 = sphi 0, %s223
    %s241 = sphi 0, %s241
    %s243 = sphi 0, %s241
    %s244 = sphi 0, %s243
    %s258 = sphi 0, %s244
    %s262 = sphi 0, %s262
    %s264 = sphi 0, %s262
    %s265 = sphi 0, %s264
    %s279 = sphi 0, %s265
    %s283 = sphi 0, %s283
    %s285 = sphi 0, %s283
    %s286 = sphi 0, %s285
    %s300 = sphi 0, %s286
    %s304 = sphi 0, %s304
    %s306 = sphi 0, %s304
    %s307 = sphi 0, %s306
    %s321 = sphi 0, %s307
    %s325 = sphi 0, %s325
    %s327 = sphi 0, %s325
    %s328 = sphi 0, %s327
    %s342 = sphi 0, %s328
    %s346 = sphi 0, %s346
    %s348 = sphi 0, %s346
    %s349 = sphi 0, %s348
    %s363 = sphi 0, %s349
    %s367 = sphi 0, %s367
    %s369 = sphi 0, %s367
    %s370 = sphi 0, %s369
    %s384 = sphi 0, %s370
    %s388 = sphi 0, %s388
    %s390 = sphi 0, %s388
    %s391 = sphi 0, %s390
    %s405 = sphi 0, %s391
    %s409 = sphi 0, %s409
    %s411 = sphi 0, %s409
    %s412 = sphi 0, %s411
    %s426 = sphi 0, %s412
    %s432 = sphi 0, %s434
    %s435 = sphi 0, %s432
    %s436 = sphi 0, %s435
    %s452 = sphi 0, %s436
    %s458 = sphi 0, %s460
    %s461 = sphi 0, %s458
    %s462 = sphi 0, %s461
    %s478 = sphi 0, %s462
    %s484 = sphi 0, %s486
    %s487 = sphi 0, %s484
    %s488 = sphi 0, %s487
    %s504 = sphi 0, %s488
  $region4: #{vae_forward.1} parent=0 // loop_header_branch
    %30 = sbr.rel (%p28) target = $region8
  $region5: #{vae_forward.1} parent=0 // loop_body
    %s32 = ssub.s32 %s27, 1
    %s33 = ssub.s32 %s27, 2
    %s34 = sadd.s32 %s27, 1
    %s35 = ssub.s32 %s27, %s34
    %p36 = scmp.eq.s32.totalorder %s35, 0
    %s38 = sadd.s32 %s37, 1
    %s39 = scalar_select %p36, %s37, %s38
    %p42 = pneg %p36
    %p43 = scmp.eq.s32.totalorder %s27, 3
    %p44 = por %p42, %p43
    %p45 = scmp.ne.s32.totalorder %s37, %s40
    %p46 = scmp.eq.s32.totalorder %s27, 0
    %p47 = por %p45, %p46
    %p48 = scmp.ne.s32.totalorder %s37, %s40
    %p49 = scmp.eq.s32.totalorder %s32, 3
    %p50 = por %p48, %p49
    %p51 = scmp.ne.s32.totalorder %s40, %s41
    %p52 = scmp.eq.s32.totalorder %s32, 0
    %p53 = por %p51, %p52
    %p54 = scmp.ne.s32.totalorder %s40, %s41
    %p55 = scmp.eq.s32.totalorder %s33, 3
    %p56 = por %p54, %p55
    %p58 = scmp.ne.s32.totalorder %s41, %s57
    %p59 = scmp.eq.s32.totalorder %s33, 0
    %p60 = por %p58, %p59
    %s61 = sadd.s32 %s27, 4
    %s62 = sadd.s32 %s34, 4
    %s63 = ssub.s32 %s61, %s62
    %p64 = scmp.eq.s32.totalorder %s63, 0
    %s66 = sadd.s32 %s65, 1
    %s67 = scalar_select %p64, %s65, %s66
    %p70 = pneg %p64
    %p71 = scmp.eq.s32.totalorder %s27, 3
    %p72 = por %p70, %p71
    %p73 = scmp.ne.s32.totalorder %s65, %s68
    %p74 = scmp.eq.s32.totalorder %s27, 0
    %p75 = por %p73, %p74
    %p76 = scmp.ne.s32.totalorder %s65, %s68
    %p77 = scmp.eq.s32.totalorder %s32, 3
    %p78 = por %p76, %p77
    %p79 = scmp.ne.s32.totalorder %s68, %s69
    %p80 = scmp.eq.s32.totalorder %s32, 0
    %p81 = por %p79, %p80
    %p82 = scmp.ne.s32.totalorder %s68, %s69
    %p83 = scmp.eq.s32.totalorder %s33, 3
    %p84 = por %p82, %p83
    %p86 = scmp.ne.s32.totalorder %s69, %s85
    %p87 = scmp.eq.s32.totalorder %s33, 0
    %p88 = por %p86, %p87
    %s89 = ssub.s32 %s27, %s34
    %p90 = scmp.eq.s32.totalorder %s89, 0
    %s92 = sadd.s32 %s91, 1
    %s93 = scalar_select %p90, %s91, %s92
    %p96 = pneg %p90
    %p97 = scmp.eq.s32.totalorder %s27, 3
    %p98 = por %p96, %p97
    %p99 = scmp.ne.s32.totalorder %s91, %s94
    %p100 = scmp.eq.s32.totalorder %s27, 0
    %p101 = por %p99, %p100
    %p102 = scmp.ne.s32.totalorder %s91, %s94
    %p103 = scmp.eq.s32.totalorder %s32, 3
    %p104 = por %p102, %p103
    %p105 = scmp.ne.s32.totalorder %s94, %s95
    %p106 = scmp.eq.s32.totalorder %s32, 0
    %p107 = por %p105, %p106
    %p108 = scmp.ne.s32.totalorder %s94, %s95
    %p109 = scmp.eq.s32.totalorder %s33, 3
    %p110 = por %p108, %p109
    %p112 = scmp.ne.s32.totalorder %s95, %s111
    %p113 = scmp.eq.s32.totalorder %s33, 0
    %p114 = por %p112, %p113
    %s116 = sadd.s32 %s115, 1
    %p119 = scmp.eq.s32.totalorder %s27, 3
    %p120 = scmp.ne.s32.totalorder %s115, %s117
    %p121 = scmp.eq.s32.totalorder %s27, 0
    %p122 = por %p120, %p121
    %p123 = scmp.ne.s32.totalorder %s115, %s117
    %p124 = scmp.eq.s32.totalorder %s32, 3
    %p125 = por %p123, %p124
    %p126 = scmp.ne.s32.totalorder %s117, %s118
    %p127 = scmp.eq.s32.totalorder %s32, 0
    %p128 = por %p126, %p127
    %p129 = scmp.ne.s32.totalorder %s117, %s118
    %p130 = scmp.eq.s32.totalorder %s33, 3
    %p131 = por %p129, %p130
    %p133 = scmp.ne.s32.totalorder %s118, %s132
    %p134 = scmp.eq.s32.totalorder %s33, 0
    %p135 = por %p133, %p134
    %s137 = sadd.s32 %s136, 1
    %p140 = scmp.eq.s32.totalorder %s27, 3
    %p141 = scmp.ne.s32.totalorder %s136, %s138
    %p142 = scmp.eq.s32.totalorder %s27, 0
    %p143 = por %p141, %p142
    %p144 = scmp.ne.s32.totalorder %s136, %s138
    %p145 = scmp.eq.s32.totalorder %s32, 3
    %p146 = por %p144, %p145
    %p147 = scmp.ne.s32.totalorder %s138, %s139
    %p148 = scmp.eq.s32.totalorder %s32, 0
    %p149 = por %p147, %p148
    %p150 = scmp.ne.s32.totalorder %s138, %s139
    %p151 = scmp.eq.s32.totalorder %s33, 3
    %p152 = por %p150, %p151
    %p154 = scmp.ne.s32.totalorder %s139, %s153
    %p155 = scmp.eq.s32.totalorder %s33, 0
    %p156 = por %p154, %p155
    %s158 = sadd.s32 %s157, 1
    %p161 = scmp.eq.s32.totalorder %s27, 3
    %p162 = scmp.ne.s32.totalorder %s157, %s159
    %p163 = scmp.eq.s32.totalorder %s27, 0
    %p164 = por %p162, %p163
    %p165 = scmp.ne.s32.totalorder %s157, %s159
    %p166 = scmp.eq.s32.totalorder %s32, 3
    %p167 = por %p165, %p166
    %p168 = scmp.ne.s32.totalorder %s159, %s160
    %p169 = scmp.eq.s32.totalorder %s32, 0
    %p170 = por %p168, %p169
    %p171 = scmp.ne.s32.totalorder %s159, %s160
    %p172 = scmp.eq.s32.totalorder %s33, 3
    %p173 = por %p171, %p172
    %p175 = scmp.ne.s32.totalorder %s160, %s174
    %p176 = scmp.eq.s32.totalorder %s33, 0
    %p177 = por %p175, %p176
    %s179 = sadd.s32 %s178, 1
    %p182 = scmp.eq.s32.totalorder %s27, 3
    %p183 = scmp.ne.s32.totalorder %s178, %s180
    %p184 = scmp.eq.s32.totalorder %s27, 0
    %p185 = por %p183, %p184
    %p186 = scmp.ne.s32.totalorder %s178, %s180
    %p187 = scmp.eq.s32.totalorder %s32, 3
    %p188 = por %p186, %p187
    %p189 = scmp.ne.s32.totalorder %s180, %s181
    %p190 = scmp.eq.s32.totalorder %s32, 0
    %p191 = por %p189, %p190
    %p192 = scmp.ne.s32.totalorder %s180, %s181
    %p193 = scmp.eq.s32.totalorder %s33, 3
    %p194 = por %p192, %p193
    %p196 = scmp.ne.s32.totalorder %s181, %s195
    %p197 = scmp.eq.s32.totalorder %s33, 0
    %p198 = por %p196, %p197
    %s200 = sadd.s32 %s199, 1
    %p203 = scmp.eq.s32.totalorder %s27, 3
    %p204 = scmp.ne.s32.totalorder %s199, %s201
    %p205 = scmp.eq.s32.totalorder %s27, 0
    %p206 = por %p204, %p205
    %p207 = scmp.ne.s32.totalorder %s199, %s201
    %p208 = scmp.eq.s32.totalorder %s32, 3
    %p209 = por %p207, %p208
    %p210 = scmp.ne.s32.totalorder %s201, %s202
    %p211 = scmp.eq.s32.totalorder %s32, 0
    %p212 = por %p210, %p211
    %p213 = scmp.ne.s32.totalorder %s201, %s202
    %p214 = scmp.eq.s32.totalorder %s33, 3
    %p215 = por %p213, %p214
    %p217 = scmp.ne.s32.totalorder %s202, %s216
    %p218 = scmp.eq.s32.totalorder %s33, 0
    %p219 = por %p217, %p218
    %s221 = sadd.s32 %s220, 1
    %p224 = scmp.eq.s32.totalorder %s27, 3
    %p225 = scmp.ne.s32.totalorder %s220, %s222
    %p226 = scmp.eq.s32.totalorder %s27, 0
    %p227 = por %p225, %p226
    %p228 = scmp.ne.s32.totalorder %s220, %s222
    %p229 = scmp.eq.s32.totalorder %s32, 3
    %p230 = por %p228, %p229
    %p231 = scmp.ne.s32.totalorder %s222, %s223
    %p232 = scmp.eq.s32.totalorder %s32, 0
    %p233 = por %p231, %p232
    %p234 = scmp.ne.s32.totalorder %s222, %s223
    %p235 = scmp.eq.s32.totalorder %s33, 3
    %p236 = por %p234, %p235
    %p238 = scmp.ne.s32.totalorder %s223, %s237
    %p239 = scmp.eq.s32.totalorder %s33, 0
    %p240 = por %p238, %p239
    %s242 = sadd.s32 %s241, 1
    %p245 = scmp.eq.s32.totalorder %s27, 3
    %p246 = scmp.ne.s32.totalorder %s241, %s243
    %p247 = scmp.eq.s32.totalorder %s27, 0
    %p248 = por %p246, %p247
    %p249 = scmp.ne.s32.totalorder %s241, %s243
    %p250 = scmp.eq.s32.totalorder %s32, 3
    %p251 = por %p249, %p250
    %p252 = scmp.ne.s32.totalorder %s243, %s244
    %p253 = scmp.eq.s32.totalorder %s32, 0
    %p254 = por %p252, %p253
    %p255 = scmp.ne.s32.totalorder %s243, %s244
    %p256 = scmp.eq.s32.totalorder %s33, 3
    %p257 = por %p255, %p256
    %p259 = scmp.ne.s32.totalorder %s244, %s258
    %p260 = scmp.eq.s32.totalorder %s33, 0
    %p261 = por %p259, %p260
    %s263 = sadd.s32 %s262, 1
    %p266 = scmp.eq.s32.totalorder %s27, 3
    %p267 = scmp.ne.s32.totalorder %s262, %s264
    %p268 = scmp.eq.s32.totalorder %s27, 0
    %p269 = por %p267, %p268
    %p270 = scmp.ne.s32.totalorder %s262, %s264
    %p271 = scmp.eq.s32.totalorder %s32, 3
    %p272 = por %p270, %p271
    %p273 = scmp.ne.s32.totalorder %s264, %s265
    %p274 = scmp.eq.s32.totalorder %s32, 0
    %p275 = por %p273, %p274
    %p276 = scmp.ne.s32.totalorder %s264, %s265
    %p277 = scmp.eq.s32.totalorder %s33, 3
    %p278 = por %p276, %p277
    %p280 = scmp.ne.s32.totalorder %s265, %s279
    %p281 = scmp.eq.s32.totalorder %s33, 0
    %p282 = por %p280, %p281
    %s284 = sadd.s32 %s283, 1
    %p287 = scmp.eq.s32.totalorder %s27, 3
    %p288 = scmp.ne.s32.totalorder %s283, %s285
    %p289 = scmp.eq.s32.totalorder %s27, 0
    %p290 = por %p288, %p289
    %p291 = scmp.ne.s32.totalorder %s283, %s285
    %p292 = scmp.eq.s32.totalorder %s32, 3
    %p293 = por %p291, %p292
    %p294 = scmp.ne.s32.totalorder %s285, %s286
    %p295 = scmp.eq.s32.totalorder %s32, 0
    %p296 = por %p294, %p295
    %p297 = scmp.ne.s32.totalorder %s285, %s286
    %p298 = scmp.eq.s32.totalorder %s33, 3
    %p299 = por %p297, %p298
    %p301 = scmp.ne.s32.totalorder %s286, %s300
    %p302 = scmp.eq.s32.totalorder %s33, 0
    %p303 = por %p301, %p302
    %s305 = sadd.s32 %s304, 1
    %p308 = scmp.eq.s32.totalorder %s27, 3
    %p309 = scmp.ne.s32.totalorder %s304, %s306
    %p310 = scmp.eq.s32.totalorder %s27, 0
    %p311 = por %p309, %p310
    %p312 = scmp.ne.s32.totalorder %s304, %s306
    %p313 = scmp.eq.s32.totalorder %s32, 3
    %p314 = por %p312, %p313
    %p315 = scmp.ne.s32.totalorder %s306, %s307
    %p316 = scmp.eq.s32.totalorder %s32, 0
    %p317 = por %p315, %p316
    %p318 = scmp.ne.s32.totalorder %s306, %s307
    %p319 = scmp.eq.s32.totalorder %s33, 3
    %p320 = por %p318, %p319
    %p322 = scmp.ne.s32.totalorder %s307, %s321
    %p323 = scmp.eq.s32.totalorder %s33, 0
    %p324 = por %p322, %p323
    %s326 = sadd.s32 %s325, 1
    %p329 = scmp.eq.s32.totalorder %s27, 3
    %p330 = scmp.ne.s32.totalorder %s325, %s327
    %p331 = scmp.eq.s32.totalorder %s27, 0
    %p332 = por %p330, %p331
    %p333 = scmp.ne.s32.totalorder %s325, %s327
    %p334 = scmp.eq.s32.totalorder %s32, 3
    %p335 = por %p333, %p334
    %p336 = scmp.ne.s32.totalorder %s327, %s328
    %p337 = scmp.eq.s32.totalorder %s32, 0
    %p338 = por %p336, %p337
    %p339 = scmp.ne.s32.totalorder %s327, %s328
    %p340 = scmp.eq.s32.totalorder %s33, 3
    %p341 = por %p339, %p340
    %p343 = scmp.ne.s32.totalorder %s328, %s342
    %p344 = scmp.eq.s32.totalorder %s33, 0
    %p345 = por %p343, %p344
    %s347 = sadd.s32 %s346, 1
    %p350 = scmp.eq.s32.totalorder %s27, 3
    %p351 = scmp.ne.s32.totalorder %s346, %s348
    %p352 = scmp.eq.s32.totalorder %s27, 0
    %p353 = por %p351, %p352
    %p354 = scmp.ne.s32.totalorder %s346, %s348
    %p355 = scmp.eq.s32.totalorder %s32, 3
    %p356 = por %p354, %p355
    %p357 = scmp.ne.s32.totalorder %s348, %s349
    %p358 = scmp.eq.s32.totalorder %s32, 0
    %p359 = por %p357, %p358
    %p360 = scmp.ne.s32.totalorder %s348, %s349
    %p361 = scmp.eq.s32.totalorder %s33, 3
    %p362 = por %p360, %p361
    %p364 = scmp.ne.s32.totalorder %s349, %s363
    %p365 = scmp.eq.s32.totalorder %s33, 0
    %p366 = por %p364, %p365
    %s368 = sadd.s32 %s367, 1
    %p371 = scmp.eq.s32.totalorder %s27, 3
    %p372 = scmp.ne.s32.totalorder %s367, %s369
    %p373 = scmp.eq.s32.totalorder %s27, 0
    %p374 = por %p372, %p373
    %p375 = scmp.ne.s32.totalorder %s367, %s369
    %p376 = scmp.eq.s32.totalorder %s32, 3
    %p377 = por %p375, %p376
    %p378 = scmp.ne.s32.totalorder %s369, %s370
    %p379 = scmp.eq.s32.totalorder %s32, 0
    %p380 = por %p378, %p379
    %p381 = scmp.ne.s32.totalorder %s369, %s370
    %p382 = scmp.eq.s32.totalorder %s33, 3
    %p383 = por %p381, %p382
    %p385 = scmp.ne.s32.totalorder %s370, %s384
    %p386 = scmp.eq.s32.totalorder %s33, 0
    %p387 = por %p385, %p386
    %s389 = sadd.s32 %s388, 1
    %p392 = scmp.eq.s32.totalorder %s27, 3
    %p393 = scmp.ne.s32.totalorder %s388, %s390
    %p394 = scmp.eq.s32.totalorder %s27, 0
    %p395 = por %p393, %p394
    %p396 = scmp.ne.s32.totalorder %s388, %s390
    %p397 = scmp.eq.s32.totalorder %s32, 3
    %p398 = por %p396, %p397
    %p399 = scmp.ne.s32.totalorder %s390, %s391
    %p400 = scmp.eq.s32.totalorder %s32, 0
    %p401 = por %p399, %p400
    %p402 = scmp.ne.s32.totalorder %s390, %s391
    %p403 = scmp.eq.s32.totalorder %s33, 3
    %p404 = por %p402, %p403
    %p406 = scmp.ne.s32.totalorder %s391, %s405
    %p407 = scmp.eq.s32.totalorder %s33, 0
    %p408 = por %p406, %p407
    %s410 = sadd.s32 %s409, 1
    %p413 = scmp.eq.s32.totalorder %s27, 3
    %p414 = scmp.ne.s32.totalorder %s409, %s411
    %p415 = scmp.eq.s32.totalorder %s27, 0
    %p416 = por %p414, %p415
    %p417 = scmp.ne.s32.totalorder %s409, %s411
    %p418 = scmp.eq.s32.totalorder %s32, 3
    %p419 = por %p417, %p418
    %p420 = scmp.ne.s32.totalorder %s411, %s412
    %p421 = scmp.eq.s32.totalorder %s32, 0
    %p422 = por %p420, %p421
    %p423 = scmp.ne.s32.totalorder %s411, %s412
    %p424 = scmp.eq.s32.totalorder %s33, 3
    %p425 = por %p423, %p424
    %p427 = scmp.ne.s32.totalorder %s412, %s426
    %p428 = scmp.eq.s32.totalorder %s33, 0
    %p429 = por %p427, %p428
    %s430 = ssub.s32 %s27, %s34
    %p431 = scmp.eq.s32.totalorder %s430, 0
    %s433 = sadd.s32 %s432, 1
    %s434 = scalar_select %p431, %s432, %s433
    %p437 = pneg %p431
    %p438 = scmp.eq.s32.totalorder %s27, 3
    %p439 = por %p437, %p438
    %p440 = scmp.ne.s32.totalorder %s432, %s435
    %p441 = scmp.eq.s32.totalorder %s27, 0
    %p442 = por %p440, %p441
    %p443 = scmp.ne.s32.totalorder %s432, %s435
    %p444 = scmp.eq.s32.totalorder %s32, 3
    %p445 = por %p443, %p444
    %p446 = scmp.ne.s32.totalorder %s435, %s436
    %p447 = scmp.eq.s32.totalorder %s32, 0
    %p448 = por %p446, %p447
    %p449 = scmp.ne.s32.totalorder %s435, %s436
    %p450 = scmp.eq.s32.totalorder %s33, 3
    %p451 = por %p449, %p450
    %p453 = scmp.ne.s32.totalorder %s436, %s452
    %p454 = scmp.eq.s32.totalorder %s33, 0
    %p455 = por %p453, %p454
    %s456 = ssub.s32 %s27, %s34
    %p457 = scmp.eq.s32.totalorder %s456, 0
    %s459 = sadd.s32 %s458, 1
    %s460 = scalar_select %p457, %s458, %s459
    %p463 = pneg %p457
    %p464 = scmp.eq.s32.totalorder %s27, 3
    %p465 = por %p463, %p464
    %p466 = scmp.ne.s32.totalorder %s458, %s461
    %p467 = scmp.eq.s32.totalorder %s27, 0
    %p468 = por %p466, %p467
    %p469 = scmp.ne.s32.totalorder %s458, %s461
    %p470 = scmp.eq.s32.totalorder %s32, 3
    %p471 = por %p469, %p470
    %p472 = scmp.ne.s32.totalorder %s461, %s462
    %p473 = scmp.eq.s32.totalorder %s32, 0
    %p474 = por %p472, %p473
    %p475 = scmp.ne.s32.totalorder %s461, %s462
    %p476 = scmp.eq.s32.totalorder %s33, 3
    %p477 = por %p475, %p476
    %p479 = scmp.ne.s32.totalorder %s462, %s478
    %p480 = scmp.eq.s32.totalorder %s33, 0
    %p481 = por %p479, %p480
    %s482 = ssub.s32 %s27, %s34
    %p483 = scmp.eq.s32.totalorder %s482, 0
    %s485 = sadd.s32 %s484, 1
    %s486 = scalar_select %p483, %s484, %s485
    %p489 = pneg %p483
    %p490 = scmp.eq.s32.totalorder %s27, 3
    %p491 = por %p489, %p490
    %p492 = scmp.ne.s32.totalorder %s484, %s487
    %p493 = scmp.eq.s32.totalorder %s27, 0
    %p494 = por %p492, %p493
    %p495 = scmp.ne.s32.totalorder %s484, %s487
    %p496 = scmp.eq.s32.totalorder %s32, 3
    %p497 = por %p495, %p496
    %p498 = scmp.ne.s32.totalorder %s487, %s488
    %p499 = scmp.eq.s32.totalorder %s32, 0
    %p500 = por %p498, %p499
    %p501 = scmp.ne.s32.totalorder %s487, %s488
    %p502 = scmp.eq.s32.totalorder %s33, 3
    %p503 = por %p501, %p502
    %p505 = scmp.ne.s32.totalorder %s488, %s504
    %p506 = scmp.eq.s32.totalorder %s33, 0
    %p507 = por %p505, %p506
    %p508 = scmp.le.s32.totalorder 1, %s27
    %p509 = scmp.lt.s32.totalorder %s27, 5
    %p510 = pnand %p508, %p509
    %p511 = pneg %p510
    // Predicated region
    $region9: #{vae_forward.1} parent=5 // pred_check
      _
    $region10: #{vae_forward.1} parent=5 // pred_check_branch
      %513 = sbr.rel (%p510) target = $region12
    $region11: #{vae_forward.1} parent=5 // pred_region
      %s514 = ssub.s32 %s27, 1
      // Predicated region
      $region13: #{vae_forward.1} parent=11 // pred_check
        %p515 = pneg %p128
      $region14: #{vae_forward.1} parent=11 // pred_check_branch
        %517 = sbr.rel (%p515) target = $region16
      $region15: #{vae_forward.1} parent=11 // pred_region
        _
      $region16: #{vae_forward.1} parent=11 // pred_fallthru
        _
      // Predicated region
      $region17: #{vae_forward.1} parent=11 // pred_check
        %p518 = pneg %p149
      $region18: #{vae_forward.1} parent=11 // pred_check_branch
        %520 = sbr.rel (%p518) target = $region20
      $region19: #{vae_forward.1} parent=11 // pred_region
        _
      $region20: #{vae_forward.1} parent=11 // pred_fallthru
        _
      // Predicated region
      $region21: #{vae_forward.1} parent=11 // pred_check
        %p521 = pneg %p170
      $region22: #{vae_forward.1} parent=11 // pred_check_branch
        %523 = sbr.rel (%p521) target = $region24
      $region23: #{vae_forward.1} parent=11 // pred_region
        _
      $region24: #{vae_forward.1} parent=11 // pred_fallthru
        _
      // Predicated region
      $region25: #{vae_forward.1} parent=11 // pred_check
        %p524 = pneg %p191
      $region26: #{vae_forward.1} parent=11 // pred_check_branch
        %526 = sbr.rel (%p524) target = $region28
      $region27: #{vae_forward.1} parent=11 // pred_region
        _
      $region28: #{vae_forward.1} parent=11 // pred_fallthru
        _
      // Predicated region
      $region29: #{vae_forward.1} parent=11 // pred_check
        %p527 = pneg %p212
      $region30: #{vae_forward.1} parent=11 // pred_check_branch
        %529 = sbr.rel (%p527) target = $region32
      $region31: #{vae_forward.1} parent=11 // pred_region
        _
      $region32: #{vae_forward.1} parent=11 // pred_fallthru
        _
      // Predicated region
      $region33: #{vae_forward.1} parent=11 // pred_check
        %p530 = pneg %p233
      $region34: #{vae_forward.1} parent=11 // pred_check_branch
        %532 = sbr.rel (%p530) target = $region36
      $region35: #{vae_forward.1} parent=11 // pred_region
        _
      $region36: #{vae_forward.1} parent=11 // pred_fallthru
        _
      // Predicated region
      $region37: #{vae_forward.1} parent=11 // pred_check
        %p533 = pneg %p254
      $region38: #{vae_forward.1} parent=11 // pred_check_branch
        %535 = sbr.rel (%p533) target = $region40
      $region39: #{vae_forward.1} parent=11 // pred_region
        _
      $region40: #{vae_forward.1} parent=11 // pred_fallthru
        _
      // Predicated region
      $region41: #{vae_forward.1} parent=11 // pred_check
        %p536 = pneg %p275
      $region42: #{vae_forward.1} parent=11 // pred_check_branch
        %538 = sbr.rel (%p536) target = $region44
      $region43: #{vae_forward.1} parent=11 // pred_region
        _
      $region44: #{vae_forward.1} parent=11 // pred_fallthru
        _
      // Predicated region
      $region45: #{vae_forward.1} parent=11 // pred_check
        %p539 = pneg %p296
      $region46: #{vae_forward.1} parent=11 // pred_check_branch
        %541 = sbr.rel (%p539) target = $region48
      $region47: #{vae_forward.1} parent=11 // pred_region
        _
      $region48: #{vae_forward.1} parent=11 // pred_fallthru
        _
      // Predicated region
      $region49: #{vae_forward.1} parent=11 // pred_check
        %p542 = pneg %p317
      $region50: #{vae_forward.1} parent=11 // pred_check_branch
        %544 = sbr.rel (%p542) target = $region52
      $region51: #{vae_forward.1} parent=11 // pred_region
        _
      $region52: #{vae_forward.1} parent=11 // pred_fallthru
        _
      // Predicated region
      $region53: #{vae_forward.1} parent=11 // pred_check
        %p545 = pneg %p338
      $region54: #{vae_forward.1} parent=11 // pred_check_branch
        %547 = sbr.rel (%p545) target = $region56
      $region55: #{vae_forward.1} parent=11 // pred_region
        _
      $region56: #{vae_forward.1} parent=11 // pred_fallthru
        _
      // Predicated region
      $region57: #{vae_forward.1} parent=11 // pred_check
        %p548 = pneg %p359
      $region58: #{vae_forward.1} parent=11 // pred_check_branch
        %550 = sbr.rel (%p548) target = $region60
      $region59: #{vae_forward.1} parent=11 // pred_region
        _
      $region60: #{vae_forward.1} parent=11 // pred_fallthru
        _
      // Predicated region
      $region61: #{vae_forward.1} parent=11 // pred_check
        %p551 = pneg %p380
      $region62: #{vae_forward.1} parent=11 // pred_check_branch
        %553 = sbr.rel (%p551) target = $region64
      $region63: #{vae_forward.1} parent=11 // pred_region
        _
      $region64: #{vae_forward.1} parent=11 // pred_fallthru
        _
      // Predicated region
      $region65: #{vae_forward.1} parent=11 // pred_check
        %p554 = pneg %p401
      $region66: #{vae_forward.1} parent=11 // pred_check_branch
        %556 = sbr.rel (%p554) target = $region68
      $region67: #{vae_forward.1} parent=11 // pred_region
        _
      $region68: #{vae_forward.1} parent=11 // pred_fallthru
        _
      // Predicated region
      $region69: #{vae_forward.1} parent=11 // pred_check
        %p557 = pneg %p422
      $region70: #{vae_forward.1} parent=11 // pred_check_branch
        %559 = sbr.rel (%p557) target = $region72
      $region71: #{vae_forward.1} parent=11 // pred_region
        _
      $region72: #{vae_forward.1} parent=11 // pred_fallthru
        _
    $region12: #{vae_forward.1} parent=5 // pred_fallthru
      _
    %p560 = scmp.lt.s32.totalorder %s27, 4
    // Predicated region
    $region73: #{vae_forward.1} parent=5 // pred_check
      %p561 = pneg %p560
    $region74: #{vae_forward.1} parent=5 // pred_check_branch
      %563 = sbr.rel (%p561) target = $region76
    $region75: #{vae_forward.1} parent=5 // pred_region
      // Predicated region
      $region77: #{vae_forward.1} parent=75 // pred_check
        %p564 = pneg %p47
      $region78: #{vae_forward.1} parent=75 // pred_check_branch
        %566 = sbr.rel (%p564) target = $region80
      $region79: #{vae_forward.1} parent=75 // pred_region
        %s567 = smul.u32 8, %s27
        %p568 = scmp.lt.s32.totalorder %s567, 63
        %s569 = scalar_select %p568, %s567, 63
        %s570 = smul.addr %s569, 7
        %s571 = smul.addr %s570, 8
        %s572 = scalar_lea.vmem %s0, %s571
        %s573 = smul.u32 8, %s27
      $region80: #{vae_forward.1} parent=75 // pred_fallthru
        _
      // Predicated region
      $region81: #{vae_forward.1} parent=75 // pred_check
        %p574 = pneg %p75
      $region82: #{vae_forward.1} parent=75 // pred_check_branch
        %576 = sbr.rel (%p574) target = $region84
      $region83: #{vae_forward.1} parent=75 // pred_region
        %s577 = sadd.s32 %s27, 4
        %s578 = smul.u32 8, %s577
        %p579 = scmp.lt.s32.totalorder %s578, 63
        %s580 = scalar_select %p579, %s578, 63
        %s581 = smul.addr %s580, 7
        %s582 = smul.addr %s581, 8
        %s583 = scalar_lea.vmem %s1, %s582
        %s584 = sadd.s32 %s27, 4
        %s585 = smul.u32 8, %s584
      $region84: #{vae_forward.1} parent=75 // pred_fallthru
        _
      // Predicated region
      $region85: #{vae_forward.1} parent=75 // pred_check
        %p586 = pneg %p101
      $region86: #{vae_forward.1} parent=75 // pred_check_branch
        %588 = sbr.rel (%p586) target = $region88
      $region87: #{vae_forward.1} parent=75 // pred_region
        %s589 = smul.u32 16, %s27
        %p590 = scmp.lt.s32.totalorder %s589, 63
        %s591 = scalar_select %p590, %s589, 63
        %s592 = smul.addr %s591, 2
        %s593 = smul.addr %s592, 8
        %s594 = scalar_lea.vmem %s2, %s593
        %s595 = smul.u32 16, %s27
      $region88: #{vae_forward.1} parent=75 // pred_fallthru
        _
    $region76: #{vae_forward.1} parent=5 // pred_fallthru
      _
    %p596 = scmp.le.s32.totalorder 1, %s27
    %p597 = scmp.lt.s32.totalorder %s27, 5
    %p598 = pnand %p596, %p597
    %p599 = pneg %p598
    // Predicated region
    $region89: #{vae_forward.1} parent=5 // pred_check
      _
    $region90: #{vae_forward.1} parent=5 // pred_check_branch
      %601 = sbr.rel (%p598) target = $region92
    $region91: #{vae_forward.1} parent=5 // pred_region
      %s602 = ssub.s32 %s27, 1
      %s603 = smul.u32 8, %s32
      %p604 = scmp.lt.s32.totalorder %s603, 63
      %s605 = scalar_select %p604, %s603, 63
      %s606 = smul.addr %s605, 7
      %s607 = smul.addr %s606, 8
      %s608 = scalar_lea.vmem %s0, %s607
      %p609 = pneg %p53
      %p610 = pneg %p50
      %s611 = sadd.s32 %s32, 4
      %s612 = smul.u32 8, %s611
      %p613 = scmp.lt.s32.totalorder %s612, 63
      %s614 = scalar_select %p613, %s612, 63
      %s615 = smul.addr %s614, 7
      %s616 = smul.addr %s615, 8
      %s617 = scalar_lea.vmem %s1, %s616
      %p618 = pneg %p81
      %p619 = pneg %p78
      %s620 = smul.u32 16, %s32
      %p621 = scmp.lt.s32.totalorder %s620, 63
      %s622 = scalar_select %p621, %s620, 63
      %s623 = smul.addr %s622, 2
      %s624 = smul.addr %s623, 8
      %s625 = scalar_lea.vmem %s2, %s624
      %p626 = pneg %p107
      %p627 = pneg %p104
      %p628 = pneg %p128
      %p629 = pneg %p125
      %p630 = pneg %p149
      %p631 = pneg %p146
      %p632 = pneg %p170
      %p633 = pneg %p167
      %p634 = pneg %p191
      %p635 = pneg %p188
      %p636 = pneg %p212
      %p637 = pneg %p209
      %p638 = pneg %p233
      %p639 = pneg %p230
      %p640 = pneg %p254
      %p641 = pneg %p251
      %p642 = pneg %p275
      %p643 = pneg %p272
      %p644 = pneg %p296
      %p645 = pneg %p293
      %p646 = pneg %p317
      %p647 = pneg %p314
      %p648 = pneg %p338
      %p649 = pneg %p335
      %p650 = pneg %p359
      %p651 = pneg %p356
      %p652 = pneg %p380
      %p653 = pneg %p377
      %p654 = pneg %p401
      %p655 = pneg %p398
      %p656 = pneg %p422
      %p657 = pneg %p419
      %p658 = pneg %p448
      %p659 = pneg %p445
      %s660 = smul.u32 16, %s32
      %p661 = scmp.lt.s32.totalorder %s660, 63
      %s662 = scalar_select %p661, %s660, 63
      %s663 = smul.addr %s662, 7
      %s664 = smul.addr %s663, 8
      %s665 = scalar_lea.vmem %s18, %s664
      %p666 = pneg %p474
      %p667 = pneg %p471
      %s668 = smul.u32 16, %s32
      %p669 = scmp.lt.s32.totalorder %s668, 63
      %s670 = scalar_select %p669, %s668, 63
      %s671 = smul.addr %s670, 2
      %s672 = smul.addr %s671, 8
      %s673 = scalar_lea.vmem %s19, %s672
      %p674 = pneg %p500
      %p675 = pneg %p497
      %s676 = smul.u32 16, %s32
      %p677 = scmp.lt.s32.totalorder %s676, 63
      %s678 = scalar_select %p677, %s676, 63
      %s679 = smul.addr %s678, 2
      %s680 = smul.addr %s679, 8
      %s681 = scalar_lea.vmem %s20, %s680
      %s682 = smul.u32 8, %s32
      %p683 = scmp.lt.s32.totalorder %s682, 63
      %s684 = scalar_select %p683, %s682, 63
      %s685 = smul.addr %s684, 7
      %s686 = smul.addr %s685, 8
      %s687 = scalar_lea.vmem %s0, %s686
      %s688 = smul.u32 8, %s32
      %s689 = sadd.s32 %s32, 4
      %s690 = smul.u32 8, %s689
      %p691 = scmp.lt.s32.totalorder %s690, 63
      %s692 = scalar_select %p691, %s690, 63
      %s693 = smul.addr %s692, 7
      %s694 = smul.addr %s693, 8
      %s695 = scalar_lea.vmem %s1, %s694
      %s696 = sadd.s32 %s32, 4
      %s697 = smul.u32 8, %s696
      %s698 = smul.u32 16, %s32
      %p699 = scmp.lt.s32.totalorder %s698, 63
      %s700 = scalar_select %p699, %s698, 63
      %s701 = smul.addr %s700, 2
      %s702 = smul.addr %s701, 8
      %s703 = scalar_lea.vmem %s2, %s702
      %s704 = smul.u32 16, %s32
      %s705 = smul.u32 16, %s32
      %p706 = scmp.lt.s32.totalorder %s705, 63
      %s707 = scalar_select %p706, %s705, 63
      %s708 = smul.addr %s707, 7
      %s709 = smul.addr %s708, 8
      %s710 = scalar_lea.vmem %s18, %s709
      %s711 = smul.u32 16, %s32
      %s712 = smul.u32 16, %s32
      %p713 = scmp.lt.s32.totalorder %s712, 63
      %s714 = scalar_select %p713, %s712, 63
      %s715 = smul.addr %s714, 2
      %s716 = smul.addr %s715, 8
      %s717 = scalar_lea.vmem %s19, %s716
      %s718 = smul.u32 16, %s32
      %s719 = smul.u32 16, %s32
      %p720 = scmp.lt.s32.totalorder %s719, 63
      %s721 = scalar_select %p720, %s719, 63
      %s722 = smul.addr %s721, 2
      %s723 = smul.addr %s722, 8
      %s724 = scalar_lea.vmem %s20, %s723
      %s725 = smul.u32 16, %s32
      %v727 = vld [vmem:[%s3] sm:$0xff]
      %v728 = vld [vmem:[%s3 + $0x8] sm:$0xff]
      %v729 = vld [vmem:[%s3 + $0x10] sm:$0xff]
      %v730 = vld [vmem:[%s3 + $0x18] sm:$0xff]
      %v731 = vld [vmem:[%s3 + $0x20] sm:$0xff]
      %v732 = vld [vmem:[%s3 + $0x28] sm:$0xff]
      %v733 = vld [vmem:[%s3 + $0x30] sm:$0xff]
      %v734 = vld [vmem:[%s3 + $0x38] sm:$0xff]
      %v735 = vld [vmem:[%s3 + $0x40] sm:$0xff]
      %v736 = vld [vmem:[%s3 + $0x48] sm:$0xff]
      %v737 = vld [vmem:[%s3 + $0x50] sm:$0xff]
      %v738 = vld [vmem:[%s3 + $0x58] sm:$0xff]
      %v739 = vld [vmem:[%s3 + $0x60] sm:$0xff]
      %v740 = vld [vmem:[%s3 + $0x68] sm:$0xff]
      %v741 = vld [vmem:[%s3 + $0x70] sm:$0xff]
      %v742 = vld [vmem:[%s3 + $0x78] sm:$0xff]
      %v743 = vld [vmem:[%s3 + $0x80] sm:$0xff]
      %v744 = vld [vmem:[%s3 + $0x88] sm:$0xff]
      %v745 = vld [vmem:[%s3 + $0x90] sm:$0xff]
      %v746 = vld [vmem:[%s3 + $0x98] sm:$0xff]
      %v747 = vld [vmem:[%s3 + $0xa0] sm:$0xff]
      %v748 = vld [vmem:[%s3 + $0xa8] sm:$0xff]
      %v749 = vld [vmem:[%s3 + $0xb0] sm:$0xff]
      %v750 = vld [vmem:[%s3 + $0xb8] sm:$0xff]
      %v751 = vld [vmem:[%s3 + $0xc0] sm:$0xff]
      %v752 = vld [vmem:[%s3 + $0xc8] sm:$0xff]
      %v753 = vld [vmem:[%s3 + $0xd0] sm:$0xff]
      %v754 = vld [vmem:[%s3 + $0xd8] sm:$0xff]
      %v755 = vld [vmem:[%s3 + $0xe0] sm:$0xff]
      %v756 = vld [vmem:[%s3 + $0xe8] sm:$0xff]
      %v757 = vld [vmem:[%s3 + $0xf0] sm:$0xff]
      %v758 = vld [vmem:[%s3 + $0xf8] sm:$0xff]
      %v759 = vld [vmem:[%s3 + $0x100] sm:$0xff]
      %v760 = vld [vmem:[%s3 + $0x108] sm:$0xff]
      %v761 = vld [vmem:[%s3 + $0x110] sm:$0xff]
      %v762 = vld [vmem:[%s3 + $0x118] sm:$0xff]
      %v763 = vld [vmem:[%s3 + $0x120] sm:$0xff]
      %v764 = vld [vmem:[%s3 + $0x128] sm:$0xff]
      %v765 = vld [vmem:[%s3 + $0x130] sm:$0xff]
      %v766 = vld [vmem:[%s3 + $0x138] sm:$0xff]
      %v767 = vld [vmem:[%s3 + $0x140] sm:$0xff]
      %v768 = vld [vmem:[%s3 + $0x148] sm:$0xff]
      %v769 = vld [vmem:[%s3 + $0x150] sm:$0xff]
      %v770 = vld [vmem:[%s3 + $0x158] sm:$0xff]
      %v771 = vld [vmem:[%s3 + $0x160] sm:$0xff]
      %v772 = vld [vmem:[%s3 + $0x168] sm:$0xff]
      %v773 = vld [vmem:[%s3 + $0x170] sm:$0xff]
      %v774 = vld [vmem:[%s3 + $0x178] sm:$0xff]
      %v775 = vld [vmem:[%s3 + $0x180] sm:$0xff]
      %v776 = vld [vmem:[%s3 + $0x188] sm:$0xff]
      %v777 = vld [vmem:[%s3 + $0x190] sm:$0xff]
      %v778 = vld [vmem:[%s3 + $0x198] sm:$0xff]
      %v779 = vld [vmem:[%s3 + $0x1a0] sm:$0xff]
      %v780 = vld [vmem:[%s3 + $0x1a8] sm:$0xff]
      %v781 = vld [vmem:[%s3 + $0x1b0] sm:$0xff]
      %v782 = vld [vmem:[%s3 + $0x1b8] sm:$0xff]
      %v783 = vld [vmem:[%s3 + $0x1c0] sm:$0xff]
      %v784 = vld [vmem:[%s3 + $0x1c8] sm:$0xff]
      %v785 = vld [vmem:[%s3 + $0x1d0] sm:$0xff]
      %v786 = vld [vmem:[%s3 + $0x1d8] sm:$0xff]
      %v787 = vld [vmem:[%s3 + $0x1e0] sm:$0xff]
      %v788 = vld [vmem:[%s3 + $0x1e8] sm:$0xff]
      %v789 = vld [vmem:[%s3 + $0x1f0] sm:$0xff]
      %v790 = vld [vmem:[%s3 + $0x1f8] sm:$0xff]
      %v791 = vld [vmem:[%s3 + $0x200] sm:$0xff]
      %v792 = vld [vmem:[%s3 + $0x208] sm:$0xff]
      %v793 = vld [vmem:[%s3 + $0x210] sm:$0xff]
      %v794 = vld [vmem:[%s3 + $0x218] sm:$0xff]
      %v795 = vld [vmem:[%s3 + $0x220] sm:$0xff]
      %v796 = vld [vmem:[%s3 + $0x228] sm:$0xff]
      %v797 = vld [vmem:[%s3 + $0x230] sm:$0xff]
      %v798 = vld [vmem:[%s3 + $0x238] sm:$0xff]
      %v799 = vld [vmem:[%s3 + $0x240] sm:$0xff]
      %v800 = vld [vmem:[%s3 + $0x248] sm:$0xff]
      %v801 = vld [vmem:[%s3 + $0x250] sm:$0xff]
      %v802 = vld [vmem:[%s3 + $0x258] sm:$0xff]
      %v803 = vld [vmem:[%s3 + $0x260] sm:$0xff]
      %v804 = vld [vmem:[%s3 + $0x268] sm:$0xff]
      %v805 = vld [vmem:[%s3 + $0x270] sm:$0xff]
      %v806 = vld [vmem:[%s3 + $0x278] sm:$0xff]
      %v807 = vld [vmem:[%s3 + $0x280] sm:$0xff]
      %v808 = vld [vmem:[%s3 + $0x288] sm:$0xff]
      %v809 = vld [vmem:[%s3 + $0x290] sm:$0xff]
      %v810 = vld [vmem:[%s3 + $0x298] sm:$0xff]
      %v811 = vld [vmem:[%s3 + $0x2a0] sm:$0xff]
      %v812 = vld [vmem:[%s3 + $0x2a8] sm:$0xff]
      %v813 = vld [vmem:[%s3 + $0x2b0] sm:$0xff]
      %v814 = vld [vmem:[%s3 + $0x2b8] sm:$0xff]
      %v815 = vld [vmem:[%s3 + $0x2c0] sm:$0xff]
      %v816 = vld [vmem:[%s3 + $0x2c8] sm:$0xff]
      %v817 = vld [vmem:[%s3 + $0x2d0] sm:$0xff]
      %v818 = vld [vmem:[%s3 + $0x2d8] sm:$0xff]
      %v819 = vld [vmem:[%s3 + $0x2e0] sm:$0xff]
      %v820 = vld [vmem:[%s3 + $0x2e8] sm:$0xff]
      %v821 = vld [vmem:[%s3 + $0x2f0] sm:$0xff]
      %v822 = vld [vmem:[%s3 + $0x2f8] sm:$0xff]
      %v823 = vld [vmem:[%s3 + $0x300] sm:$0xff]
      %v824 = vld [vmem:[%s3 + $0x308] sm:$0xff]
      %v825 = vld [vmem:[%s3 + $0x310] sm:$0xff]
      %v826 = vld [vmem:[%s3 + $0x318] sm:$0xff]
      %v827 = vld [vmem:[%s3 + $0x320] sm:$0xff]
      %v828 = vld [vmem:[%s3 + $0x328] sm:$0xff]
      %v829 = vld [vmem:[%s3 + $0x330] sm:$0xff]
      %v830 = vld [vmem:[%s3 + $0x338] sm:$0xff]
      %v831 = vld [vmem:[%s3 + $0x340] sm:$0xff]
      %v832 = vld [vmem:[%s3 + $0x348] sm:$0xff]
      %v833 = vld [vmem:[%s3 + $0x350] sm:$0xff]
      %v834 = vld [vmem:[%s3 + $0x358] sm:$0xff]
      %v835 = vld [vmem:[%s3 + $0x360] sm:$0xff]
      %v836 = vld [vmem:[%s3 + $0x368] sm:$0xff]
      %v837 = vld [vmem:[%s3 + $0x370] sm:$0xff]
      %v838 = vld [vmem:[%s3 + $0x378] sm:$0xff]
      %v839 = vld [vmem:[%s3 + $0x380] sm:$0xff]
      %v840 = vld [vmem:[%s3 + $0x388] sm:$0xff]
      %v841 = vld [vmem:[%s3 + $0x390] sm:$0xff]
      %v842 = vld [vmem:[%s3 + $0x398] sm:$0xff]
      %v843 = vld [vmem:[%s3 + $0x3a0] sm:$0xff]
      %v844 = vld [vmem:[%s3 + $0x3a8] sm:$0xff]
      %v845 = vld [vmem:[%s3 + $0x3b0] sm:$0xff]
      %v846 = vld [vmem:[%s3 + $0x3b8] sm:$0xff]
      %v847 = vld [vmem:[%s3 + $0x3c0] sm:$0xff]
      %v848 = vld [vmem:[%s3 + $0x3c8] sm:$0xff]
      %v849 = vld [vmem:[%s3 + $0x3d0] sm:$0xff]
      %v850 = vld [vmem:[%s3 + $0x3d8] sm:$0xff]
      %v851 = vld [vmem:[%s3 + $0x3e0] sm:$0xff]
      %v852 = vld [vmem:[%s3 + $0x3e8] sm:$0xff]
      %v853 = vld [vmem:[%s3 + $0x3f0] sm:$0xff]
      %v854 = vld [vmem:[%s3 + $0x3f8] sm:$0xff]
      %v855 = vld [vmem:[%s3 + $0x400] sm:$0xff]
      %v856 = vld [vmem:[%s3 + $0x408] sm:$0xff]
      %v857 = vld [vmem:[%s3 + $0x410] sm:$0xff]
      %v858 = vld [vmem:[%s3 + $0x418] sm:$0xff]
      %v859 = vld [vmem:[%s3 + $0x420] sm:$0xff]
      %v860 = vld [vmem:[%s3 + $0x428] sm:$0xff]
      %v861 = vld [vmem:[%s3 + $0x430] sm:$0xff]
      %v862 = vld [vmem:[%s3 + $0x438] sm:$0xff]
      %v863 = vld [vmem:[%s3 + $0x440] sm:$0xff]
      %v864 = vld [vmem:[%s3 + $0x448] sm:$0xff]
      %v865 = vld [vmem:[%s3 + $0x450] sm:$0xff]
      %v866 = vld [vmem:[%s3 + $0x458] sm:$0xff]
      %v867 = vld [vmem:[%s3 + $0x460] sm:$0xff]
      %v868 = vld [vmem:[%s3 + $0x468] sm:$0xff]
      %v869 = vld [vmem:[%s3 + $0x470] sm:$0xff]
      %v870 = vld [vmem:[%s3 + $0x478] sm:$0xff]
      %v871 = vld [vmem:[%s3 + $0x480] sm:$0xff]
      %v872 = vld [vmem:[%s3 + $0x488] sm:$0xff]
      %v873 = vld [vmem:[%s3 + $0x490] sm:$0xff]
      %v874 = vld [vmem:[%s3 + $0x498] sm:$0xff]
      %v875 = vld [vmem:[%s3 + $0x4a0] sm:$0xff]
      %v876 = vld [vmem:[%s3 + $0x4a8] sm:$0xff]
      %v877 = vld [vmem:[%s3 + $0x4b0] sm:$0xff]
      %v878 = vld [vmem:[%s3 + $0x4b8] sm:$0xff]
      %v879 = vld [vmem:[%s3 + $0x4c0] sm:$0xff]
      %v880 = vld [vmem:[%s3 + $0x4c8] sm:$0xff]
      %v881 = vld [vmem:[%s3 + $0x4d0] sm:$0xff]
      %v882 = vld [vmem:[%s3 + $0x4d8] sm:$0xff]
      %v883 = vld [vmem:[%s3 + $0x4e0] sm:$0xff]
      %v884 = vld [vmem:[%s3 + $0x4e8] sm:$0xff]
      %v885 = vld [vmem:[%s3 + $0x4f0] sm:$0xff]
      %v886 = vld [vmem:[%s3 + $0x4f8] sm:$0xff]
      %v887 = vld [vmem:[%s3 + $0x500] sm:$0xff]
      %v888 = vld [vmem:[%s3 + $0x508] sm:$0xff]
      %v889 = vld [vmem:[%s3 + $0x510] sm:$0xff]
      %v890 = vld [vmem:[%s3 + $0x518] sm:$0xff]
      %v891 = vld [vmem:[%s3 + $0x520] sm:$0xff]
      %v892 = vld [vmem:[%s3 + $0x528] sm:$0xff]
      %v893 = vld [vmem:[%s3 + $0x530] sm:$0xff]
      %v894 = vld [vmem:[%s3 + $0x538] sm:$0xff]
      %v895 = vld [vmem:[%s3 + $0x540] sm:$0xff]
      %v896 = vld [vmem:[%s3 + $0x548] sm:$0xff]
      %v897 = vld [vmem:[%s3 + $0x550] sm:$0xff]
      %v898 = vld [vmem:[%s3 + $0x558] sm:$0xff]
      %v899 = vld [vmem:[%s3 + $0x560] sm:$0xff]
      %v900 = vld [vmem:[%s3 + $0x568] sm:$0xff]
      %v901 = vld [vmem:[%s3 + $0x570] sm:$0xff]
      %v902 = vld [vmem:[%s3 + $0x578] sm:$0xff]
      %v903 = vld [vmem:[%s3 + $0x580] sm:$0xff]
      %v904 = vld [vmem:[%s3 + $0x588] sm:$0xff]
      %v905 = vld [vmem:[%s3 + $0x590] sm:$0xff]
      %v906 = vld [vmem:[%s3 + $0x598] sm:$0xff]
      %v907 = vld [vmem:[%s3 + $0x5a0] sm:$0xff]
      %v908 = vld [vmem:[%s3 + $0x5a8] sm:$0xff]
      %v909 = vld [vmem:[%s3 + $0x5b0] sm:$0xff]
      %v910 = vld [vmem:[%s3 + $0x5b8] sm:$0xff]
      %v911 = vld [vmem:[%s3 + $0x5c0] sm:$0xff]
      %v912 = vld [vmem:[%s3 + $0x5c8] sm:$0xff]
      %v913 = vld [vmem:[%s3 + $0x5d0] sm:$0xff]
      %v914 = vld [vmem:[%s3 + $0x5d8] sm:$0xff]
      %v915 = vld [vmem:[%s3 + $0x5e0] sm:$0xff]
      %v916 = vld [vmem:[%s3 + $0x5e8] sm:$0xff]
      %v917 = vld [vmem:[%s3 + $0x5f0] sm:$0xff]
      %v918 = vld [vmem:[%s3 + $0x5f8] sm:$0xff]
      %v919 = vld [vmem:[%s3 + $0x600] sm:$0xff]
      %v920 = vld [vmem:[%s3 + $0x608] sm:$0xff]
      %v921 = vld [vmem:[%s3 + $0x610] sm:$0xff]
      %v922 = vld [vmem:[%s3 + $0x618] sm:$0xff]
      %v923 = vld [vmem:[%s4] sm:$0xf]
      %v924 = vld [vmem:[%s5] sm:$0xff]
      %v925 = vld [vmem:[%s5 + $0x8] sm:$0xff]
      %v926 = vld [vmem:[%s5 + $0x10] sm:$0xff]
      %v927 = vld [vmem:[%s5 + $0x18] sm:$0xff]
      %v928 = vld [vmem:[%s5 + $0x20] sm:$0xff]
      %v929 = vld [vmem:[%s5 + $0x28] sm:$0xff]
      %v930 = vld [vmem:[%s5 + $0x30] sm:$0xff]
      %v931 = vld [vmem:[%s5 + $0x38] sm:$0xff]
      %v932 = vld [vmem:[%s5 + $0x40] sm:$0xff]
      %v933 = vld [vmem:[%s5 + $0x48] sm:$0xff]
      %v934 = vld [vmem:[%s5 + $0x50] sm:$0xff]
      %v935 = vld [vmem:[%s5 + $0x58] sm:$0xff]
      %v936 = vld [vmem:[%s5 + $0x60] sm:$0xff]
      %v937 = vld [vmem:[%s5 + $0x68] sm:$0xff]
      %v938 = vld [vmem:[%s5 + $0x70] sm:$0xff]
      %v939 = vld [vmem:[%s5 + $0x78] sm:$0xff]
      %v940 = vld [vmem:[%s5 + $0x80] sm:$0xff]
      %v941 = vld [vmem:[%s5 + $0x88] sm:$0xff]
      %v942 = vld [vmem:[%s5 + $0x90] sm:$0xff]
      %v943 = vld [vmem:[%s5 + $0x98] sm:$0xff]
      %v944 = vld [vmem:[%s5 + $0xa0] sm:$0xff]
      %v945 = vld [vmem:[%s5 + $0xa8] sm:$0xff]
      %v946 = vld [vmem:[%s5 + $0xb0] sm:$0xff]
      %v947 = vld [vmem:[%s5 + $0xb8] sm:$0xff]
      %v948 = vld [vmem:[%s5 + $0xc0] sm:$0xff]
      %v949 = vld [vmem:[%s5 + $0xc8] sm:$0xff]
      %v950 = vld [vmem:[%s5 + $0xd0] sm:$0xff]
      %v951 = vld [vmem:[%s5 + $0xd8] sm:$0xff]
      %v952 = vld [vmem:[%s5 + $0xe0] sm:$0xff]
      %v953 = vld [vmem:[%s5 + $0xe8] sm:$0xff]
      %v954 = vld [vmem:[%s5 + $0xf0] sm:$0xff]
      %v955 = vld [vmem:[%s5 + $0xf8] sm:$0xff]
      %v956 = vld [vmem:[%s5 + $0x100] sm:$0xff]
      %v957 = vld [vmem:[%s5 + $0x108] sm:$0xff]
      %v958 = vld [vmem:[%s5 + $0x110] sm:$0xff]
      %v959 = vld [vmem:[%s5 + $0x118] sm:$0xff]
      %v960 = vld [vmem:[%s5 + $0x120] sm:$0xff]
      %v961 = vld [vmem:[%s5 + $0x128] sm:$0xff]
      %v962 = vld [vmem:[%s5 + $0x130] sm:$0xff]
      %v963 = vld [vmem:[%s5 + $0x138] sm:$0xff]
      %v964 = vld [vmem:[%s5 + $0x140] sm:$0xff]
      %v965 = vld [vmem:[%s5 + $0x148] sm:$0xff]
      %v966 = vld [vmem:[%s5 + $0x150] sm:$0xff]
      %v967 = vld [vmem:[%s5 + $0x158] sm:$0xff]
      %v968 = vld [vmem:[%s5 + $0x160] sm:$0xff]
      %v969 = vld [vmem:[%s5 + $0x168] sm:$0xff]
      %v970 = vld [vmem:[%s5 + $0x170] sm:$0xff]
      %v971 = vld [vmem:[%s5 + $0x178] sm:$0xff]
      %v972 = vld [vmem:[%s5 + $0x180] sm:$0xff]
      %v973 = vld [vmem:[%s5 + $0x188] sm:$0xff]
      %v974 = vld [vmem:[%s5 + $0x190] sm:$0xff]
      %v975 = vld [vmem:[%s5 + $0x198] sm:$0xff]
      %v976 = vld [vmem:[%s5 + $0x1a0] sm:$0xff]
      %v977 = vld [vmem:[%s5 + $0x1a8] sm:$0xff]
      %v978 = vld [vmem:[%s5 + $0x1b0] sm:$0xff]
      %v979 = vld [vmem:[%s5 + $0x1b8] sm:$0xff]
      %v980 = vld [vmem:[%s5 + $0x1c0] sm:$0xff]
      %v981 = vld [vmem:[%s5 + $0x1c8] sm:$0xff]
      %v982 = vld [vmem:[%s5 + $0x1d0] sm:$0xff]
      %v983 = vld [vmem:[%s5 + $0x1d8] sm:$0xff]
      %v984 = vld [vmem:[%s5 + $0x1e0] sm:$0xff]
      %v985 = vld [vmem:[%s5 + $0x1e8] sm:$0xff]
      %v986 = vld [vmem:[%s5 + $0x1f0] sm:$0xff]
      %v987 = vld [vmem:[%s5 + $0x1f8] sm:$0xff]
      %v988 = vld [vmem:[%s5 + $0x200] sm:$0xff]
      %v989 = vld [vmem:[%s5 + $0x208] sm:$0xff]
      %v990 = vld [vmem:[%s5 + $0x210] sm:$0xff]
      %v991 = vld [vmem:[%s5 + $0x218] sm:$0xff]
      %v992 = vld [vmem:[%s5 + $0x220] sm:$0xff]
      %v993 = vld [vmem:[%s5 + $0x228] sm:$0xff]
      %v994 = vld [vmem:[%s5 + $0x230] sm:$0xff]
      %v995 = vld [vmem:[%s5 + $0x238] sm:$0xff]
      %v996 = vld [vmem:[%s5 + $0x240] sm:$0xff]
      %v997 = vld [vmem:[%s5 + $0x248] sm:$0xff]
      %v998 = vld [vmem:[%s5 + $0x250] sm:$0xff]
      %v999 = vld [vmem:[%s5 + $0x258] sm:$0xff]
      %v1000 = vld [vmem:[%s5 + $0x260] sm:$0xff]
      %v1001 = vld [vmem:[%s5 + $0x268] sm:$0xff]
      %v1002 = vld [vmem:[%s5 + $0x270] sm:$0xff]
      %v1003 = vld [vmem:[%s5 + $0x278] sm:$0xff]
      %v1004 = vld [vmem:[%s5 + $0x280] sm:$0xff]
      %v1005 = vld [vmem:[%s5 + $0x288] sm:$0xff]
      %v1006 = vld [vmem:[%s5 + $0x290] sm:$0xff]
      %v1007 = vld [vmem:[%s5 + $0x298] sm:$0xff]
      %v1008 = vld [vmem:[%s5 + $0x2a0] sm:$0xff]
      %v1009 = vld [vmem:[%s5 + $0x2a8] sm:$0xff]
      %v1010 = vld [vmem:[%s5 + $0x2b0] sm:$0xff]
      %v1011 = vld [vmem:[%s5 + $0x2b8] sm:$0xff]
      %v1012 = vld [vmem:[%s5 + $0x2c0] sm:$0xff]
      %v1013 = vld [vmem:[%s5 + $0x2c8] sm:$0xff]
      %v1014 = vld [vmem:[%s5 + $0x2d0] sm:$0xff]
      %v1015 = vld [vmem:[%s5 + $0x2d8] sm:$0xff]
      %v1016 = vld [vmem:[%s5 + $0x2e0] sm:$0xff]
      %v1017 = vld [vmem:[%s5 + $0x2e8] sm:$0xff]
      %v1018 = vld [vmem:[%s5 + $0x2f0] sm:$0xff]
      %v1019 = vld [vmem:[%s5 + $0x2f8] sm:$0xff]
      %v1020 = vld [vmem:[%s5 + $0x300] sm:$0xff]
      %v1021 = vld [vmem:[%s5 + $0x308] sm:$0xff]
      %v1022 = vld [vmem:[%s5 + $0x310] sm:$0xff]
      %v1023 = vld [vmem:[%s5 + $0x318] sm:$0xff]
      %v1024 = vld [vmem:[%s5 + $0x320] sm:$0xff]
      %v1025 = vld [vmem:[%s5 + $0x328] sm:$0xff]
      %v1026 = vld [vmem:[%s5 + $0x330] sm:$0xff]
      %v1027 = vld [vmem:[%s5 + $0x338] sm:$0xff]
      %v1028 = vld [vmem:[%s5 + $0x340] sm:$0xff]
      %v1029 = vld [vmem:[%s5 + $0x348] sm:$0xff]
      %v1030 = vld [vmem:[%s5 + $0x350] sm:$0xff]
      %v1031 = vld [vmem:[%s5 + $0x358] sm:$0xff]
      %v1032 = vld [vmem:[%s5 + $0x360] sm:$0xff]
      %v1033 = vld [vmem:[%s5 + $0x368] sm:$0xff]
      %v1034 = vld [vmem:[%s5 + $0x370] sm:$0xff]
      %v1035 = vld [vmem:[%s5 + $0x378] sm:$0xff]
      %v1036 = vld [vmem:[%s5 + $0x380] sm:$0xff]
      %v1037 = vld [vmem:[%s5 + $0x388] sm:$0xff]
      %v1038 = vld [vmem:[%s5 + $0x390] sm:$0xff]
      %v1039 = vld [vmem:[%s5 + $0x398] sm:$0xff]
      %v1040 = vld [vmem:[%s5 + $0x3a0] sm:$0xff]
      %v1041 = vld [vmem:[%s5 + $0x3a8] sm:$0xff]
      %v1042 = vld [vmem:[%s5 + $0x3b0] sm:$0xff]
      %v1043 = vld [vmem:[%s5 + $0x3b8] sm:$0xff]
      %v1044 = vld [vmem:[%s5 + $0x3c0] sm:$0xff]
      %v1045 = vld [vmem:[%s5 + $0x3c8] sm:$0xff]
      %v1046 = vld [vmem:[%s5 + $0x3d0] sm:$0xff]
      %v1047 = vld [vmem:[%s5 + $0x3d8] sm:$0xff]
      %v1048 = vld [vmem:[%s5 + $0x3e0] sm:$0xff]
      %v1049 = vld [vmem:[%s5 + $0x3e8] sm:$0xff]
      %v1050 = vld [vmem:[%s5 + $0x3f0] sm:$0xff]
      %v1051 = vld [vmem:[%s5 + $0x3f8] sm:$0xff]
      %v1052 = vld [vmem:[%s6] sm:$0xf]
      %v1053 = vld [vmem:[%s687] sm:$0xff]
      %v1054 = vld [vmem:[%s687 + $0x8] sm:$0xff]
      %v1055 = vld [vmem:[%s687 + $0x10] sm:$0xff]
      %v1056 = vld [vmem:[%s687 + $0x18] sm:$0xff]
      %v1057 = vld [vmem:[%s687 + $0x20] sm:$0xff]
      %v1058 = vld [vmem:[%s687 + $0x28] sm:$0xff]
      %v1059 = vld [vmem:[%s687 + $0x30] sm:$0xff]
      %v1060 = vld [vmem:[%s687 + $0x38] sm:$0xff]
      %v1061 = vld [vmem:[%s687 + $0x40] sm:$0xff]
      %v1062 = vld [vmem:[%s687 + $0x48] sm:$0xff]
      %v1063 = vld [vmem:[%s687 + $0x50] sm:$0xff]
      %v1064 = vld [vmem:[%s687 + $0x58] sm:$0xff]
      %v1065 = vld [vmem:[%s687 + $0x60] sm:$0xff]
      %v1066 = vld [vmem:[%s687 + $0x68] sm:$0xff]
      %v1067 = vld [vmem:[%s687 + $0x70] sm:$0xff]
      %v1068 = vld [vmem:[%s687 + $0x78] sm:$0xff]
      %v1069 = vld [vmem:[%s687 + $0x80] sm:$0xff]
      %v1070 = vld [vmem:[%s687 + $0x88] sm:$0xff]
      %v1071 = vld [vmem:[%s687 + $0x90] sm:$0xff]
      %v1072 = vld [vmem:[%s687 + $0x98] sm:$0xff]
      %v1073 = vld [vmem:[%s687 + $0xa0] sm:$0xff]
      %v1074 = vld [vmem:[%s687 + $0xa8] sm:$0xff]
      %v1075 = vld [vmem:[%s687 + $0xb0] sm:$0xff]
      %v1076 = vld [vmem:[%s687 + $0xb8] sm:$0xff]
      %v1077 = vld [vmem:[%s687 + $0xc0] sm:$0xff]
      %v1078 = vld [vmem:[%s687 + $0xc8] sm:$0xff]
      %v1079 = vld [vmem:[%s687 + $0xd0] sm:$0xff]
      %v1080 = vld [vmem:[%s687 + $0xd8] sm:$0xff]
      %v1081 = vld [vmem:[%s687 + $0xe0] sm:$0xff]
      %v1082 = vld [vmem:[%s687 + $0xe8] sm:$0xff]
      %v1083 = vld [vmem:[%s687 + $0xf0] sm:$0xff]
      %v1084 = vld [vmem:[%s687 + $0xf8] sm:$0xff]
      %v1085 = vld [vmem:[%s687 + $0x100] sm:$0xff]
      %v1086 = vld [vmem:[%s687 + $0x108] sm:$0xff]
      %v1087 = vld [vmem:[%s687 + $0x110] sm:$0xff]
      %v1088 = vld [vmem:[%s687 + $0x118] sm:$0xff]
      %v1089 = vld [vmem:[%s687 + $0x120] sm:$0xff]
      %v1090 = vld [vmem:[%s687 + $0x128] sm:$0xff]
      %v1091 = vld [vmem:[%s687 + $0x130] sm:$0xff]
      %v1092 = vld [vmem:[%s687 + $0x138] sm:$0xff]
      %v1093 = vld [vmem:[%s687 + $0x140] sm:$0xff]
      %v1094 = vld [vmem:[%s687 + $0x148] sm:$0xff]
      %v1095 = vld [vmem:[%s687 + $0x150] sm:$0xff]
      %v1096 = vld [vmem:[%s687 + $0x158] sm:$0xff]
      %v1097 = vld [vmem:[%s687 + $0x160] sm:$0xff]
      %v1098 = vld [vmem:[%s687 + $0x168] sm:$0xff]
      %v1099 = vld [vmem:[%s687 + $0x170] sm:$0xff]
      %v1100 = vld [vmem:[%s687 + $0x178] sm:$0xff]
      %v1101 = vld [vmem:[%s687 + $0x180] sm:$0xff]
      %v1102 = vld [vmem:[%s687 + $0x188] sm:$0xff]
      %v1103 = vld [vmem:[%s687 + $0x190] sm:$0xff]
      %v1104 = vld [vmem:[%s687 + $0x198] sm:$0xff]
      %v1105 = vld [vmem:[%s687 + $0x1a0] sm:$0xff]
      %v1106 = vld [vmem:[%s687 + $0x1a8] sm:$0xff]
      %v1107 = vld [vmem:[%s687 + $0x1b0] sm:$0xff]
      %v1108 = vld [vmem:[%s687 + $0x1b8] sm:$0xff]
      %v1109 = vpack.c.bf16 %v1060, %v1053
      %v1110 = vpack.c.bf16 %v1061, %v1054
      %v1111 = vpack.c.bf16 %v1062, %v1055
      %v1112 = vpack.c.bf16 %v1063, %v1056
      %v1113 = vpack.c.bf16 %v1064, %v1057
      %v1114 = vpack.c.bf16 %v1065, %v1058
      %v1115 = vpack.c.bf16 %v1066, %v1059
      %v1116 = vpack.c.bf16 %v1074, %v1067
      %v1117 = vpack.c.bf16 %v1075, %v1068
      %v1118 = vpack.c.bf16 %v1076, %v1069
      %v1119 = vpack.c.bf16 %v1077, %v1070
      %v1120 = vpack.c.bf16 %v1078, %v1071
      %v1121 = vpack.c.bf16 %v1079, %v1072
      %v1122 = vpack.c.bf16 %v1080, %v1073
      %v1123 = vpack.c.bf16 %v1088, %v1081
      %v1124 = vpack.c.bf16 %v1089, %v1082
      %v1125 = vpack.c.bf16 %v1090, %v1083
      %v1126 = vpack.c.bf16 %v1091, %v1084
      %v1127 = vpack.c.bf16 %v1092, %v1085
      %v1128 = vpack.c.bf16 %v1093, %v1086
      %v1129 = vpack.c.bf16 %v1094, %v1087
      %v1130 = vpack.c.bf16 %v1102, %v1095
      %v1131 = vpack.c.bf16 %v1103, %v1096
      %v1132 = vpack.c.bf16 %v1104, %v1097
      %v1133 = vpack.c.bf16 %v1105, %v1098
      %v1134 = vpack.c.bf16 %v1106, %v1099
      %v1135 = vpack.c.bf16 %v1107, %v1100
      %v1136 = vpack.c.bf16 %v1108, %v1101
      %v1138 = vlaneseq
      %v1139 = vshrl.u32 %v1138, 7
      %v1140 = vsub.s32 0, %v1139
      %v1141 = vrot.slane %v923, %v1140
      %v1142 = vlaneseq
      %v1143 = vshrl.u32 %v1142, 7
      %v1144 = vsub.s32 1, %v1143
      %v1145 = vrot.slane %v923, %v1144
      %v1146 = vlaneseq
      %v1147 = vshrl.u32 %v1146, 7
      %v1148 = vsub.s32 2, %v1147
      %v1149 = vrot.slane %v923, %v1148
      %v1150 = vlaneseq
      %v1151 = vshrl.u32 %v1150, 7
      %v1152 = vsub.s32 3, %v1151
      %v1153 = vrot.slane %v923, %v1152
      %v1354 = vunpack.c.l.b16 %v727
      %v1355 = vunpack.c.h.b16 %v727
      %v1356 = vunpack.c.l.b16 %v728
      %v1357 = vunpack.c.h.b16 %v728
      %v1358 = vunpack.c.l.b16 %v729
      %v1359 = vunpack.c.h.b16 %v729
      %v1360 = vunpack.c.l.b16 %v730
      %v1361 = vunpack.c.h.b16 %v730
      %v1362 = vunpack.c.l.b16 %v731
      %v1363 = vunpack.c.h.b16 %v731
      %v1364 = vunpack.c.l.b16 %v732
      %v1365 = vunpack.c.h.b16 %v732
      %v1366 = vunpack.c.l.b16 %v733
      %v1367 = vunpack.c.h.b16 %v733
      %v1368 = vunpack.c.l.b16 %v734
      %v1369 = vunpack.c.h.b16 %v734
      %v1370 = vunpack.c.l.b16 %v735
      %v1371 = vunpack.c.h.b16 %v735
      %v1372 = vunpack.c.l.b16 %v736
      %v1373 = vunpack.c.h.b16 %v736
      %v1374 = vunpack.c.l.b16 %v737
      %v1375 = vunpack.c.h.b16 %v737
      %v1376 = vunpack.c.l.b16 %v738
      %v1377 = vunpack.c.h.b16 %v738
      %v1378 = vunpack.c.l.b16 %v739
      %v1379 = vunpack.c.h.b16 %v739
      %v1380 = vunpack.c.l.b16 %v740
      %v1381 = vunpack.c.h.b16 %v740
      %v1382 = vunpack.c.l.b16 %v741
      %v1383 = vunpack.c.h.b16 %v741
      %v1384 = vunpack.c.l.b16 %v742
      %v1385 = vunpack.c.h.b16 %v742
      %v1386 = vunpack.c.l.b16 %v743
      %v1387 = vunpack.c.h.b16 %v743
      %v1388 = vunpack.c.l.b16 %v744
      %v1389 = vunpack.c.h.b16 %v744
      %v1390 = vunpack.c.l.b16 %v745
      %v1391 = vunpack.c.h.b16 %v745
      %v1392 = vunpack.c.l.b16 %v746
      %v1393 = vunpack.c.h.b16 %v746
      %v1394 = vunpack.c.l.b16 %v747
      %v1395 = vunpack.c.h.b16 %v747
      %v1396 = vunpack.c.l.b16 %v748
      %v1397 = vunpack.c.h.b16 %v748
      %v1398 = vunpack.c.l.b16 %v749
      %v1399 = vunpack.c.h.b16 %v749
      %v1400 = vunpack.c.l.b16 %v750
      %v1401 = vunpack.c.h.b16 %v750
      %v1402 = vunpack.c.l.b16 %v751
      %v1403 = vunpack.c.h.b16 %v751
      %v1404 = vunpack.c.l.b16 %v752
      %v1405 = vunpack.c.h.b16 %v752
      %v1406 = vunpack.c.l.b16 %v753
      %v1407 = vunpack.c.h.b16 %v753
      %v1408 = vunpack.c.l.b16 %v754
      %v1409 = vunpack.c.h.b16 %v754
      %v1410 = vunpack.c.l.b16 %v755
      %v1411 = vunpack.c.h.b16 %v755
      %v1412 = vunpack.c.l.b16 %v756
      %v1413 = vunpack.c.h.b16 %v756
      %v1414 = vunpack.c.l.b16 %v757
      %v1415 = vunpack.c.h.b16 %v757
      %v1416 = vunpack.c.l.b16 %v758
      %v1417 = vunpack.c.h.b16 %v758
      %v1418 = vunpack.c.l.b16 %v759
      %v1419 = vunpack.c.h.b16 %v759
      %v1420 = vunpack.c.l.b16 %v760
      %v1421 = vunpack.c.h.b16 %v760
      %v1422 = vunpack.c.l.b16 %v761
      %v1423 = vunpack.c.h.b16 %v761
      %v1424 = vunpack.c.l.b16 %v762
      %v1425 = vunpack.c.h.b16 %v762
      %v1426 = vunpack.c.l.b16 %v763
      %v1427 = vunpack.c.h.b16 %v763
      %v1428 = vunpack.c.l.b16 %v764
      %v1429 = vunpack.c.h.b16 %v764
      %v1430 = vunpack.c.l.b16 %v765
      %v1431 = vunpack.c.h.b16 %v765
      %v1432 = vunpack.c.l.b16 %v766
      %v1433 = vunpack.c.h.b16 %v766
      %v1434 = vunpack.c.l.b16 %v767
      %v1435 = vunpack.c.h.b16 %v767
      %v1436 = vunpack.c.l.b16 %v768
      %v1437 = vunpack.c.h.b16 %v768
      %v1438 = vunpack.c.l.b16 %v769
      %v1439 = vunpack.c.h.b16 %v769
      %v1440 = vunpack.c.l.b16 %v770
      %v1441 = vunpack.c.h.b16 %v770
      %v1442 = vunpack.c.l.b16 %v771
      %v1443 = vunpack.c.h.b16 %v771
      %v1444 = vunpack.c.l.b16 %v772
      %v1445 = vunpack.c.h.b16 %v772
      %v1446 = vunpack.c.l.b16 %v773
      %v1447 = vunpack.c.h.b16 %v773
      %v1448 = vunpack.c.l.b16 %v774
      %v1449 = vunpack.c.h.b16 %v774
      %v1450 = vunpack.c.l.b16 %v775
      %v1451 = vunpack.c.h.b16 %v775
      %v1452 = vunpack.c.l.b16 %v776
      %v1453 = vunpack.c.h.b16 %v776
      %v1454 = vunpack.c.l.b16 %v777
      %v1455 = vunpack.c.h.b16 %v777
      %v1456 = vunpack.c.l.b16 %v778
      %v1457 = vunpack.c.h.b16 %v778
      %v1458 = vunpack.c.l.b16 %v779
      %v1459 = vunpack.c.h.b16 %v779
      %v1460 = vunpack.c.l.b16 %v780
      %v1461 = vunpack.c.h.b16 %v780
      %v1462 = vunpack.c.l.b16 %v781
      %v1463 = vunpack.c.h.b16 %v781
      %v1464 = vunpack.c.l.b16 %v782
      %v1465 = vunpack.c.h.b16 %v782
      %v1466 = vunpack.c.l.b16 %v783
      %v1467 = vunpack.c.h.b16 %v783
      %v1468 = vunpack.c.l.b16 %v784
      %v1469 = vunpack.c.h.b16 %v784
      %v1470 = vunpack.c.l.b16 %v785
      %v1471 = vunpack.c.h.b16 %v785
      %v1472 = vunpack.c.l.b16 %v786
      %v1473 = vunpack.c.h.b16 %v786
      %v1474 = vunpack.c.l.b16 %v787
      %v1475 = vunpack.c.h.b16 %v787
      %v1476 = vunpack.c.l.b16 %v788
      %v1477 = vunpack.c.h.b16 %v788
      %v1478 = vunpack.c.l.b16 %v789
      %v1479 = vunpack.c.h.b16 %v789
      %v1480 = vunpack.c.l.b16 %v790
      %v1481 = vunpack.c.h.b16 %v790
      %v1482 = vunpack.c.l.b16 %v791
      %v1483 = vunpack.c.h.b16 %v791
      %v1484 = vunpack.c.l.b16 %v792
      %v1485 = vunpack.c.h.b16 %v792
      %v1486 = vunpack.c.l.b16 %v793
      %v1487 = vunpack.c.h.b16 %v793
      %v1488 = vunpack.c.l.b16 %v794
      %v1489 = vunpack.c.h.b16 %v794
      %v1490 = vunpack.c.l.b16 %v795
      %v1491 = vunpack.c.h.b16 %v795
      %v1492 = vunpack.c.l.b16 %v796
      %v1493 = vunpack.c.h.b16 %v796
      %v1494 = vunpack.c.l.b16 %v797
      %v1495 = vunpack.c.h.b16 %v797
      %v1496 = vunpack.c.l.b16 %v798
      %v1497 = vunpack.c.h.b16 %v798
      %v1498 = vunpack.c.l.b16 %v799
      %v1499 = vunpack.c.h.b16 %v799
      %v1500 = vunpack.c.l.b16 %v800
      %v1501 = vunpack.c.h.b16 %v800
      %v1502 = vunpack.c.l.b16 %v801
      %v1503 = vunpack.c.h.b16 %v801
      %v1504 = vunpack.c.l.b16 %v802
      %v1505 = vunpack.c.h.b16 %v802
      %v1506 = vunpack.c.l.b16 %v803
      %v1507 = vunpack.c.h.b16 %v803
      %v1508 = vunpack.c.l.b16 %v804
      %v1509 = vunpack.c.h.b16 %v804
      %v1510 = vunpack.c.l.b16 %v805
      %v1511 = vunpack.c.h.b16 %v805
      %v1512 = vunpack.c.l.b16 %v806
      %v1513 = vunpack.c.h.b16 %v806
      %v1514 = vunpack.c.l.b16 %v807
      %v1515 = vunpack.c.h.b16 %v807
      %v1516 = vunpack.c.l.b16 %v808
      %v1517 = vunpack.c.h.b16 %v808
      %v1518 = vunpack.c.l.b16 %v809
      %v1519 = vunpack.c.h.b16 %v809
      %v1520 = vunpack.c.l.b16 %v810
      %v1521 = vunpack.c.h.b16 %v810
      %v1522 = vunpack.c.l.b16 %v811
      %v1523 = vunpack.c.h.b16 %v811
      %v1524 = vunpack.c.l.b16 %v812
      %v1525 = vunpack.c.h.b16 %v812
      %v1526 = vunpack.c.l.b16 %v813
      %v1527 = vunpack.c.h.b16 %v813
      %v1528 = vunpack.c.l.b16 %v814
      %v1529 = vunpack.c.h.b16 %v814
      %v1530 = vunpack.c.l.b16 %v815
      %v1531 = vunpack.c.h.b16 %v815
      %v1532 = vunpack.c.l.b16 %v816
      %v1533 = vunpack.c.h.b16 %v816
      %v1534 = vunpack.c.l.b16 %v817
      %v1535 = vunpack.c.h.b16 %v817
      %v1536 = vunpack.c.l.b16 %v818
      %v1537 = vunpack.c.h.b16 %v818
      %v1538 = vunpack.c.l.b16 %v819
      %v1539 = vunpack.c.h.b16 %v819
      %v1540 = vunpack.c.l.b16 %v820
      %v1541 = vunpack.c.h.b16 %v820
      %v1542 = vunpack.c.l.b16 %v821
      %v1543 = vunpack.c.h.b16 %v821
      %v1544 = vunpack.c.l.b16 %v822
      %v1545 = vunpack.c.h.b16 %v822
      %v1546 = vunpack.c.l.b16 %v823
      %v1547 = vunpack.c.h.b16 %v823
      %v1548 = vunpack.c.l.b16 %v824
      %v1549 = vunpack.c.h.b16 %v824
      %v1550 = vunpack.c.l.b16 %v825
      %v1551 = vunpack.c.h.b16 %v825
      %v1552 = vunpack.c.l.b16 %v826
      %v1553 = vunpack.c.h.b16 %v826
      %v1554 = vunpack.c.l.b16 %v827
      %v1555 = vunpack.c.h.b16 %v827
      %v1556 = vunpack.c.l.b16 %v828
      %v1557 = vunpack.c.h.b16 %v828
      %v1558 = vunpack.c.l.b16 %v829
      %v1559 = vunpack.c.h.b16 %v829
      %v1560 = vunpack.c.l.b16 %v830
      %v1561 = vunpack.c.h.b16 %v830
      %v1562 = vunpack.c.l.b16 %v831
      %v1563 = vunpack.c.h.b16 %v831
      %v1564 = vunpack.c.l.b16 %v832
      %v1565 = vunpack.c.h.b16 %v832
      %v1566 = vunpack.c.l.b16 %v833
      %v1567 = vunpack.c.h.b16 %v833
      %v1568 = vunpack.c.l.b16 %v834
      %v1569 = vunpack.c.h.b16 %v834
      %v1570 = vunpack.c.l.b16 %v835
      %v1571 = vunpack.c.h.b16 %v835
      %v1572 = vunpack.c.l.b16 %v836
      %v1573 = vunpack.c.h.b16 %v836
      %v1574 = vunpack.c.l.b16 %v837
      %v1575 = vunpack.c.h.b16 %v837
      %v1576 = vunpack.c.l.b16 %v838
      %v1577 = vunpack.c.h.b16 %v838
      %v1578 = vunpack.c.l.b16 %v839
      %v1579 = vunpack.c.h.b16 %v839
      %v1580 = vunpack.c.l.b16 %v840
      %v1581 = vunpack.c.h.b16 %v840
      %v1582 = vunpack.c.l.b16 %v841
      %v1583 = vunpack.c.h.b16 %v841
      %v1584 = vunpack.c.l.b16 %v842
      %v1585 = vunpack.c.h.b16 %v842
      %v1586 = vunpack.c.l.b16 %v843
      %v1587 = vunpack.c.h.b16 %v843
      %v1588 = vunpack.c.l.b16 %v844
      %v1589 = vunpack.c.h.b16 %v844
      %v1590 = vunpack.c.l.b16 %v845
      %v1591 = vunpack.c.h.b16 %v845
      %v1592 = vunpack.c.l.b16 %v846
      %v1593 = vunpack.c.h.b16 %v846
      %v1594 = vunpack.c.l.b16 %v847
      %v1595 = vunpack.c.h.b16 %v847
      %v1596 = vunpack.c.l.b16 %v848
      %v1597 = vunpack.c.h.b16 %v848
      %v1598 = vunpack.c.l.b16 %v849
      %v1599 = vunpack.c.h.b16 %v849
      %v1600 = vunpack.c.l.b16 %v850
      %v1601 = vunpack.c.h.b16 %v850
      %v1602 = vunpack.c.l.b16 %v851
      %v1603 = vunpack.c.h.b16 %v851
      %v1604 = vunpack.c.l.b16 %v852
      %v1605 = vunpack.c.h.b16 %v852
      %v1606 = vunpack.c.l.b16 %v853
      %v1607 = vunpack.c.h.b16 %v853
      %v1608 = vunpack.c.l.b16 %v854
      %v1609 = vunpack.c.h.b16 %v854
      %v1610 = vunpack.c.l.b16 %v855
      %v1611 = vunpack.c.h.b16 %v855
      %v1612 = vunpack.c.l.b16 %v856
      %v1613 = vunpack.c.h.b16 %v856
      %v1614 = vunpack.c.l.b16 %v857
      %v1615 = vunpack.c.h.b16 %v857
      %v1616 = vunpack.c.l.b16 %v858
      %v1617 = vunpack.c.h.b16 %v858
      %v1618 = vunpack.c.l.b16 %v859
      %v1619 = vunpack.c.h.b16 %v859
      %v1620 = vunpack.c.l.b16 %v860
      %v1621 = vunpack.c.h.b16 %v860
      %v1622 = vunpack.c.l.b16 %v861
      %v1623 = vunpack.c.h.b16 %v861
      %v1624 = vunpack.c.l.b16 %v862
      %v1625 = vunpack.c.h.b16 %v862
      %v1626 = vunpack.c.l.b16 %v863
      %v1627 = vunpack.c.h.b16 %v863
      %v1628 = vunpack.c.l.b16 %v864
      %v1629 = vunpack.c.h.b16 %v864
      %v1630 = vunpack.c.l.b16 %v865
      %v1631 = vunpack.c.h.b16 %v865
      %v1632 = vunpack.c.l.b16 %v866
      %v1633 = vunpack.c.h.b16 %v866
      %v1634 = vunpack.c.l.b16 %v867
      %v1635 = vunpack.c.h.b16 %v867
      %v1636 = vunpack.c.l.b16 %v868
      %v1637 = vunpack.c.h.b16 %v868
      %v1638 = vunpack.c.l.b16 %v869
      %v1639 = vunpack.c.h.b16 %v869
      %v1640 = vunpack.c.l.b16 %v870
      %v1641 = vunpack.c.h.b16 %v870
      %v1642 = vunpack.c.l.b16 %v871
      %v1643 = vunpack.c.h.b16 %v871
      %v1644 = vunpack.c.l.b16 %v872
      %v1645 = vunpack.c.h.b16 %v872
      %v1646 = vunpack.c.l.b16 %v873
      %v1647 = vunpack.c.h.b16 %v873
      %v1648 = vunpack.c.l.b16 %v874
      %v1649 = vunpack.c.h.b16 %v874
      %v1650 = vunpack.c.l.b16 %v875
      %v1651 = vunpack.c.h.b16 %v875
      %v1652 = vunpack.c.l.b16 %v876
      %v1653 = vunpack.c.h.b16 %v876
      %v1654 = vunpack.c.l.b16 %v877
      %v1655 = vunpack.c.h.b16 %v877
      %v1656 = vunpack.c.l.b16 %v878
      %v1657 = vunpack.c.h.b16 %v878
      %v1658 = vunpack.c.l.b16 %v879
      %v1659 = vunpack.c.h.b16 %v879
      %v1660 = vunpack.c.l.b16 %v880
      %v1661 = vunpack.c.h.b16 %v880
      %v1662 = vunpack.c.l.b16 %v881
      %v1663 = vunpack.c.h.b16 %v881
      %v1664 = vunpack.c.l.b16 %v882
      %v1665 = vunpack.c.h.b16 %v882
      %v1666 = vunpack.c.l.b16 %v883
      %v1667 = vunpack.c.h.b16 %v883
      %v1668 = vunpack.c.l.b16 %v884
      %v1669 = vunpack.c.h.b16 %v884
      %v1670 = vunpack.c.l.b16 %v885
      %v1671 = vunpack.c.h.b16 %v885
      %v1672 = vunpack.c.l.b16 %v886
      %v1673 = vunpack.c.h.b16 %v886
      %v1674 = vunpack.c.l.b16 %v887
      %v1675 = vunpack.c.h.b16 %v887
      %v1676 = vunpack.c.l.b16 %v888
      %v1677 = vunpack.c.h.b16 %v888
      %v1678 = vunpack.c.l.b16 %v889
      %v1679 = vunpack.c.h.b16 %v889
      %v1680 = vunpack.c.l.b16 %v890
      %v1681 = vunpack.c.h.b16 %v890
      %v1682 = vunpack.c.l.b16 %v891
      %v1683 = vunpack.c.h.b16 %v891
      %v1684 = vunpack.c.l.b16 %v892
      %v1685 = vunpack.c.h.b16 %v892
      %v1686 = vunpack.c.l.b16 %v893
      %v1687 = vunpack.c.h.b16 %v893
      %v1688 = vunpack.c.l.b16 %v894
      %v1689 = vunpack.c.h.b16 %v894
      %v1690 = vunpack.c.l.b16 %v895
      %v1691 = vunpack.c.h.b16 %v895
      %v1692 = vunpack.c.l.b16 %v896
      %v1693 = vunpack.c.h.b16 %v896
      %v1694 = vunpack.c.l.b16 %v897
      %v1695 = vunpack.c.h.b16 %v897
      %v1696 = vunpack.c.l.b16 %v898
      %v1697 = vunpack.c.h.b16 %v898
      %v1698 = vunpack.c.l.b16 %v899
      %v1699 = vunpack.c.h.b16 %v899
      %v1700 = vunpack.c.l.b16 %v900
      %v1701 = vunpack.c.h.b16 %v900
      %v1702 = vunpack.c.l.b16 %v901
      %v1703 = vunpack.c.h.b16 %v901
      %v1704 = vunpack.c.l.b16 %v902
      %v1705 = vunpack.c.h.b16 %v902
      %v1706 = vunpack.c.l.b16 %v903
      %v1707 = vunpack.c.h.b16 %v903
      %v1708 = vunpack.c.l.b16 %v904
      %v1709 = vunpack.c.h.b16 %v904
      %v1710 = vunpack.c.l.b16 %v905
      %v1711 = vunpack.c.h.b16 %v905
      %v1712 = vunpack.c.l.b16 %v906
      %v1713 = vunpack.c.h.b16 %v906
      %v1714 = vunpack.c.l.b16 %v907
      %v1715 = vunpack.c.h.b16 %v907
      %v1716 = vunpack.c.l.b16 %v908
      %v1717 = vunpack.c.h.b16 %v908
      %v1718 = vunpack.c.l.b16 %v909
      %v1719 = vunpack.c.h.b16 %v909
      %v1720 = vunpack.c.l.b16 %v910
      %v1721 = vunpack.c.h.b16 %v910
      %v1722 = vunpack.c.l.b16 %v911
      %v1723 = vunpack.c.h.b16 %v911
      %v1724 = vunpack.c.l.b16 %v912
      %v1725 = vunpack.c.h.b16 %v912
      %v1726 = vunpack.c.l.b16 %v913
      %v1727 = vunpack.c.h.b16 %v913
      %v1728 = vunpack.c.l.b16 %v914
      %v1729 = vunpack.c.h.b16 %v914
      %v1730 = vunpack.c.l.b16 %v915
      %v1731 = vunpack.c.h.b16 %v915
      %v1732 = vunpack.c.l.b16 %v916
      %v1733 = vunpack.c.h.b16 %v916
      %v1734 = vunpack.c.l.b16 %v917
      %v1735 = vunpack.c.h.b16 %v917
      %v1736 = vunpack.c.l.b16 %v918
      %v1737 = vunpack.c.h.b16 %v918
      %v1738 = vunpack.c.l.b16 %v919
      %v1739 = vunpack.c.h.b16 %v919
      %v1740 = vunpack.c.l.b16 %v920
      %v1741 = vunpack.c.h.b16 %v920
      %v1742 = vunpack.c.l.b16 %v921
      %v1743 = vunpack.c.h.b16 %v921
      %v1744 = vunpack.c.l.b16 %v922
      %v1745 = vunpack.c.h.b16 %v922
      %v1746 = vpack.c.b16 %v1358, %v1354
      %v1747 = vpack.c.b16 %v1359, %v1355
      %v1748 = vpack.c.b16 %v1360, %v1356
      %v1749 = vpack.c.b16 %v1361, %v1357
      %v1750 = vpack.c.b16 %v1366, %v1362
      %v1751 = vpack.c.b16 %v1367, %v1363
      %v1752 = vpack.c.b16 %v1368, %v1364
      %v1753 = vpack.c.b16 %v1369, %v1365
      %v1754 = vpack.c.b16 %v1374, %v1370
      %v1755 = vpack.c.b16 %v1375, %v1371
      %v1756 = vpack.c.b16 %v1376, %v1372
      %v1757 = vpack.c.b16 %v1377, %v1373
      %v1758 = vpack.c.b16 %v1382, %v1378
      %v1759 = vpack.c.b16 %v1383, %v1379
      %v1760 = vpack.c.b16 %v1384, %v1380
      %v1761 = vpack.c.b16 %v1385, %v1381
      %v1762 = vpack.c.b16 %v1390, %v1386
      %v1763 = vpack.c.b16 %v1391, %v1387
      %v1764 = vpack.c.b16 %v1392, %v1388
      %v1765 = vpack.c.b16 %v1393, %v1389
      %v1766 = vpack.c.b16 %v1398, %v1394
      %v1767 = vpack.c.b16 %v1399, %v1395
      %v1768 = vpack.c.b16 %v1400, %v1396
      %v1769 = vpack.c.b16 %v1401, %v1397
      %v1770 = vpack.c.b16 %v1406, %v1402
      %v1771 = vpack.c.b16 %v1407, %v1403
      %v1772 = vpack.c.b16 %v1408, %v1404
      %v1773 = vpack.c.b16 %v1409, %v1405
      %v1774 = vpack.c.b16 %v1414, %v1410
      %v1775 = vpack.c.b16 %v1415, %v1411
      %v1776 = vpack.c.b16 %v1416, %v1412
      %v1777 = vpack.c.b16 %v1417, %v1413
      %v1778 = vpack.c.b16 %v1422, %v1418
      %v1779 = vpack.c.b16 %v1423, %v1419
      %v1780 = vpack.c.b16 %v1424, %v1420
      %v1781 = vpack.c.b16 %v1425, %v1421
      %v1782 = vpack.c.b16 %v1430, %v1426
      %v1783 = vpack.c.b16 %v1431, %v1427
      %v1784 = vpack.c.b16 %v1432, %v1428
      %v1785 = vpack.c.b16 %v1433, %v1429
      %v1786 = vpack.c.b16 %v1438, %v1434
      %v1787 = vpack.c.b16 %v1439, %v1435
      %v1788 = vpack.c.b16 %v1440, %v1436
      %v1789 = vpack.c.b16 %v1441, %v1437
      %v1790 = vpack.c.b16 %v1446, %v1442
      %v1791 = vpack.c.b16 %v1447, %v1443
      %v1792 = vpack.c.b16 %v1448, %v1444
      %v1793 = vpack.c.b16 %v1449, %v1445
      %v1794 = vpack.c.b16 %v1454, %v1450
      %v1795 = vpack.c.b16 %v1455, %v1451
      %v1796 = vpack.c.b16 %v1456, %v1452
      %v1797 = vpack.c.b16 %v1457, %v1453
      %v1798 = vpack.c.b16 %v1462, %v1458
      %v1799 = vpack.c.b16 %v1463, %v1459
      %v1800 = vpack.c.b16 %v1464, %v1460
      %v1801 = vpack.c.b16 %v1465, %v1461
      %v1802 = vpack.c.b16 %v1470, %v1466
      %v1803 = vpack.c.b16 %v1471, %v1467
      %v1804 = vpack.c.b16 %v1472, %v1468
      %v1805 = vpack.c.b16 %v1473, %v1469
      %v1806 = vpack.c.b16 %v1478, %v1474
      %v1807 = vpack.c.b16 %v1479, %v1475
      %v1808 = vpack.c.b16 %v1480, %v1476
      %v1809 = vpack.c.b16 %v1481, %v1477
      %v1810 = vpack.c.b16 %v1486, %v1482
      %v1811 = vpack.c.b16 %v1487, %v1483
      %v1812 = vpack.c.b16 %v1488, %v1484
      %v1813 = vpack.c.b16 %v1489, %v1485
      %v1814 = vpack.c.b16 %v1494, %v1490
      %v1815 = vpack.c.b16 %v1495, %v1491
      %v1816 = vpack.c.b16 %v1496, %v1492
      %v1817 = vpack.c.b16 %v1497, %v1493
      %v1818 = vpack.c.b16 %v1502, %v1498
      %v1819 = vpack.c.b16 %v1503, %v1499
      %v1820 = vpack.c.b16 %v1504, %v1500
      %v1821 = vpack.c.b16 %v1505, %v1501
      %v1822 = vpack.c.b16 %v1510, %v1506
      %v1823 = vpack.c.b16 %v1511, %v1507
      %v1824 = vpack.c.b16 %v1512, %v1508
      %v1825 = vpack.c.b16 %v1513, %v1509
      %v1826 = vpack.c.b16 %v1518, %v1514
      %v1827 = vpack.c.b16 %v1519, %v1515
      %v1828 = vpack.c.b16 %v1520, %v1516
      %v1829 = vpack.c.b16 %v1521, %v1517
      %v1830 = vpack.c.b16 %v1526, %v1522
      %v1831 = vpack.c.b16 %v1527, %v1523
      %v1832 = vpack.c.b16 %v1528, %v1524
      %v1833 = vpack.c.b16 %v1529, %v1525
      %v1834 = vpack.c.b16 %v1534, %v1530
      %v1835 = vpack.c.b16 %v1535, %v1531
      %v1836 = vpack.c.b16 %v1536, %v1532
      %v1837 = vpack.c.b16 %v1537, %v1533
      %v1838 = vpack.c.b16 %v1542, %v1538
      %v1839 = vpack.c.b16 %v1543, %v1539
      %v1840 = vpack.c.b16 %v1544, %v1540
      %v1841 = vpack.c.b16 %v1545, %v1541
      %v1842 = vpack.c.b16 %v1550, %v1546
      %v1843 = vpack.c.b16 %v1551, %v1547
      %v1844 = vpack.c.b16 %v1552, %v1548
      %v1845 = vpack.c.b16 %v1553, %v1549
      %v1846 = vpack.c.b16 %v1558, %v1554
      %v1847 = vpack.c.b16 %v1559, %v1555
      %v1848 = vpack.c.b16 %v1560, %v1556
      %v1849 = vpack.c.b16 %v1561, %v1557
      %v1850 = vpack.c.b16 %v1566, %v1562
      %v1851 = vpack.c.b16 %v1567, %v1563
      %v1852 = vpack.c.b16 %v1568, %v1564
      %v1853 = vpack.c.b16 %v1569, %v1565
      %v1854 = vpack.c.b16 %v1574, %v1570
      %v1855 = vpack.c.b16 %v1575, %v1571
      %v1856 = vpack.c.b16 %v1576, %v1572
      %v1857 = vpack.c.b16 %v1577, %v1573
      %v1858 = vpack.c.b16 %v1582, %v1578
      %v1859 = vpack.c.b16 %v1583, %v1579
      %v1860 = vpack.c.b16 %v1584, %v1580
      %v1861 = vpack.c.b16 %v1585, %v1581
      %v1862 = vpack.c.b16 %v1590, %v1586
      %v1863 = vpack.c.b16 %v1591, %v1587
      %v1864 = vpack.c.b16 %v1592, %v1588
      %v1865 = vpack.c.b16 %v1593, %v1589
      %v1866 = vpack.c.b16 %v1598, %v1594
      %v1867 = vpack.c.b16 %v1599, %v1595
      %v1868 = vpack.c.b16 %v1600, %v1596
      %v1869 = vpack.c.b16 %v1601, %v1597
      %v1870 = vpack.c.b16 %v1606, %v1602
      %v1871 = vpack.c.b16 %v1607, %v1603
      %v1872 = vpack.c.b16 %v1608, %v1604
      %v1873 = vpack.c.b16 %v1609, %v1605
      %v1874 = vpack.c.b16 %v1614, %v1610
      %v1875 = vpack.c.b16 %v1615, %v1611
      %v1876 = vpack.c.b16 %v1616, %v1612
      %v1877 = vpack.c.b16 %v1617, %v1613
      %v1878 = vpack.c.b16 %v1622, %v1618
      %v1879 = vpack.c.b16 %v1623, %v1619
      %v1880 = vpack.c.b16 %v1624, %v1620
      %v1881 = vpack.c.b16 %v1625, %v1621
      %v1882 = vpack.c.b16 %v1630, %v1626
      %v1883 = vpack.c.b16 %v1631, %v1627
      %v1884 = vpack.c.b16 %v1632, %v1628
      %v1885 = vpack.c.b16 %v1633, %v1629
      %v1886 = vpack.c.b16 %v1638, %v1634
      %v1887 = vpack.c.b16 %v1639, %v1635
      %v1888 = vpack.c.b16 %v1640, %v1636
      %v1889 = vpack.c.b16 %v1641, %v1637
      %v1890 = vpack.c.b16 %v1646, %v1642
      %v1891 = vpack.c.b16 %v1647, %v1643
      %v1892 = vpack.c.b16 %v1648, %v1644
      %v1893 = vpack.c.b16 %v1649, %v1645
      %v1894 = vpack.c.b16 %v1654, %v1650
      %v1895 = vpack.c.b16 %v1655, %v1651
      %v1896 = vpack.c.b16 %v1656, %v1652
      %v1897 = vpack.c.b16 %v1657, %v1653
      %v1898 = vpack.c.b16 %v1662, %v1658
      %v1899 = vpack.c.b16 %v1663, %v1659
      %v1900 = vpack.c.b16 %v1664, %v1660
      %v1901 = vpack.c.b16 %v1665, %v1661
      %v1902 = vpack.c.b16 %v1670, %v1666
      %v1903 = vpack.c.b16 %v1671, %v1667
      %v1904 = vpack.c.b16 %v1672, %v1668
      %v1905 = vpack.c.b16 %v1673, %v1669
      %v1906 = vpack.c.b16 %v1678, %v1674
      %v1907 = vpack.c.b16 %v1679, %v1675
      %v1908 = vpack.c.b16 %v1680, %v1676
      %v1909 = vpack.c.b16 %v1681, %v1677
      %v1910 = vpack.c.b16 %v1686, %v1682
      %v1911 = vpack.c.b16 %v1687, %v1683
      %v1912 = vpack.c.b16 %v1688, %v1684
      %v1913 = vpack.c.b16 %v1689, %v1685
      %v1914 = vpack.c.b16 %v1694, %v1690
      %v1915 = vpack.c.b16 %v1695, %v1691
      %v1916 = vpack.c.b16 %v1696, %v1692
      %v1917 = vpack.c.b16 %v1697, %v1693
      %v1918 = vpack.c.b16 %v1702, %v1698
      %v1919 = vpack.c.b16 %v1703, %v1699
      %v1920 = vpack.c.b16 %v1704, %v1700
      %v1921 = vpack.c.b16 %v1705, %v1701
      %v1922 = vpack.c.b16 %v1710, %v1706
      %v1923 = vpack.c.b16 %v1711, %v1707
      %v1924 = vpack.c.b16 %v1712, %v1708
      %v1925 = vpack.c.b16 %v1713, %v1709
      %v1926 = vpack.c.b16 %v1718, %v1714
      %v1927 = vpack.c.b16 %v1719, %v1715
      %v1928 = vpack.c.b16 %v1720, %v1716
      %v1929 = vpack.c.b16 %v1721, %v1717
      %v1930 = vpack.c.b16 %v1726, %v1722
      %v1931 = vpack.c.b16 %v1727, %v1723
      %v1932 = vpack.c.b16 %v1728, %v1724
      %v1933 = vpack.c.b16 %v1729, %v1725
      %v1934 = vpack.c.b16 %v1734, %v1730
      %v1935 = vpack.c.b16 %v1735, %v1731
      %v1936 = vpack.c.b16 %v1736, %v1732
      %v1937 = vpack.c.b16 %v1737, %v1733
      %v1938 = vpack.c.b16 %v1742, %v1738
      %v1939 = vpack.c.b16 %v1743, %v1739
      %v1940 = vpack.c.b16 %v1744, %v1740
      %v1941 = vpack.c.b16 %v1745, %v1741
      %vm2138 = vcmask 130048
      %v2140 = vsel %vm2138, %v1115, 0
      %v2143 = vsel %vm2138, %v1122, 0
      %v2146 = vsel %vm2138, %v1129, 0
      %v2149 = vsel %vm2138, %v1136, 0
      %2151 = vmatprep.subr.bf16.mxu0 %v1747
      %2152 = vmatpush1.bf16.msra.mxu0 %v1746
      %2153 = vmatprep.subr.bf16.mxu0 %v1751
      %2154 = vmatpush1.bf16.msra.mxu0 %v1750
      %2155 = vmatprep.subr.bf16.mxu0 %v1755
      %2156 = vmatpush1.bf16.msra.mxu0 %v1754
      %2157 = vmatprep.subr.bf16.mxu0 %v1759
      %2158 = vmatpush1.bf16.msra.mxu0 %v1758
      %2159 = vmatprep.subr.bf16.mxu0 %v1763
      %2160 = vmatpush1.bf16.msra.mxu0 %v1762
      %2161 = vmatprep.subr.bf16.mxu0 %v1767
      %2162 = vmatpush1.bf16.msra.mxu0 %v1766
      %2163 = vmatprep.subr.bf16.mxu0 %v1771
      %2164 = vmatpush1.bf16.msra.mxu0 %v1770
      %2165 = vmatprep.subr.bf16.mxu0 %v1775
      %2166 = vmatpush1.bf16.msra.mxu0 %v1774
      %2167 = vmatprep.subr.bf16.mxu0 %v1779
      %2168 = vmatpush1.bf16.msra.mxu0 %v1778
      %2169 = vmatprep.subr.bf16.mxu0 %v1783
      %2170 = vmatpush1.bf16.msra.mxu0 %v1782
      %2171 = vmatprep.subr.bf16.mxu0 %v1787
      %2172 = vmatpush1.bf16.msra.mxu0 %v1786
      %2173 = vmatprep.subr.bf16.mxu0 %v1791
      %2174 = vmatpush1.bf16.msra.mxu0 %v1790
      %2175 = vmatprep.subr.bf16.mxu0 %v1795
      %2176 = vmatpush1.bf16.msra.mxu0 %v1794
      %2177 = vmatprep.subr.bf16.mxu0 %v1799
      %2178 = vmatpush1.bf16.msra.mxu0 %v1798
      %2179 = vmatprep.subr.bf16.mxu0 %v1803
      %2180 = vmatpush1.bf16.msra.mxu0 %v1802
      %2181 = vmatprep.subr.bf16.mxu0 %v1807
      %2182 = vmatpush1.bf16.msra.mxu0 %v1806
      %2183 = vmatprep.mubr.bf16.mxu0 %v1110
      %2184 = vmatmul.mubr.bf16.gmra.mrb[0].mxu0 %v1109
      %v2185 = vpop.f32.mrb[0].mxu0
      %v2186 = vadd.f32 %v1141, %v2185
      %v2187 = vpop.f32.mrb[0].mxu0
      %v2188 = vadd.f32 %v1145, %v2187
      %v2189 = vpop.f32.mrb[0].mxu0
      %v2190 = vadd.f32 %v1141, %v2189
      %v2191 = vpop.f32.mrb[0].mxu0
      %v2192 = vadd.f32 %v1145, %v2191
      %2193 = vmatprep.mubr.bf16.mxu0 %v1117
      %2194 = vmatmul.mubr.bf16.gmra.mrb[0].mxu0 %v1116
      %v2195 = vpop.f32.mrb[0].mxu0
      %v2196 = vadd.f32 %v1141, %v2195
      %v2197 = vpop.f32.mrb[0].mxu0
      %v2198 = vadd.f32 %v1145, %v2197
      %v2199 = vpop.f32.mrb[0].mxu0
      %v2200 = vadd.f32 %v1141, %v2199
      %v2201 = vpop.f32.mrb[0].mxu0
      %v2202 = vadd.f32 %v1145, %v2201
      %2203 = vmatprep.mubr.bf16.mxu0 %v1124
      %2204 = vmatmul.mubr.bf16.gmra.mrb[0].mxu0 %v1123
      %v2205 = vpop.f32.mrb[0].mxu0
      %v2206 = vadd.f32 %v1141, %v2205
      %v2207 = vpop.f32.mrb[0].mxu0
      %v2208 = vadd.f32 %v1145, %v2207
      %v2209 = vpop.f32.mrb[0].mxu0
      %v2210 = vadd.f32 %v1141, %v2209
      %v2211 = vpop.f32.mrb[0].mxu0
      %v2212 = vadd.f32 %v1145, %v2211
      %2213 = vmatprep.mubr.bf16.mxu0 %v1131
      %2214 = vmatmul.mubr.bf16.gmra.mrb[0].mxu0 %v1130
      %v2215 = vpop.f32.mrb[0].mxu0
      %v2216 = vadd.f32 %v1141, %v2215
      %v2217 = vpop.f32.mrb[0].mxu0
      %v2218 = vadd.f32 %v1145, %v2217
      %v2219 = vpop.f32.mrb[0].mxu0
      %v2220 = vadd.f32 %v1141, %v2219
      %v2221 = vpop.f32.mrb[0].mxu0
      %v2222 = vadd.f32 %v1145, %v2221
      %2223 = vdwg.mxu0
      %2224 = vmatprep.subr.bf16.mxu0 %v1811
      %2225 = vmatpush1.bf16.msra.mxu0 %v1810
      %2226 = vmatprep.subr.bf16.mxu0 %v1815
      %2227 = vmatpush1.bf16.msra.mxu0 %v1814
      %2228 = vmatprep.subr.bf16.mxu0 %v1819
      %2229 = vmatpush1.bf16.msra.mxu0 %v1818
      %2230 = vmatprep.subr.bf16.mxu0 %v1823
      %2231 = vmatpush1.bf16.msra.mxu0 %v1822
      %2232 = vmatprep.subr.bf16.mxu0 %v1827
      %2233 = vmatpush1.bf16.msra.mxu0 %v1826
      %2234 = vmatprep.subr.bf16.mxu0 %v1831
      %2235 = vmatpush1.bf16.msra.mxu0 %v1830
      %2236 = vmatprep.subr.bf16.mxu0 %v1835
      %2237 = vmatpush1.bf16.msra.mxu0 %v1834
      %2238 = vmatprep.subr.bf16.mxu0 %v1839
      %2239 = vmatpush1.bf16.msra.mxu0 %v1838
      %2240 = vmatprep.subr.bf16.mxu0 %v1843
      %2241 = vmatpush1.bf16.msra.mxu0 %v1842
      %2242 = vmatprep.subr.bf16.mxu0 %v1847
      %2243 = vmatpush1.bf16.msra.mxu0 %v1846
      %2244 = vmatprep.subr.bf16.mxu0 %v1851
      %2245 = vmatpush1.bf16.msra.mxu0 %v1850
      %2246 = vmatprep.subr.bf16.mxu0 %v1855
      %2247 = vmatpush1.bf16.msra.mxu0 %v1854
      %2248 = vmatprep.subr.bf16.mxu0 %v1859
      %2249 = vmatpush1.bf16.msra.mxu0 %v1858
      %2250 = vmatprep.subr.bf16.mxu0 %v1863
      %2251 = vmatpush1.bf16.msra.mxu0 %v1862
      %2252 = vmatprep.subr.bf16.mxu0 %v1867
      %2253 = vmatpush1.bf16.msra.mxu0 %v1866
      %2254 = vmatprep.subr.bf16.mxu0 %v1871
      %2255 = vmatpush1.bf16.msra.mxu0 %v1870
      %2256 = vmatprep.mubr.bf16.mxu0 %v1112
      %2257 = vmatmul.mubr.bf16.gmra.mrb[0].mxu0 %v1111
      %v2258 = vpop.f32.mrb[0].mxu0
      %v2259 = vadd.f32 %v2186, %v2258
      %v2260 = vpop.f32.mrb[0].mxu0
      %v2261 = vadd.f32 %v2188, %v2260
      %v2262 = vpop.f32.mrb[0].mxu0
      %v2263 = vadd.f32 %v2190, %v2262
      %v2264 = vpop.f32.mrb[0].mxu0
      %v2265 = vadd.f32 %v2192, %v2264
      %2266 = vmatprep.mubr.bf16.mxu0 %v1119
      %2267 = vmatmul.mubr.bf16.gmra.mrb[0].mxu0 %v1118
      %v2268 = vpop.f32.mrb[0].mxu0
      %v2269 = vadd.f32 %v2196, %v2268
      %v2270 = vpop.f32.mrb[0].mxu0
      %v2271 = vadd.f32 %v2198, %v2270
      %v2272 = vpop.f32.mrb[0].mxu0
      %v2273 = vadd.f32 %v2200, %v2272
      %v2274 = vpop.f32.mrb[0].mxu0
      %v2275 = vadd.f32 %v2202, %v2274
      %2276 = vmatprep.mubr.bf16.mxu0 %v1126
      %2277 = vmatmul.mubr.bf16.gmra.mrb[0].mxu0 %v1125
      %v2278 = vpop.f32.mrb[0].mxu0
      %v2279 = vadd.f32 %v2206, %v2278
      %v2280 = vpop.f32.mrb[0].mxu0
      %v2281 = vadd.f32 %v2208, %v2280
      %v2282 = vpop.f32.mrb[0].mxu0
      %v2283 = vadd.f32 %v2210, %v2282
      %v2284 = vpop.f32.mrb[0].mxu0
      %v2285 = vadd.f32 %v2212, %v2284
      %2286 = vmatprep.mubr.bf16.mxu0 %v1133
      %2287 = vmatmul.mubr.bf16.gmra.mrb[0].mxu0 %v1132
      %v2288 = vpop.f32.mrb[0].mxu0
      %v2289 = vadd.f32 %v2216, %v2288
      %v2290 = vpop.f32.mrb[0].mxu0
      %v2291 = vadd.f32 %v2218, %v2290
      %v2292 = vpop.f32.mrb[0].mxu0
      %v2293 = vadd.f32 %v2220, %v2292
      %v2294 = vpop.f32.mrb[0].mxu0
      %v2295 = vadd.f32 %v2222, %v2294
      %2296 = vdwg.mxu0
      %2297 = vmatprep.subr.bf16.mxu0 %v1875
      %2298 = vmatpush1.bf16.msra.mxu0 %v1874
      %2299 = vmatprep.subr.bf16.mxu0 %v1879
      %2300 = vmatpush1.bf16.msra.mxu0 %v1878
      %2301 = vmatprep.subr.bf16.mxu0 %v1883
      %2302 = vmatpush1.bf16.msra.mxu0 %v1882
      %2303 = vmatprep.subr.bf16.mxu0 %v1887
      %2304 = vmatpush1.bf16.msra.mxu0 %v1886
      %2305 = vmatprep.subr.bf16.mxu0 %v1891
      %2306 = vmatpush1.bf16.msra.mxu0 %v1890
      %2307 = vmatprep.subr.bf16.mxu0 %v1895
      %2308 = vmatpush1.bf16.msra.mxu0 %v1894
      %2309 = vmatprep.subr.bf16.mxu0 %v1899
      %2310 = vmatpush1.bf16.msra.mxu0 %v1898
      %2311 = vmatprep.subr.bf16.mxu0 %v1903
      %2312 = vmatpush1.bf16.msra.mxu0 %v1902
      %2313 = vmatprep.subr.bf16.mxu0 %v1907
      %2314 = vmatpush1.bf16.msra.mxu0 %v1906
      %2315 = vmatprep.subr.bf16.mxu0 %v1911
      %2316 = vmatpush1.bf16.msra.mxu0 %v1910
      %2317 = vmatprep.subr.bf16.mxu0 %v1915
      %2318 = vmatpush1.bf16.msra.mxu0 %v1914
      %2319 = vmatprep.subr.bf16.mxu0 %v1919
      %2320 = vmatpush1.bf16.msra.mxu0 %v1918
      %2321 = vmatprep.subr.bf16.mxu0 %v1923
      %2322 = vmatpush1.bf16.msra.mxu0 %v1922
      %2323 = vmatprep.subr.bf16.mxu0 %v1927
      %2324 = vmatpush1.bf16.msra.mxu0 %v1926
      %2325 = vmatprep.subr.bf16.mxu0 %v1931
      %2326 = vmatpush1.bf16.msra.mxu0 %v1930
      %2327 = vmatprep.subr.bf16.mxu0 %v1935
      %2328 = vmatpush1.bf16.msra.mxu0 %v1934
      %2329 = vmatprep.mubr.bf16.mxu0 %v1114
      %2330 = vmatmul.mubr.bf16.gmra.mrb[0].mxu0 %v1113
      %v2331 = vpop.f32.mrb[0].mxu0
      %v2332 = vadd.f32 %v2259, %v2331
      %v2333 = vpop.f32.mrb[0].mxu0
      %v2334 = vadd.f32 %v2261, %v2333
      %v2335 = vpop.f32.mrb[0].mxu0
      %v2336 = vadd.f32 %v2263, %v2335
      %v2337 = vpop.f32.mrb[0].mxu0
      %v2338 = vadd.f32 %v2265, %v2337
      %2339 = vmatprep.mubr.bf16.mxu0 %v1121
      %2340 = vmatmul.mubr.bf16.gmra.mrb[0].mxu0 %v1120
      %v2341 = vpop.f32.mrb[0].mxu0
      %v2342 = vadd.f32 %v2269, %v2341
      %v2343 = vpop.f32.mrb[0].mxu0
      %v2344 = vadd.f32 %v2271, %v2343
      %v2345 = vpop.f32.mrb[0].mxu0
      %v2346 = vadd.f32 %v2273, %v2345
      %v2347 = vpop.f32.mrb[0].mxu0
      %v2348 = vadd.f32 %v2275, %v2347
      %2349 = vmatprep.mubr.bf16.mxu0 %v1128
      %2350 = vmatmul.mubr.bf16.gmra.mrb[0].mxu0 %v1127
      %v2351 = vpop.f32.mrb[0].mxu0
      %v2352 = vadd.f32 %v2279, %v2351
      %v2353 = vpop.f32.mrb[0].mxu0
      %v2354 = vadd.f32 %v2281, %v2353
      %v2355 = vpop.f32.mrb[0].mxu0
      %v2356 = vadd.f32 %v2283, %v2355
      %v2357 = vpop.f32.mrb[0].mxu0
      %v2358 = vadd.f32 %v2285, %v2357
      %2359 = vmatprep.mubr.bf16.mxu0 %v1135
      %2360 = vmatmul.mubr.bf16.gmra.mrb[0].mxu0 %v1134
      %v2361 = vpop.f32.mrb[0].mxu0
      %v2362 = vadd.f32 %v2289, %v2361
      %v2363 = vpop.f32.mrb[0].mxu0
      %v2364 = vadd.f32 %v2291, %v2363
      %v2365 = vpop.f32.mrb[0].mxu0
      %v2366 = vadd.f32 %v2293, %v2365
      %v2367 = vpop.f32.mrb[0].mxu0
      %v2368 = vadd.f32 %v2295, %v2367
      %2369 = vdwg.mxu0
      %2370 = vmatprep.subr.bf16.mxu0 %v1939
      %2371 = vmatpush1.bf16.msra.mxu0 %v1938
      %2372 = vmatprep.subr.bf16.mxu0 0
      %2373 = vmatpush1.bf16.msra.mxu0 0
      %2374 = vmatprep.subr.bf16.mxu0 0
      %2375 = vmatpush1.bf16.msra.mxu0 0
      %2376 = vmatprep.subr.bf16.mxu0 0
      %2377 = vmatpush1.bf16.msra.mxu0 0
      %2378 = vmatprep.subr.bf16.mxu0 0
      %2379 = vmatpush1.bf16.msra.mxu0 0
      %2380 = vmatprep.subr.bf16.mxu0 0
      %2381 = vmatpush1.bf16.msra.mxu0 0
      %2382 = vmatprep.subr.bf16.mxu0 0
      %2383 = vmatpush1.bf16.msra.mxu0 0
      %2384 = vmatprep.subr.bf16.mxu0 0
      %2385 = vmatpush1.bf16.msra.mxu0 0
      %2386 = vmatprep.subr.bf16.mxu0 0
      %2387 = vmatpush1.bf16.msra.mxu0 0
      %2388 = vmatprep.subr.bf16.mxu0 0
      %2389 = vmatpush1.bf16.msra.mxu0 0
      %2390 = vmatprep.subr.bf16.mxu0 0
      %2391 = vmatpush1.bf16.msra.mxu0 0
      %2392 = vmatprep.subr.bf16.mxu0 0
      %2393 = vmatpush1.bf16.msra.mxu0 0
      %2394 = vmatprep.subr.bf16.mxu0 0
      %2395 = vmatpush1.bf16.msra.mxu0 0
      %2396 = vmatprep.subr.bf16.mxu0 0
      %2397 = vmatpush1.bf16.msra.mxu0 0
      %2398 = vmatprep.subr.bf16.mxu0 0
      %2399 = vmatpush1.bf16.msra.mxu0 0
      %2400 = vmatprep.subr.bf16.mxu0 0
      %2401 = vmatpush1.bf16.msra.mxu0 0
      %2402 = vmatprep.mubr.bf16.mxu0 0
      %2403 = vmatmul.mubr.bf16.gmra.mrb[0].mxu0 %v2140
      %v2404 = vpop.f32.mrb[0].mxu0
      %v2405 = vadd.f32 %v2332, %v2404
      %v2406 = vpop.f32.mrb[0].mxu0
      %v2407 = vadd.f32 %v2334, %v2406
      %v2408 = vpop.f32.mrb[0].mxu0
      %v2409 = vadd.f32 %v2336, %v2408
      %v2410 = vpop.f32.mrb[0].mxu0
      %v2411 = vadd.f32 %v2338, %v2410
      %2412 = vmatprep.mubr.bf16.mxu0 0
      %2413 = vmatmul.mubr.bf16.gmra.mrb[0].mxu0 %v2143
      %v2414 = vpop.f32.mrb[0].mxu0
      %v2415 = vadd.f32 %v2342, %v2414
      %v2416 = vpop.f32.mrb[0].mxu0
      %v2417 = vadd.f32 %v2344, %v2416
      %v2418 = vpop.f32.mrb[0].mxu0
      %v2419 = vadd.f32 %v2346, %v2418
      %v2420 = vpop.f32.mrb[0].mxu0
      %v2421 = vadd.f32 %v2348, %v2420
      %2422 = vmatprep.mubr.bf16.mxu0 0
      %2423 = vmatmul.mubr.bf16.gmra.mrb[0].mxu0 %v2146
      %v2424 = vpop.f32.mrb[0].mxu0
      %v2425 = vadd.f32 %v2352, %v2424
      %v2426 = vpop.f32.mrb[0].mxu0
      %v2427 = vadd.f32 %v2354, %v2426
      %v2428 = vpop.f32.mrb[0].mxu0
      %v2429 = vadd.f32 %v2356, %v2428
      %v2430 = vpop.f32.mrb[0].mxu0
      %v2431 = vadd.f32 %v2358, %v2430
      %2432 = vmatprep.mubr.bf16.mxu0 0
      %2433 = vmatmul.mubr.bf16.gmra.mrb[0].mxu0 %v2149
      %v2434 = vpop.f32.mrb[0].mxu0
      %v2435 = vadd.f32 %v2362, %v2434
      %v2436 = vpop.f32.mrb[0].mxu0
      %v2437 = vadd.f32 %v2364, %v2436
      %v2438 = vpop.f32.mrb[0].mxu0
      %v2439 = vadd.f32 %v2366, %v2438
      %v2440 = vpop.f32.mrb[0].mxu0
      %v2441 = vadd.f32 %v2368, %v2440
      %2442 = vdwg.mxu0
      %2443 = vmatprep.subr.bf16.mxu0 %v1749
      %2444 = vmatpush1.bf16.msra.mxu0 %v1748
      %2445 = vmatprep.subr.bf16.mxu0 %v1753
      %2446 = vmatpush1.bf16.msra.mxu0 %v1752
      %2447 = vmatprep.subr.bf16.mxu0 %v1757
      %2448 = vmatpush1.bf16.msra.mxu0 %v1756
      %2449 = vmatprep.subr.bf16.mxu0 %v1761
      %2450 = vmatpush1.bf16.msra.mxu0 %v1760
      %2451 = vmatprep.subr.bf16.mxu0 %v1765
      %2452 = vmatpush1.bf16.msra.mxu0 %v1764
      %2453 = vmatprep.subr.bf16.mxu0 %v1769
      %2454 = vmatpush1.bf16.msra.mxu0 %v1768
      %2455 = vmatprep.subr.bf16.mxu0 %v1773
      %2456 = vmatpush1.bf16.msra.mxu0 %v1772
      %2457 = vmatprep.subr.bf16.mxu0 %v1777
      %2458 = vmatpush1.bf16.msra.mxu0 %v1776
      %2459 = vmatprep.subr.bf16.mxu0 %v1781
      %2460 = vmatpush1.bf16.msra.mxu0 %v1780
      %2461 = vmatprep.subr.bf16.mxu0 %v1785
      %2462 = vmatpush1.bf16.msra.mxu0 %v1784
      %2463 = vmatprep.subr.bf16.mxu0 %v1789
      %2464 = vmatpush1.bf16.msra.mxu0 %v1788
      %2465 = vmatprep.subr.bf16.mxu0 %v1793
      %2466 = vmatpush1.bf16.msra.mxu0 %v1792
      %2467 = vmatprep.subr.bf16.mxu0 %v1797
      %2468 = vmatpush1.bf16.msra.mxu0 %v1796
      %2469 = vmatprep.subr.bf16.mxu0 %v1801
      %2470 = vmatpush1.bf16.msra.mxu0 %v1800
      %2471 = vmatprep.subr.bf16.mxu0 %v1805
      %2472 = vmatpush1.bf16.msra.mxu0 %v1804
      %2473 = vmatprep.subr.bf16.mxu0 %v1809
      %2474 = vmatpush1.bf16.msra.mxu0 %v1808
      %2475 = vmatprep.mubr.bf16.mxu0 %v1110
      %2476 = vmatmul.mubr.bf16.gmra.mrb[0].mxu0 %v1109
      %v2477 = vpop.f32.mrb[0].mxu0
      %v2478 = vadd.f32 %v1149, %v2477
      %v2479 = vpop.f32.mrb[0].mxu0
      %v2480 = vadd.f32 %v1153, %v2479
      %v2481 = vpop.f32.mrb[0].mxu0
      %v2482 = vadd.f32 %v1149, %v2481
      %v2483 = vpop.f32.mrb[0].mxu0
      %v2484 = vadd.f32 %v1153, %v2483
      %2485 = vmatprep.mubr.bf16.mxu0 %v1117
      %2486 = vmatmul.mubr.bf16.gmra.mrb[0].mxu0 %v1116
      %v2487 = vpop.f32.mrb[0].mxu0
      %v2488 = vadd.f32 %v1149, %v2487
      %v2489 = vpop.f32.mrb[0].mxu0
      %v2490 = vadd.f32 %v1153, %v2489
      %v2491 = vpop.f32.mrb[0].mxu0
      %v2492 = vadd.f32 %v1149, %v2491
      %v2493 = vpop.f32.mrb[0].mxu0
      %v2494 = vadd.f32 %v1153, %v2493
      %2495 = vmatprep.mubr.bf16.mxu0 %v1124
      %2496 = vmatmul.mubr.bf16.gmra.mrb[0].mxu0 %v1123
      %v2497 = vpop.f32.mrb[0].mxu0
      %v2498 = vadd.f32 %v1149, %v2497
      %v2499 = vpop.f32.mrb[0].mxu0
      %v2500 = vadd.f32 %v1153, %v2499
      %v2501 = vpop.f32.mrb[0].mxu0
      %v2502 = vadd.f32 %v1149, %v2501
      %v2503 = vpop.f32.mrb[0].mxu0
      %v2504 = vadd.f32 %v1153, %v2503
      %2505 = vmatprep.mubr.bf16.mxu0 %v1131
      %2506 = vmatmul.mubr.bf16.gmra.mrb[0].mxu0 %v1130
      %v2507 = vpop.f32.mrb[0].mxu0
      %v2508 = vadd.f32 %v1149, %v2507
      %v2509 = vpop.f32.mrb[0].mxu0
      %v2510 = vadd.f32 %v1153, %v2509
      %v2511 = vpop.f32.mrb[0].mxu0
      %v2512 = vadd.f32 %v1149, %v2511
      %v2513 = vpop.f32.mrb[0].mxu0
      %v2514 = vadd.f32 %v1153, %v2513
      %2515 = vdwg.mxu0
      %2516 = vmatprep.subr.bf16.mxu0 %v1813
      %2517 = vmatpush1.bf16.msra.mxu0 %v1812
      %2518 = vmatprep.subr.bf16.mxu0 %v1817
      %2519 = vmatpush1.bf16.msra.mxu0 %v1816
      %2520 = vmatprep.subr.bf16.mxu0 %v1821
      %2521 = vmatpush1.bf16.msra.mxu0 %v1820
      %2522 = vmatprep.subr.bf16.mxu0 %v1825
      %2523 = vmatpush1.bf16.msra.mxu0 %v1824
      %2524 = vmatprep.subr.bf16.mxu0 %v1829
      %2525 = vmatpush1.bf16.msra.mxu0 %v1828
      %2526 = vmatprep.subr.bf16.mxu0 %v1833
      %2527 = vmatpush1.bf16.msra.mxu0 %v1832
      %2528 = vmatprep.subr.bf16.mxu0 %v1837
      %2529 = vmatpush1.bf16.msra.mxu0 %v1836
      %2530 = vmatprep.subr.bf16.mxu0 %v1841
      %2531 = vmatpush1.bf16.msra.mxu0 %v1840
      %2532 = vmatprep.subr.bf16.mxu0 %v1845
      %2533 = vmatpush1.bf16.msra.mxu0 %v1844
      %2534 = vmatprep.subr.bf16.mxu0 %v1849
      %2535 = vmatpush1.bf16.msra.mxu0 %v1848
      %2536 = vmatprep.subr.bf16.mxu0 %v1853
      %2537 = vmatpush1.bf16.msra.mxu0 %v1852
      %2538 = vmatprep.subr.bf16.mxu0 %v1857
      %2539 = vmatpush1.bf16.msra.mxu0 %v1856
      %2540 = vmatprep.subr.bf16.mxu0 %v1861
      %2541 = vmatpush1.bf16.msra.mxu0 %v1860
      %2542 = vmatprep.subr.bf16.mxu0 %v1865
      %2543 = vmatpush1.bf16.msra.mxu0 %v1864
      %2544 = vmatprep.subr.bf16.mxu0 %v1869
      %2545 = vmatpush1.bf16.msra.mxu0 %v1868
      %2546 = vmatprep.subr.bf16.mxu0 %v1873
      %2547 = vmatpush1.bf16.msra.mxu0 %v1872
      %2548 = vmatprep.mubr.bf16.mxu0 %v1112
      %2549 = vmatmul.mubr.bf16.gmra.mrb[0].mxu0 %v1111
      %v2550 = vpop.f32.mrb[0].mxu0
      %v2551 = vadd.f32 %v2478, %v2550
      %v2552 = vpop.f32.mrb[0].mxu0
      %v2553 = vadd.f32 %v2480, %v2552
      %v2554 = vpop.f32.mrb[0].mxu0
      %v2555 = vadd.f32 %v2482, %v2554
      %v2556 = vpop.f32.mrb[0].mxu0
      %v2557 = vadd.f32 %v2484, %v2556
      %2558 = vmatprep.mubr.bf16.mxu0 %v1119
      %2559 = vmatmul.mubr.bf16.gmra.mrb[0].mxu0 %v1118
      %v2560 = vpop.f32.mrb[0].mxu0
      %v2561 = vadd.f32 %v2488, %v2560
      %v2562 = vpop.f32.mrb[0].mxu0
      %v2563 = vadd.f32 %v2490, %v2562
      %v2564 = vpop.f32.mrb[0].mxu0
      %v2565 = vadd.f32 %v2492, %v2564
      %v2566 = vpop.f32.mrb[0].mxu0
      %v2567 = vadd.f32 %v2494, %v2566
      %2568 = vmatprep.mubr.bf16.mxu0 %v1126
      %2569 = vmatmul.mubr.bf16.gmra.mrb[0].mxu0 %v1125
      %v2570 = vpop.f32.mrb[0].mxu0
      %v2571 = vadd.f32 %v2498, %v2570
      %v2572 = vpop.f32.mrb[0].mxu0
      %v2573 = vadd.f32 %v2500, %v2572
      %v2574 = vpop.f32.mrb[0].mxu0
      %v2575 = vadd.f32 %v2502, %v2574
      %v2576 = vpop.f32.mrb[0].mxu0
      %v2577 = vadd.f32 %v2504, %v2576
      %2578 = vmatprep.mubr.bf16.mxu0 %v1133
      %2579 = vmatmul.mubr.bf16.gmra.mrb[0].mxu0 %v1132
      %v2580 = vpop.f32.mrb[0].mxu0
      %v2581 = vadd.f32 %v2508, %v2580
      %v2582 = vpop.f32.mrb[0].mxu0
      %v2583 = vadd.f32 %v2510, %v2582
      %v2584 = vpop.f32.mrb[0].mxu0
      %v2585 = vadd.f32 %v2512, %v2584
      %v2586 = vpop.f32.mrb[0].mxu0
      %v2587 = vadd.f32 %v2514, %v2586
      %2588 = vdwg.mxu0
      %2589 = vmatprep.subr.bf16.mxu0 %v1877
      %2590 = vmatpush1.bf16.msra.mxu0 %v1876
      %2591 = vmatprep.subr.bf16.mxu0 %v1881
      %2592 = vmatpush1.bf16.msra.mxu0 %v1880
      %2593 = vmatprep.subr.bf16.mxu0 %v1885
      %2594 = vmatpush1.bf16.msra.mxu0 %v1884
      %2595 = vmatprep.subr.bf16.mxu0 %v1889
      %2596 = vmatpush1.bf16.msra.mxu0 %v1888
      %2597 = vmatprep.subr.bf16.mxu0 %v1893
      %2598 = vmatpush1.bf16.msra.mxu0 %v1892
      %2599 = vmatprep.subr.bf16.mxu0 %v1897
      %2600 = vmatpush1.bf16.msra.mxu0 %v1896
      %2601 = vmatprep.subr.bf16.mxu0 %v1901
      %2602 = vmatpush1.bf16.msra.mxu0 %v1900
      %2603 = vmatprep.subr.bf16.mxu0 %v1905
      %2604 = vmatpush1.bf16.msra.mxu0 %v1904
      %2605 = vmatprep.subr.bf16.mxu0 %v1909
      %2606 = vmatpush1.bf16.msra.mxu0 %v1908
      %2607 = vmatprep.subr.bf16.mxu0 %v1913
      %2608 = vmatpush1.bf16.msra.mxu0 %v1912
      %2609 = vmatprep.subr.bf16.mxu0 %v1917
      %2610 = vmatpush1.bf16.msra.mxu0 %v1916
      %2611 = vmatprep.subr.bf16.mxu0 %v1921
      %2612 = vmatpush1.bf16.msra.mxu0 %v1920
      %2613 = vmatprep.subr.bf16.mxu0 %v1925
      %2614 = vmatpush1.bf16.msra.mxu0 %v1924
      %2615 = vmatprep.subr.bf16.mxu0 %v1929
      %2616 = vmatpush1.bf16.msra.mxu0 %v1928
      %2617 = vmatprep.subr.bf16.mxu0 %v1933
      %2618 = vmatpush1.bf16.msra.mxu0 %v1932
      %2619 = vmatprep.subr.bf16.mxu0 %v1937
      %2620 = vmatpush1.bf16.msra.mxu0 %v1936
      %2621 = vmatprep.mubr.bf16.mxu0 %v1114
      %2622 = vmatmul.mubr.bf16.gmra.mrb[0].mxu0 %v1113
      %v2623 = vpop.f32.mrb[0].mxu0
      %v2624 = vadd.f32 %v2551, %v2623
      %v2625 = vpop.f32.mrb[0].mxu0
      %v2626 = vadd.f32 %v2553, %v2625
      %v2627 = vpop.f32.mrb[0].mxu0
      %v2628 = vadd.f32 %v2555, %v2627
      %v2629 = vpop.f32.mrb[0].mxu0
      %v2630 = vadd.f32 %v2557, %v2629
      %2631 = vmatprep.mubr.bf16.mxu0 %v1121
      %2632 = vmatmul.mubr.bf16.gmra.mrb[0].mxu0 %v1120
      %v2633 = vpop.f32.mrb[0].mxu0
      %v2634 = vadd.f32 %v2561, %v2633
      %v2635 = vpop.f32.mrb[0].mxu0
      %v2636 = vadd.f32 %v2563, %v2635
      %v2637 = vpop.f32.mrb[0].mxu0
      %v2638 = vadd.f32 %v2565, %v2637
      %v2639 = vpop.f32.mrb[0].mxu0
      %v2640 = vadd.f32 %v2567, %v2639
      %2641 = vmatprep.mubr.bf16.mxu0 %v1128
      %2642 = vmatmul.mubr.bf16.gmra.mrb[0].mxu0 %v1127
      %v2643 = vpop.f32.mrb[0].mxu0
      %v2644 = vadd.f32 %v2571, %v2643
      %v2645 = vpop.f32.mrb[0].mxu0
      %v2646 = vadd.f32 %v2573, %v2645
      %v2647 = vpop.f32.mrb[0].mxu0
      %v2648 = vadd.f32 %v2575, %v2647
      %v2649 = vpop.f32.mrb[0].mxu0
      %v2650 = vadd.f32 %v2577, %v2649
      %2651 = vmatprep.mubr.bf16.mxu0 %v1135
      %2652 = vmatmul.mubr.bf16.gmra.mrb[0].mxu0 %v1134
      %v2653 = vpop.f32.mrb[0].mxu0
      %v2654 = vadd.f32 %v2581, %v2653
      %v2655 = vpop.f32.mrb[0].mxu0
      %v2656 = vadd.f32 %v2583, %v2655
      %v2657 = vpop.f32.mrb[0].mxu0
      %v2658 = vadd.f32 %v2585, %v2657
      %v2659 = vpop.f32.mrb[0].mxu0
      %v2660 = vadd.f32 %v2587, %v2659
      %2661 = vdwg.mxu0
      %2662 = vmatprep.subr.bf16.mxu0 %v1941
      %2663 = vmatpush1.bf16.msra.mxu0 %v1940
      %2664 = vmatprep.subr.bf16.mxu0 0
      %2665 = vmatpush1.bf16.msra.mxu0 0
      %2666 = vmatprep.subr.bf16.mxu0 0
      %2667 = vmatpush1.bf16.msra.mxu0 0
      %2668 = vmatprep.subr.bf16.mxu0 0
      %2669 = vmatpush1.bf16.msra.mxu0 0
      %2670 = vmatprep.subr.bf16.mxu0 0
      %2671 = vmatpush1.bf16.msra.mxu0 0
      %2672 = vmatprep.subr.bf16.mxu0 0
      %2673 = vmatpush1.bf16.msra.mxu0 0
      %2674 = vmatprep.subr.bf16.mxu0 0
      %2675 = vmatpush1.bf16.msra.mxu0 0
      %2676 = vmatprep.subr.bf16.mxu0 0
      %2677 = vmatpush1.bf16.msra.mxu0 0
      %2678 = vmatprep.subr.bf16.mxu0 0
      %2679 = vmatpush1.bf16.msra.mxu0 0
      %2680 = vmatprep.subr.bf16.mxu0 0
      %2681 = vmatpush1.bf16.msra.mxu0 0
      %2682 = vmatprep.subr.bf16.mxu0 0
      %2683 = vmatpush1.bf16.msra.mxu0 0
      %2684 = vmatprep.subr.bf16.mxu0 0
      %2685 = vmatpush1.bf16.msra.mxu0 0
      %2686 = vmatprep.subr.bf16.mxu0 0
      %2687 = vmatpush1.bf16.msra.mxu0 0
      %2688 = vmatprep.subr.bf16.mxu0 0
      %2689 = vmatpush1.bf16.msra.mxu0 0
      %2690 = vmatprep.subr.bf16.mxu0 0
      %2691 = vmatpush1.bf16.msra.mxu0 0
      %2692 = vmatprep.subr.bf16.mxu0 0
      %2693 = vmatpush1.bf16.msra.mxu0 0
      %2694 = vmatprep.mubr.bf16.mxu0 0
      %2695 = vmatmul.mubr.bf16.gmra.mrb[0].mxu0 %v2140
      %v2696 = vpop.f32.mrb[0].mxu0
      %v2697 = vadd.f32 %v2624, %v2696
      %v2698 = vpop.f32.mrb[0].mxu0
      %v2699 = vadd.f32 %v2626, %v2698
      %v2700 = vpop.f32.mrb[0].mxu0
      %v2701 = vadd.f32 %v2628, %v2700
      %v2702 = vpop.f32.mrb[0].mxu0
      %v2703 = vadd.f32 %v2630, %v2702
      %2704 = vmatprep.mubr.bf16.mxu0 0
      %2705 = vmatmul.mubr.bf16.gmra.mrb[0].mxu0 %v2143
      %v2706 = vpop.f32.mrb[0].mxu0
      %v2707 = vadd.f32 %v2634, %v2706
      %v2708 = vpop.f32.mrb[0].mxu0
      %v2709 = vadd.f32 %v2636, %v2708
      %v2710 = vpop.f32.mrb[0].mxu0
      %v2711 = vadd.f32 %v2638, %v2710
      %v2712 = vpop.f32.mrb[0].mxu0
      %v2713 = vadd.f32 %v2640, %v2712
      %2714 = vmatprep.mubr.bf16.mxu0 0
      %2715 = vmatmul.mubr.bf16.gmra.mrb[0].mxu0 %v2146
      %v2716 = vpop.f32.mrb[0].mxu0
      %v2717 = vadd.f32 %v2644, %v2716
      %v2718 = vpop.f32.mrb[0].mxu0
      %v2719 = vadd.f32 %v2646, %v2718
      %v2720 = vpop.f32.mrb[0].mxu0
      %v2721 = vadd.f32 %v2648, %v2720
      %v2722 = vpop.f32.mrb[0].mxu0
      %v2723 = vadd.f32 %v2650, %v2722
      %2724 = vmatprep.mubr.bf16.mxu0 0
      %2725 = vmatmul.mubr.bf16.gmra.mrb[0].mxu0 %v2149
      %v2726 = vpop.f32.mrb[0].mxu0
      %v2727 = vadd.f32 %v2654, %v2726
      %v2728 = vpop.f32.mrb[0].mxu0
      %v2729 = vadd.f32 %v2656, %v2728
      %v2730 = vpop.f32.mrb[0].mxu0
      %v2731 = vadd.f32 %v2658, %v2730
      %v2732 = vpop.f32.mrb[0].mxu0
      %v2733 = vadd.f32 %v2660, %v2732
      %2734 = vdwg.mxu0
      %v2735 = vmax.f32 %v2405, 0.0
      %v2736 = vmax.f32 %v2407, 0.0
      %v2737 = vmax.f32 %v2697, 0.0
      %v2738 = vmax.f32 %v2699, 0.0
      %v2739 = vmax.f32 %v2409, 0.0
      %v2740 = vmax.f32 %v2411, 0.0
      %v2741 = vmax.f32 %v2701, 0.0
      %v2742 = vmax.f32 %v2703, 0.0
      %v2743 = vmax.f32 %v2415, 0.0
      %v2744 = vmax.f32 %v2417, 0.0
      %v2745 = vmax.f32 %v2707, 0.0
      %v2746 = vmax.f32 %v2709, 0.0
      %v2747 = vmax.f32 %v2419, 0.0
      %v2748 = vmax.f32 %v2421, 0.0
      %v2749 = vmax.f32 %v2711, 0.0
      %v2750 = vmax.f32 %v2713, 0.0
      %v2751 = vmax.f32 %v2425, 0.0
      %v2752 = vmax.f32 %v2427, 0.0
      %v2753 = vmax.f32 %v2717, 0.0
      %v2754 = vmax.f32 %v2719, 0.0
      %v2755 = vmax.f32 %v2429, 0.0
      %v2756 = vmax.f32 %v2431, 0.0
      %v2757 = vmax.f32 %v2721, 0.0
      %v2758 = vmax.f32 %v2723, 0.0
      %v2759 = vmax.f32 %v2435, 0.0
      %v2760 = vmax.f32 %v2437, 0.0
      %v2761 = vmax.f32 %v2727, 0.0
      %v2762 = vmax.f32 %v2729, 0.0
      %v2763 = vmax.f32 %v2439, 0.0
      %v2764 = vmax.f32 %v2441, 0.0
      %v2765 = vmax.f32 %v2731, 0.0
      %v2766 = vmax.f32 %v2733, 0.0
      %v2767 = vpack.c.bf16 %v2739, %v2735
      %v2768 = vpack.c.bf16 %v2740, %v2736
      %v2769 = vpack.c.bf16 %v2741, %v2737
      %v2770 = vpack.c.bf16 %v2742, %v2738
      %v2771 = vpack.c.bf16 %v2747, %v2743
      %v2772 = vpack.c.bf16 %v2748, %v2744
      %v2773 = vpack.c.bf16 %v2749, %v2745
      %v2774 = vpack.c.bf16 %v2750, %v2746
      %v2775 = vpack.c.bf16 %v2755, %v2751
      %v2776 = vpack.c.bf16 %v2756, %v2752
      %v2777 = vpack.c.bf16 %v2757, %v2753
      %v2778 = vpack.c.bf16 %v2758, %v2754
      %v2779 = vpack.c.bf16 %v2763, %v2759
      %v2780 = vpack.c.bf16 %v2764, %v2760
      %v2781 = vpack.c.bf16 %v2765, %v2761
      %v2782 = vpack.c.bf16 %v2766, %v2762
      %v2784 = vlaneseq
      %v2785 = vshrl.u32 %v2784, 7
      %v2786 = vsub.s32 0, %v2785
      %v2787 = vrot.slane %v1052, %v2786
      %v2788 = vlaneseq
      %v2789 = vshrl.u32 %v2788, 7
      %v2790 = vsub.s32 1, %v2789
      %v2791 = vrot.slane %v1052, %v2790
      %v2792 = vlaneseq
      %v2793 = vshrl.u32 %v2792, 7
      %v2794 = vsub.s32 2, %v2793
      %v2795 = vrot.slane %v1052, %v2794
      %v2796 = vlaneseq
      %v2797 = vshrl.u32 %v2796, 7
      %v2798 = vsub.s32 3, %v2797
      %v2799 = vrot.slane %v1052, %v2798
      %v2932 = vunpack.c.l.b16 %v924
      %v2933 = vunpack.c.h.b16 %v924
      %v2934 = vunpack.c.l.b16 %v925
      %v2935 = vunpack.c.h.b16 %v925
      %v2936 = vunpack.c.l.b16 %v926
      %v2937 = vunpack.c.h.b16 %v926
      %v2938 = vunpack.c.l.b16 %v927
      %v2939 = vunpack.c.h.b16 %v927
      %v2940 = vunpack.c.l.b16 %v928
      %v2941 = vunpack.c.h.b16 %v928
      %v2942 = vunpack.c.l.b16 %v929
      %v2943 = vunpack.c.h.b16 %v929
      %v2944 = vunpack.c.l.b16 %v930
      %v2945 = vunpack.c.h.b16 %v930
      %v2946 = vunpack.c.l.b16 %v931
      %v2947 = vunpack.c.h.b16 %v931
      %v2948 = vunpack.c.l.b16 %v932
      %v2949 = vunpack.c.h.b16 %v932
      %v2950 = vunpack.c.l.b16 %v933
      %v2951 = vunpack.c.h.b16 %v933
      %v2952 = vunpack.c.l.b16 %v934
      %v2953 = vunpack.c.h.b16 %v934
      %v2954 = vunpack.c.l.b16 %v935
      %v2955 = vunpack.c.h.b16 %v935
      %v2956 = vunpack.c.l.b16 %v936
      %v2957 = vunpack.c.h.b16 %v936
      %v2958 = vunpack.c.l.b16 %v937
      %v2959 = vunpack.c.h.b16 %v937
      %v2960 = vunpack.c.l.b16 %v938
      %v2961 = vunpack.c.h.b16 %v938
      %v2962 = vunpack.c.l.b16 %v939
      %v2963 = vunpack.c.h.b16 %v939
      %v2964 = vunpack.c.l.b16 %v940
      %v2965 = vunpack.c.h.b16 %v940
      %v2966 = vunpack.c.l.b16 %v941
      %v2967 = vunpack.c.h.b16 %v941
      %v2968 = vunpack.c.l.b16 %v942
      %v2969 = vunpack.c.h.b16 %v942
      %v2970 = vunpack.c.l.b16 %v943
      %v2971 = vunpack.c.h.b16 %v943
      %v2972 = vunpack.c.l.b16 %v944
      %v2973 = vunpack.c.h.b16 %v944
      %v2974 = vunpack.c.l.b16 %v945
      %v2975 = vunpack.c.h.b16 %v945
      %v2976 = vunpack.c.l.b16 %v946
      %v2977 = vunpack.c.h.b16 %v946
      %v2978 = vunpack.c.l.b16 %v947
      %v2979 = vunpack.c.h.b16 %v947
      %v2980 = vunpack.c.l.b16 %v948
      %v2981 = vunpack.c.h.b16 %v948
      %v2982 = vunpack.c.l.b16 %v949
      %v2983 = vunpack.c.h.b16 %v949
      %v2984 = vunpack.c.l.b16 %v950
      %v2985 = vunpack.c.h.b16 %v950
      %v2986 = vunpack.c.l.b16 %v951
      %v2987 = vunpack.c.h.b16 %v951
      %v2988 = vunpack.c.l.b16 %v952
      %v2989 = vunpack.c.h.b16 %v952
      %v2990 = vunpack.c.l.b16 %v953
      %v2991 = vunpack.c.h.b16 %v953
      %v2992 = vunpack.c.l.b16 %v954
      %v2993 = vunpack.c.h.b16 %v954
      %v2994 = vunpack.c.l.b16 %v955
      %v2995 = vunpack.c.h.b16 %v955
      %v2996 = vunpack.c.l.b16 %v956
      %v2997 = vunpack.c.h.b16 %v956
      %v2998 = vunpack.c.l.b16 %v957
      %v2999 = vunpack.c.h.b16 %v957
      %v3000 = vunpack.c.l.b16 %v958
      %v3001 = vunpack.c.h.b16 %v958
      %v3002 = vunpack.c.l.b16 %v959
      %v3003 = vunpack.c.h.b16 %v959
      %v3004 = vunpack.c.l.b16 %v960
      %v3005 = vunpack.c.h.b16 %v960
      %v3006 = vunpack.c.l.b16 %v961
      %v3007 = vunpack.c.h.b16 %v961
      %v3008 = vunpack.c.l.b16 %v962
      %v3009 = vunpack.c.h.b16 %v962
      %v3010 = vunpack.c.l.b16 %v963
      %v3011 = vunpack.c.h.b16 %v963
      %v3012 = vunpack.c.l.b16 %v964
      %v3013 = vunpack.c.h.b16 %v964
      %v3014 = vunpack.c.l.b16 %v965
      %v3015 = vunpack.c.h.b16 %v965
      %v3016 = vunpack.c.l.b16 %v966
      %v3017 = vunpack.c.h.b16 %v966
      %v3018 = vunpack.c.l.b16 %v967
      %v3019 = vunpack.c.h.b16 %v967
      %v3020 = vunpack.c.l.b16 %v968
      %v3021 = vunpack.c.h.b16 %v968
      %v3022 = vunpack.c.l.b16 %v969
      %v3023 = vunpack.c.h.b16 %v969
      %v3024 = vunpack.c.l.b16 %v970
      %v3025 = vunpack.c.h.b16 %v970
      %v3026 = vunpack.c.l.b16 %v971
      %v3027 = vunpack.c.h.b16 %v971
      %v3028 = vunpack.c.l.b16 %v972
      %v3029 = vunpack.c.h.b16 %v972
      %v3030 = vunpack.c.l.b16 %v973
      %v3031 = vunpack.c.h.b16 %v973
      %v3032 = vunpack.c.l.b16 %v974
      %v3033 = vunpack.c.h.b16 %v974
      %v3034 = vunpack.c.l.b16 %v975
      %v3035 = vunpack.c.h.b16 %v975
      %v3036 = vunpack.c.l.b16 %v976
      %v3037 = vunpack.c.h.b16 %v976
      %v3038 = vunpack.c.l.b16 %v977
      %v3039 = vunpack.c.h.b16 %v977
      %v3040 = vunpack.c.l.b16 %v978
      %v3041 = vunpack.c.h.b16 %v978
      %v3042 = vunpack.c.l.b16 %v979
      %v3043 = vunpack.c.h.b16 %v979
      %v3044 = vunpack.c.l.b16 %v980
      %v3045 = vunpack.c.h.b16 %v980
      %v3046 = vunpack.c.l.b16 %v981
      %v3047 = vunpack.c.h.b16 %v981
      %v3048 = vunpack.c.l.b16 %v982
      %v3049 = vunpack.c.h.b16 %v982
      %v3050 = vunpack.c.l.b16 %v983
      %v3051 = vunpack.c.h.b16 %v983
      %v3052 = vunpack.c.l.b16 %v984
      %v3053 = vunpack.c.h.b16 %v984
      %v3054 = vunpack.c.l.b16 %v985
      %v3055 = vunpack.c.h.b16 %v985
      %v3056 = vunpack.c.l.b16 %v986
      %v3057 = vunpack.c.h.b16 %v986
      %v3058 = vunpack.c.l.b16 %v987
      %v3059 = vunpack.c.h.b16 %v987
      %v3060 = vunpack.c.l.b16 %v988
      %v3061 = vunpack.c.h.b16 %v988
      %v3062 = vunpack.c.l.b16 %v989
      %v3063 = vunpack.c.h.b16 %v989
      %v3064 = vunpack.c.l.b16 %v990
      %v3065 = vunpack.c.h.b16 %v990
      %v3066 = vunpack.c.l.b16 %v991
      %v3067 = vunpack.c.h.b16 %v991
      %v3068 = vunpack.c.l.b16 %v992
      %v3069 = vunpack.c.h.b16 %v992
      %v3070 = vunpack.c.l.b16 %v993
      %v3071 = vunpack.c.h.b16 %v993
      %v3072 = vunpack.c.l.b16 %v994
      %v3073 = vunpack.c.h.b16 %v994
      %v3074 = vunpack.c.l.b16 %v995
      %v3075 = vunpack.c.h.b16 %v995
      %v3076 = vunpack.c.l.b16 %v996
      %v3077 = vunpack.c.h.b16 %v996
      %v3078 = vunpack.c.l.b16 %v997
      %v3079 = vunpack.c.h.b16 %v997
      %v3080 = vunpack.c.l.b16 %v998
      %v3081 = vunpack.c.h.b16 %v998
      %v3082 = vunpack.c.l.b16 %v999
      %v3083 = vunpack.c.h.b16 %v999
      %v3084 = vunpack.c.l.b16 %v1000
      %v3085 = vunpack.c.h.b16 %v1000
      %v3086 = vunpack.c.l.b16 %v1001
      %v3087 = vunpack.c.h.b16 %v1001
      %v3088 = vunpack.c.l.b16 %v1002
      %v3089 = vunpack.c.h.b16 %v1002
      %v3090 = vunpack.c.l.b16 %v1003
      %v3091 = vunpack.c.h.b16 %v1003
      %v3092 = vunpack.c.l.b16 %v1004
      %v3093 = vunpack.c.h.b16 %v1004
      %v3094 = vunpack.c.l.b16 %v1005
      %v3095 = vunpack.c.h.b16 %v1005
      %v3096 = vunpack.c.l.b16 %v1006
      %v3097 = vunpack.c.h.b16 %v1006
      %v3098 = vunpack.c.l.b16 %v1007
      %v3099 = vunpack.c.h.b16 %v1007
      %v3100 = vunpack.c.l.b16 %v1008
      %v3101 = vunpack.c.h.b16 %v1008
      %v3102 = vunpack.c.l.b16 %v1009
      %v3103 = vunpack.c.h.b16 %v1009
      %v3104 = vunpack.c.l.b16 %v1010
      %v3105 = vunpack.c.h.b16 %v1010
      %v3106 = vunpack.c.l.b16 %v1011
      %v3107 = vunpack.c.h.b16 %v1011
      %v3108 = vunpack.c.l.b16 %v1012
      %v3109 = vunpack.c.h.b16 %v1012
      %v3110 = vunpack.c.l.b16 %v1013
      %v3111 = vunpack.c.h.b16 %v1013
      %v3112 = vunpack.c.l.b16 %v1014
      %v3113 = vunpack.c.h.b16 %v1014
      %v3114 = vunpack.c.l.b16 %v1015
      %v3115 = vunpack.c.h.b16 %v1015
      %v3116 = vunpack.c.l.b16 %v1016
      %v3117 = vunpack.c.h.b16 %v1016
      %v3118 = vunpack.c.l.b16 %v1017
      %v3119 = vunpack.c.h.b16 %v1017
      %v3120 = vunpack.c.l.b16 %v1018
      %v3121 = vunpack.c.h.b16 %v1018
      %v3122 = vunpack.c.l.b16 %v1019
      %v3123 = vunpack.c.h.b16 %v1019
      %v3124 = vunpack.c.l.b16 %v1020
      %v3125 = vunpack.c.h.b16 %v1020
      %v3126 = vunpack.c.l.b16 %v1021
      %v3127 = vunpack.c.h.b16 %v1021
      %v3128 = vunpack.c.l.b16 %v1022
      %v3129 = vunpack.c.h.b16 %v1022
      %v3130 = vunpack.c.l.b16 %v1023
      %v3131 = vunpack.c.h.b16 %v1023
      %v3132 = vunpack.c.l.b16 %v1024
      %v3133 = vunpack.c.h.b16 %v1024
      %v3134 = vunpack.c.l.b16 %v1025
      %v3135 = vunpack.c.h.b16 %v1025
      %v3136 = vunpack.c.l.b16 %v1026
      %v3137 = vunpack.c.h.b16 %v1026
      %v3138 = vunpack.c.l.b16 %v1027
      %v3139 = vunpack.c.h.b16 %v1027
      %v3140 = vunpack.c.l.b16 %v1028
      %v3141 = vunpack.c.h.b16 %v1028
      %v3142 = vunpack.c.l.b16 %v1029
      %v3143 = vunpack.c.h.b16 %v1029
      %v3144 = vunpack.c.l.b16 %v1030
      %v3145 = vunpack.c.h.b16 %v1030
      %v3146 = vunpack.c.l.b16 %v1031
      %v3147 = vunpack.c.h.b16 %v1031
      %v3148 = vunpack.c.l.b16 %v1032
      %v3149 = vunpack.c.h.b16 %v1032
      %v3150 = vunpack.c.l.b16 %v1033
      %v3151 = vunpack.c.h.b16 %v1033
      %v3152 = vunpack.c.l.b16 %v1034
      %v3153 = vunpack.c.h.b16 %v1034
      %v3154 = vunpack.c.l.b16 %v1035
      %v3155 = vunpack.c.h.b16 %v1035
      %v3156 = vunpack.c.l.b16 %v1036
      %v3157 = vunpack.c.h.b16 %v1036
      %v3158 = vunpack.c.l.b16 %v1037
      %v3159 = vunpack.c.h.b16 %v1037
      %v3160 = vunpack.c.l.b16 %v1038
      %v3161 = vunpack.c.h.b16 %v1038
      %v3162 = vunpack.c.l.b16 %v1039
      %v3163 = vunpack.c.h.b16 %v1039
      %v3164 = vunpack.c.l.b16 %v1040
      %v3165 = vunpack.c.h.b16 %v1040
      %v3166 = vunpack.c.l.b16 %v1041
      %v3167 = vunpack.c.h.b16 %v1041
      %v3168 = vunpack.c.l.b16 %v1042
      %v3169 = vunpack.c.h.b16 %v1042
      %v3170 = vunpack.c.l.b16 %v1043
      %v3171 = vunpack.c.h.b16 %v1043
      %v3172 = vunpack.c.l.b16 %v1044
      %v3173 = vunpack.c.h.b16 %v1044
      %v3174 = vunpack.c.l.b16 %v1045
      %v3175 = vunpack.c.h.b16 %v1045
      %v3176 = vunpack.c.l.b16 %v1046
      %v3177 = vunpack.c.h.b16 %v1046
      %v3178 = vunpack.c.l.b16 %v1047
      %v3179 = vunpack.c.h.b16 %v1047
      %v3180 = vunpack.c.l.b16 %v1048
      %v3181 = vunpack.c.h.b16 %v1048
      %v3182 = vunpack.c.l.b16 %v1049
      %v3183 = vunpack.c.h.b16 %v1049
      %v3184 = vunpack.c.l.b16 %v1050
      %v3185 = vunpack.c.h.b16 %v1050
      %v3186 = vunpack.c.l.b16 %v1051
      %v3187 = vunpack.c.h.b16 %v1051
      %v3188 = vpack.c.b16 %v2936, %v2932
      %v3189 = vpack.c.b16 %v2937, %v2933
      %v3190 = vpack.c.b16 %v2938, %v2934
      %v3191 = vpack.c.b16 %v2939, %v2935
      %v3192 = vpack.c.b16 %v2944, %v2940
      %v3193 = vpack.c.b16 %v2945, %v2941
      %v3194 = vpack.c.b16 %v2946, %v2942
      %v3195 = vpack.c.b16 %v2947, %v2943
      %v3196 = vpack.c.b16 %v2952, %v2948
      %v3197 = vpack.c.b16 %v2953, %v2949
      %v3198 = vpack.c.b16 %v2954, %v2950
      %v3199 = vpack.c.b16 %v2955, %v2951
      %v3200 = vpack.c.b16 %v2960, %v2956
      %v3201 = vpack.c.b16 %v2961, %v2957
      %v3202 = vpack.c.b16 %v2962, %v2958
      %v3203 = vpack.c.b16 %v2963, %v2959
      %v3204 = vpack.c.b16 %v2968, %v2964
      %v3205 = vpack.c.b16 %v2969, %v2965
      %v3206 = vpack.c.b16 %v2970, %v2966
      %v3207 = vpack.c.b16 %v2971, %v2967
      %v3208 = vpack.c.b16 %v2976, %v2972
      %v3209 = vpack.c.b16 %v2977, %v2973
      %v3210 = vpack.c.b16 %v2978, %v2974
      %v3211 = vpack.c.b16 %v2979, %v2975
      %v3212 = vpack.c.b16 %v2984, %v2980
      %v3213 = vpack.c.b16 %v2985, %v2981
      %v3214 = vpack.c.b16 %v2986, %v2982
      %v3215 = vpack.c.b16 %v2987, %v2983
      %v3216 = vpack.c.b16 %v2992, %v2988
      %v3217 = vpack.c.b16 %v2993, %v2989
      %v3218 = vpack.c.b16 %v2994, %v2990
      %v3219 = vpack.c.b16 %v2995, %v2991
      %v3220 = vpack.c.b16 %v3000, %v2996
      %v3221 = vpack.c.b16 %v3001, %v2997
      %v3222 = vpack.c.b16 %v3002, %v2998
      %v3223 = vpack.c.b16 %v3003, %v2999
      %v3224 = vpack.c.b16 %v3008, %v3004
      %v3225 = vpack.c.b16 %v3009, %v3005
      %v3226 = vpack.c.b16 %v3010, %v3006
      %v3227 = vpack.c.b16 %v3011, %v3007
      %v3228 = vpack.c.b16 %v3016, %v3012
      %v3229 = vpack.c.b16 %v3017, %v3013
      %v3230 = vpack.c.b16 %v3018, %v3014
      %v3231 = vpack.c.b16 %v3019, %v3015
      %v3232 = vpack.c.b16 %v3024, %v3020
      %v3233 = vpack.c.b16 %v3025, %v3021
      %v3234 = vpack.c.b16 %v3026, %v3022
      %v3235 = vpack.c.b16 %v3027, %v3023
      %v3236 = vpack.c.b16 %v3032, %v3028
      %v3237 = vpack.c.b16 %v3033, %v3029
      %v3238 = vpack.c.b16 %v3034, %v3030
      %v3239 = vpack.c.b16 %v3035, %v3031
      %v3240 = vpack.c.b16 %v3040, %v3036
      %v3241 = vpack.c.b16 %v3041, %v3037
      %v3242 = vpack.c.b16 %v3042, %v3038
      %v3243 = vpack.c.b16 %v3043, %v3039
      %v3244 = vpack.c.b16 %v3048, %v3044
      %v3245 = vpack.c.b16 %v3049, %v3045
      %v3246 = vpack.c.b16 %v3050, %v3046
      %v3247 = vpack.c.b16 %v3051, %v3047
      %v3248 = vpack.c.b16 %v3056, %v3052
      %v3249 = vpack.c.b16 %v3057, %v3053
      %v3250 = vpack.c.b16 %v3058, %v3054
      %v3251 = vpack.c.b16 %v3059, %v3055
      %v3252 = vpack.c.b16 %v3064, %v3060
      %v3253 = vpack.c.b16 %v3065, %v3061
      %v3254 = vpack.c.b16 %v3066, %v3062
      %v3255 = vpack.c.b16 %v3067, %v3063
      %v3256 = vpack.c.b16 %v3072, %v3068
      %v3257 = vpack.c.b16 %v3073, %v3069
      %v3258 = vpack.c.b16 %v3074, %v3070
      %v3259 = vpack.c.b16 %v3075, %v3071
      %v3260 = vpack.c.b16 %v3080, %v3076
      %v3261 = vpack.c.b16 %v3081, %v3077
      %v3262 = vpack.c.b16 %v3082, %v3078
      %v3263 = vpack.c.b16 %v3083, %v3079
      %v3264 = vpack.c.b16 %v3088, %v3084
      %v3265 = vpack.c.b16 %v3089, %v3085
      %v3266 = vpack.c.b16 %v3090, %v3086
      %v3267 = vpack.c.b16 %v3091, %v3087
      %v3268 = vpack.c.b16 %v3096, %v3092
      %v3269 = vpack.c.b16 %v3097, %v3093
      %v3270 = vpack.c.b16 %v3098, %v3094
      %v3271 = vpack.c.b16 %v3099, %v3095
      %v3272 = vpack.c.b16 %v3104, %v3100
      %v3273 = vpack.c.b16 %v3105, %v3101
      %v3274 = vpack.c.b16 %v3106, %v3102
      %v3275 = vpack.c.b16 %v3107, %v3103
      %v3276 = vpack.c.b16 %v3112, %v3108
      %v3277 = vpack.c.b16 %v3113, %v3109
      %v3278 = vpack.c.b16 %v3114, %v3110
      %v3279 = vpack.c.b16 %v3115, %v3111
      %v3280 = vpack.c.b16 %v3120, %v3116
      %v3281 = vpack.c.b16 %v3121, %v3117
      %v3282 = vpack.c.b16 %v3122, %v3118
      %v3283 = vpack.c.b16 %v3123, %v3119
      %v3284 = vpack.c.b16 %v3128, %v3124
      %v3285 = vpack.c.b16 %v3129, %v3125
      %v3286 = vpack.c.b16 %v3130, %v3126
      %v3287 = vpack.c.b16 %v3131, %v3127
      %v3288 = vpack.c.b16 %v3136, %v3132
      %v3289 = vpack.c.b16 %v3137, %v3133
      %v3290 = vpack.c.b16 %v3138, %v3134
      %v3291 = vpack.c.b16 %v3139, %v3135
      %v3292 = vpack.c.b16 %v3144, %v3140
      %v3293 = vpack.c.b16 %v3145, %v3141
      %v3294 = vpack.c.b16 %v3146, %v3142
      %v3295 = vpack.c.b16 %v3147, %v3143
      %v3296 = vpack.c.b16 %v3152, %v3148
      %v3297 = vpack.c.b16 %v3153, %v3149
      %v3298 = vpack.c.b16 %v3154, %v3150
      %v3299 = vpack.c.b16 %v3155, %v3151
      %v3300 = vpack.c.b16 %v3160, %v3156
      %v3301 = vpack.c.b16 %v3161, %v3157
      %v3302 = vpack.c.b16 %v3162, %v3158
      %v3303 = vpack.c.b16 %v3163, %v3159
      %v3304 = vpack.c.b16 %v3168, %v3164
      %v3305 = vpack.c.b16 %v3169, %v3165
      %v3306 = vpack.c.b16 %v3170, %v3166
      %v3307 = vpack.c.b16 %v3171, %v3167
      %v3308 = vpack.c.b16 %v3176, %v3172
      %v3309 = vpack.c.b16 %v3177, %v3173
      %v3310 = vpack.c.b16 %v3178, %v3174
      %v3311 = vpack.c.b16 %v3179, %v3175
      %v3312 = vpack.c.b16 %v3184, %v3180
      %v3313 = vpack.c.b16 %v3185, %v3181
      %v3314 = vpack.c.b16 %v3186, %v3182
      %v3315 = vpack.c.b16 %v3187, %v3183
      %3444 = vmatprep.subr.bf16.mxu0 %v3189
      %3445 = vmatpush1.bf16.msra.mxu0 %v3188
      %3446 = vmatprep.subr.bf16.mxu0 %v3193
      %3447 = vmatpush1.bf16.msra.mxu0 %v3192
      %3448 = vmatprep.subr.bf16.mxu0 %v3197
      %3449 = vmatpush1.bf16.msra.mxu0 %v3196
      %3450 = vmatprep.subr.bf16.mxu0 %v3201
      %3451 = vmatpush1.bf16.msra.mxu0 %v3200
      %3452 = vmatprep.subr.bf16.mxu0 %v3205
      %3453 = vmatpush1.bf16.msra.mxu0 %v3204
      %3454 = vmatprep.subr.bf16.mxu0 %v3209
      %3455 = vmatpush1.bf16.msra.mxu0 %v3208
      %3456 = vmatprep.subr.bf16.mxu0 %v3213
      %3457 = vmatpush1.bf16.msra.mxu0 %v3212
      %3458 = vmatprep.subr.bf16.mxu0 %v3217
      %3459 = vmatpush1.bf16.msra.mxu0 %v3216
      %3460 = vmatprep.subr.bf16.mxu0 %v3221
      %3461 = vmatpush1.bf16.msra.mxu0 %v3220
      %3462 = vmatprep.subr.bf16.mxu0 %v3225
      %3463 = vmatpush1.bf16.msra.mxu0 %v3224
      %3464 = vmatprep.subr.bf16.mxu0 %v3229
      %3465 = vmatpush1.bf16.msra.mxu0 %v3228
      %3466 = vmatprep.subr.bf16.mxu0 %v3233
      %3467 = vmatpush1.bf16.msra.mxu0 %v3232
      %3468 = vmatprep.subr.bf16.mxu0 %v3237
      %3469 = vmatpush1.bf16.msra.mxu0 %v3236
      %3470 = vmatprep.subr.bf16.mxu0 %v3241
      %3471 = vmatpush1.bf16.msra.mxu0 %v3240
      %3472 = vmatprep.subr.bf16.mxu0 %v3245
      %3473 = vmatpush1.bf16.msra.mxu0 %v3244
      %3474 = vmatprep.subr.bf16.mxu0 %v3249
      %3475 = vmatpush1.bf16.msra.mxu0 %v3248
      %3476 = vmatprep.mubr.bf16.mxu0 %v2768
      %3477 = vmatmul.mubr.bf16.gmra.mrb[0].mxu0 %v2767
      %v3478 = vpop.f32.mrb[0].mxu0
      %v3479 = vadd.f32 %v2787, %v3478
      %v3480 = vpop.f32.mrb[0].mxu0
      %v3481 = vadd.f32 %v2791, %v3480
      %v3482 = vpop.f32.mrb[0].mxu0
      %v3483 = vadd.f32 %v2787, %v3482
      %v3484 = vpop.f32.mrb[0].mxu0
      %v3485 = vadd.f32 %v2791, %v3484
      %3486 = vmatprep.mubr.bf16.mxu0 %v2772
      %3487 = vmatmul.mubr.bf16.gmra.mrb[0].mxu0 %v2771
      %v3488 = vpop.f32.mrb[0].mxu0
      %v3489 = vadd.f32 %v2787, %v3488
      %v3490 = vpop.f32.mrb[0].mxu0
      %v3491 = vadd.f32 %v2791, %v3490
      %v3492 = vpop.f32.mrb[0].mxu0
      %v3493 = vadd.f32 %v2787, %v3492
      %v3494 = vpop.f32.mrb[0].mxu0
      %v3495 = vadd.f32 %v2791, %v3494
      %3496 = vmatprep.mubr.bf16.mxu0 %v2776
      %3497 = vmatmul.mubr.bf16.gmra.mrb[0].mxu0 %v2775
      %v3498 = vpop.f32.mrb[0].mxu0
      %v3499 = vadd.f32 %v2787, %v3498
      %v3500 = vpop.f32.mrb[0].mxu0
      %v3501 = vadd.f32 %v2791, %v3500
      %v3502 = vpop.f32.mrb[0].mxu0
      %v3503 = vadd.f32 %v2787, %v3502
      %v3504 = vpop.f32.mrb[0].mxu0
      %v3505 = vadd.f32 %v2791, %v3504
      %3506 = vmatprep.mubr.bf16.mxu0 %v2780
      %3507 = vmatmul.mubr.bf16.gmra.mrb[0].mxu0 %v2779
      %v3508 = vpop.f32.mrb[0].mxu0
      %v3509 = vadd.f32 %v2787, %v3508
      %v3510 = vpop.f32.mrb[0].mxu0
      %v3511 = vadd.f32 %v2791, %v3510
      %v3512 = vpop.f32.mrb[0].mxu0
      %v3513 = vadd.f32 %v2787, %v3512
      %v3514 = vpop.f32.mrb[0].mxu0
      %v3515 = vadd.f32 %v2791, %v3514
      %3516 = vdwg.mxu0
      %3517 = vmatprep.subr.bf16.mxu0 %v3253
      %3518 = vmatpush1.bf16.msra.mxu0 %v3252
      %3519 = vmatprep.subr.bf16.mxu0 %v3257
      %3520 = vmatpush1.bf16.msra.mxu0 %v3256
      %3521 = vmatprep.subr.bf16.mxu0 %v3261
      %3522 = vmatpush1.bf16.msra.mxu0 %v3260
      %3523 = vmatprep.subr.bf16.mxu0 %v3265
      %3524 = vmatpush1.bf16.msra.mxu0 %v3264
      %3525 = vmatprep.subr.bf16.mxu0 %v3269
      %3526 = vmatpush1.bf16.msra.mxu0 %v3268
      %3527 = vmatprep.subr.bf16.mxu0 %v3273
      %3528 = vmatpush1.bf16.msra.mxu0 %v3272
      %3529 = vmatprep.subr.bf16.mxu0 %v3277
      %3530 = vmatpush1.bf16.msra.mxu0 %v3276
      %3531 = vmatprep.subr.bf16.mxu0 %v3281
      %3532 = vmatpush1.bf16.msra.mxu0 %v3280
      %3533 = vmatprep.subr.bf16.mxu0 %v3285
      %3534 = vmatpush1.bf16.msra.mxu0 %v3284
      %3535 = vmatprep.subr.bf16.mxu0 %v3289
      %3536 = vmatpush1.bf16.msra.mxu0 %v3288
      %3537 = vmatprep.subr.bf16.mxu0 %v3293
      %3538 = vmatpush1.bf16.msra.mxu0 %v3292
      %3539 = vmatprep.subr.bf16.mxu0 %v3297
      %3540 = vmatpush1.bf16.msra.mxu0 %v3296
      %3541 = vmatprep.subr.bf16.mxu0 %v3301
      %3542 = vmatpush1.bf16.msra.mxu0 %v3300
      %3543 = vmatprep.subr.bf16.mxu0 %v3305
      %3544 = vmatpush1.bf16.msra.mxu0 %v3304
      %3545 = vmatprep.subr.bf16.mxu0 %v3309
      %3546 = vmatpush1.bf16.msra.mxu0 %v3308
      %3547 = vmatprep.subr.bf16.mxu0 %v3313
      %3548 = vmatpush1.bf16.msra.mxu0 %v3312
      %3549 = vmatprep.mubr.bf16.mxu0 %v2770
      %3550 = vmatmul.mubr.bf16.gmra.mrb[0].mxu0 %v2769
      %v3551 = vpop.f32.mrb[0].mxu0
      %v3552 = vadd.f32 %v3479, %v3551
      %v3553 = vpop.f32.mrb[0].mxu0
      %v3554 = vadd.f32 %v3481, %v3553
      %v3555 = vpop.f32.mrb[0].mxu0
      %v3556 = vadd.f32 %v3483, %v3555
      %v3557 = vpop.f32.mrb[0].mxu0
      %v3558 = vadd.f32 %v3485, %v3557
      %3559 = vmatprep.mubr.bf16.mxu0 %v2774
      %3560 = vmatmul.mubr.bf16.gmra.mrb[0].mxu0 %v2773
      %v3561 = vpop.f32.mrb[0].mxu0
      %v3562 = vadd.f32 %v3489, %v3561
      %v3563 = vpop.f32.mrb[0].mxu0
      %v3564 = vadd.f32 %v3491, %v3563
      %v3565 = vpop.f32.mrb[0].mxu0
      %v3566 = vadd.f32 %v3493, %v3565
      %v3567 = vpop.f32.mrb[0].mxu0
      %v3568 = vadd.f32 %v3495, %v3567
      %3569 = vmatprep.mubr.bf16.mxu0 %v2778
      %3570 = vmatmul.mubr.bf16.gmra.mrb[0].mxu0 %v2777
      %v3571 = vpop.f32.mrb[0].mxu0
      %v3572 = vadd.f32 %v3499, %v3571
      %v3573 = vpop.f32.mrb[0].mxu0
      %v3574 = vadd.f32 %v3501, %v3573
      %v3575 = vpop.f32.mrb[0].mxu0
      %v3576 = vadd.f32 %v3503, %v3575
      %v3577 = vpop.f32.mrb[0].mxu0
      %v3578 = vadd.f32 %v3505, %v3577
      %3579 = vmatprep.mubr.bf16.mxu0 %v2782
      %3580 = vmatmul.mubr.bf16.gmra.mrb[0].mxu0 %v2781
      %v3581 = vpop.f32.mrb[0].mxu0
      %v3582 = vadd.f32 %v3509, %v3581
      %v3583 = vpop.f32.mrb[0].mxu0
      %v3584 = vadd.f32 %v3511, %v3583
      %v3585 = vpop.f32.mrb[0].mxu0
      %v3586 = vadd.f32 %v3513, %v3585
      %v3587 = vpop.f32.mrb[0].mxu0
      %v3588 = vadd.f32 %v3515, %v3587
      %3589 = vdwg.mxu0
      %3590 = vmatprep.subr.bf16.mxu0 %v3191
      %3591 = vmatpush1.bf16.msra.mxu0 %v3190
      %3592 = vmatprep.subr.bf16.mxu0 %v3195
      %3593 = vmatpush1.bf16.msra.mxu0 %v3194
      %3594 = vmatprep.subr.bf16.mxu0 %v3199
      %3595 = vmatpush1.bf16.msra.mxu0 %v3198
      %3596 = vmatprep.subr.bf16.mxu0 %v3203
      %3597 = vmatpush1.bf16.msra.mxu0 %v3202
      %3598 = vmatprep.subr.bf16.mxu0 %v3207
      %3599 = vmatpush1.bf16.msra.mxu0 %v3206
      %3600 = vmatprep.subr.bf16.mxu0 %v3211
      %3601 = vmatpush1.bf16.msra.mxu0 %v3210
      %3602 = vmatprep.subr.bf16.mxu0 %v3215
      %3603 = vmatpush1.bf16.msra.mxu0 %v3214
      %3604 = vmatprep.subr.bf16.mxu0 %v3219
      %3605 = vmatpush1.bf16.msra.mxu0 %v3218
      %3606 = vmatprep.subr.bf16.mxu0 %v3223
      %3607 = vmatpush1.bf16.msra.mxu0 %v3222
      %3608 = vmatprep.subr.bf16.mxu0 %v3227
      %3609 = vmatpush1.bf16.msra.mxu0 %v3226
      %3610 = vmatprep.subr.bf16.mxu0 %v3231
      %3611 = vmatpush1.bf16.msra.mxu0 %v3230
      %3612 = vmatprep.subr.bf16.mxu0 %v3235
      %3613 = vmatpush1.bf16.msra.mxu0 %v3234
      %3614 = vmatprep.subr.bf16.mxu0 %v3239
      %3615 = vmatpush1.bf16.msra.mxu0 %v3238
      %3616 = vmatprep.subr.bf16.mxu0 %v3243
      %3617 = vmatpush1.bf16.msra.mxu0 %v3242
      %3618 = vmatprep.subr.bf16.mxu0 %v3247
      %3619 = vmatpush1.bf16.msra.mxu0 %v3246
      %3620 = vmatprep.subr.bf16.mxu0 %v3251
      %3621 = vmatpush1.bf16.msra.mxu0 %v3250
      %3622 = vmatprep.mubr.bf16.mxu0 %v2768
      %3623 = vmatmul.mubr.bf16.gmra.mrb[0].mxu0 %v2767
      %v3624 = vpop.f32.mrb[0].mxu0
      %v3625 = vadd.f32 %v2795, %v3624
      %v3626 = vpop.f32.mrb[0].mxu0
      %v3627 = vadd.f32 %v2799, %v3626
      %v3628 = vpop.f32.mrb[0].mxu0
      %v3629 = vadd.f32 %v2795, %v3628
      %v3630 = vpop.f32.mrb[0].mxu0
      %v3631 = vadd.f32 %v2799, %v3630
      %3632 = vmatprep.mubr.bf16.mxu0 %v2772
      %3633 = vmatmul.mubr.bf16.gmra.mrb[0].mxu0 %v2771
      %v3634 = vpop.f32.mrb[0].mxu0
      %v3635 = vadd.f32 %v2795, %v3634
      %v3636 = vpop.f32.mrb[0].mxu0
      %v3637 = vadd.f32 %v2799, %v3636
      %v3638 = vpop.f32.mrb[0].mxu0
      %v3639 = vadd.f32 %v2795, %v3638
      %v3640 = vpop.f32.mrb[0].mxu0
      %v3641 = vadd.f32 %v2799, %v3640
      %3642 = vmatprep.mubr.bf16.mxu0 %v2776
      %3643 = vmatmul.mubr.bf16.gmra.mrb[0].mxu0 %v2775
      %v3644 = vpop.f32.mrb[0].mxu0
      %v3645 = vadd.f32 %v2795, %v3644
      %v3646 = vpop.f32.mrb[0].mxu0
      %v3647 = vadd.f32 %v2799, %v3646
      %v3648 = vpop.f32.mrb[0].mxu0
      %v3649 = vadd.f32 %v2795, %v3648
      %v3650 = vpop.f32.mrb[0].mxu0
      %v3651 = vadd.f32 %v2799, %v3650
      %3652 = vmatprep.mubr.bf16.mxu0 %v2780
      %3653 = vmatmul.mubr.bf16.gmra.mrb[0].mxu0 %v2779
      %v3654 = vpop.f32.mrb[0].mxu0
      %v3655 = vadd.f32 %v2795, %v3654
      %v3656 = vpop.f32.mrb[0].mxu0
      %v3657 = vadd.f32 %v2799, %v3656
      %v3658 = vpop.f32.mrb[0].mxu0
      %v3659 = vadd.f32 %v2795, %v3658
      %v3660 = vpop.f32.mrb[0].mxu0
      %v3661 = vadd.f32 %v2799, %v3660
      %3662 = vdwg.mxu0
      %3663 = vmatprep.subr.bf16.mxu0 %v3255
      %3664 = vmatpush1.bf16.msra.mxu0 %v3254
      %3665 = vmatprep.subr.bf16.mxu0 %v3259
      %3666 = vmatpush1.bf16.msra.mxu0 %v3258
      %3667 = vmatprep.subr.bf16.mxu0 %v3263
      %3668 = vmatpush1.bf16.msra.mxu0 %v3262
      %3669 = vmatprep.subr.bf16.mxu0 %v3267
      %3670 = vmatpush1.bf16.msra.mxu0 %v3266
      %3671 = vmatprep.subr.bf16.mxu0 %v3271
      %3672 = vmatpush1.bf16.msra.mxu0 %v3270
      %3673 = vmatprep.subr.bf16.mxu0 %v3275
      %3674 = vmatpush1.bf16.msra.mxu0 %v3274
      %3675 = vmatprep.subr.bf16.mxu0 %v3279
      %3676 = vmatpush1.bf16.msra.mxu0 %v3278
      %3677 = vmatprep.subr.bf16.mxu0 %v3283
      %3678 = vmatpush1.bf16.msra.mxu0 %v3282
      %3679 = vmatprep.subr.bf16.mxu0 %v3287
      %3680 = vmatpush1.bf16.msra.mxu0 %v3286
      %3681 = vmatprep.subr.bf16.mxu0 %v3291
      %3682 = vmatpush1.bf16.msra.mxu0 %v3290
      %3683 = vmatprep.subr.bf16.mxu0 %v3295
      %3684 = vmatpush1.bf16.msra.mxu0 %v3294
      %3685 = vmatprep.subr.bf16.mxu0 %v3299
      %3686 = vmatpush1.bf16.msra.mxu0 %v3298
      %3687 = vmatprep.subr.bf16.mxu0 %v3303
      %3688 = vmatpush1.bf16.msra.mxu0 %v3302
      %3689 = vmatprep.subr.bf16.mxu0 %v3307
      %3690 = vmatpush1.bf16.msra.mxu0 %v3306
      %3691 = vmatprep.subr.bf16.mxu0 %v3311
      %3692 = vmatpush1.bf16.msra.mxu0 %v3310
      %3693 = vmatprep.subr.bf16.mxu0 %v3315
      %3694 = vmatpush1.bf16.msra.mxu0 %v3314
      %3695 = vmatprep.mubr.bf16.mxu0 %v2770
      %3696 = vmatmul.mubr.bf16.gmra.mrb[0].mxu0 %v2769
      %v3697 = vpop.f32.mrb[0].mxu0
      %v3698 = vadd.f32 %v3625, %v3697
      %v3699 = vpop.f32.mrb[0].mxu0
      %v3700 = vadd.f32 %v3627, %v3699
      %v3701 = vpop.f32.mrb[0].mxu0
      %v3702 = vadd.f32 %v3629, %v3701
      %v3703 = vpop.f32.mrb[0].mxu0
      %v3704 = vadd.f32 %v3631, %v3703
      %3705 = vmatprep.mubr.bf16.mxu0 %v2774
      %3706 = vmatmul.mubr.bf16.gmra.mrb[0].mxu0 %v2773
      %v3707 = vpop.f32.mrb[0].mxu0
      %v3708 = vadd.f32 %v3635, %v3707
      %v3709 = vpop.f32.mrb[0].mxu0
      %v3710 = vadd.f32 %v3637, %v3709
      %v3711 = vpop.f32.mrb[0].mxu0
      %v3712 = vadd.f32 %v3639, %v3711
      %v3713 = vpop.f32.mrb[0].mxu0
      %v3714 = vadd.f32 %v3641, %v3713
      %3715 = vmatprep.mubr.bf16.mxu0 %v2778
      %3716 = vmatmul.mubr.bf16.gmra.mrb[0].mxu0 %v2777
      %v3717 = vpop.f32.mrb[0].mxu0
      %v3718 = vadd.f32 %v3645, %v3717
      %v3719 = vpop.f32.mrb[0].mxu0
      %v3720 = vadd.f32 %v3647, %v3719
      %v3721 = vpop.f32.mrb[0].mxu0
      %v3722 = vadd.f32 %v3649, %v3721
      %v3723 = vpop.f32.mrb[0].mxu0
      %v3724 = vadd.f32 %v3651, %v3723
      %3725 = vmatprep.mubr.bf16.mxu0 %v2782
      %3726 = vmatmul.mubr.bf16.gmra.mrb[0].mxu0 %v2781
      %v3727 = vpop.f32.mrb[0].mxu0
      %v3728 = vadd.f32 %v3655, %v3727
      %v3729 = vpop.f32.mrb[0].mxu0
      %v3730 = vadd.f32 %v3657, %v3729
      %v3731 = vpop.f32.mrb[0].mxu0
      %v3732 = vadd.f32 %v3659, %v3731
      %v3733 = vpop.f32.mrb[0].mxu0
      %v3734 = vadd.f32 %v3661, %v3733
      %3735 = vdwg.mxu0
      %v3736 = vld [vmem:[%s695] sm:$0xff]
      %v3737 = vld [vmem:[%s695 + $0x8] sm:$0xff]
      %v3738 = vld [vmem:[%s695 + $0x10] sm:$0xff]
      %v3739 = vld [vmem:[%s695 + $0x18] sm:$0xff]
      %v3740 = vld [vmem:[%s695 + $0x20] sm:$0xff]
      %v3741 = vld [vmem:[%s695 + $0x28] sm:$0xff]
      %v3742 = vld [vmem:[%s695 + $0x30] sm:$0xff]
      %v3743 = vld [vmem:[%s695 + $0x38] sm:$0xff]
      %v3744 = vld [vmem:[%s695 + $0x40] sm:$0xff]
      %v3745 = vld [vmem:[%s695 + $0x48] sm:$0xff]
      %v3746 = vld [vmem:[%s695 + $0x50] sm:$0xff]
      %v3747 = vld [vmem:[%s695 + $0x58] sm:$0xff]
      %v3748 = vld [vmem:[%s695 + $0x60] sm:$0xff]
      %v3749 = vld [vmem:[%s695 + $0x68] sm:$0xff]
      %v3750 = vld [vmem:[%s695 + $0x70] sm:$0xff]
      %v3751 = vld [vmem:[%s695 + $0x78] sm:$0xff]
      %v3752 = vld [vmem:[%s695 + $0x80] sm:$0xff]
      %v3753 = vld [vmem:[%s695 + $0x88] sm:$0xff]
      %v3754 = vld [vmem:[%s695 + $0x90] sm:$0xff]
      %v3755 = vld [vmem:[%s695 + $0x98] sm:$0xff]
      %v3756 = vld [vmem:[%s695 + $0xa0] sm:$0xff]
      %v3757 = vld [vmem:[%s695 + $0xa8] sm:$0xff]
      %v3758 = vld [vmem:[%s695 + $0xb0] sm:$0xff]
      %v3759 = vld [vmem:[%s695 + $0xb8] sm:$0xff]
      %v3760 = vld [vmem:[%s695 + $0xc0] sm:$0xff]
      %v3761 = vld [vmem:[%s695 + $0xc8] sm:$0xff]
      %v3762 = vld [vmem:[%s695 + $0xd0] sm:$0xff]
      %v3763 = vld [vmem:[%s695 + $0xd8] sm:$0xff]
      %v3764 = vld [vmem:[%s695 + $0xe0] sm:$0xff]
      %v3765 = vld [vmem:[%s695 + $0xe8] sm:$0xff]
      %v3766 = vld [vmem:[%s695 + $0xf0] sm:$0xff]
      %v3767 = vld [vmem:[%s695 + $0xf8] sm:$0xff]
      %v3768 = vld [vmem:[%s695 + $0x100] sm:$0xff]
      %v3769 = vld [vmem:[%s695 + $0x108] sm:$0xff]
      %v3770 = vld [vmem:[%s695 + $0x110] sm:$0xff]
      %v3771 = vld [vmem:[%s695 + $0x118] sm:$0xff]
      %v3772 = vld [vmem:[%s695 + $0x120] sm:$0xff]
      %v3773 = vld [vmem:[%s695 + $0x128] sm:$0xff]
      %v3774 = vld [vmem:[%s695 + $0x130] sm:$0xff]
      %v3775 = vld [vmem:[%s695 + $0x138] sm:$0xff]
      %v3776 = vld [vmem:[%s695 + $0x140] sm:$0xff]
      %v3777 = vld [vmem:[%s695 + $0x148] sm:$0xff]
      %v3778 = vld [vmem:[%s695 + $0x150] sm:$0xff]
      %v3779 = vld [vmem:[%s695 + $0x158] sm:$0xff]
      %v3780 = vld [vmem:[%s695 + $0x160] sm:$0xff]
      %v3781 = vld [vmem:[%s695 + $0x168] sm:$0xff]
      %v3782 = vld [vmem:[%s695 + $0x170] sm:$0xff]
      %v3783 = vld [vmem:[%s695 + $0x178] sm:$0xff]
      %v3784 = vld [vmem:[%s695 + $0x180] sm:$0xff]
      %v3785 = vld [vmem:[%s695 + $0x188] sm:$0xff]
      %v3786 = vld [vmem:[%s695 + $0x190] sm:$0xff]
      %v3787 = vld [vmem:[%s695 + $0x198] sm:$0xff]
      %v3788 = vld [vmem:[%s695 + $0x1a0] sm:$0xff]
      %v3789 = vld [vmem:[%s695 + $0x1a8] sm:$0xff]
      %v3790 = vld [vmem:[%s695 + $0x1b0] sm:$0xff]
      %v3791 = vld [vmem:[%s695 + $0x1b8] sm:$0xff]
      %v3792 = vpack.c.bf16 %v3743, %v3736
      %v3793 = vpack.c.bf16 %v3744, %v3737
      %v3794 = vpack.c.bf16 %v3745, %v3738
      %v3795 = vpack.c.bf16 %v3746, %v3739
      %v3796 = vpack.c.bf16 %v3747, %v3740
      %v3797 = vpack.c.bf16 %v3748, %v3741
      %v3798 = vpack.c.bf16 %v3749, %v3742
      %v3799 = vpack.c.bf16 %v3757, %v3750
      %v3800 = vpack.c.bf16 %v3758, %v3751
      %v3801 = vpack.c.bf16 %v3759, %v3752
      %v3802 = vpack.c.bf16 %v3760, %v3753
      %v3803 = vpack.c.bf16 %v3761, %v3754
      %v3804 = vpack.c.bf16 %v3762, %v3755
      %v3805 = vpack.c.bf16 %v3763, %v3756
      %v3806 = vpack.c.bf16 %v3771, %v3764
      %v3807 = vpack.c.bf16 %v3772, %v3765
      %v3808 = vpack.c.bf16 %v3773, %v3766
      %v3809 = vpack.c.bf16 %v3774, %v3767
      %v3810 = vpack.c.bf16 %v3775, %v3768
      %v3811 = vpack.c.bf16 %v3776, %v3769
      %v3812 = vpack.c.bf16 %v3777, %v3770
      %v3813 = vpack.c.bf16 %v3785, %v3778
      %v3814 = vpack.c.bf16 %v3786, %v3779
      %v3815 = vpack.c.bf16 %v3787, %v3780
      %v3816 = vpack.c.bf16 %v3788, %v3781
      %v3817 = vpack.c.bf16 %v3789, %v3782
      %v3818 = vpack.c.bf16 %v3790, %v3783
      %v3819 = vpack.c.bf16 %v3791, %v3784
      %v3821 = vsel %vm2138, %v3798, 0
      %v3824 = vsel %vm2138, %v3805, 0
      %v3827 = vsel %vm2138, %v3812, 0
      %v3830 = vsel %vm2138, %v3819, 0
      %3832 = vmatprep.subr.bf16.mxu0 %v1747
      %3833 = vmatpush1.bf16.msra.mxu0 %v1746
      %3834 = vmatprep.subr.bf16.mxu0 %v1751
      %3835 = vmatpush1.bf16.msra.mxu0 %v1750
      %3836 = vmatprep.subr.bf16.mxu0 %v1755
      %3837 = vmatpush1.bf16.msra.mxu0 %v1754
      %3838 = vmatprep.subr.bf16.mxu0 %v1759
      %3839 = vmatpush1.bf16.msra.mxu0 %v1758
      %3840 = vmatprep.subr.bf16.mxu0 %v1763
      %3841 = vmatpush1.bf16.msra.mxu0 %v1762
      %3842 = vmatprep.subr.bf16.mxu0 %v1767
      %3843 = vmatpush1.bf16.msra.mxu0 %v1766
      %3844 = vmatprep.subr.bf16.mxu0 %v1771
      %3845 = vmatpush1.bf16.msra.mxu0 %v1770
      %3846 = vmatprep.subr.bf16.mxu0 %v1775
      %3847 = vmatpush1.bf16.msra.mxu0 %v1774
      %3848 = vmatprep.subr.bf16.mxu0 %v1779
      %3849 = vmatpush1.bf16.msra.mxu0 %v1778
      %3850 = vmatprep.subr.bf16.mxu0 %v1783
      %3851 = vmatpush1.bf16.msra.mxu0 %v1782
      %3852 = vmatprep.subr.bf16.mxu0 %v1787
      %3853 = vmatpush1.bf16.msra.mxu0 %v1786
      %3854 = vmatprep.subr.bf16.mxu0 %v1791
      %3855 = vmatpush1.bf16.msra.mxu0 %v1790
      %3856 = vmatprep.subr.bf16.mxu0 %v1795
      %3857 = vmatpush1.bf16.msra.mxu0 %v1794
      %3858 = vmatprep.subr.bf16.mxu0 %v1799
      %3859 = vmatpush1.bf16.msra.mxu0 %v1798
      %3860 = vmatprep.subr.bf16.mxu0 %v1803
      %3861 = vmatpush1.bf16.msra.mxu0 %v1802
      %3862 = vmatprep.subr.bf16.mxu0 %v1807
      %3863 = vmatpush1.bf16.msra.mxu0 %v1806
      %3864 = vmatprep.mubr.bf16.mxu0 %v3793
      %3865 = vmatmul.mubr.bf16.gmra.mrb[0].mxu0 %v3792
      %v3866 = vpop.f32.mrb[0].mxu0
      %v3867 = vadd.f32 %v1141, %v3866
      %v3868 = vpop.f32.mrb[0].mxu0
      %v3869 = vadd.f32 %v1145, %v3868
      %v3870 = vpop.f32.mrb[0].mxu0
      %v3871 = vadd.f32 %v1141, %v3870
      %v3872 = vpop.f32.mrb[0].mxu0
      %v3873 = vadd.f32 %v1145, %v3872
      %3874 = vmatprep.mubr.bf16.mxu0 %v3800
      %3875 = vmatmul.mubr.bf16.gmra.mrb[0].mxu0 %v3799
      %v3876 = vpop.f32.mrb[0].mxu0
      %v3877 = vadd.f32 %v1141, %v3876
      %v3878 = vpop.f32.mrb[0].mxu0
      %v3879 = vadd.f32 %v1145, %v3878
      %v3880 = vpop.f32.mrb[0].mxu0
      %v3881 = vadd.f32 %v1141, %v3880
      %v3882 = vpop.f32.mrb[0].mxu0
      %v3883 = vadd.f32 %v1145, %v3882
      %3884 = vmatprep.mubr.bf16.mxu0 %v3807
      %3885 = vmatmul.mubr.bf16.gmra.mrb[0].mxu0 %v3806
      %v3886 = vpop.f32.mrb[0].mxu0
      %v3887 = vadd.f32 %v1141, %v3886
      %v3888 = vpop.f32.mrb[0].mxu0
      %v3889 = vadd.f32 %v1145, %v3888
      %v3890 = vpop.f32.mrb[0].mxu0
      %v3891 = vadd.f32 %v1141, %v3890
      %v3892 = vpop.f32.mrb[0].mxu0
      %v3893 = vadd.f32 %v1145, %v3892
      %3894 = vmatprep.mubr.bf16.mxu0 %v3814
      %3895 = vmatmul.mubr.bf16.gmra.mrb[0].mxu0 %v3813
      %v3896 = vpop.f32.mrb[0].mxu0
      %v3897 = vadd.f32 %v1141, %v3896
      %v3898 = vpop.f32.mrb[0].mxu0
      %v3899 = vadd.f32 %v1145, %v3898
      %v3900 = vpop.f32.mrb[0].mxu0
      %v3901 = vadd.f32 %v1141, %v3900
      %v3902 = vpop.f32.mrb[0].mxu0
      %v3903 = vadd.f32 %v1145, %v3902
      %3904 = vdwg.mxu0
      %3905 = vmatprep.subr.bf16.mxu0 %v1811
      %3906 = vmatpush1.bf16.msra.mxu0 %v1810
      %3907 = vmatprep.subr.bf16.mxu0 %v1815
      %3908 = vmatpush1.bf16.msra.mxu0 %v1814
      %3909 = vmatprep.subr.bf16.mxu0 %v1819
      %3910 = vmatpush1.bf16.msra.mxu0 %v1818
      %3911 = vmatprep.subr.bf16.mxu0 %v1823
      %3912 = vmatpush1.bf16.msra.mxu0 %v1822
      %3913 = vmatprep.subr.bf16.mxu0 %v1827
      %3914 = vmatpush1.bf16.msra.mxu0 %v1826
      %3915 = vmatprep.subr.bf16.mxu0 %v1831
      %3916 = vmatpush1.bf16.msra.mxu0 %v1830
      %3917 = vmatprep.subr.bf16.mxu0 %v1835
      %3918 = vmatpush1.bf16.msra.mxu0 %v1834
      %3919 = vmatprep.subr.bf16.mxu0 %v1839
      %3920 = vmatpush1.bf16.msra.mxu0 %v1838
      %3921 = vmatprep.subr.bf16.mxu0 %v1843
      %3922 = vmatpush1.bf16.msra.mxu0 %v1842
      %3923 = vmatprep.subr.bf16.mxu0 %v1847
      %3924 = vmatpush1.bf16.msra.mxu0 %v1846
      %3925 = vmatprep.subr.bf16.mxu0 %v1851
      %3926 = vmatpush1.bf16.msra.mxu0 %v1850
      %3927 = vmatprep.subr.bf16.mxu0 %v1855
      %3928 = vmatpush1.bf16.msra.mxu0 %v1854
      %3929 = vmatprep.subr.bf16.mxu0 %v1859
      %3930 = vmatpush1.bf16.msra.mxu0 %v1858
      %3931 = vmatprep.subr.bf16.mxu0 %v1863
      %3932 = vmatpush1.bf16.msra.mxu0 %v1862
      %3933 = vmatprep.subr.bf16.mxu0 %v1867
      %3934 = vmatpush1.bf16.msra.mxu0 %v1866
      %3935 = vmatprep.subr.bf16.mxu0 %v1871
      %3936 = vmatpush1.bf16.msra.mxu0 %v1870
      %3937 = vmatprep.mubr.bf16.mxu0 %v3795
      %3938 = vmatmul.mubr.bf16.gmra.mrb[0].mxu0 %v3794
      %v3939 = vpop.f32.mrb[0].mxu0
      %v3940 = vadd.f32 %v3867, %v3939
      %v3941 = vpop.f32.mrb[0].mxu0
      %v3942 = vadd.f32 %v3869, %v3941
      %v3943 = vpop.f32.mrb[0].mxu0
      %v3944 = vadd.f32 %v3871, %v3943
      %v3945 = vpop.f32.mrb[0].mxu0
      %v3946 = vadd.f32 %v3873, %v3945
      %3947 = vmatprep.mubr.bf16.mxu0 %v3802
      %3948 = vmatmul.mubr.bf16.gmra.mrb[0].mxu0 %v3801
      %v3949 = vpop.f32.mrb[0].mxu0
      %v3950 = vadd.f32 %v3877, %v3949
      %v3951 = vpop.f32.mrb[0].mxu0
      %v3952 = vadd.f32 %v3879, %v3951
      %v3953 = vpop.f32.mrb[0].mxu0
      %v3954 = vadd.f32 %v3881, %v3953
      %v3955 = vpop.f32.mrb[0].mxu0
      %v3956 = vadd.f32 %v3883, %v3955
      %3957 = vmatprep.mubr.bf16.mxu0 %v3809
      %3958 = vmatmul.mubr.bf16.gmra.mrb[0].mxu0 %v3808
      %v3959 = vpop.f32.mrb[0].mxu0
      %v3960 = vadd.f32 %v3887, %v3959
      %v3961 = vpop.f32.mrb[0].mxu0
      %v3962 = vadd.f32 %v3889, %v3961
      %v3963 = vpop.f32.mrb[0].mxu0
      %v3964 = vadd.f32 %v3891, %v3963
      %v3965 = vpop.f32.mrb[0].mxu0
      %v3966 = vadd.f32 %v3893, %v3965
      %3967 = vmatprep.mubr.bf16.mxu0 %v3816
      %3968 = vmatmul.mubr.bf16.gmra.mrb[0].mxu0 %v3815
      %v3969 = vpop.f32.mrb[0].mxu0
      %v3970 = vadd.f32 %v3897, %v3969
      %v3971 = vpop.f32.mrb[0].mxu0
      %v3972 = vadd.f32 %v3899, %v3971
      %v3973 = vpop.f32.mrb[0].mxu0
      %v3974 = vadd.f32 %v3901, %v3973
      %v3975 = vpop.f32.mrb[0].mxu0
      %v3976 = vadd.f32 %v3903, %v3975
      %3977 = vdwg.mxu0
      %3978 = vmatprep.subr.bf16.mxu0 %v1875
      %3979 = vmatpush1.bf16.msra.mxu0 %v1874
      %3980 = vmatprep.subr.bf16.mxu0 %v1879
      %3981 = vmatpush1.bf16.msra.mxu0 %v1878
      %3982 = vmatprep.subr.bf16.mxu0 %v1883
      %3983 = vmatpush1.bf16.msra.mxu0 %v1882
      %3984 = vmatprep.subr.bf16.mxu0 %v1887
      %3985 = vmatpush1.bf16.msra.mxu0 %v1886
      %3986 = vmatprep.subr.bf16.mxu0 %v1891
      %3987 = vmatpush1.bf16.msra.mxu0 %v1890
      %3988 = vmatprep.subr.bf16.mxu0 %v1895
      %3989 = vmatpush1.bf16.msra.mxu0 %v1894
      %3990 = vmatprep.subr.bf16.mxu0 %v1899
      %3991 = vmatpush1.bf16.msra.mxu0 %v1898
      %3992 = vmatprep.subr.bf16.mxu0 %v1903
      %3993 = vmatpush1.bf16.msra.mxu0 %v1902
      %3994 = vmatprep.subr.bf16.mxu0 %v1907
      %3995 = vmatpush1.bf16.msra.mxu0 %v1906
      %3996 = vmatprep.subr.bf16.mxu0 %v1911
      %3997 = vmatpush1.bf16.msra.mxu0 %v1910
      %3998 = vmatprep.subr.bf16.mxu0 %v1915
      %3999 = vmatpush1.bf16.msra.mxu0 %v1914
      %4000 = vmatprep.subr.bf16.mxu0 %v1919
      %4001 = vmatpush1.bf16.msra.mxu0 %v1918
      %4002 = vmatprep.subr.bf16.mxu0 %v1923
      %4003 = vmatpush1.bf16.msra.mxu0 %v1922
      %4004 = vmatprep.subr.bf16.mxu0 %v1927
      %4005 = vmatpush1.bf16.msra.mxu0 %v1926
      %4006 = vmatprep.subr.bf16.mxu0 %v1931
      %4007 = vmatpush1.bf16.msra.mxu0 %v1930
      %4008 = vmatprep.subr.bf16.mxu0 %v1935
      %4009 = vmatpush1.bf16.msra.mxu0 %v1934
      %4010 = vmatprep.mubr.bf16.mxu0 %v3797
      %4011 = vmatmul.mubr.bf16.gmra.mrb[0].mxu0 %v3796
      %v4012 = vpop.f32.mrb[0].mxu0
      %v4013 = vadd.f32 %v3940, %v4012
      %v4014 = vpop.f32.mrb[0].mxu0
      %v4015 = vadd.f32 %v3942, %v4014
      %v4016 = vpop.f32.mrb[0].mxu0
      %v4017 = vadd.f32 %v3944, %v4016
      %v4018 = vpop.f32.mrb[0].mxu0
      %v4019 = vadd.f32 %v3946, %v4018
      %4020 = vmatprep.mubr.bf16.mxu0 %v3804
      %4021 = vmatmul.mubr.bf16.gmra.mrb[0].mxu0 %v3803
      %v4022 = vpop.f32.mrb[0].mxu0
      %v4023 = vadd.f32 %v3950, %v4022
      %v4024 = vpop.f32.mrb[0].mxu0
      %v4025 = vadd.f32 %v3952, %v4024
      %v4026 = vpop.f32.mrb[0].mxu0
      %v4027 = vadd.f32 %v3954, %v4026
      %v4028 = vpop.f32.mrb[0].mxu0
      %v4029 = vadd.f32 %v3956, %v4028
      %4030 = vmatprep.mubr.bf16.mxu0 %v3811
      %4031 = vmatmul.mubr.bf16.gmra.mrb[0].mxu0 %v3810
      %v4032 = vpop.f32.mrb[0].mxu0
      %v4033 = vadd.f32 %v3960, %v4032
      %v4034 = vpop.f32.mrb[0].mxu0
      %v4035 = vadd.f32 %v3962, %v4034
      %v4036 = vpop.f32.mrb[0].mxu0
      %v4037 = vadd.f32 %v3964, %v4036
      %v4038 = vpop.f32.mrb[0].mxu0
      %v4039 = vadd.f32 %v3966, %v4038
      %4040 = vmatprep.mubr.bf16.mxu0 %v3818
      %4041 = vmatmul.mubr.bf16.gmra.mrb[0].mxu0 %v3817
      %v4042 = vpop.f32.mrb[0].mxu0
      %v4043 = vadd.f32 %v3970, %v4042
      %v4044 = vpop.f32.mrb[0].mxu0
      %v4045 = vadd.f32 %v3972, %v4044
      %v4046 = vpop.f32.mrb[0].mxu0
      %v4047 = vadd.f32 %v3974, %v4046
      %v4048 = vpop.f32.mrb[0].mxu0
      %v4049 = vadd.f32 %v3976, %v4048
      %4050 = vdwg.mxu0
      %4051 = vmatprep.subr.bf16.mxu0 %v1939
      %4052 = vmatpush1.bf16.msra.mxu0 %v1938
      %4053 = vmatprep.subr.bf16.mxu0 0
      %4054 = vmatpush1.bf16.msra.mxu0 0
      %4055 = vmatprep.subr.bf16.mxu0 0
      %4056 = vmatpush1.bf16.msra.mxu0 0
      %4057 = vmatprep.subr.bf16.mxu0 0
      %4058 = vmatpush1.bf16.msra.mxu0 0
      %4059 = vmatprep.subr.bf16.mxu0 0
      %4060 = vmatpush1.bf16.msra.mxu0 0
      %4061 = vmatprep.subr.bf16.mxu0 0
      %4062 = vmatpush1.bf16.msra.mxu0 0
      %4063 = vmatprep.subr.bf16.mxu0 0
      %4064 = vmatpush1.bf16.msra.mxu0 0
      %4065 = vmatprep.subr.bf16.mxu0 0
      %4066 = vmatpush1.bf16.msra.mxu0 0
      %4067 = vmatprep.subr.bf16.mxu0 0
      %4068 = vmatpush1.bf16.msra.mxu0 0
      %4069 = vmatprep.subr.bf16.mxu0 0
      %4070 = vmatpush1.bf16.msra.mxu0 0
      %4071 = vmatprep.subr.bf16.mxu0 0
      %4072 = vmatpush1.bf16.msra.mxu0 0
      %4073 = vmatprep.subr.bf16.mxu0 0
      %4074 = vmatpush1.bf16.msra.mxu0 0
      %4075 = vmatprep.subr.bf16.mxu0 0
      %4076 = vmatpush1.bf16.msra.mxu0 0
      %4077 = vmatprep.subr.bf16.mxu0 0
      %4078 = vmatpush1.bf16.msra.mxu0 0
      %4079 = vmatprep.subr.bf16.mxu0 0
      %4080 = vmatpush1.bf16.msra.mxu0 0
      %4081 = vmatprep.subr.bf16.mxu0 0
      %4082 = vmatpush1.bf16.msra.mxu0 0
      %4083 = vmatprep.mubr.bf16.mxu0 0
      %4084 = vmatmul.mubr.bf16.gmra.mrb[0].mxu0 %v3821
      %v4085 = vpop.f32.mrb[0].mxu0
      %v4086 = vadd.f32 %v4013, %v4085
      %v4087 = vpop.f32.mrb[0].mxu0
      %v4088 = vadd.f32 %v4015, %v4087
      %v4089 = vpop.f32.mrb[0].mxu0
      %v4090 = vadd.f32 %v4017, %v4089
      %v4091 = vpop.f32.mrb[0].mxu0
      %v4092 = vadd.f32 %v4019, %v4091
      %4093 = vmatprep.mubr.bf16.mxu0 0
      %4094 = vmatmul.mubr.bf16.gmra.mrb[0].mxu0 %v3824
      %v4095 = vpop.f32.mrb[0].mxu0
      %v4096 = vadd.f32 %v4023, %v4095
      %v4097 = vpop.f32.mrb[0].mxu0
      %v4098 = vadd.f32 %v4025, %v4097
      %v4099 = vpop.f32.mrb[0].mxu0
      %v4100 = vadd.f32 %v4027, %v4099
      %v4101 = vpop.f32.mrb[0].mxu0
      %v4102 = vadd.f32 %v4029, %v4101
      %4103 = vmatprep.mubr.bf16.mxu0 0
      %4104 = vmatmul.mubr.bf16.gmra.mrb[0].mxu0 %v3827
      %v4105 = vpop.f32.mrb[0].mxu0
      %v4106 = vadd.f32 %v4033, %v4105
      %v4107 = vpop.f32.mrb[0].mxu0
      %v4108 = vadd.f32 %v4035, %v4107
      %v4109 = vpop.f32.mrb[0].mxu0
      %v4110 = vadd.f32 %v4037, %v4109
      %v4111 = vpop.f32.mrb[0].mxu0
      %v4112 = vadd.f32 %v4039, %v4111
      %4113 = vmatprep.mubr.bf16.mxu0 0
      %4114 = vmatmul.mubr.bf16.gmra.mrb[0].mxu0 %v3830
      %v4115 = vpop.f32.mrb[0].mxu0
      %v4116 = vadd.f32 %v4043, %v4115
      %v4117 = vpop.f32.mrb[0].mxu0
      %v4118 = vadd.f32 %v4045, %v4117
      %v4119 = vpop.f32.mrb[0].mxu0
      %v4120 = vadd.f32 %v4047, %v4119
      %v4121 = vpop.f32.mrb[0].mxu0
      %v4122 = vadd.f32 %v4049, %v4121
      %4123 = vdwg.mxu0
      %4124 = vmatprep.subr.bf16.mxu0 %v1749
      %4125 = vmatpush1.bf16.msra.mxu0 %v1748
      %4126 = vmatprep.subr.bf16.mxu0 %v1753
      %4127 = vmatpush1.bf16.msra.mxu0 %v1752
      %4128 = vmatprep.subr.bf16.mxu0 %v1757
      %4129 = vmatpush1.bf16.msra.mxu0 %v1756
      %4130 = vmatprep.subr.bf16.mxu0 %v1761
      %4131 = vmatpush1.bf16.msra.mxu0 %v1760
      %4132 = vmatprep.subr.bf16.mxu0 %v1765
      %4133 = vmatpush1.bf16.msra.mxu0 %v1764
      %4134 = vmatprep.subr.bf16.mxu0 %v1769
      %4135 = vmatpush1.bf16.msra.mxu0 %v1768
      %4136 = vmatprep.subr.bf16.mxu0 %v1773
      %4137 = vmatpush1.bf16.msra.mxu0 %v1772
      %4138 = vmatprep.subr.bf16.mxu0 %v1777
      %4139 = vmatpush1.bf16.msra.mxu0 %v1776
      %4140 = vmatprep.subr.bf16.mxu0 %v1781
      %4141 = vmatpush1.bf16.msra.mxu0 %v1780
      %4142 = vmatprep.subr.bf16.mxu0 %v1785
      %4143 = vmatpush1.bf16.msra.mxu0 %v1784
      %4144 = vmatprep.subr.bf16.mxu0 %v1789
      %4145 = vmatpush1.bf16.msra.mxu0 %v1788
      %4146 = vmatprep.subr.bf16.mxu0 %v1793
      %4147 = vmatpush1.bf16.msra.mxu0 %v1792
      %4148 = vmatprep.subr.bf16.mxu0 %v1797
      %4149 = vmatpush1.bf16.msra.mxu0 %v1796
      %4150 = vmatprep.subr.bf16.mxu0 %v1801
      %4151 = vmatpush1.bf16.msra.mxu0 %v1800
      %4152 = vmatprep.subr.bf16.mxu0 %v1805
      %4153 = vmatpush1.bf16.msra.mxu0 %v1804
      %4154 = vmatprep.subr.bf16.mxu0 %v1809
      %4155 = vmatpush1.bf16.msra.mxu0 %v1808
      %4156 = vmatprep.mubr.bf16.mxu0 %v3793
      %4157 = vmatmul.mubr.bf16.gmra.mrb[0].mxu0 %v3792
      %v4158 = vpop.f32.mrb[0].mxu0
      %v4159 = vadd.f32 %v1149, %v4158
      %v4160 = vpop.f32.mrb[0].mxu0
      %v4161 = vadd.f32 %v1153, %v4160
      %v4162 = vpop.f32.mrb[0].mxu0
      %v4163 = vadd.f32 %v1149, %v4162
      %v4164 = vpop.f32.mrb[0].mxu0
      %v4165 = vadd.f32 %v1153, %v4164
      %4166 = vmatprep.mubr.bf16.mxu0 %v3800
      %4167 = vmatmul.mubr.bf16.gmra.mrb[0].mxu0 %v3799
      %v4168 = vpop.f32.mrb[0].mxu0
      %v4169 = vadd.f32 %v1149, %v4168
      %v4170 = vpop.f32.mrb[0].mxu0
      %v4171 = vadd.f32 %v1153, %v4170
      %v4172 = vpop.f32.mrb[0].mxu0
      %v4173 = vadd.f32 %v1149, %v4172
      %v4174 = vpop.f32.mrb[0].mxu0
      %v4175 = vadd.f32 %v1153, %v4174
      %4176 = vmatprep.mubr.bf16.mxu0 %v3807
      %4177 = vmatmul.mubr.bf16.gmra.mrb[0].mxu0 %v3806
      %v4178 = vpop.f32.mrb[0].mxu0
      %v4179 = vadd.f32 %v1149, %v4178
      %v4180 = vpop.f32.mrb[0].mxu0
      %v4181 = vadd.f32 %v1153, %v4180
      %v4182 = vpop.f32.mrb[0].mxu0
      %v4183 = vadd.f32 %v1149, %v4182
      %v4184 = vpop.f32.mrb[0].mxu0
      %v4185 = vadd.f32 %v1153, %v4184
      %4186 = vmatprep.mubr.bf16.mxu0 %v3814
      %4187 = vmatmul.mubr.bf16.gmra.mrb[0].mxu0 %v3813
      %v4188 = vpop.f32.mrb[0].mxu0
      %v4189 = vadd.f32 %v1149, %v4188
      %v4190 = vpop.f32.mrb[0].mxu0
      %v4191 = vadd.f32 %v1153, %v4190
      %v4192 = vpop.f32.mrb[0].mxu0
      %v4193 = vadd.f32 %v1149, %v4192
      %v4194 = vpop.f32.mrb[0].mxu0
      %v4195 = vadd.f32 %v1153, %v4194
      %4196 = vdwg.mxu0
      %4197 = vmatprep.subr.bf16.mxu0 %v1813
      %4198 = vmatpush1.bf16.msra.mxu0 %v1812
      %4199 = vmatprep.subr.bf16.mxu0 %v1817
      %4200 = vmatpush1.bf16.msra.mxu0 %v1816
      %4201 = vmatprep.subr.bf16.mxu0 %v1821
      %4202 = vmatpush1.bf16.msra.mxu0 %v1820
      %4203 = vmatprep.subr.bf16.mxu0 %v1825
      %4204 = vmatpush1.bf16.msra.mxu0 %v1824
      %4205 = vmatprep.subr.bf16.mxu0 %v1829
      %4206 = vmatpush1.bf16.msra.mxu0 %v1828
      %4207 = vmatprep.subr.bf16.mxu0 %v1833
      %4208 = vmatpush1.bf16.msra.mxu0 %v1832
      %4209 = vmatprep.subr.bf16.mxu0 %v1837
      %4210 = vmatpush1.bf16.msra.mxu0 %v1836
      %4211 = vmatprep.subr.bf16.mxu0 %v1841
      %4212 = vmatpush1.bf16.msra.mxu0 %v1840
      %4213 = vmatprep.subr.bf16.mxu0 %v1845
      %4214 = vmatpush1.bf16.msra.mxu0 %v1844
      %4215 = vmatprep.subr.bf16.mxu0 %v1849
      %4216 = vmatpush1.bf16.msra.mxu0 %v1848
      %4217 = vmatprep.subr.bf16.mxu0 %v1853
      %4218 = vmatpush1.bf16.msra.mxu0 %v1852
      %4219 = vmatprep.subr.bf16.mxu0 %v1857
      %4220 = vmatpush1.bf16.msra.mxu0 %v1856
      %4221 = vmatprep.subr.bf16.mxu0 %v1861
      %4222 = vmatpush1.bf16.msra.mxu0 %v1860
      %4223 = vmatprep.subr.bf16.mxu0 %v1865
      %4224 = vmatpush1.bf16.msra.mxu0 %v1864
      %4225 = vmatprep.subr.bf16.mxu0 %v1869
      %4226 = vmatpush1.bf16.msra.mxu0 %v1868
      %4227 = vmatprep.subr.bf16.mxu0 %v1873
      %4228 = vmatpush1.bf16.msra.mxu0 %v1872
      %4229 = vmatprep.mubr.bf16.mxu0 %v3795
      %4230 = vmatmul.mubr.bf16.gmra.mrb[0].mxu0 %v3794
      %v4231 = vpop.f32.mrb[0].mxu0
      %v4232 = vadd.f32 %v4159, %v4231
      %v4233 = vpop.f32.mrb[0].mxu0
      %v4234 = vadd.f32 %v4161, %v4233
      %v4235 = vpop.f32.mrb[0].mxu0
      %v4236 = vadd.f32 %v4163, %v4235
      %v4237 = vpop.f32.mrb[0].mxu0
      %v4238 = vadd.f32 %v4165, %v4237
      %4239 = vmatprep.mubr.bf16.mxu0 %v3802
      %4240 = vmatmul.mubr.bf16.gmra.mrb[0].mxu0 %v3801
      %v4241 = vpop.f32.mrb[0].mxu0
      %v4242 = vadd.f32 %v4169, %v4241
      %v4243 = vpop.f32.mrb[0].mxu0
      %v4244 = vadd.f32 %v4171, %v4243
      %v4245 = vpop.f32.mrb[0].mxu0
      %v4246 = vadd.f32 %v4173, %v4245
      %v4247 = vpop.f32.mrb[0].mxu0
      %v4248 = vadd.f32 %v4175, %v4247
      %4249 = vmatprep.mubr.bf16.mxu0 %v3809
      %4250 = vmatmul.mubr.bf16.gmra.mrb[0].mxu0 %v3808
      %v4251 = vpop.f32.mrb[0].mxu0
      %v4252 = vadd.f32 %v4179, %v4251
      %v4253 = vpop.f32.mrb[0].mxu0
      %v4254 = vadd.f32 %v4181, %v4253
      %v4255 = vpop.f32.mrb[0].mxu0
      %v4256 = vadd.f32 %v4183, %v4255
      %v4257 = vpop.f32.mrb[0].mxu0
      %v4258 = vadd.f32 %v4185, %v4257
      %4259 = vmatprep.mubr.bf16.mxu0 %v3816
      %4260 = vmatmul.mubr.bf16.gmra.mrb[0].mxu0 %v3815
      %v4261 = vpop.f32.mrb[0].mxu0
      %v4262 = vadd.f32 %v4189, %v4261
      %v4263 = vpop.f32.mrb[0].mxu0
      %v4264 = vadd.f32 %v4191, %v4263
      %v4265 = vpop.f32.mrb[0].mxu0
      %v4266 = vadd.f32 %v4193, %v4265
      %v4267 = vpop.f32.mrb[0].mxu0
      %v4268 = vadd.f32 %v4195, %v4267
      %4269 = vdwg.mxu0
      %4270 = vmatprep.subr.bf16.mxu0 %v1877
      %4271 = vmatpush1.bf16.msra.mxu0 %v1876
      %4272 = vmatprep.subr.bf16.mxu0 %v1881
      %4273 = vmatpush1.bf16.msra.mxu0 %v1880
      %4274 = vmatprep.subr.bf16.mxu0 %v1885
      %4275 = vmatpush1.bf16.msra.mxu0 %v1884
      %4276 = vmatprep.subr.bf16.mxu0 %v1889
      %4277 = vmatpush1.bf16.msra.mxu0 %v1888
      %4278 = vmatprep.subr.bf16.mxu0 %v1893
      %4279 = vmatpush1.bf16.msra.mxu0 %v1892
      %4280 = vmatprep.subr.bf16.mxu0 %v1897
      %4281 = vmatpush1.bf16.msra.mxu0 %v1896
      %4282 = vmatprep.subr.bf16.mxu0 %v1901
      %4283 = vmatpush1.bf16.msra.mxu0 %v1900
      %4284 = vmatprep.subr.bf16.mxu0 %v1905
      %4285 = vmatpush1.bf16.msra.mxu0 %v1904
      %4286 = vmatprep.subr.bf16.mxu0 %v1909
      %4287 = vmatpush1.bf16.msra.mxu0 %v1908
      %4288 = vmatprep.subr.bf16.mxu0 %v1913
      %4289 = vmatpush1.bf16.msra.mxu0 %v1912
      %4290 = vmatprep.subr.bf16.mxu0 %v1917
      %4291 = vmatpush1.bf16.msra.mxu0 %v1916
      %4292 = vmatprep.subr.bf16.mxu0 %v1921
      %4293 = vmatpush1.bf16.msra.mxu0 %v1920
      %4294 = vmatprep.subr.bf16.mxu0 %v1925
      %4295 = vmatpush1.bf16.msra.mxu0 %v1924
      %4296 = vmatprep.subr.bf16.mxu0 %v1929
      %4297 = vmatpush1.bf16.msra.mxu0 %v1928
      %4298 = vmatprep.subr.bf16.mxu0 %v1933
      %4299 = vmatpush1.bf16.msra.mxu0 %v1932
      %4300 = vmatprep.subr.bf16.mxu0 %v1937
      %4301 = vmatpush1.bf16.msra.mxu0 %v1936
      %4302 = vmatprep.mubr.bf16.mxu0 %v3797
      %4303 = vmatmul.mubr.bf16.gmra.mrb[0].mxu0 %v3796
      %v4304 = vpop.f32.mrb[0].mxu0
      %v4305 = vadd.f32 %v4232, %v4304
      %v4306 = vpop.f32.mrb[0].mxu0
      %v4307 = vadd.f32 %v4234, %v4306
      %v4308 = vpop.f32.mrb[0].mxu0
      %v4309 = vadd.f32 %v4236, %v4308
      %v4310 = vpop.f32.mrb[0].mxu0
      %v4311 = vadd.f32 %v4238, %v4310
      %4312 = vmatprep.mubr.bf16.mxu0 %v3804
      %4313 = vmatmul.mubr.bf16.gmra.mrb[0].mxu0 %v3803
      %v4314 = vpop.f32.mrb[0].mxu0
      %v4315 = vadd.f32 %v4242, %v4314
      %v4316 = vpop.f32.mrb[0].mxu0
      %v4317 = vadd.f32 %v4244, %v4316
      %v4318 = vpop.f32.mrb[0].mxu0
      %v4319 = vadd.f32 %v4246, %v4318
      %v4320 = vpop.f32.mrb[0].mxu0
      %v4321 = vadd.f32 %v4248, %v4320
      %4322 = vmatprep.mubr.bf16.mxu0 %v3811
      %4323 = vmatmul.mubr.bf16.gmra.mrb[0].mxu0 %v3810
      %v4324 = vpop.f32.mrb[0].mxu0
      %v4325 = vadd.f32 %v4252, %v4324
      %v4326 = vpop.f32.mrb[0].mxu0
      %v4327 = vadd.f32 %v4254, %v4326
      %v4328 = vpop.f32.mrb[0].mxu0
      %v4329 = vadd.f32 %v4256, %v4328
      %v4330 = vpop.f32.mrb[0].mxu0
      %v4331 = vadd.f32 %v4258, %v4330
      %4332 = vmatprep.mubr.bf16.mxu0 %v3818
      %4333 = vmatmul.mubr.bf16.gmra.mrb[0].mxu0 %v3817
      %v4334 = vpop.f32.mrb[0].mxu0
      %v4335 = vadd.f32 %v4262, %v4334
      %v4336 = vpop.f32.mrb[0].mxu0
      %v4337 = vadd.f32 %v4264, %v4336
      %v4338 = vpop.f32.mrb[0].mxu0
      %v4339 = vadd.f32 %v4266, %v4338
      %v4340 = vpop.f32.mrb[0].mxu0
      %v4341 = vadd.f32 %v4268, %v4340
      %4342 = vdwg.mxu0
      %4343 = vmatprep.subr.bf16.mxu0 %v1941
      %4344 = vmatpush1.bf16.msra.mxu0 %v1940
      %4345 = vmatprep.subr.bf16.mxu0 0
      %4346 = vmatpush1.bf16.msra.mxu0 0
      %4347 = vmatprep.subr.bf16.mxu0 0
      %4348 = vmatpush1.bf16.msra.mxu0 0
      %4349 = vmatprep.subr.bf16.mxu0 0
      %4350 = vmatpush1.bf16.msra.mxu0 0
      %4351 = vmatprep.subr.bf16.mxu0 0
      %4352 = vmatpush1.bf16.msra.mxu0 0
      %4353 = vmatprep.subr.bf16.mxu0 0
      %4354 = vmatpush1.bf16.msra.mxu0 0
      %4355 = vmatprep.subr.bf16.mxu0 0
      %4356 = vmatpush1.bf16.msra.mxu0 0
      %4357 = vmatprep.subr.bf16.mxu0 0
      %4358 = vmatpush1.bf16.msra.mxu0 0
      %4359 = vmatprep.subr.bf16.mxu0 0
      %4360 = vmatpush1.bf16.msra.mxu0 0
      %4361 = vmatprep.subr.bf16.mxu0 0
      %4362 = vmatpush1.bf16.msra.mxu0 0
      %4363 = vmatprep.subr.bf16.mxu0 0
      %4364 = vmatpush1.bf16.msra.mxu0 0
      %4365 = vmatprep.subr.bf16.mxu0 0
      %4366 = vmatpush1.bf16.msra.mxu0 0
      %4367 = vmatprep.subr.bf16.mxu0 0
      %4368 = vmatpush1.bf16.msra.mxu0 0
      %4369 = vmatprep.subr.bf16.mxu0 0
      %4370 = vmatpush1.bf16.msra.mxu0 0
      %4371 = vmatprep.subr.bf16.mxu0 0
      %4372 = vmatpush1.bf16.msra.mxu0 0
      %4373 = vmatprep.subr.bf16.mxu0 0
      %4374 = vmatpush1.bf16.msra.mxu0 0
      %4375 = vmatprep.mubr.bf16.mxu0 0
      %4376 = vmatmul.mubr.bf16.gmra.mrb[0].mxu0 %v3821
      %v4377 = vpop.f32.mrb[0].mxu0
      %v4378 = vadd.f32 %v4305, %v4377
      %v4379 = vpop.f32.mrb[0].mxu0
      %v4380 = vadd.f32 %v4307, %v4379
      %v4381 = vpop.f32.mrb[0].mxu0
      %v4382 = vadd.f32 %v4309, %v4381
      %v4383 = vpop.f32.mrb[0].mxu0
      %v4384 = vadd.f32 %v4311, %v4383
      %4385 = vmatprep.mubr.bf16.mxu0 0
      %4386 = vmatmul.mubr.bf16.gmra.mrb[0].mxu0 %v3824
      %v4387 = vpop.f32.mrb[0].mxu0
      %v4388 = vadd.f32 %v4315, %v4387
      %v4389 = vpop.f32.mrb[0].mxu0
      %v4390 = vadd.f32 %v4317, %v4389
      %v4391 = vpop.f32.mrb[0].mxu0
      %v4392 = vadd.f32 %v4319, %v4391
      %v4393 = vpop.f32.mrb[0].mxu0
      %v4394 = vadd.f32 %v4321, %v4393
      %4395 = vmatprep.mubr.bf16.mxu0 0
      %4396 = vmatmul.mubr.bf16.gmra.mrb[0].mxu0 %v3827
      %v4397 = vpop.f32.mrb[0].mxu0
      %v4398 = vadd.f32 %v4325, %v4397
      %v4399 = vpop.f32.mrb[0].mxu0
      %v4400 = vadd.f32 %v4327, %v4399
      %v4401 = vpop.f32.mrb[0].mxu0
      %v4402 = vadd.f32 %v4329, %v4401
      %v4403 = vpop.f32.mrb[0].mxu0
      %v4404 = vadd.f32 %v4331, %v4403
      %4405 = vmatprep.mubr.bf16.mxu0 0
      %4406 = vmatmul.mubr.bf16.gmra.mrb[0].mxu0 %v3830
      %v4407 = vpop.f32.mrb[0].mxu0
      %v4408 = vadd.f32 %v4335, %v4407
      %v4409 = vpop.f32.mrb[0].mxu0
      %v4410 = vadd.f32 %v4337, %v4409
      %v4411 = vpop.f32.mrb[0].mxu0
      %v4412 = vadd.f32 %v4339, %v4411
      %v4413 = vpop.f32.mrb[0].mxu0
      %v4414 = vadd.f32 %v4341, %v4413
      %4415 = vdwg.mxu0
      %v4416 = vmax.f32 %v4086, 0.0
      %v4417 = vmax.f32 %v4088, 0.0
      %v4418 = vmax.f32 %v4378, 0.0
      %v4419 = vmax.f32 %v4380, 0.0
      %v4420 = vmax.f32 %v4090, 0.0
      %v4421 = vmax.f32 %v4092, 0.0
      %v4422 = vmax.f32 %v4382, 0.0
      %v4423 = vmax.f32 %v4384, 0.0
      %v4424 = vmax.f32 %v4096, 0.0
      %v4425 = vmax.f32 %v4098, 0.0
      %v4426 = vmax.f32 %v4388, 0.0
      %v4427 = vmax.f32 %v4390, 0.0
      %v4428 = vmax.f32 %v4100, 0.0
      %v4429 = vmax.f32 %v4102, 0.0
      %v4430 = vmax.f32 %v4392, 0.0
      %v4431 = vmax.f32 %v4394, 0.0
      %v4432 = vmax.f32 %v4106, 0.0
      %v4433 = vmax.f32 %v4108, 0.0
      %v4434 = vmax.f32 %v4398, 0.0
      %v4435 = vmax.f32 %v4400, 0.0
      %v4436 = vmax.f32 %v4110, 0.0
      %v4437 = vmax.f32 %v4112, 0.0
      %v4438 = vmax.f32 %v4402, 0.0
      %v4439 = vmax.f32 %v4404, 0.0
      %v4440 = vmax.f32 %v4116, 0.0
      %v4441 = vmax.f32 %v4118, 0.0
      %v4442 = vmax.f32 %v4408, 0.0
      %v4443 = vmax.f32 %v4410, 0.0
      %v4444 = vmax.f32 %v4120, 0.0
      %v4445 = vmax.f32 %v4122, 0.0
      %v4446 = vmax.f32 %v4412, 0.0
      %v4447 = vmax.f32 %v4414, 0.0
      %v4448 = vpack.c.bf16 %v4420, %v4416
      %v4449 = vpack.c.bf16 %v4421, %v4417
      %v4450 = vpack.c.bf16 %v4422, %v4418
      %v4451 = vpack.c.bf16 %v4423, %v4419
      %v4452 = vpack.c.bf16 %v4428, %v4424
      %v4453 = vpack.c.bf16 %v4429, %v4425
      %v4454 = vpack.c.bf16 %v4430, %v4426
      %v4455 = vpack.c.bf16 %v4431, %v4427
      %v4456 = vpack.c.bf16 %v4436, %v4432
      %v4457 = vpack.c.bf16 %v4437, %v4433
      %v4458 = vpack.c.bf16 %v4438, %v4434
      %v4459 = vpack.c.bf16 %v4439, %v4435
      %v4460 = vpack.c.bf16 %v4444, %v4440
      %v4461 = vpack.c.bf16 %v4445, %v4441
      %v4462 = vpack.c.bf16 %v4446, %v4442
      %v4463 = vpack.c.bf16 %v4447, %v4443
      %4464 = vmatprep.subr.bf16.mxu0 %v3189
      %4465 = vmatpush1.bf16.msra.mxu0 %v3188
      %4466 = vmatprep.subr.bf16.mxu0 %v3193
      %4467 = vmatpush1.bf16.msra.mxu0 %v3192
      %4468 = vmatprep.subr.bf16.mxu0 %v3197
      %4469 = vmatpush1.bf16.msra.mxu0 %v3196
      %4470 = vmatprep.subr.bf16.mxu0 %v3201
      %4471 = vmatpush1.bf16.msra.mxu0 %v3200
      %4472 = vmatprep.subr.bf16.mxu0 %v3205
      %4473 = vmatpush1.bf16.msra.mxu0 %v3204
      %4474 = vmatprep.subr.bf16.mxu0 %v3209
      %4475 = vmatpush1.bf16.msra.mxu0 %v3208
      %4476 = vmatprep.subr.bf16.mxu0 %v3213
      %4477 = vmatpush1.bf16.msra.mxu0 %v3212
      %4478 = vmatprep.subr.bf16.mxu0 %v3217
      %4479 = vmatpush1.bf16.msra.mxu0 %v3216
      %4480 = vmatprep.subr.bf16.mxu0 %v3221
      %4481 = vmatpush1.bf16.msra.mxu0 %v3220
      %4482 = vmatprep.subr.bf16.mxu0 %v3225
      %4483 = vmatpush1.bf16.msra.mxu0 %v3224
      %4484 = vmatprep.subr.bf16.mxu0 %v3229
      %4485 = vmatpush1.bf16.msra.mxu0 %v3228
      %4486 = vmatprep.subr.bf16.mxu0 %v3233
      %4487 = vmatpush1.bf16.msra.mxu0 %v3232
      %4488 = vmatprep.subr.bf16.mxu0 %v3237
      %4489 = vmatpush1.bf16.msra.mxu0 %v3236
      %4490 = vmatprep.subr.bf16.mxu0 %v3241
      %4491 = vmatpush1.bf16.msra.mxu0 %v3240
      %4492 = vmatprep.subr.bf16.mxu0 %v3245
      %4493 = vmatpush1.bf16.msra.mxu0 %v3244
      %4494 = vmatprep.subr.bf16.mxu0 %v3249
      %4495 = vmatpush1.bf16.msra.mxu0 %v3248
      %4496 = vmatprep.mubr.bf16.mxu0 %v4449
      %4497 = vmatmul.mubr.bf16.gmra.mrb[0].mxu0 %v4448
      %v4498 = vpop.f32.mrb[0].mxu0
      %v4499 = vadd.f32 %v2787, %v4498
      %v4500 = vpop.f32.mrb[0].mxu0
      %v4501 = vadd.f32 %v2791, %v4500
      %v4502 = vpop.f32.mrb[0].mxu0
      %v4503 = vadd.f32 %v2787, %v4502
      %v4504 = vpop.f32.mrb[0].mxu0
      %v4505 = vadd.f32 %v2791, %v4504
      %4506 = vmatprep.mubr.bf16.mxu0 %v4453
      %4507 = vmatmul.mubr.bf16.gmra.mrb[0].mxu0 %v4452
      %v4508 = vpop.f32.mrb[0].mxu0
      %v4509 = vadd.f32 %v2787, %v4508
      %v4510 = vpop.f32.mrb[0].mxu0
      %v4511 = vadd.f32 %v2791, %v4510
      %v4512 = vpop.f32.mrb[0].mxu0
      %v4513 = vadd.f32 %v2787, %v4512
      %v4514 = vpop.f32.mrb[0].mxu0
      %v4515 = vadd.f32 %v2791, %v4514
      %4516 = vmatprep.mubr.bf16.mxu0 %v4457
      %4517 = vmatmul.mubr.bf16.gmra.mrb[0].mxu0 %v4456
      %v4518 = vpop.f32.mrb[0].mxu0
      %v4519 = vadd.f32 %v2787, %v4518
      %v4520 = vpop.f32.mrb[0].mxu0
      %v4521 = vadd.f32 %v2791, %v4520
      %v4522 = vpop.f32.mrb[0].mxu0
      %v4523 = vadd.f32 %v2787, %v4522
      %v4524 = vpop.f32.mrb[0].mxu0
      %v4525 = vadd.f32 %v2791, %v4524
      %4526 = vmatprep.mubr.bf16.mxu0 %v4461
      %4527 = vmatmul.mubr.bf16.gmra.mrb[0].mxu0 %v4460
      %v4528 = vpop.f32.mrb[0].mxu0
      %v4529 = vadd.f32 %v2787, %v4528
      %v4530 = vpop.f32.mrb[0].mxu0
      %v4531 = vadd.f32 %v2791, %v4530
      %v4532 = vpop.f32.mrb[0].mxu0
      %v4533 = vadd.f32 %v2787, %v4532
      %v4534 = vpop.f32.mrb[0].mxu0
      %v4535 = vadd.f32 %v2791, %v4534
      %4536 = vdwg.mxu0
      %4537 = vmatprep.subr.bf16.mxu0 %v3253
      %4538 = vmatpush1.bf16.msra.mxu0 %v3252
      %4539 = vmatprep.subr.bf16.mxu0 %v3257
      %4540 = vmatpush1.bf16.msra.mxu0 %v3256
      %4541 = vmatprep.subr.bf16.mxu0 %v3261
      %4542 = vmatpush1.bf16.msra.mxu0 %v3260
      %4543 = vmatprep.subr.bf16.mxu0 %v3265
      %4544 = vmatpush1.bf16.msra.mxu0 %v3264
      %4545 = vmatprep.subr.bf16.mxu0 %v3269
      %4546 = vmatpush1.bf16.msra.mxu0 %v3268
      %4547 = vmatprep.subr.bf16.mxu0 %v3273
      %4548 = vmatpush1.bf16.msra.mxu0 %v3272
      %4549 = vmatprep.subr.bf16.mxu0 %v3277
      %4550 = vmatpush1.bf16.msra.mxu0 %v3276
      %4551 = vmatprep.subr.bf16.mxu0 %v3281
      %4552 = vmatpush1.bf16.msra.mxu0 %v3280
      %4553 = vmatprep.subr.bf16.mxu0 %v3285
      %4554 = vmatpush1.bf16.msra.mxu0 %v3284
      %4555 = vmatprep.subr.bf16.mxu0 %v3289
      %4556 = vmatpush1.bf16.msra.mxu0 %v3288
      %4557 = vmatprep.subr.bf16.mxu0 %v3293
      %4558 = vmatpush1.bf16.msra.mxu0 %v3292
      %4559 = vmatprep.subr.bf16.mxu0 %v3297
      %4560 = vmatpush1.bf16.msra.mxu0 %v3296
      %4561 = vmatprep.subr.bf16.mxu0 %v3301
      %4562 = vmatpush1.bf16.msra.mxu0 %v3300
      %4563 = vmatprep.subr.bf16.mxu0 %v3305
      %4564 = vmatpush1.bf16.msra.mxu0 %v3304
      %4565 = vmatprep.subr.bf16.mxu0 %v3309
      %4566 = vmatpush1.bf16.msra.mxu0 %v3308
      %4567 = vmatprep.subr.bf16.mxu0 %v3313
      %4568 = vmatpush1.bf16.msra.mxu0 %v3312
      %4569 = vmatprep.mubr.bf16.mxu0 %v4451
      %4570 = vmatmul.mubr.bf16.gmra.mrb[0].mxu0 %v4450
      %v4571 = vpop.f32.mrb[0].mxu0
      %v4572 = vadd.f32 %v4499, %v4571
      %v4573 = vpop.f32.mrb[0].mxu0
      %v4574 = vadd.f32 %v4501, %v4573
      %v4575 = vpop.f32.mrb[0].mxu0
      %v4576 = vadd.f32 %v4503, %v4575
      %v4577 = vpop.f32.mrb[0].mxu0
      %v4578 = vadd.f32 %v4505, %v4577
      %4579 = vmatprep.mubr.bf16.mxu0 %v4455
      %4580 = vmatmul.mubr.bf16.gmra.mrb[0].mxu0 %v4454
      %v4581 = vpop.f32.mrb[0].mxu0
      %v4582 = vadd.f32 %v4509, %v4581
      %v4583 = vpop.f32.mrb[0].mxu0
      %v4584 = vadd.f32 %v4511, %v4583
      %v4585 = vpop.f32.mrb[0].mxu0
      %v4586 = vadd.f32 %v4513, %v4585
      %v4587 = vpop.f32.mrb[0].mxu0
      %v4588 = vadd.f32 %v4515, %v4587
      %4589 = vmatprep.mubr.bf16.mxu0 %v4459
      %4590 = vmatmul.mubr.bf16.gmra.mrb[0].mxu0 %v4458
      %v4591 = vpop.f32.mrb[0].mxu0
      %v4592 = vadd.f32 %v4519, %v4591
      %v4593 = vpop.f32.mrb[0].mxu0
      %v4594 = vadd.f32 %v4521, %v4593
      %v4595 = vpop.f32.mrb[0].mxu0
      %v4596 = vadd.f32 %v4523, %v4595
      %v4597 = vpop.f32.mrb[0].mxu0
      %v4598 = vadd.f32 %v4525, %v4597
      %4599 = vmatprep.mubr.bf16.mxu0 %v4463
      %4600 = vmatmul.mubr.bf16.gmra.mrb[0].mxu0 %v4462
      %v4601 = vpop.f32.mrb[0].mxu0
      %v4602 = vadd.f32 %v4529, %v4601
      %v4603 = vpop.f32.mrb[0].mxu0
      %v4604 = vadd.f32 %v4531, %v4603
      %v4605 = vpop.f32.mrb[0].mxu0
      %v4606 = vadd.f32 %v4533, %v4605
      %v4607 = vpop.f32.mrb[0].mxu0
      %v4608 = vadd.f32 %v4535, %v4607
      %4609 = vdwg.mxu0
      %4610 = vmatprep.subr.bf16.mxu0 %v3191
      %4611 = vmatpush1.bf16.msra.mxu0 %v3190
      %4612 = vmatprep.subr.bf16.mxu0 %v3195
      %4613 = vmatpush1.bf16.msra.mxu0 %v3194
      %4614 = vmatprep.subr.bf16.mxu0 %v3199
      %4615 = vmatpush1.bf16.msra.mxu0 %v3198
      %4616 = vmatprep.subr.bf16.mxu0 %v3203
      %4617 = vmatpush1.bf16.msra.mxu0 %v3202
      %4618 = vmatprep.subr.bf16.mxu0 %v3207
      %4619 = vmatpush1.bf16.msra.mxu0 %v3206
      %4620 = vmatprep.subr.bf16.mxu0 %v3211
      %4621 = vmatpush1.bf16.msra.mxu0 %v3210
      %4622 = vmatprep.subr.bf16.mxu0 %v3215
      %4623 = vmatpush1.bf16.msra.mxu0 %v3214
      %4624 = vmatprep.subr.bf16.mxu0 %v3219
      %4625 = vmatpush1.bf16.msra.mxu0 %v3218
      %4626 = vmatprep.subr.bf16.mxu0 %v3223
      %4627 = vmatpush1.bf16.msra.mxu0 %v3222
      %4628 = vmatprep.subr.bf16.mxu0 %v3227
      %4629 = vmatpush1.bf16.msra.mxu0 %v3226
      %4630 = vmatprep.subr.bf16.mxu0 %v3231
      %4631 = vmatpush1.bf16.msra.mxu0 %v3230
      %4632 = vmatprep.subr.bf16.mxu0 %v3235
      %4633 = vmatpush1.bf16.msra.mxu0 %v3234
      %4634 = vmatprep.subr.bf16.mxu0 %v3239
      %4635 = vmatpush1.bf16.msra.mxu0 %v3238
      %4636 = vmatprep.subr.bf16.mxu0 %v3243
      %4637 = vmatpush1.bf16.msra.mxu0 %v3242
      %4638 = vmatprep.subr.bf16.mxu0 %v3247
      %4639 = vmatpush1.bf16.msra.mxu0 %v3246
      %4640 = vmatprep.subr.bf16.mxu0 %v3251
      %4641 = vmatpush1.bf16.msra.mxu0 %v3250
      %4642 = vmatprep.mubr.bf16.mxu0 %v4449
      %4643 = vmatmul.mubr.bf16.gmra.mrb[0].mxu0 %v4448
      %v4644 = vpop.f32.mrb[0].mxu0
      %v4645 = vadd.f32 %v2795, %v4644
      %v4646 = vpop.f32.mrb[0].mxu0
      %v4647 = vadd.f32 %v2799, %v4646
      %v4648 = vpop.f32.mrb[0].mxu0
      %v4649 = vadd.f32 %v2795, %v4648
      %v4650 = vpop.f32.mrb[0].mxu0
      %v4651 = vadd.f32 %v2799, %v4650
      %4652 = vmatprep.mubr.bf16.mxu0 %v4453
      %4653 = vmatmul.mubr.bf16.gmra.mrb[0].mxu0 %v4452
      %v4654 = vpop.f32.mrb[0].mxu0
      %v4655 = vadd.f32 %v2795, %v4654
      %v4656 = vpop.f32.mrb[0].mxu0
      %v4657 = vadd.f32 %v2799, %v4656
      %v4658 = vpop.f32.mrb[0].mxu0
      %v4659 = vadd.f32 %v2795, %v4658
      %v4660 = vpop.f32.mrb[0].mxu0
      %v4661 = vadd.f32 %v2799, %v4660
      %4662 = vmatprep.mubr.bf16.mxu0 %v4457
      %4663 = vmatmul.mubr.bf16.gmra.mrb[0].mxu0 %v4456
      %v4664 = vpop.f32.mrb[0].mxu0
      %v4665 = vadd.f32 %v2795, %v4664
      %v4666 = vpop.f32.mrb[0].mxu0
      %v4667 = vadd.f32 %v2799, %v4666
      %v4668 = vpop.f32.mrb[0].mxu0
      %v4669 = vadd.f32 %v2795, %v4668
      %v4670 = vpop.f32.mrb[0].mxu0
      %v4671 = vadd.f32 %v2799, %v4670
      %4672 = vmatprep.mubr.bf16.mxu0 %v4461
      %4673 = vmatmul.mubr.bf16.gmra.mrb[0].mxu0 %v4460
      %v4674 = vpop.f32.mrb[0].mxu0
      %v4675 = vadd.f32 %v2795, %v4674
      %v4676 = vpop.f32.mrb[0].mxu0
      %v4677 = vadd.f32 %v2799, %v4676
      %v4678 = vpop.f32.mrb[0].mxu0
      %v4679 = vadd.f32 %v2795, %v4678
      %v4680 = vpop.f32.mrb[0].mxu0
      %v4681 = vadd.f32 %v2799, %v4680
      %4682 = vdwg.mxu0
      %4683 = vmatprep.subr.bf16.mxu0 %v3255
      %4684 = vmatpush1.bf16.msra.mxu0 %v3254
      %4685 = vmatprep.subr.bf16.mxu0 %v3259
      %4686 = vmatpush1.bf16.msra.mxu0 %v3258
      %4687 = vmatprep.subr.bf16.mxu0 %v3263
      %4688 = vmatpush1.bf16.msra.mxu0 %v3262
      %4689 = vmatprep.subr.bf16.mxu0 %v3267
      %4690 = vmatpush1.bf16.msra.mxu0 %v3266
      %4691 = vmatprep.subr.bf16.mxu0 %v3271
      %4692 = vmatpush1.bf16.msra.mxu0 %v3270
      %4693 = vmatprep.subr.bf16.mxu0 %v3275
      %4694 = vmatpush1.bf16.msra.mxu0 %v3274
      %4695 = vmatprep.subr.bf16.mxu0 %v3279
      %4696 = vmatpush1.bf16.msra.mxu0 %v3278
      %4697 = vmatprep.subr.bf16.mxu0 %v3283
      %4698 = vmatpush1.bf16.msra.mxu0 %v3282
      %4699 = vmatprep.subr.bf16.mxu0 %v3287
      %4700 = vmatpush1.bf16.msra.mxu0 %v3286
      %4701 = vmatprep.subr.bf16.mxu0 %v3291
      %4702 = vmatpush1.bf16.msra.mxu0 %v3290
      %4703 = vmatprep.subr.bf16.mxu0 %v3295
      %4704 = vmatpush1.bf16.msra.mxu0 %v3294
      %4705 = vmatprep.subr.bf16.mxu0 %v3299
      %4706 = vmatpush1.bf16.msra.mxu0 %v3298
      %4707 = vmatprep.subr.bf16.mxu0 %v3303
      %4708 = vmatpush1.bf16.msra.mxu0 %v3302
      %4709 = vmatprep.subr.bf16.mxu0 %v3307
      %4710 = vmatpush1.bf16.msra.mxu0 %v3306
      %4711 = vmatprep.subr.bf16.mxu0 %v3311
      %4712 = vmatpush1.bf16.msra.mxu0 %v3310
      %4713 = vmatprep.subr.bf16.mxu0 %v3315
      %4714 = vmatpush1.bf16.msra.mxu0 %v3314
      %4715 = vmatprep.mubr.bf16.mxu0 %v4451
      %4716 = vmatmul.mubr.bf16.gmra.mrb[0].mxu0 %v4450
      %v4717 = vpop.f32.mrb[0].mxu0
      %v4718 = vadd.f32 %v4645, %v4717
      %v4719 = vpop.f32.mrb[0].mxu0
      %v4720 = vadd.f32 %v4647, %v4719
      %v4721 = vpop.f32.mrb[0].mxu0
      %v4722 = vadd.f32 %v4649, %v4721
      %v4723 = vpop.f32.mrb[0].mxu0
      %v4724 = vadd.f32 %v4651, %v4723
      %4725 = vmatprep.mubr.bf16.mxu0 %v4455
      %4726 = vmatmul.mubr.bf16.gmra.mrb[0].mxu0 %v4454
      %v4727 = vpop.f32.mrb[0].mxu0
      %v4728 = vadd.f32 %v4655, %v4727
      %v4729 = vpop.f32.mrb[0].mxu0
      %v4730 = vadd.f32 %v4657, %v4729
      %v4731 = vpop.f32.mrb[0].mxu0
      %v4732 = vadd.f32 %v4659, %v4731
      %v4733 = vpop.f32.mrb[0].mxu0
      %v4734 = vadd.f32 %v4661, %v4733
      %4735 = vmatprep.mubr.bf16.mxu0 %v4459
      %4736 = vmatmul.mubr.bf16.gmra.mrb[0].mxu0 %v4458
      %v4737 = vpop.f32.mrb[0].mxu0
      %v4738 = vadd.f32 %v4665, %v4737
      %v4739 = vpop.f32.mrb[0].mxu0
      %v4740 = vadd.f32 %v4667, %v4739
      %v4741 = vpop.f32.mrb[0].mxu0
      %v4742 = vadd.f32 %v4669, %v4741
      %v4743 = vpop.f32.mrb[0].mxu0
      %v4744 = vadd.f32 %v4671, %v4743
      %4745 = vmatprep.mubr.bf16.mxu0 %v4463
      %4746 = vmatmul.mubr.bf16.gmra.mrb[0].mxu0 %v4462
      %v4747 = vpop.f32.mrb[0].mxu0
      %v4748 = vadd.f32 %v4675, %v4747
      %v4749 = vpop.f32.mrb[0].mxu0
      %v4750 = vadd.f32 %v4677, %v4749
      %v4751 = vpop.f32.mrb[0].mxu0
      %v4752 = vadd.f32 %v4679, %v4751
      %v4753 = vpop.f32.mrb[0].mxu0
      %v4754 = vadd.f32 %v4681, %v4753
      %4755 = vdwg.mxu0
      %v4756 = vld [vmem:[%s7] sm:$0xff]
      %v4757 = vld [vmem:[%s7 + $0x8] sm:$0xff]
      %v4758 = vld [vmem:[%s7 + $0x10] sm:$0xff]
      %v4759 = vld [vmem:[%s7 + $0x18] sm:$0xff]
      %v4760 = vld [vmem:[%s7 + $0x20] sm:$0xff]
      %v4761 = vld [vmem:[%s7 + $0x28] sm:$0xff]
      %v4762 = vld [vmem:[%s7 + $0x30] sm:$0xff]
      %v4763 = vld [vmem:[%s7 + $0x38] sm:$0xff]
      %v4764 = vld [vmem:[%s7 + $0x40] sm:$0xff]
      %v4765 = vld [vmem:[%s7 + $0x48] sm:$0xff]
      %v4766 = vld [vmem:[%s7 + $0x50] sm:$0xff]
      %v4767 = vld [vmem:[%s7 + $0x58] sm:$0xff]
      %v4768 = vld [vmem:[%s7 + $0x60] sm:$0xff]
      %v4769 = vld [vmem:[%s7 + $0x68] sm:$0xff]
      %v4770 = vld [vmem:[%s7 + $0x70] sm:$0xff]
      %v4771 = vld [vmem:[%s7 + $0x78] sm:$0xff]
      %v4772 = vld [vmem:[%s8] sm:$0xff]
      %v4773 = vld [vmem:[%s8 + $0x8] sm:$0xff]
      %v4774 = vld [vmem:[%s8 + $0x10] sm:$0xff]
      %v4775 = vld [vmem:[%s8 + $0x18] sm:$0xff]
      %v4776 = vld [vmem:[%s8 + $0x20] sm:$0xff]
      %v4777 = vld [vmem:[%s8 + $0x28] sm:$0xff]
      %v4778 = vld [vmem:[%s8 + $0x30] sm:$0xff]
      %v4779 = vld [vmem:[%s8 + $0x38] sm:$0xff]
      %v4780 = vld [vmem:[%s8 + $0x40] sm:$0xff]
      %v4781 = vld [vmem:[%s8 + $0x48] sm:$0xff]
      %v4782 = vld [vmem:[%s8 + $0x50] sm:$0xff]
      %v4783 = vld [vmem:[%s8 + $0x58] sm:$0xff]
      %v4784 = vld [vmem:[%s8 + $0x60] sm:$0xff]
      %v4785 = vld [vmem:[%s8 + $0x68] sm:$0xff]
      %v4786 = vld [vmem:[%s8 + $0x70] sm:$0xff]
      %v4787 = vld [vmem:[%s8 + $0x78] sm:$0xff]
      %vm4788 = vcmask 523264
      %v4790 = vsel %vm4788, %v4772, 0
      %v4793 = vsel %vm4788, %v4773, 0
      %v4796 = vsel %vm4788, %v4774, 0
      %v4799 = vsel %vm4788, %v4775, 0
      %v4802 = vsel %vm4788, %v4776, 0
      %v4805 = vsel %vm4788, %v4777, 0
      %v4808 = vsel %vm4788, %v4778, 0
      %v4811 = vsel %vm4788, %v4779, 0
      %v4814 = vsel %vm4788, %v4780, 0
      %v4817 = vsel %vm4788, %v4781, 0
      %v4820 = vsel %vm4788, %v4782, 0
      %v4823 = vsel %vm4788, %v4783, 0
      %v4826 = vsel %vm4788, %v4784, 0
      %v4829 = vsel %vm4788, %v4785, 0
      %v4832 = vsel %vm4788, %v4786, 0
      %v4835 = vsel %vm4788, %v4787, 0
      %4837 = vmatprep.subr.mxu0 %v3700
      %4838 = vmatpush1.msra.mxu0 %v3698
      %4839 = vmatprep.subr.mxu0 %v3704
      %4840 = vmatpush1.msra.mxu0 %v3702
      %4841 = vmatprep.subr.mxu0 %v3710
      %4842 = vmatpush1.msra.mxu0 %v3708
      %4843 = vmatprep.subr.mxu0 %v3714
      %4844 = vmatpush1.msra.mxu0 %v3712
      %4845 = vmatprep.subr.mxu0 %v3720
      %4846 = vmatpush1.msra.mxu0 %v3718
      %4847 = vmatprep.subr.mxu0 %v3724
      %4848 = vmatpush1.msra.mxu0 %v3722
      %4849 = vmatprep.subr.mxu0 %v3730
      %4850 = vmatpush1.msra.mxu0 %v3728
      %4851 = vmatprep.subr.mxu0 %v3734
      %4852 = vmatpush1.msra.mxu0 %v3732
      %4853 = vmatprep.subr.mxu0 0.0
      %4854 = vmatpush1.msra.mxu0 0.0
      %4855 = vmatprep.subr.mxu0 0.0
      %4856 = vmatpush1.msra.mxu0 0.0
      %4857 = vmatprep.subr.mxu0 0.0
      %4858 = vmatpush1.msra.mxu0 0.0
      %4859 = vmatprep.subr.mxu0 0.0
      %4860 = vmatpush1.msra.mxu0 0.0
      %4861 = vmatprep.subr.mxu0 0.0
      %4862 = vmatpush1.msra.mxu0 0.0
      %4863 = vmatprep.subr.mxu0 0.0
      %4864 = vmatpush1.msra.mxu0 0.0
      %4865 = vmatprep.subr.mxu0 0.0
      %4866 = vmatpush1.msra.mxu0 0.0
      %4867 = vmatprep.subr.mxu0 0.0
      %4868 = vmatpush1.msra.mxu0 0.0
      %4869 = vmatprep.subr.mxu0 0.0
      %4870 = vmatpush1.msra.mxu0 0.0
      %4871 = vmatprep.subr.mxu0 0.0
      %4872 = vmatpush1.msra.mxu0 0.0
      %4873 = vmatprep.subr.mxu0 0.0
      %4874 = vmatpush1.msra.mxu0 0.0
      %4875 = vmatprep.subr.mxu0 0.0
      %4876 = vmatpush1.msra.mxu0 0.0
      %4877 = vmatprep.subr.mxu0 0.0
      %4878 = vmatpush1.msra.mxu0 0.0
      %4879 = vmatprep.subr.mxu0 0.0
      %4880 = vmatpush1.msra.mxu0 0.0
      %4881 = vmatprep.subr.mxu0 0.0
      %4882 = vmatpush1.msra.mxu0 0.0
      %4883 = vmatprep.subr.mxu0 0.0
      %4884 = vmatpush1.msra.mxu0 0.0
      %4885 = vmatprep.subr.mxu0 0.0
      %4886 = vmatpush1.msra.mxu0 0.0
      %4887 = vmatprep.subr.mxu0 0.0
      %4888 = vmatpush1.msra.mxu0 0.0
      %4889 = vmatprep.subr.mxu0 0.0
      %4890 = vmatpush1.msra.mxu0 0.0
      %4891 = vmatprep.subr.mxu0 0.0
      %4892 = vmatpush1.msra.mxu0 0.0
      %4893 = vmatprep.subr.mxu0 0.0
      %4894 = vmatpush1.msra.mxu0 0.0
      %4895 = vmatprep.subr.mxu0 0.0
      %4896 = vmatpush1.msra.mxu0 0.0
      %4897 = vmatprep.subr.mxu0 0.0
      %4898 = vmatpush1.msra.mxu0 0.0
      %4899 = vmatprep.subr.mxu0 0.0
      %4900 = vmatpush1.msra.mxu0 0.0
      %4901 = vmatprep.mubr.f32.mxu0 0.0
      %4902 = vmatmul.mubr.f32.gmra.mrb[0].mxu0 %v4790
      %v4903 = vpop.f32.mrb[0].mxu0
      %v4904 = vadd.f32 0.0, %v4903
      %v4905 = vpop.f32.mrb[0].mxu0
      %v4906 = vadd.f32 0.0, %v4905
      %4907 = vmatprep.mubr.f32.mxu0 0.0
      %4908 = vmatmul.mubr.f32.gmra.mrb[0].mxu0 %v4793
      %v4909 = vpop.f32.mrb[0].mxu0
      %v4910 = vadd.f32 0.0, %v4909
      %v4911 = vpop.f32.mrb[0].mxu0
      %v4912 = vadd.f32 0.0, %v4911
      %4913 = vmatprep.mubr.f32.mxu0 0.0
      %4914 = vmatmul.mubr.f32.gmra.mrb[0].mxu0 %v4796
      %v4915 = vpop.f32.mrb[0].mxu0
      %v4916 = vadd.f32 0.0, %v4915
      %v4917 = vpop.f32.mrb[0].mxu0
      %v4918 = vadd.f32 0.0, %v4917
      %4919 = vmatprep.mubr.f32.mxu0 0.0
      %4920 = vmatmul.mubr.f32.gmra.mrb[0].mxu0 %v4799
      %v4921 = vpop.f32.mrb[0].mxu0
      %v4922 = vadd.f32 0.0, %v4921
      %v4923 = vpop.f32.mrb[0].mxu0
      %v4924 = vadd.f32 0.0, %v4923
      %4925 = vmatprep.mubr.f32.mxu0 0.0
      %4926 = vmatmul.mubr.f32.gmra.mrb[0].mxu0 %v4802
      %v4927 = vpop.f32.mrb[0].mxu0
      %v4928 = vadd.f32 0.0, %v4927
      %v4929 = vpop.f32.mrb[0].mxu0
      %v4930 = vadd.f32 0.0, %v4929
      %4931 = vmatprep.mubr.f32.mxu0 0.0
      %4932 = vmatmul.mubr.f32.gmra.mrb[0].mxu0 %v4805
      %v4933 = vpop.f32.mrb[0].mxu0
      %v4934 = vadd.f32 0.0, %v4933
      %v4935 = vpop.f32.mrb[0].mxu0
      %v4936 = vadd.f32 0.0, %v4935
      %4937 = vmatprep.mubr.f32.mxu0 0.0
      %4938 = vmatmul.mubr.f32.gmra.mrb[0].mxu0 %v4808
      %v4939 = vpop.f32.mrb[0].mxu0
      %v4940 = vadd.f32 0.0, %v4939
      %v4941 = vpop.f32.mrb[0].mxu0
      %v4942 = vadd.f32 0.0, %v4941
      %4943 = vmatprep.mubr.f32.mxu0 0.0
      %4944 = vmatmul.mubr.f32.gmra.mrb[0].mxu0 %v4811
      %v4945 = vpop.f32.mrb[0].mxu0
      %v4946 = vadd.f32 0.0, %v4945
      %v4947 = vpop.f32.mrb[0].mxu0
      %v4948 = vadd.f32 0.0, %v4947
      %4949 = vmatprep.mubr.f32.mxu0 0.0
      %4950 = vmatmul.mubr.f32.gmra.mrb[0].mxu0 %v4814
      %v4951 = vpop.f32.mrb[0].mxu0
      %v4952 = vadd.f32 0.0, %v4951
      %v4953 = vpop.f32.mrb[0].mxu0
      %v4954 = vadd.f32 0.0, %v4953
      %4955 = vmatprep.mubr.f32.mxu0 0.0
      %4956 = vmatmul.mubr.f32.gmra.mrb[0].mxu0 %v4817
      %v4957 = vpop.f32.mrb[0].mxu0
      %v4958 = vadd.f32 0.0, %v4957
      %v4959 = vpop.f32.mrb[0].mxu0
      %v4960 = vadd.f32 0.0, %v4959
      %4961 = vmatprep.mubr.f32.mxu0 0.0
      %4962 = vmatmul.mubr.f32.gmra.mrb[0].mxu0 %v4820
      %v4963 = vpop.f32.mrb[0].mxu0
      %v4964 = vadd.f32 0.0, %v4963
      %v4965 = vpop.f32.mrb[0].mxu0
      %v4966 = vadd.f32 0.0, %v4965
      %4967 = vmatprep.mubr.f32.mxu0 0.0
      %4968 = vmatmul.mubr.f32.gmra.mrb[0].mxu0 %v4823
      %v4969 = vpop.f32.mrb[0].mxu0
      %v4970 = vadd.f32 0.0, %v4969
      %v4971 = vpop.f32.mrb[0].mxu0
      %v4972 = vadd.f32 0.0, %v4971
      %4973 = vmatprep.mubr.f32.mxu0 0.0
      %4974 = vmatmul.mubr.f32.gmra.mrb[0].mxu0 %v4826
      %v4975 = vpop.f32.mrb[0].mxu0
      %v4976 = vadd.f32 0.0, %v4975
      %v4977 = vpop.f32.mrb[0].mxu0
      %v4978 = vadd.f32 0.0, %v4977
      %4979 = vmatprep.mubr.f32.mxu0 0.0
      %4980 = vmatmul.mubr.f32.gmra.mrb[0].mxu0 %v4829
      %v4981 = vpop.f32.mrb[0].mxu0
      %v4982 = vadd.f32 0.0, %v4981
      %v4983 = vpop.f32.mrb[0].mxu0
      %v4984 = vadd.f32 0.0, %v4983
      %4985 = vmatprep.mubr.f32.mxu0 0.0
      %4986 = vmatmul.mubr.f32.gmra.mrb[0].mxu0 %v4832
      %v4987 = vpop.f32.mrb[0].mxu0
      %v4988 = vadd.f32 0.0, %v4987
      %v4989 = vpop.f32.mrb[0].mxu0
      %v4990 = vadd.f32 0.0, %v4989
      %4991 = vmatprep.mubr.f32.mxu0 0.0
      %4992 = vmatmul.mubr.f32.gmra.mrb[0].mxu0 %v4835
      %v4993 = vpop.f32.mrb[0].mxu0
      %v4994 = vadd.f32 0.0, %v4993
      %v4995 = vpop.f32.mrb[0].mxu0
      %v4996 = vadd.f32 0.0, %v4995
      %4997 = vdwg.mxu0
      %v4999 = vsel %vm4788, %v4756, 0
      %v5002 = vsel %vm4788, %v4757, 0
      %v5005 = vsel %vm4788, %v4758, 0
      %v5008 = vsel %vm4788, %v4759, 0
      %v5011 = vsel %vm4788, %v4760, 0
      %v5014 = vsel %vm4788, %v4761, 0
      %v5017 = vsel %vm4788, %v4762, 0
      %v5020 = vsel %vm4788, %v4763, 0
      %v5023 = vsel %vm4788, %v4764, 0
      %v5026 = vsel %vm4788, %v4765, 0
      %v5029 = vsel %vm4788, %v4766, 0
      %v5032 = vsel %vm4788, %v4767, 0
      %v5035 = vsel %vm4788, %v4768, 0
      %v5038 = vsel %vm4788, %v4769, 0
      %v5041 = vsel %vm4788, %v4770, 0
      %v5044 = vsel %vm4788, %v4771, 0
      %5046 = vmatprep.subr.mxu0 %v3554
      %5047 = vmatpush1.msra.mxu0 %v3552
      %5048 = vmatprep.subr.mxu0 %v3558
      %5049 = vmatpush1.msra.mxu0 %v3556
      %5050 = vmatprep.subr.mxu0 %v3564
      %5051 = vmatpush1.msra.mxu0 %v3562
      %5052 = vmatprep.subr.mxu0 %v3568
      %5053 = vmatpush1.msra.mxu0 %v3566
      %5054 = vmatprep.subr.mxu0 %v3574
      %5055 = vmatpush1.msra.mxu0 %v3572
      %5056 = vmatprep.subr.mxu0 %v3578
      %5057 = vmatpush1.msra.mxu0 %v3576
      %5058 = vmatprep.subr.mxu0 %v3584
      %5059 = vmatpush1.msra.mxu0 %v3582
      %5060 = vmatprep.subr.mxu0 %v3588
      %5061 = vmatpush1.msra.mxu0 %v3586
      %5062 = vmatprep.subr.mxu0 0.0
      %5063 = vmatpush1.msra.mxu0 0.0
      %5064 = vmatprep.subr.mxu0 0.0
      %5065 = vmatpush1.msra.mxu0 0.0
      %5066 = vmatprep.subr.mxu0 0.0
      %5067 = vmatpush1.msra.mxu0 0.0
      %5068 = vmatprep.subr.mxu0 0.0
      %5069 = vmatpush1.msra.mxu0 0.0
      %5070 = vmatprep.subr.mxu0 0.0
      %5071 = vmatpush1.msra.mxu0 0.0
      %5072 = vmatprep.subr.mxu0 0.0
      %5073 = vmatpush1.msra.mxu0 0.0
      %5074 = vmatprep.subr.mxu0 0.0
      %5075 = vmatpush1.msra.mxu0 0.0
      %5076 = vmatprep.subr.mxu0 0.0
      %5077 = vmatpush1.msra.mxu0 0.0
      %5078 = vmatprep.subr.mxu0 0.0
      %5079 = vmatpush1.msra.mxu0 0.0
      %5080 = vmatprep.subr.mxu0 0.0
      %5081 = vmatpush1.msra.mxu0 0.0
      %5082 = vmatprep.subr.mxu0 0.0
      %5083 = vmatpush1.msra.mxu0 0.0
      %5084 = vmatprep.subr.mxu0 0.0
      %5085 = vmatpush1.msra.mxu0 0.0
      %5086 = vmatprep.subr.mxu0 0.0
      %5087 = vmatpush1.msra.mxu0 0.0
      %5088 = vmatprep.subr.mxu0 0.0
      %5089 = vmatpush1.msra.mxu0 0.0
      %5090 = vmatprep.subr.mxu0 0.0
      %5091 = vmatpush1.msra.mxu0 0.0
      %5092 = vmatprep.subr.mxu0 0.0
      %5093 = vmatpush1.msra.mxu0 0.0
      %5094 = vmatprep.subr.mxu0 0.0
      %5095 = vmatpush1.msra.mxu0 0.0
      %5096 = vmatprep.subr.mxu0 0.0
      %5097 = vmatpush1.msra.mxu0 0.0
      %5098 = vmatprep.subr.mxu0 0.0
      %5099 = vmatpush1.msra.mxu0 0.0
      %5100 = vmatprep.subr.mxu0 0.0
      %5101 = vmatpush1.msra.mxu0 0.0
      %5102 = vmatprep.subr.mxu0 0.0
      %5103 = vmatpush1.msra.mxu0 0.0
      %5104 = vmatprep.subr.mxu0 0.0
      %5105 = vmatpush1.msra.mxu0 0.0
      %5106 = vmatprep.subr.mxu0 0.0
      %5107 = vmatpush1.msra.mxu0 0.0
      %5108 = vmatprep.subr.mxu0 0.0
      %5109 = vmatpush1.msra.mxu0 0.0
      %5110 = vmatprep.mubr.f32.mxu0 0.0
      %5111 = vmatmul.mubr.f32.gmra.mrb[0].mxu0 %v4999
      %v5112 = vpop.f32.mrb[0].mxu0
      %v5113 = vadd.f32 %v4904, %v5112
      %v5114 = vpop.f32.mrb[0].mxu0
      %v5115 = vadd.f32 %v4906, %v5114
      %5116 = vmatprep.mubr.f32.mxu0 0.0
      %5117 = vmatmul.mubr.f32.gmra.mrb[0].mxu0 %v5002
      %v5118 = vpop.f32.mrb[0].mxu0
      %v5119 = vadd.f32 %v4910, %v5118
      %v5120 = vpop.f32.mrb[0].mxu0
      %v5121 = vadd.f32 %v4912, %v5120
      %5122 = vmatprep.mubr.f32.mxu0 0.0
      %5123 = vmatmul.mubr.f32.gmra.mrb[0].mxu0 %v5005
      %v5124 = vpop.f32.mrb[0].mxu0
      %v5125 = vadd.f32 %v4916, %v5124
      %v5126 = vpop.f32.mrb[0].mxu0
      %v5127 = vadd.f32 %v4918, %v5126
      %5128 = vmatprep.mubr.f32.mxu0 0.0
      %5129 = vmatmul.mubr.f32.gmra.mrb[0].mxu0 %v5008
      %v5130 = vpop.f32.mrb[0].mxu0
      %v5131 = vadd.f32 %v4922, %v5130
      %v5132 = vpop.f32.mrb[0].mxu0
      %v5133 = vadd.f32 %v4924, %v5132
      %5134 = vmatprep.mubr.f32.mxu0 0.0
      %5135 = vmatmul.mubr.f32.gmra.mrb[0].mxu0 %v5011
      %v5136 = vpop.f32.mrb[0].mxu0
      %v5137 = vadd.f32 %v4928, %v5136
      %v5138 = vpop.f32.mrb[0].mxu0
      %v5139 = vadd.f32 %v4930, %v5138
      %5140 = vmatprep.mubr.f32.mxu0 0.0
      %5141 = vmatmul.mubr.f32.gmra.mrb[0].mxu0 %v5014
      %v5142 = vpop.f32.mrb[0].mxu0
      %v5143 = vadd.f32 %v4934, %v5142
      %v5144 = vpop.f32.mrb[0].mxu0
      %v5145 = vadd.f32 %v4936, %v5144
      %5146 = vmatprep.mubr.f32.mxu0 0.0
      %5147 = vmatmul.mubr.f32.gmra.mrb[0].mxu0 %v5017
      %v5148 = vpop.f32.mrb[0].mxu0
      %v5149 = vadd.f32 %v4940, %v5148
      %v5150 = vpop.f32.mrb[0].mxu0
      %v5151 = vadd.f32 %v4942, %v5150
      %5152 = vmatprep.mubr.f32.mxu0 0.0
      %5153 = vmatmul.mubr.f32.gmra.mrb[0].mxu0 %v5020
      %v5154 = vpop.f32.mrb[0].mxu0
      %v5155 = vadd.f32 %v4946, %v5154
      %v5156 = vpop.f32.mrb[0].mxu0
      %v5157 = vadd.f32 %v4948, %v5156
      %5158 = vmatprep.mubr.f32.mxu0 0.0
      %5159 = vmatmul.mubr.f32.gmra.mrb[0].mxu0 %v5023
      %v5160 = vpop.f32.mrb[0].mxu0
      %v5161 = vadd.f32 %v4952, %v5160
      %v5162 = vpop.f32.mrb[0].mxu0
      %v5163 = vadd.f32 %v4954, %v5162
      %5164 = vmatprep.mubr.f32.mxu0 0.0
      %5165 = vmatmul.mubr.f32.gmra.mrb[0].mxu0 %v5026
      %v5166 = vpop.f32.mrb[0].mxu0
      %v5167 = vadd.f32 %v4958, %v5166
      %v5168 = vpop.f32.mrb[0].mxu0
      %v5169 = vadd.f32 %v4960, %v5168
      %5170 = vmatprep.mubr.f32.mxu0 0.0
      %5171 = vmatmul.mubr.f32.gmra.mrb[0].mxu0 %v5029
      %v5172 = vpop.f32.mrb[0].mxu0
      %v5173 = vadd.f32 %v4964, %v5172
      %v5174 = vpop.f32.mrb[0].mxu0
      %v5175 = vadd.f32 %v4966, %v5174
      %5176 = vmatprep.mubr.f32.mxu0 0.0
      %5177 = vmatmul.mubr.f32.gmra.mrb[0].mxu0 %v5032
      %v5178 = vpop.f32.mrb[0].mxu0
      %v5179 = vadd.f32 %v4970, %v5178
      %v5180 = vpop.f32.mrb[0].mxu0
      %v5181 = vadd.f32 %v4972, %v5180
      %5182 = vmatprep.mubr.f32.mxu0 0.0
      %5183 = vmatmul.mubr.f32.gmra.mrb[0].mxu0 %v5035
      %v5184 = vpop.f32.mrb[0].mxu0
      %v5185 = vadd.f32 %v4976, %v5184
      %v5186 = vpop.f32.mrb[0].mxu0
      %v5187 = vadd.f32 %v4978, %v5186
      %5188 = vmatprep.mubr.f32.mxu0 0.0
      %5189 = vmatmul.mubr.f32.gmra.mrb[0].mxu0 %v5038
      %v5190 = vpop.f32.mrb[0].mxu0
      %v5191 = vadd.f32 %v4982, %v5190
      %v5192 = vpop.f32.mrb[0].mxu0
      %v5193 = vadd.f32 %v4984, %v5192
      %5194 = vmatprep.mubr.f32.mxu0 0.0
      %5195 = vmatmul.mubr.f32.gmra.mrb[0].mxu0 %v5041
      %v5196 = vpop.f32.mrb[0].mxu0
      %v5197 = vadd.f32 %v4988, %v5196
      %v5198 = vpop.f32.mrb[0].mxu0
      %v5199 = vadd.f32 %v4990, %v5198
      %5200 = vmatprep.mubr.f32.mxu0 0.0
      %5201 = vmatmul.mubr.f32.gmra.mrb[0].mxu0 %v5044
      %v5202 = vpop.f32.mrb[0].mxu0
      %v5203 = vadd.f32 %v4994, %v5202
      %v5204 = vpop.f32.mrb[0].mxu0
      %v5205 = vadd.f32 %v4996, %v5204
      %5206 = vdwg.mxu0
      %5207 = vmatprep.subr.mxu0 %v4720
      %5208 = vmatpush1.msra.mxu0 %v4718
      %5209 = vmatprep.subr.mxu0 %v4724
      %5210 = vmatpush1.msra.mxu0 %v4722
      %5211 = vmatprep.subr.mxu0 %v4730
      %5212 = vmatpush1.msra.mxu0 %v4728
      %5213 = vmatprep.subr.mxu0 %v4734
      %5214 = vmatpush1.msra.mxu0 %v4732
      %5215 = vmatprep.subr.mxu0 %v4740
      %5216 = vmatpush1.msra.mxu0 %v4738
      %5217 = vmatprep.subr.mxu0 %v4744
      %5218 = vmatpush1.msra.mxu0 %v4742
      %5219 = vmatprep.subr.mxu0 %v4750
      %5220 = vmatpush1.msra.mxu0 %v4748
      %5221 = vmatprep.subr.mxu0 %v4754
      %5222 = vmatpush1.msra.mxu0 %v4752
      %5223 = vmatprep.subr.mxu0 0.0
      %5224 = vmatpush1.msra.mxu0 0.0
      %5225 = vmatprep.subr.mxu0 0.0
      %5226 = vmatpush1.msra.mxu0 0.0
      %5227 = vmatprep.subr.mxu0 0.0
      %5228 = vmatpush1.msra.mxu0 0.0
      %5229 = vmatprep.subr.mxu0 0.0
      %5230 = vmatpush1.msra.mxu0 0.0
      %5231 = vmatprep.subr.mxu0 0.0
      %5232 = vmatpush1.msra.mxu0 0.0
      %5233 = vmatprep.subr.mxu0 0.0
      %5234 = vmatpush1.msra.mxu0 0.0
      %5235 = vmatprep.subr.mxu0 0.0
      %5236 = vmatpush1.msra.mxu0 0.0
      %5237 = vmatprep.subr.mxu0 0.0
      %5238 = vmatpush1.msra.mxu0 0.0
      %5239 = vmatprep.subr.mxu0 0.0
      %5240 = vmatpush1.msra.mxu0 0.0
      %5241 = vmatprep.subr.mxu0 0.0
      %5242 = vmatpush1.msra.mxu0 0.0
      %5243 = vmatprep.subr.mxu0 0.0
      %5244 = vmatpush1.msra.mxu0 0.0
      %5245 = vmatprep.subr.mxu0 0.0
      %5246 = vmatpush1.msra.mxu0 0.0
      %5247 = vmatprep.subr.mxu0 0.0
      %5248 = vmatpush1.msra.mxu0 0.0
      %5249 = vmatprep.subr.mxu0 0.0
      %5250 = vmatpush1.msra.mxu0 0.0
      %5251 = vmatprep.subr.mxu0 0.0
      %5252 = vmatpush1.msra.mxu0 0.0
      %5253 = vmatprep.subr.mxu0 0.0
      %5254 = vmatpush1.msra.mxu0 0.0
      %5255 = vmatprep.subr.mxu0 0.0
      %5256 = vmatpush1.msra.mxu0 0.0
      %5257 = vmatprep.subr.mxu0 0.0
      %5258 = vmatpush1.msra.mxu0 0.0
      %5259 = vmatprep.subr.mxu0 0.0
      %5260 = vmatpush1.msra.mxu0 0.0
      %5261 = vmatprep.subr.mxu0 0.0
      %5262 = vmatpush1.msra.mxu0 0.0
      %5263 = vmatprep.subr.mxu0 0.0
      %5264 = vmatpush1.msra.mxu0 0.0
      %5265 = vmatprep.subr.mxu0 0.0
      %5266 = vmatpush1.msra.mxu0 0.0
      %5267 = vmatprep.subr.mxu0 0.0
      %5268 = vmatpush1.msra.mxu0 0.0
      %5269 = vmatprep.subr.mxu0 0.0
      %5270 = vmatpush1.msra.mxu0 0.0
      %5271 = vmatprep.mubr.f32.mxu0 0.0
      %5272 = vmatmul.mubr.f32.gmra.mrb[0].mxu0 %v4790
      %v5273 = vpop.f32.mrb[0].mxu0
      %v5274 = vadd.f32 0.0, %v5273
      %v5275 = vpop.f32.mrb[0].mxu0
      %v5276 = vadd.f32 0.0, %v5275
      %5277 = vmatprep.mubr.f32.mxu0 0.0
      %5278 = vmatmul.mubr.f32.gmra.mrb[0].mxu0 %v4793
      %v5279 = vpop.f32.mrb[0].mxu0
      %v5280 = vadd.f32 0.0, %v5279
      %v5281 = vpop.f32.mrb[0].mxu0
      %v5282 = vadd.f32 0.0, %v5281
      %5283 = vmatprep.mubr.f32.mxu0 0.0
      %5284 = vmatmul.mubr.f32.gmra.mrb[0].mxu0 %v4796
      %v5285 = vpop.f32.mrb[0].mxu0
      %v5286 = vadd.f32 0.0, %v5285
      %v5287 = vpop.f32.mrb[0].mxu0
      %v5288 = vadd.f32 0.0, %v5287
      %5289 = vmatprep.mubr.f32.mxu0 0.0
      %5290 = vmatmul.mubr.f32.gmra.mrb[0].mxu0 %v4799
      %v5291 = vpop.f32.mrb[0].mxu0
      %v5292 = vadd.f32 0.0, %v5291
      %v5293 = vpop.f32.mrb[0].mxu0
      %v5294 = vadd.f32 0.0, %v5293
      %5295 = vmatprep.mubr.f32.mxu0 0.0
      %5296 = vmatmul.mubr.f32.gmra.mrb[0].mxu0 %v4802
      %v5297 = vpop.f32.mrb[0].mxu0
      %v5298 = vadd.f32 0.0, %v5297
      %v5299 = vpop.f32.mrb[0].mxu0
      %v5300 = vadd.f32 0.0, %v5299
      %5301 = vmatprep.mubr.f32.mxu0 0.0
      %5302 = vmatmul.mubr.f32.gmra.mrb[0].mxu0 %v4805
      %v5303 = vpop.f32.mrb[0].mxu0
      %v5304 = vadd.f32 0.0, %v5303
      %v5305 = vpop.f32.mrb[0].mxu0
      %v5306 = vadd.f32 0.0, %v5305
      %5307 = vmatprep.mubr.f32.mxu0 0.0
      %5308 = vmatmul.mubr.f32.gmra.mrb[0].mxu0 %v4808
      %v5309 = vpop.f32.mrb[0].mxu0
      %v5310 = vadd.f32 0.0, %v5309
      %v5311 = vpop.f32.mrb[0].mxu0
      %v5312 = vadd.f32 0.0, %v5311
      %5313 = vmatprep.mubr.f32.mxu0 0.0
      %5314 = vmatmul.mubr.f32.gmra.mrb[0].mxu0 %v4811
      %v5315 = vpop.f32.mrb[0].mxu0
      %v5316 = vadd.f32 0.0, %v5315
      %v5317 = vpop.f32.mrb[0].mxu0
      %v5318 = vadd.f32 0.0, %v5317
      %5319 = vmatprep.mubr.f32.mxu0 0.0
      %5320 = vmatmul.mubr.f32.gmra.mrb[0].mxu0 %v4814
      %v5321 = vpop.f32.mrb[0].mxu0
      %v5322 = vadd.f32 0.0, %v5321
      %v5323 = vpop.f32.mrb[0].mxu0
      %v5324 = vadd.f32 0.0, %v5323
      %5325 = vmatprep.mubr.f32.mxu0 0.0
      %5326 = vmatmul.mubr.f32.gmra.mrb[0].mxu0 %v4817
      %v5327 = vpop.f32.mrb[0].mxu0
      %v5328 = vadd.f32 0.0, %v5327
      %v5329 = vpop.f32.mrb[0].mxu0
      %v5330 = vadd.f32 0.0, %v5329
      %5331 = vmatprep.mubr.f32.mxu0 0.0
      %5332 = vmatmul.mubr.f32.gmra.mrb[0].mxu0 %v4820
      %v5333 = vpop.f32.mrb[0].mxu0
      %v5334 = vadd.f32 0.0, %v5333
      %v5335 = vpop.f32.mrb[0].mxu0
      %v5336 = vadd.f32 0.0, %v5335
      %5337 = vmatprep.mubr.f32.mxu0 0.0
      %5338 = vmatmul.mubr.f32.gmra.mrb[0].mxu0 %v4823
      %v5339 = vpop.f32.mrb[0].mxu0
      %v5340 = vadd.f32 0.0, %v5339
      %v5341 = vpop.f32.mrb[0].mxu0
      %v5342 = vadd.f32 0.0, %v5341
      %5343 = vmatprep.mubr.f32.mxu0 0.0
      %5344 = vmatmul.mubr.f32.gmra.mrb[0].mxu0 %v4826
      %v5345 = vpop.f32.mrb[0].mxu0
      %v5346 = vadd.f32 0.0, %v5345
      %v5347 = vpop.f32.mrb[0].mxu0
      %v5348 = vadd.f32 0.0, %v5347
      %5349 = vmatprep.mubr.f32.mxu0 0.0
      %5350 = vmatmul.mubr.f32.gmra.mrb[0].mxu0 %v4829
      %v5351 = vpop.f32.mrb[0].mxu0
      %v5352 = vadd.f32 0.0, %v5351
      %v5353 = vpop.f32.mrb[0].mxu0
      %v5354 = vadd.f32 0.0, %v5353
      %5355 = vmatprep.mubr.f32.mxu0 0.0
      %5356 = vmatmul.mubr.f32.gmra.mrb[0].mxu0 %v4832
      %v5357 = vpop.f32.mrb[0].mxu0
      %v5358 = vadd.f32 0.0, %v5357
      %v5359 = vpop.f32.mrb[0].mxu0
      %v5360 = vadd.f32 0.0, %v5359
      %5361 = vmatprep.mubr.f32.mxu0 0.0
      %5362 = vmatmul.mubr.f32.gmra.mrb[0].mxu0 %v4835
      %v5363 = vpop.f32.mrb[0].mxu0
      %v5364 = vadd.f32 0.0, %v5363
      %v5365 = vpop.f32.mrb[0].mxu0
      %v5366 = vadd.f32 0.0, %v5365
      %5367 = vdwg.mxu0
      %5368 = vmatprep.subr.mxu0 %v4574
      %5369 = vmatpush1.msra.mxu0 %v4572
      %5370 = vmatprep.subr.mxu0 %v4578
      %5371 = vmatpush1.msra.mxu0 %v4576
      %5372 = vmatprep.subr.mxu0 %v4584
      %5373 = vmatpush1.msra.mxu0 %v4582
      %5374 = vmatprep.subr.mxu0 %v4588
      %5375 = vmatpush1.msra.mxu0 %v4586
      %5376 = vmatprep.subr.mxu0 %v4594
      %5377 = vmatpush1.msra.mxu0 %v4592
      %5378 = vmatprep.subr.mxu0 %v4598
      %5379 = vmatpush1.msra.mxu0 %v4596
      %5380 = vmatprep.subr.mxu0 %v4604
      %5381 = vmatpush1.msra.mxu0 %v4602
      %5382 = vmatprep.subr.mxu0 %v4608
      %5383 = vmatpush1.msra.mxu0 %v4606
      %5384 = vmatprep.subr.mxu0 0.0
      %5385 = vmatpush1.msra.mxu0 0.0
      %5386 = vmatprep.subr.mxu0 0.0
      %5387 = vmatpush1.msra.mxu0 0.0
      %5388 = vmatprep.subr.mxu0 0.0
      %5389 = vmatpush1.msra.mxu0 0.0
      %5390 = vmatprep.subr.mxu0 0.0
      %5391 = vmatpush1.msra.mxu0 0.0
      %5392 = vmatprep.subr.mxu0 0.0
      %5393 = vmatpush1.msra.mxu0 0.0
      %5394 = vmatprep.subr.mxu0 0.0
      %5395 = vmatpush1.msra.mxu0 0.0
      %5396 = vmatprep.subr.mxu0 0.0
      %5397 = vmatpush1.msra.mxu0 0.0
      %5398 = vmatprep.subr.mxu0 0.0
      %5399 = vmatpush1.msra.mxu0 0.0
      %5400 = vmatprep.subr.mxu0 0.0
      %5401 = vmatpush1.msra.mxu0 0.0
      %5402 = vmatprep.subr.mxu0 0.0
      %5403 = vmatpush1.msra.mxu0 0.0
      %5404 = vmatprep.subr.mxu0 0.0
      %5405 = vmatpush1.msra.mxu0 0.0
      %5406 = vmatprep.subr.mxu0 0.0
      %5407 = vmatpush1.msra.mxu0 0.0
      %5408 = vmatprep.subr.mxu0 0.0
      %5409 = vmatpush1.msra.mxu0 0.0
      %5410 = vmatprep.subr.mxu0 0.0
      %5411 = vmatpush1.msra.mxu0 0.0
      %5412 = vmatprep.subr.mxu0 0.0
      %5413 = vmatpush1.msra.mxu0 0.0
      %5414 = vmatprep.subr.mxu0 0.0
      %5415 = vmatpush1.msra.mxu0 0.0
      %5416 = vmatprep.subr.mxu0 0.0
      %5417 = vmatpush1.msra.mxu0 0.0
      %5418 = vmatprep.subr.mxu0 0.0
      %5419 = vmatpush1.msra.mxu0 0.0
      %5420 = vmatprep.subr.mxu0 0.0
      %5421 = vmatpush1.msra.mxu0 0.0
      %5422 = vmatprep.subr.mxu0 0.0
      %5423 = vmatpush1.msra.mxu0 0.0
      %5424 = vmatprep.subr.mxu0 0.0
      %5425 = vmatpush1.msra.mxu0 0.0
      %5426 = vmatprep.subr.mxu0 0.0
      %5427 = vmatpush1.msra.mxu0 0.0
      %5428 = vmatprep.subr.mxu0 0.0
      %5429 = vmatpush1.msra.mxu0 0.0
      %5430 = vmatprep.subr.mxu0 0.0
      %5431 = vmatpush1.msra.mxu0 0.0
      %5432 = vmatprep.mubr.f32.mxu0 0.0
      %5433 = vmatmul.mubr.f32.gmra.mrb[0].mxu0 %v4999
      %v5434 = vpop.f32.mrb[0].mxu0
      %v5435 = vadd.f32 %v5274, %v5434
      %v5436 = vpop.f32.mrb[0].mxu0
      %v5437 = vadd.f32 %v5276, %v5436
      %5438 = vmatprep.mubr.f32.mxu0 0.0
      %5439 = vmatmul.mubr.f32.gmra.mrb[0].mxu0 %v5002
      %v5440 = vpop.f32.mrb[0].mxu0
      %v5441 = vadd.f32 %v5280, %v5440
      %v5442 = vpop.f32.mrb[0].mxu0
      %v5443 = vadd.f32 %v5282, %v5442
      %5444 = vmatprep.mubr.f32.mxu0 0.0
      %5445 = vmatmul.mubr.f32.gmra.mrb[0].mxu0 %v5005
      %v5446 = vpop.f32.mrb[0].mxu0
      %v5447 = vadd.f32 %v5286, %v5446
      %v5448 = vpop.f32.mrb[0].mxu0
      %v5449 = vadd.f32 %v5288, %v5448
      %5450 = vmatprep.mubr.f32.mxu0 0.0
      %5451 = vmatmul.mubr.f32.gmra.mrb[0].mxu0 %v5008
      %v5452 = vpop.f32.mrb[0].mxu0
      %v5453 = vadd.f32 %v5292, %v5452
      %v5454 = vpop.f32.mrb[0].mxu0
      %v5455 = vadd.f32 %v5294, %v5454
      %5456 = vmatprep.mubr.f32.mxu0 0.0
      %5457 = vmatmul.mubr.f32.gmra.mrb[0].mxu0 %v5011
      %v5458 = vpop.f32.mrb[0].mxu0
      %v5459 = vadd.f32 %v5298, %v5458
      %v5460 = vpop.f32.mrb[0].mxu0
      %v5461 = vadd.f32 %v5300, %v5460
      %5462 = vmatprep.mubr.f32.mxu0 0.0
      %5463 = vmatmul.mubr.f32.gmra.mrb[0].mxu0 %v5014
      %v5464 = vpop.f32.mrb[0].mxu0
      %v5465 = vadd.f32 %v5304, %v5464
      %v5466 = vpop.f32.mrb[0].mxu0
      %v5467 = vadd.f32 %v5306, %v5466
      %5468 = vmatprep.mubr.f32.mxu0 0.0
      %5469 = vmatmul.mubr.f32.gmra.mrb[0].mxu0 %v5017
      %v5470 = vpop.f32.mrb[0].mxu0
      %v5471 = vadd.f32 %v5310, %v5470
      %v5472 = vpop.f32.mrb[0].mxu0
      %v5473 = vadd.f32 %v5312, %v5472
      %5474 = vmatprep.mubr.f32.mxu0 0.0
      %5475 = vmatmul.mubr.f32.gmra.mrb[0].mxu0 %v5020
      %v5476 = vpop.f32.mrb[0].mxu0
      %v5477 = vadd.f32 %v5316, %v5476
      %v5478 = vpop.f32.mrb[0].mxu0
      %v5479 = vadd.f32 %v5318, %v5478
      %5480 = vmatprep.mubr.f32.mxu0 0.0
      %5481 = vmatmul.mubr.f32.gmra.mrb[0].mxu0 %v5023
      %v5482 = vpop.f32.mrb[0].mxu0
      %v5483 = vadd.f32 %v5322, %v5482
      %v5484 = vpop.f32.mrb[0].mxu0
      %v5485 = vadd.f32 %v5324, %v5484
      %5486 = vmatprep.mubr.f32.mxu0 0.0
      %5487 = vmatmul.mubr.f32.gmra.mrb[0].mxu0 %v5026
      %v5488 = vpop.f32.mrb[0].mxu0
      %v5489 = vadd.f32 %v5328, %v5488
      %v5490 = vpop.f32.mrb[0].mxu0
      %v5491 = vadd.f32 %v5330, %v5490
      %5492 = vmatprep.mubr.f32.mxu0 0.0
      %5493 = vmatmul.mubr.f32.gmra.mrb[0].mxu0 %v5029
      %v5494 = vpop.f32.mrb[0].mxu0
      %v5495 = vadd.f32 %v5334, %v5494
      %v5496 = vpop.f32.mrb[0].mxu0
      %v5497 = vadd.f32 %v5336, %v5496
      %5498 = vmatprep.mubr.f32.mxu0 0.0
      %5499 = vmatmul.mubr.f32.gmra.mrb[0].mxu0 %v5032
      %v5500 = vpop.f32.mrb[0].mxu0
      %v5501 = vadd.f32 %v5340, %v5500
      %v5502 = vpop.f32.mrb[0].mxu0
      %v5503 = vadd.f32 %v5342, %v5502
      %5504 = vmatprep.mubr.f32.mxu0 0.0
      %5505 = vmatmul.mubr.f32.gmra.mrb[0].mxu0 %v5035
      %v5506 = vpop.f32.mrb[0].mxu0
      %v5507 = vadd.f32 %v5346, %v5506
      %v5508 = vpop.f32.mrb[0].mxu0
      %v5509 = vadd.f32 %v5348, %v5508
      %5510 = vmatprep.mubr.f32.mxu0 0.0
      %5511 = vmatmul.mubr.f32.gmra.mrb[0].mxu0 %v5038
      %v5512 = vpop.f32.mrb[0].mxu0
      %v5513 = vadd.f32 %v5352, %v5512
      %v5514 = vpop.f32.mrb[0].mxu0
      %v5515 = vadd.f32 %v5354, %v5514
      %5516 = vmatprep.mubr.f32.mxu0 0.0
      %5517 = vmatmul.mubr.f32.gmra.mrb[0].mxu0 %v5041
      %v5518 = vpop.f32.mrb[0].mxu0
      %v5519 = vadd.f32 %v5358, %v5518
      %v5520 = vpop.f32.mrb[0].mxu0
      %v5521 = vadd.f32 %v5360, %v5520
      %5522 = vmatprep.mubr.f32.mxu0 0.0
      %5523 = vmatmul.mubr.f32.gmra.mrb[0].mxu0 %v5044
      %v5524 = vpop.f32.mrb[0].mxu0
      %v5525 = vadd.f32 %v5364, %v5524
      %v5526 = vpop.f32.mrb[0].mxu0
      %v5527 = vadd.f32 %v5366, %v5526
      %5528 = vdwg.mxu0
      %v5529 = vmul.f32 %v5435, 1.442695
      %v5530 = vpow.pop %v5529
      %v5531 = vmul.f32 %v5437, 1.442695
      %v5532 = vpow.pop %v5531
      %v5533 = vmul.f32 %v5441, 1.442695
      %v5534 = vpow.pop %v5533
      %v5535 = vmul.f32 %v5443, 1.442695
      %v5536 = vpow.pop %v5535
      %v5537 = vmul.f32 %v5447, 1.442695
      %v5538 = vpow.pop %v5537
      %v5539 = vmul.f32 %v5449, 1.442695
      %v5540 = vpow.pop %v5539
      %v5541 = vmul.f32 %v5453, 1.442695
      %v5542 = vpow.pop %v5541
      %v5543 = vmul.f32 %v5455, 1.442695
      %v5544 = vpow.pop %v5543
      %v5545 = vmul.f32 %v5459, 1.442695
      %v5546 = vpow.pop %v5545
      %v5547 = vmul.f32 %v5461, 1.442695
      %v5548 = vpow.pop %v5547
      %v5549 = vmul.f32 %v5465, 1.442695
      %v5550 = vpow.pop %v5549
      %v5551 = vmul.f32 %v5467, 1.442695
      %v5552 = vpow.pop %v5551
      %v5553 = vmul.f32 %v5471, 1.442695
      %v5554 = vpow.pop %v5553
      %v5555 = vmul.f32 %v5473, 1.442695
      %v5556 = vpow.pop %v5555
      %v5557 = vmul.f32 %v5477, 1.442695
      %v5558 = vpow.pop %v5557
      %v5559 = vmul.f32 %v5479, 1.442695
      %v5560 = vpow.pop %v5559
      %v5561 = vmul.f32 %v5483, 1.442695
      %v5562 = vpow.pop %v5561
      %v5563 = vmul.f32 %v5485, 1.442695
      %v5564 = vpow.pop %v5563
      %v5565 = vmul.f32 %v5489, 1.442695
      %v5566 = vpow.pop %v5565
      %v5567 = vmul.f32 %v5491, 1.442695
      %v5568 = vpow.pop %v5567
      %v5569 = vmul.f32 %v5495, 1.442695
      %v5570 = vpow.pop %v5569
      %v5571 = vmul.f32 %v5497, 1.442695
      %v5572 = vpow.pop %v5571
      %v5573 = vmul.f32 %v5501, 1.442695
      %v5574 = vpow.pop %v5573
      %v5575 = vmul.f32 %v5503, 1.442695
      %v5576 = vpow.pop %v5575
      %v5577 = vmul.f32 %v5507, 1.442695
      %v5578 = vpow.pop %v5577
      %v5579 = vmul.f32 %v5509, 1.442695
      %v5580 = vpow.pop %v5579
      %v5581 = vmul.f32 %v5513, 1.442695
      %v5582 = vpow.pop %v5581
      %v5583 = vmul.f32 %v5515, 1.442695
      %v5584 = vpow.pop %v5583
      %v5585 = vmul.f32 %v5519, 1.442695
      %v5586 = vpow.pop %v5585
      %v5587 = vmul.f32 %v5521, 1.442695
      %v5588 = vpow.pop %v5587
      %v5589 = vmul.f32 %v5525, 1.442695
      %v5590 = vpow.pop %v5589
      %v5591 = vmul.f32 %v5527, 1.442695
      %v5592 = vpow.pop %v5591
      %5593 = vst [vmem:[%s717] sm:$0xff] %v5113
      %vm5594 = vcmask 424960
      %5595 = vst.msk [vmem:[%s717 + $0x8] sm:$0xff] %vm5594, %v5115
      %5596 = vst [vmem:[%s717 + $0x10] sm:$0xff] %v5119
      %5597 = vst.msk [vmem:[%s717 + $0x18] sm:$0xff] %vm5594, %v5121
      %5598 = vst [vmem:[%s717 + $0x20] sm:$0xff] %v5125
      %5599 = vst.msk [vmem:[%s717 + $0x28] sm:$0xff] %vm5594, %v5127
      %5600 = vst [vmem:[%s717 + $0x30] sm:$0xff] %v5131
      %5601 = vst.msk [vmem:[%s717 + $0x38] sm:$0xff] %vm5594, %v5133
      %5602 = vst [vmem:[%s717 + $0x40] sm:$0xff] %v5137
      %5603 = vst.msk [vmem:[%s717 + $0x48] sm:$0xff] %vm5594, %v5139
      %5604 = vst [vmem:[%s717 + $0x50] sm:$0xff] %v5143
      %5605 = vst.msk [vmem:[%s717 + $0x58] sm:$0xff] %vm5594, %v5145
      %5606 = vst [vmem:[%s717 + $0x60] sm:$0xff] %v5149
      %5607 = vst.msk [vmem:[%s717 + $0x68] sm:$0xff] %vm5594, %v5151
      %5608 = vst [vmem:[%s717 + $0x70] sm:$0xff] %v5155
      %5609 = vst.msk [vmem:[%s717 + $0x78] sm:$0xff] %vm5594, %v5157
      %5610 = vst [vmem:[%s717 + $0x80] sm:$0xff] %v5161
      %5611 = vst.msk [vmem:[%s717 + $0x88] sm:$0xff] %vm5594, %v5163
      %5612 = vst [vmem:[%s717 + $0x90] sm:$0xff] %v5167
      %5613 = vst.msk [vmem:[%s717 + $0x98] sm:$0xff] %vm5594, %v5169
      %5614 = vst [vmem:[%s717 + $0xa0] sm:$0xff] %v5173
      %5615 = vst.msk [vmem:[%s717 + $0xa8] sm:$0xff] %vm5594, %v5175
      %5616 = vst [vmem:[%s717 + $0xb0] sm:$0xff] %v5179
      %5617 = vst.msk [vmem:[%s717 + $0xb8] sm:$0xff] %vm5594, %v5181
      %5618 = vst [vmem:[%s717 + $0xc0] sm:$0xff] %v5185
      %5619 = vst.msk [vmem:[%s717 + $0xc8] sm:$0xff] %vm5594, %v5187
      %5620 = vst [vmem:[%s717 + $0xd0] sm:$0xff] %v5191
      %5621 = vst.msk [vmem:[%s717 + $0xd8] sm:$0xff] %vm5594, %v5193
      %5622 = vst [vmem:[%s717 + $0xe0] sm:$0xff] %v5197
      %5623 = vst.msk [vmem:[%s717 + $0xe8] sm:$0xff] %vm5594, %v5199
      %5624 = vst [vmem:[%s717 + $0xf0] sm:$0xff] %v5203
      %5625 = vst.msk [vmem:[%s717 + $0xf8] sm:$0xff] %vm5594, %v5205
      %5626 = vst [vmem:[%s724] sm:$0xff] %v5530
      %5627 = vst.msk [vmem:[%s724 + $0x8] sm:$0xff] %vm5594, %v5532
      %5628 = vst [vmem:[%s724 + $0x10] sm:$0xff] %v5534
      %5629 = vst.msk [vmem:[%s724 + $0x18] sm:$0xff] %vm5594, %v5536
      %5630 = vst [vmem:[%s724 + $0x20] sm:$0xff] %v5538
      %5631 = vst.msk [vmem:[%s724 + $0x28] sm:$0xff] %vm5594, %v5540
      %5632 = vst [vmem:[%s724 + $0x30] sm:$0xff] %v5542
      %5633 = vst.msk [vmem:[%s724 + $0x38] sm:$0xff] %vm5594, %v5544
      %5634 = vst [vmem:[%s724 + $0x40] sm:$0xff] %v5546
      %5635 = vst.msk [vmem:[%s724 + $0x48] sm:$0xff] %vm5594, %v5548
      %5636 = vst [vmem:[%s724 + $0x50] sm:$0xff] %v5550
      %5637 = vst.msk [vmem:[%s724 + $0x58] sm:$0xff] %vm5594, %v5552
      %5638 = vst [vmem:[%s724 + $0x60] sm:$0xff] %v5554
      %5639 = vst.msk [vmem:[%s724 + $0x68] sm:$0xff] %vm5594, %v5556
      %5640 = vst [vmem:[%s724 + $0x70] sm:$0xff] %v5558
      %5641 = vst.msk [vmem:[%s724 + $0x78] sm:$0xff] %vm5594, %v5560
      %5642 = vst [vmem:[%s724 + $0x80] sm:$0xff] %v5562
      %5643 = vst.msk [vmem:[%s724 + $0x88] sm:$0xff] %vm5594, %v5564
      %5644 = vst [vmem:[%s724 + $0x90] sm:$0xff] %v5566
      %5645 = vst.msk [vmem:[%s724 + $0x98] sm:$0xff] %vm5594, %v5568
      %5646 = vst [vmem:[%s724 + $0xa0] sm:$0xff] %v5570
      %5647 = vst.msk [vmem:[%s724 + $0xa8] sm:$0xff] %vm5594, %v5572
      %5648 = vst [vmem:[%s724 + $0xb0] sm:$0xff] %v5574
      %5649 = vst.msk [vmem:[%s724 + $0xb8] sm:$0xff] %vm5594, %v5576
      %5650 = vst [vmem:[%s724 + $0xc0] sm:$0xff] %v5578
      %5651 = vst.msk [vmem:[%s724 + $0xc8] sm:$0xff] %vm5594, %v5580
      %5652 = vst [vmem:[%s724 + $0xd0] sm:$0xff] %v5582
      %5653 = vst.msk [vmem:[%s724 + $0xd8] sm:$0xff] %vm5594, %v5584
      %5654 = vst [vmem:[%s724 + $0xe0] sm:$0xff] %v5586
      %5655 = vst.msk [vmem:[%s724 + $0xe8] sm:$0xff] %vm5594, %v5588
      %5656 = vst [vmem:[%s724 + $0xf0] sm:$0xff] %v5590
      %5657 = vst.msk [vmem:[%s724 + $0xf8] sm:$0xff] %vm5594, %v5592
      %v5658 = vld [vmem:[%s703] sm:$0xff]
      %v5659 = vld [vmem:[%s703 + $0x8] sm:$0xff]
      %v5660 = vld [vmem:[%s703 + $0x10] sm:$0xff]
      %v5661 = vld [vmem:[%s703 + $0x18] sm:$0xff]
      %v5662 = vld [vmem:[%s703 + $0x20] sm:$0xff]
      %v5663 = vld [vmem:[%s703 + $0x28] sm:$0xff]
      %v5664 = vld [vmem:[%s703 + $0x30] sm:$0xff]
      %v5665 = vld [vmem:[%s703 + $0x38] sm:$0xff]
      %v5666 = vld [vmem:[%s703 + $0x40] sm:$0xff]
      %v5667 = vld [vmem:[%s703 + $0x48] sm:$0xff]
      %v5668 = vld [vmem:[%s703 + $0x50] sm:$0xff]
      %v5669 = vld [vmem:[%s703 + $0x58] sm:$0xff]
      %v5670 = vld [vmem:[%s703 + $0x60] sm:$0xff]
      %v5671 = vld [vmem:[%s703 + $0x68] sm:$0xff]
      %v5672 = vld [vmem:[%s703 + $0x70] sm:$0xff]
      %v5673 = vld [vmem:[%s703 + $0x78] sm:$0xff]
      %v5674 = vld [vmem:[%s703 + $0x80] sm:$0xff]
      %v5675 = vld [vmem:[%s703 + $0x88] sm:$0xff]
      %v5676 = vld [vmem:[%s703 + $0x90] sm:$0xff]
      %v5677 = vld [vmem:[%s703 + $0x98] sm:$0xff]
      %v5678 = vld [vmem:[%s703 + $0xa0] sm:$0xff]
      %v5679 = vld [vmem:[%s703 + $0xa8] sm:$0xff]
      %v5680 = vld [vmem:[%s703 + $0xb0] sm:$0xff]
      %v5681 = vld [vmem:[%s703 + $0xb8] sm:$0xff]
      %v5682 = vld [vmem:[%s703 + $0xc0] sm:$0xff]
      %v5683 = vld [vmem:[%s703 + $0xc8] sm:$0xff]
      %v5684 = vld [vmem:[%s703 + $0xd0] sm:$0xff]
      %v5685 = vld [vmem:[%s703 + $0xd8] sm:$0xff]
      %v5686 = vld [vmem:[%s703 + $0xe0] sm:$0xff]
      %v5687 = vld [vmem:[%s703 + $0xe8] sm:$0xff]
      %v5688 = vld [vmem:[%s703 + $0xf0] sm:$0xff]
      %v5689 = vld [vmem:[%s703 + $0xf8] sm:$0xff]
      %v5690 = vld [vmem:[%s16] sm:$0x3]
      %v5692 = vlaneseq
      %v5693 = vshrl.u32 %v5692, 7
      %v5694 = vsub.s32 0, %v5693
      %v5695 = vrot.slane %v5690, %v5694
      %v5696 = vlaneseq
      %v5697 = vshrl.u32 %v5696, 7
      %v5698 = vsub.s32 1, %v5697
      %v5699 = vrot.slane %v5690, %v5698
      %v5702 = vmul.f32 %v5658, %v5695
      %v5703 = vmul.f32 %v5659, %v5699
      %v5704 = vmul.f32 %v5660, %v5695
      %v5705 = vmul.f32 %v5661, %v5699
      %v5706 = vmul.f32 %v5662, %v5695
      %v5707 = vmul.f32 %v5663, %v5699
      %v5708 = vmul.f32 %v5664, %v5695
      %v5709 = vmul.f32 %v5665, %v5699
      %v5710 = vmul.f32 %v5666, %v5695
      %v5711 = vmul.f32 %v5667, %v5699
      %v5712 = vmul.f32 %v5668, %v5695
      %v5713 = vmul.f32 %v5669, %v5699
      %v5714 = vmul.f32 %v5670, %v5695
      %v5715 = vmul.f32 %v5671, %v5699
      %v5716 = vmul.f32 %v5672, %v5695
      %v5717 = vmul.f32 %v5673, %v5699
      %v5718 = vmul.f32 %v5674, %v5695
      %v5719 = vmul.f32 %v5675, %v5699
      %v5720 = vmul.f32 %v5676, %v5695
      %v5721 = vmul.f32 %v5677, %v5699
      %v5722 = vmul.f32 %v5678, %v5695
      %v5723 = vmul.f32 %v5679, %v5699
      %v5724 = vmul.f32 %v5680, %v5695
      %v5725 = vmul.f32 %v5681, %v5699
      %v5726 = vmul.f32 %v5682, %v5695
      %v5727 = vmul.f32 %v5683, %v5699
      %v5728 = vmul.f32 %v5684, %v5695
      %v5729 = vmul.f32 %v5685, %v5699
      %v5730 = vmul.f32 %v5686, %v5695
      %v5731 = vmul.f32 %v5687, %v5699
      %v5732 = vmul.f32 %v5688, %v5695
      %v5733 = vmul.f32 %v5689, %v5699
      %v5734 = vmul.f32 %v5530, %v5702
      %v5735 = vmul.f32 %v5532, %v5703
      %v5736 = vmul.f32 %v5534, %v5704
      %v5737 = vmul.f32 %v5536, %v5705
      %v5738 = vmul.f32 %v5538, %v5706
      %v5739 = vmul.f32 %v5540, %v5707
      %v5740 = vmul.f32 %v5542, %v5708
      %v5741 = vmul.f32 %v5544, %v5709
      %v5742 = vmul.f32 %v5546, %v5710
      %v5743 = vmul.f32 %v5548, %v5711
      %v5744 = vmul.f32 %v5550, %v5712
      %v5745 = vmul.f32 %v5552, %v5713
      %v5746 = vmul.f32 %v5554, %v5714
      %v5747 = vmul.f32 %v5556, %v5715
      %v5748 = vmul.f32 %v5558, %v5716
      %v5749 = vmul.f32 %v5560, %v5717
      %v5750 = vmul.f32 %v5562, %v5718
      %v5751 = vmul.f32 %v5564, %v5719
      %v5752 = vmul.f32 %v5566, %v5720
      %v5753 = vmul.f32 %v5568, %v5721
      %v5754 = vmul.f32 %v5570, %v5722
      %v5755 = vmul.f32 %v5572, %v5723
      %v5756 = vmul.f32 %v5574, %v5724
      %v5757 = vmul.f32 %v5576, %v5725
      %v5758 = vmul.f32 %v5578, %v5726
      %v5759 = vmul.f32 %v5580, %v5727
      %v5760 = vmul.f32 %v5582, %v5728
      %v5761 = vmul.f32 %v5584, %v5729
      %v5762 = vmul.f32 %v5586, %v5730
      %v5763 = vmul.f32 %v5588, %v5731
      %v5764 = vmul.f32 %v5590, %v5732
      %v5765 = vmul.f32 %v5592, %v5733
      %v5766 = vadd.f32 %v5113, %v5734
      %v5767 = vadd.f32 %v5115, %v5735
      %v5768 = vadd.f32 %v5119, %v5736
      %v5769 = vadd.f32 %v5121, %v5737
      %v5770 = vadd.f32 %v5125, %v5738
      %v5771 = vadd.f32 %v5127, %v5739
      %v5772 = vadd.f32 %v5131, %v5740
      %v5773 = vadd.f32 %v5133, %v5741
      %v5774 = vadd.f32 %v5137, %v5742
      %v5775 = vadd.f32 %v5139, %v5743
      %v5776 = vadd.f32 %v5143, %v5744
      %v5777 = vadd.f32 %v5145, %v5745
      %v5778 = vadd.f32 %v5149, %v5746
      %v5779 = vadd.f32 %v5151, %v5747
      %v5780 = vadd.f32 %v5155, %v5748
      %v5781 = vadd.f32 %v5157, %v5749
      %v5782 = vadd.f32 %v5161, %v5750
      %v5783 = vadd.f32 %v5163, %v5751
      %v5784 = vadd.f32 %v5167, %v5752
      %v5785 = vadd.f32 %v5169, %v5753
      %v5786 = vadd.f32 %v5173, %v5754
      %v5787 = vadd.f32 %v5175, %v5755
      %v5788 = vadd.f32 %v5179, %v5756
      %v5789 = vadd.f32 %v5181, %v5757
      %v5790 = vadd.f32 %v5185, %v5758
      %v5791 = vadd.f32 %v5187, %v5759
      %v5792 = vadd.f32 %v5191, %v5760
      %v5793 = vadd.f32 %v5193, %v5761
      %v5794 = vadd.f32 %v5197, %v5762
      %v5795 = vadd.f32 %v5199, %v5763
      %v5796 = vadd.f32 %v5203, %v5764
      %v5797 = vadd.f32 %v5205, %v5765
      %v5798 = vmax.f32 %v5766, %v5767
      %5799 = vmax.xlane.f32.xlu0 %v5798
      %v5800 = vpop.xlane.xlu0 %5799
      %v5801 = vmax.f32 %v5768, %v5769
      %5802 = vmax.xlane.f32.xlu0 %v5801
      %v5803 = vpop.xlane.xlu0 %5802
      %v5804 = vmax.f32 %v5770, %v5771
      %5805 = vmax.xlane.f32.xlu0 %v5804
      %v5806 = vpop.xlane.xlu0 %5805
      %v5807 = vmax.f32 %v5772, %v5773
      %5808 = vmax.xlane.f32.xlu0 %v5807
      %v5809 = vpop.xlane.xlu0 %5808
      %v5810 = vmax.f32 %v5774, %v5775
      %5811 = vmax.xlane.f32.xlu0 %v5810
      %v5812 = vpop.xlane.xlu0 %5811
      %v5813 = vmax.f32 %v5776, %v5777
      %5814 = vmax.xlane.f32.xlu0 %v5813
      %v5815 = vpop.xlane.xlu0 %5814
      %v5816 = vmax.f32 %v5778, %v5779
      %5817 = vmax.xlane.f32.xlu0 %v5816
      %v5818 = vpop.xlane.xlu0 %5817
      %v5819 = vmax.f32 %v5780, %v5781
      %5820 = vmax.xlane.f32.xlu0 %v5819
      %v5821 = vpop.xlane.xlu0 %5820
      %v5822 = vmax.f32 %v5782, %v5783
      %5823 = vmax.xlane.f32.xlu0 %v5822
      %v5824 = vpop.xlane.xlu0 %5823
      %v5825 = vmax.f32 %v5784, %v5785
      %5826 = vmax.xlane.f32.xlu0 %v5825
      %v5827 = vpop.xlane.xlu0 %5826
      %v5828 = vmax.f32 %v5786, %v5787
      %5829 = vmax.xlane.f32.xlu0 %v5828
      %v5830 = vpop.xlane.xlu0 %5829
      %v5831 = vmax.f32 %v5788, %v5789
      %5832 = vmax.xlane.f32.xlu0 %v5831
      %v5833 = vpop.xlane.xlu0 %5832
      %v5834 = vmax.f32 %v5790, %v5791
      %5835 = vmax.xlane.f32.xlu0 %v5834
      %v5836 = vpop.xlane.xlu0 %5835
      %v5837 = vmax.f32 %v5792, %v5793
      %5838 = vmax.xlane.f32.xlu0 %v5837
      %v5839 = vpop.xlane.xlu0 %5838
      %v5840 = vmax.f32 %v5794, %v5795
      %5841 = vmax.xlane.f32.xlu0 %v5840
      %v5842 = vpop.xlane.xlu0 %5841
      %v5843 = vmax.f32 %v5796, %v5797
      %5844 = vmax.xlane.f32.xlu0 %v5843
      %v5845 = vpop.xlane.xlu0 %5844
      %v5846 = vmax.f32 %v5800, 0.0
      %v5847 = vmax.f32 %v5803, 0.0
      %v5848 = vmax.f32 %v5806, 0.0
      %v5849 = vmax.f32 %v5809, 0.0
      %v5850 = vmax.f32 %v5812, 0.0
      %v5851 = vmax.f32 %v5815, 0.0
      %v5852 = vmax.f32 %v5818, 0.0
      %v5853 = vmax.f32 %v5821, 0.0
      %v5854 = vmax.f32 %v5824, 0.0
      %v5855 = vmax.f32 %v5827, 0.0
      %v5856 = vmax.f32 %v5830, 0.0
      %v5857 = vmax.f32 %v5833, 0.0
      %v5858 = vmax.f32 %v5836, 0.0
      %v5859 = vmax.f32 %v5839, 0.0
      %v5860 = vmax.f32 %v5842, 0.0
      %v5861 = vmax.f32 %v5845, 0.0
      %v5862 = vsub.f32 %v5766, %v5846
      %v5863 = vsub.f32 %v5767, %v5846
      %v5864 = vsub.f32 %v5768, %v5847
      %v5865 = vsub.f32 %v5769, %v5847
      %v5866 = vsub.f32 %v5770, %v5848
      %v5867 = vsub.f32 %v5771, %v5848
      %v5868 = vsub.f32 %v5772, %v5849
      %v5869 = vsub.f32 %v5773, %v5849
      %v5870 = vsub.f32 %v5774, %v5850
      %v5871 = vsub.f32 %v5775, %v5850
      %v5872 = vsub.f32 %v5776, %v5851
      %v5873 = vsub.f32 %v5777, %v5851
      %v5874 = vsub.f32 %v5778, %v5852
      %v5875 = vsub.f32 %v5779, %v5852
      %v5876 = vsub.f32 %v5780, %v5853
      %v5877 = vsub.f32 %v5781, %v5853
      %v5878 = vsub.f32 %v5782, %v5854
      %v5879 = vsub.f32 %v5783, %v5854
      %v5880 = vsub.f32 %v5784, %v5855
      %v5881 = vsub.f32 %v5785, %v5855
      %v5882 = vsub.f32 %v5786, %v5856
      %v5883 = vsub.f32 %v5787, %v5856
      %v5884 = vsub.f32 %v5788, %v5857
      %v5885 = vsub.f32 %v5789, %v5857
      %v5886 = vsub.f32 %v5790, %v5858
      %v5887 = vsub.f32 %v5791, %v5858
      %v5888 = vsub.f32 %v5792, %v5859
      %v5889 = vsub.f32 %v5793, %v5859
      %v5890 = vsub.f32 %v5794, %v5860
      %v5891 = vsub.f32 %v5795, %v5860
      %v5892 = vsub.f32 %v5796, %v5861
      %v5893 = vsub.f32 %v5797, %v5861
      %v5894 = vmul.f32 %v5862, 1.442695
      %v5895 = vpow.pop %v5894
      %v5896 = vmul.f32 %v5863, 1.442695
      %v5897 = vpow.pop %v5896
      %v5898 = vmul.f32 %v5864, 1.442695
      %v5899 = vpow.pop %v5898
      %v5900 = vmul.f32 %v5865, 1.442695
      %v5901 = vpow.pop %v5900
      %v5902 = vmul.f32 %v5866, 1.442695
      %v5903 = vpow.pop %v5902
      %v5904 = vmul.f32 %v5867, 1.442695
      %v5905 = vpow.pop %v5904
      %v5906 = vmul.f32 %v5868, 1.442695
      %v5907 = vpow.pop %v5906
      %v5908 = vmul.f32 %v5869, 1.442695
      %v5909 = vpow.pop %v5908
      %v5910 = vmul.f32 %v5870, 1.442695
      %v5911 = vpow.pop %v5910
      %v5912 = vmul.f32 %v5871, 1.442695
      %v5913 = vpow.pop %v5912
      %v5914 = vmul.f32 %v5872, 1.442695
      %v5915 = vpow.pop %v5914
      %v5916 = vmul.f32 %v5873, 1.442695
      %v5917 = vpow.pop %v5916
      %v5918 = vmul.f32 %v5874, 1.442695
      %v5919 = vpow.pop %v5918
      %v5920 = vmul.f32 %v5875, 1.442695
      %v5921 = vpow.pop %v5920
      %v5922 = vmul.f32 %v5876, 1.442695
      %v5923 = vpow.pop %v5922
      %v5924 = vmul.f32 %v5877, 1.442695
      %v5925 = vpow.pop %v5924
      %v5926 = vmul.f32 %v5878, 1.442695
      %v5927 = vpow.pop %v5926
      %v5928 = vmul.f32 %v5879, 1.442695
      %v5929 = vpow.pop %v5928
      %v5930 = vmul.f32 %v5880, 1.442695
      %v5931 = vpow.pop %v5930
      %v5932 = vmul.f32 %v5881, 1.442695
      %v5933 = vpow.pop %v5932
      %v5934 = vmul.f32 %v5882, 1.442695
      %v5935 = vpow.pop %v5934
      %v5936 = vmul.f32 %v5883, 1.442695
      %v5937 = vpow.pop %v5936
      %v5938 = vmul.f32 %v5884, 1.442695
      %v5939 = vpow.pop %v5938
      %v5940 = vmul.f32 %v5885, 1.442695
      %v5941 = vpow.pop %v5940
      %v5942 = vmul.f32 %v5886, 1.442695
      %v5943 = vpow.pop %v5942
      %v5944 = vmul.f32 %v5887, 1.442695
      %v5945 = vpow.pop %v5944
      %v5946 = vmul.f32 %v5888, 1.442695
      %v5947 = vpow.pop %v5946
      %v5948 = vmul.f32 %v5889, 1.442695
      %v5949 = vpow.pop %v5948
      %v5950 = vmul.f32 %v5890, 1.442695
      %v5951 = vpow.pop %v5950
      %v5952 = vmul.f32 %v5891, 1.442695
      %v5953 = vpow.pop %v5952
      %v5954 = vmul.f32 %v5892, 1.442695
      %v5955 = vpow.pop %v5954
      %v5956 = vmul.f32 %v5893, 1.442695
      %v5957 = vpow.pop %v5956
      %v5958 = vsub.f32 0.0, %v5846
      %v5959 = vsub.f32 0.0, %v5847
      %v5960 = vsub.f32 0.0, %v5848
      %v5961 = vsub.f32 0.0, %v5849
      %v5962 = vsub.f32 0.0, %v5850
      %v5963 = vsub.f32 0.0, %v5851
      %v5964 = vsub.f32 0.0, %v5852
      %v5965 = vsub.f32 0.0, %v5853
      %v5966 = vsub.f32 0.0, %v5854
      %v5967 = vsub.f32 0.0, %v5855
      %v5968 = vsub.f32 0.0, %v5856
      %v5969 = vsub.f32 0.0, %v5857
      %v5970 = vsub.f32 0.0, %v5858
      %v5971 = vsub.f32 0.0, %v5859
      %v5972 = vsub.f32 0.0, %v5860
      %v5973 = vsub.f32 0.0, %v5861
      %v5974 = vmul.f32 %v5958, 1.442695
      %v5975 = vpow.pop %v5974
      %v5976 = vmul.f32 %v5959, 1.442695
      %v5977 = vpow.pop %v5976
      %v5978 = vmul.f32 %v5960, 1.442695
      %v5979 = vpow.pop %v5978
      %v5980 = vmul.f32 %v5961, 1.442695
      %v5981 = vpow.pop %v5980
      %v5982 = vmul.f32 %v5962, 1.442695
      %v5983 = vpow.pop %v5982
      %v5984 = vmul.f32 %v5963, 1.442695
      %v5985 = vpow.pop %v5984
      %v5986 = vmul.f32 %v5964, 1.442695
      %v5987 = vpow.pop %v5986
      %v5988 = vmul.f32 %v5965, 1.442695
      %v5989 = vpow.pop %v5988
      %v5990 = vmul.f32 %v5966, 1.442695
      %v5991 = vpow.pop %v5990
      %v5992 = vmul.f32 %v5967, 1.442695
      %v5993 = vpow.pop %v5992
      %v5994 = vmul.f32 %v5968, 1.442695
      %v5995 = vpow.pop %v5994
      %v5996 = vmul.f32 %v5969, 1.442695
      %v5997 = vpow.pop %v5996
      %v5998 = vmul.f32 %v5970, 1.442695
      %v5999 = vpow.pop %v5998
      %v6000 = vmul.f32 %v5971, 1.442695
      %v6001 = vpow.pop %v6000
      %v6002 = vmul.f32 %v5972, 1.442695
      %v6003 = vpow.pop %v6002
      %v6004 = vmul.f32 %v5973, 1.442695
      %v6005 = vpow.pop %v6004
      %v6006 = vpack.c.bf16 %v5899, %v5895
      %v6007 = vpack.c.bf16 %v5901, %v5897
      %v6008 = vpack.c.bf16 %v5907, %v5903
      %v6009 = vpack.c.bf16 %v5909, %v5905
      %v6010 = vpack.c.bf16 %v5915, %v5911
      %v6011 = vpack.c.bf16 %v5917, %v5913
      %v6012 = vpack.c.bf16 %v5923, %v5919
      %v6013 = vpack.c.bf16 %v5925, %v5921
      %v6014 = vpack.c.bf16 %v5931, %v5927
      %v6015 = vpack.c.bf16 %v5933, %v5929
      %v6016 = vpack.c.bf16 %v5939, %v5935
      %v6017 = vpack.c.bf16 %v5941, %v5937
      %v6018 = vpack.c.bf16 %v5947, %v5943
      %v6019 = vpack.c.bf16 %v5949, %v5945
      %v6020 = vpack.c.bf16 %v5955, %v5951
      %v6021 = vpack.c.bf16 %v5957, %v5953
      %v6022 = vld [vmem:[%s9] sm:$0xf]
      %v6023 = vld [vmem:[%s9 + $0x4] sm:$0xf]
      %v6024 = vld [vmem:[%s9 + $0x8] sm:$0xf]
      %v6025 = vld [vmem:[%s9 + $0xc] sm:$0xf]
      %v6026 = vld [vmem:[%s9 + $0x10] sm:$0xf]
      %v6027 = vld [vmem:[%s9 + $0x14] sm:$0xf]
      %v6028 = vld [vmem:[%s9 + $0x18] sm:$0xf]
      %v6029 = vld [vmem:[%s9 + $0x1c] sm:$0xf]
      %v6030 = vld [vmem:[%s9 + $0x20] sm:$0xf]
      %v6031 = vld [vmem:[%s9 + $0x24] sm:$0xf]
      %v6032 = vld [vmem:[%s9 + $0x28] sm:$0xf]
      %v6033 = vld [vmem:[%s9 + $0x2c] sm:$0xf]
      %v6034 = vld [vmem:[%s9 + $0x30] sm:$0xf]
      %v6035 = vld [vmem:[%s9 + $0x34] sm:$0xf]
      %v6036 = vld [vmem:[%s9 + $0x38] sm:$0xf]
      %v6037 = vld [vmem:[%s9 + $0x3c] sm:$0xf]
      %v6038 = vld [vmem:[%s9 + $0x40] sm:$0xf]
      %v6039 = vld [vmem:[%s9 + $0x44] sm:$0xf]
      %v6040 = vld [vmem:[%s9 + $0x48] sm:$0xf]
      %v6041 = vld [vmem:[%s9 + $0x4c] sm:$0xf]
      %v6042 = vld [vmem:[%s9 + $0x50] sm:$0xf]
      %v6043 = vld [vmem:[%s9 + $0x54] sm:$0xf]
      %v6044 = vld [vmem:[%s9 + $0x58] sm:$0xf]
      %v6045 = vld [vmem:[%s9 + $0x5c] sm:$0xf]
      %v6046 = vld [vmem:[%s9 + $0x60] sm:$0xf]
      %v6047 = vld [vmem:[%s9 + $0x64] sm:$0xf]
      %v6048 = vld [vmem:[%s9 + $0x68] sm:$0xf]
      %v6049 = vld [vmem:[%s9 + $0x6c] sm:$0xf]
      %v6050 = vld [vmem:[%s9 + $0x70] sm:$0xf]
      %v6051 = vld [vmem:[%s9 + $0x74] sm:$0xf]
      %v6052 = vld [vmem:[%s9 + $0x78] sm:$0xf]
      %v6053 = vld [vmem:[%s9 + $0x7c] sm:$0xf]
      %v6086 = vunpack.c.l.b16 %v6022
      %v6087 = vunpack.c.l.b16 %v6023
      %v6088 = vunpack.c.l.b16 %v6024
      %v6089 = vunpack.c.l.b16 %v6025
      %v6090 = vunpack.c.l.b16 %v6026
      %v6091 = vunpack.c.l.b16 %v6027
      %v6092 = vunpack.c.l.b16 %v6028
      %v6093 = vunpack.c.l.b16 %v6029
      %v6094 = vunpack.c.l.b16 %v6030
      %v6095 = vunpack.c.l.b16 %v6031
      %v6096 = vunpack.c.l.b16 %v6032
      %v6097 = vunpack.c.l.b16 %v6033
      %v6098 = vunpack.c.l.b16 %v6034
      %v6099 = vunpack.c.l.b16 %v6035
      %v6100 = vunpack.c.l.b16 %v6036
      %v6101 = vunpack.c.l.b16 %v6037
      %v6102 = vunpack.c.l.b16 %v6038
      %v6103 = vunpack.c.l.b16 %v6039
      %v6104 = vunpack.c.l.b16 %v6040
      %v6105 = vunpack.c.l.b16 %v6041
      %v6106 = vunpack.c.l.b16 %v6042
      %v6107 = vunpack.c.l.b16 %v6043
      %v6108 = vunpack.c.l.b16 %v6044
      %v6109 = vunpack.c.l.b16 %v6045
      %v6110 = vunpack.c.l.b16 %v6046
      %v6111 = vunpack.c.l.b16 %v6047
      %v6112 = vunpack.c.l.b16 %v6048
      %v6113 = vunpack.c.l.b16 %v6049
      %v6114 = vunpack.c.l.b16 %v6050
      %v6115 = vunpack.c.l.b16 %v6051
      %v6116 = vunpack.c.l.b16 %v6052
      %v6117 = vunpack.c.l.b16 %v6053
      %v6118 = vpack.c.b16 %v6087, %v6086
      %v6119 = vpack.c.b16 %v6089, %v6088
      %v6120 = vpack.c.b16 %v6091, %v6090
      %v6121 = vpack.c.b16 %v6093, %v6092
      %v6122 = vpack.c.b16 %v6095, %v6094
      %v6123 = vpack.c.b16 %v6097, %v6096
      %v6124 = vpack.c.b16 %v6099, %v6098
      %v6125 = vpack.c.b16 %v6101, %v6100
      %v6126 = vpack.c.b16 %v6103, %v6102
      %v6127 = vpack.c.b16 %v6105, %v6104
      %v6128 = vpack.c.b16 %v6107, %v6106
      %v6129 = vpack.c.b16 %v6109, %v6108
      %v6130 = vpack.c.b16 %v6111, %v6110
      %v6131 = vpack.c.b16 %v6113, %v6112
      %v6132 = vpack.c.b16 %v6115, %v6114
      %v6133 = vpack.c.b16 %v6117, %v6116
      %6150 = vmatprep.subr.bf16.mxu0 0
      %6151 = vmatpush1.bf16.msra.mxu0 %v6118
      %6152 = vmatprep.subr.bf16.mxu0 0
      %6153 = vmatpush1.bf16.msra.mxu0 %v6119
      %6154 = vmatprep.subr.bf16.mxu0 0
      %6155 = vmatpush1.bf16.msra.mxu0 %v6120
      %6156 = vmatprep.subr.bf16.mxu0 0
      %6157 = vmatpush1.bf16.msra.mxu0 %v6121
      %6158 = vmatprep.subr.bf16.mxu0 0
      %6159 = vmatpush1.bf16.msra.mxu0 %v6122
      %6160 = vmatprep.subr.bf16.mxu0 0
      %6161 = vmatpush1.bf16.msra.mxu0 %v6123
      %6162 = vmatprep.subr.bf16.mxu0 0
      %6163 = vmatpush1.bf16.msra.mxu0 %v6124
      %6164 = vmatprep.subr.bf16.mxu0 0
      %6165 = vmatpush1.bf16.msra.mxu0 %v6125
      %6166 = vmatprep.subr.bf16.mxu0 0
      %6167 = vmatpush1.bf16.msra.mxu0 %v6126
      %6168 = vmatprep.subr.bf16.mxu0 0
      %6169 = vmatpush1.bf16.msra.mxu0 %v6127
      %6170 = vmatprep.subr.bf16.mxu0 0
      %6171 = vmatpush1.bf16.msra.mxu0 %v6128
      %6172 = vmatprep.subr.bf16.mxu0 0
      %6173 = vmatpush1.bf16.msra.mxu0 %v6129
      %6174 = vmatprep.subr.bf16.mxu0 0
      %6175 = vmatpush1.bf16.msra.mxu0 %v6130
      %6176 = vmatprep.subr.bf16.mxu0 0
      %6177 = vmatpush1.bf16.msra.mxu0 %v6131
      %6178 = vmatprep.subr.bf16.mxu0 0
      %6179 = vmatpush1.bf16.msra.mxu0 %v6132
      %6180 = vmatprep.subr.bf16.mxu0 0
      %6181 = vmatpush1.bf16.msra.mxu0 %v6133
      %6182 = vmatprep.mubr.bf16.mxu0 %v6007
      %6183 = vmatmul.mubr.bf16.gmra.mrb[0].mxu0 %v6006
      %v6184 = vpop.f32.mrb[0].mxu0
      %v6185 = vadd.f32 %v5975, %v6184
      %v6186 = vpop.f32.mrb[0].mxu0
      %v6187 = vpop.f32.mrb[0].mxu0
      %v6188 = vadd.f32 %v5977, %v6187
      %v6189 = vpop.f32.mrb[0].mxu0
      %6190 = vmatprep.mubr.bf16.mxu0 %v6009
      %6191 = vmatmul.mubr.bf16.gmra.mrb[0].mxu0 %v6008
      %v6192 = vpop.f32.mrb[0].mxu0
      %v6193 = vadd.f32 %v5979, %v6192
      %v6194 = vpop.f32.mrb[0].mxu0
      %v6195 = vpop.f32.mrb[0].mxu0
      %v6196 = vadd.f32 %v5981, %v6195
      %v6197 = vpop.f32.mrb[0].mxu0
      %6198 = vmatprep.mubr.bf16.mxu0 %v6011
      %6199 = vmatmul.mubr.bf16.gmra.mrb[0].mxu0 %v6010
      %v6200 = vpop.f32.mrb[0].mxu0
      %v6201 = vadd.f32 %v5983, %v6200
      %v6202 = vpop.f32.mrb[0].mxu0
      %v6203 = vpop.f32.mrb[0].mxu0
      %v6204 = vadd.f32 %v5985, %v6203
      %v6205 = vpop.f32.mrb[0].mxu0
      %6206 = vmatprep.mubr.bf16.mxu0 %v6013
      %6207 = vmatmul.mubr.bf16.gmra.mrb[0].mxu0 %v6012
      %v6208 = vpop.f32.mrb[0].mxu0
      %v6209 = vadd.f32 %v5987, %v6208
      %v6210 = vpop.f32.mrb[0].mxu0
      %v6211 = vpop.f32.mrb[0].mxu0
      %v6212 = vadd.f32 %v5989, %v6211
      %v6213 = vpop.f32.mrb[0].mxu0
      %6214 = vmatprep.mubr.bf16.mxu0 %v6015
      %6215 = vmatmul.mubr.bf16.gmra.mrb[0].mxu0 %v6014
      %v6216 = vpop.f32.mrb[0].mxu0
      %v6217 = vadd.f32 %v5991, %v6216
      %v6218 = vpop.f32.mrb[0].mxu0
      %v6219 = vpop.f32.mrb[0].mxu0
      %v6220 = vadd.f32 %v5993, %v6219
      %v6221 = vpop.f32.mrb[0].mxu0
      %6222 = vmatprep.mubr.bf16.mxu0 %v6017
      %6223 = vmatmul.mubr.bf16.gmra.mrb[0].mxu0 %v6016
      %v6224 = vpop.f32.mrb[0].mxu0
      %v6225 = vadd.f32 %v5995, %v6224
      %v6226 = vpop.f32.mrb[0].mxu0
      %v6227 = vpop.f32.mrb[0].mxu0
      %v6228 = vadd.f32 %v5997, %v6227
      %v6229 = vpop.f32.mrb[0].mxu0
      %6230 = vmatprep.mubr.bf16.mxu0 %v6019
      %6231 = vmatmul.mubr.bf16.gmra.mrb[0].mxu0 %v6018
      %v6232 = vpop.f32.mrb[0].mxu0
      %v6233 = vadd.f32 %v5999, %v6232
      %v6234 = vpop.f32.mrb[0].mxu0
      %v6235 = vpop.f32.mrb[0].mxu0
      %v6236 = vadd.f32 %v6001, %v6235
      %v6237 = vpop.f32.mrb[0].mxu0
      %6238 = vmatprep.mubr.bf16.mxu0 %v6021
      %6239 = vmatmul.mubr.bf16.gmra.mrb[0].mxu0 %v6020
      %v6240 = vpop.f32.mrb[0].mxu0
      %v6241 = vadd.f32 %v6003, %v6240
      %v6242 = vpop.f32.mrb[0].mxu0
      %v6243 = vpop.f32.mrb[0].mxu0
      %v6244 = vadd.f32 %v6005, %v6243
      %v6245 = vpop.f32.mrb[0].mxu0
      %6246 = vdwg.mxu0
      %v6247 = vld [vmem:[%s17] sm:$0x1]
      %v6249 = vlaneseq
      %v6250 = vshrl.u32 %v6249, 7
      %v6251 = vsub.s32 0, %v6250
      %v6252 = vrot.slane %v6247, %v6251
      %v6254 = vadd.f32 %v6185, %v6252
      %v6255 = vadd.f32 %v6188, %v6252
      %v6256 = vadd.f32 %v6193, %v6252
      %v6257 = vadd.f32 %v6196, %v6252
      %v6258 = vadd.f32 %v6201, %v6252
      %v6259 = vadd.f32 %v6204, %v6252
      %v6260 = vadd.f32 %v6209, %v6252
      %v6261 = vadd.f32 %v6212, %v6252
      %v6262 = vadd.f32 %v6217, %v6252
      %v6263 = vadd.f32 %v6220, %v6252
      %v6264 = vadd.f32 %v6225, %v6252
      %v6265 = vadd.f32 %v6228, %v6252
      %v6266 = vadd.f32 %v6233, %v6252
      %v6267 = vadd.f32 %v6236, %v6252
      %v6268 = vadd.f32 %v6241, %v6252
      %v6269 = vadd.f32 %v6244, %v6252
      %v6270 = vrcp.pop %v6254
      %v6271 = vrcp.pop %v6255
      %v6272 = vrcp.pop %v6256
      %v6273 = vrcp.pop %v6257
      %v6274 = vrcp.pop %v6258
      %v6275 = vrcp.pop %v6259
      %v6276 = vrcp.pop %v6260
      %v6277 = vrcp.pop %v6261
      %v6278 = vrcp.pop %v6262
      %v6279 = vrcp.pop %v6263
      %v6280 = vrcp.pop %v6264
      %v6281 = vrcp.pop %v6265
      %v6282 = vrcp.pop %v6266
      %v6283 = vrcp.pop %v6267
      %v6284 = vrcp.pop %v6268
      %v6285 = vrcp.pop %v6269
      %v6286 = vpack.c.bf16 %v6271, %v6270
      %v6287 = vpack.c.bf16 %v6273, %v6272
      %v6288 = vpack.c.bf16 %v6275, %v6274
      %v6289 = vpack.c.bf16 %v6277, %v6276
      %v6290 = vpack.c.bf16 %v6279, %v6278
      %v6291 = vpack.c.bf16 %v6281, %v6280
      %v6292 = vpack.c.bf16 %v6283, %v6282
      %v6293 = vpack.c.bf16 %v6285, %v6284
      %v6294 = vld [vmem:[%s10] sm:$0xff]
      %v6295 = vld [vmem:[%s10 + $0x8] sm:$0xff]
      %v6296 = vld [vmem:[%s10 + $0x10] sm:$0xff]
      %v6297 = vld [vmem:[%s10 + $0x18] sm:$0xff]
      %v6298 = vld [vmem:[%s10 + $0x20] sm:$0xff]
      %v6299 = vld [vmem:[%s10 + $0x28] sm:$0xff]
      %v6300 = vld [vmem:[%s10 + $0x30] sm:$0xff]
      %v6301 = vld [vmem:[%s10 + $0x38] sm:$0xff]
      %v6302 = vld [vmem:[%s10 + $0x40] sm:$0xff]
      %v6303 = vld [vmem:[%s10 + $0x48] sm:$0xff]
      %v6304 = vld [vmem:[%s10 + $0x50] sm:$0xff]
      %v6305 = vld [vmem:[%s10 + $0x58] sm:$0xff]
      %v6306 = vld [vmem:[%s10 + $0x60] sm:$0xff]
      %v6307 = vld [vmem:[%s10 + $0x68] sm:$0xff]
      %v6308 = vld [vmem:[%s10 + $0x70] sm:$0xff]
      %v6309 = vld [vmem:[%s10 + $0x78] sm:$0xff]
      %v6326 = vunpack.c.l.b16 %v6294
      %v6327 = vunpack.c.h.b16 %v6294
      %v6328 = vunpack.c.l.b16 %v6295
      %v6329 = vunpack.c.h.b16 %v6295
      %v6330 = vunpack.c.l.b16 %v6296
      %v6331 = vunpack.c.h.b16 %v6296
      %v6332 = vunpack.c.l.b16 %v6297
      %v6333 = vunpack.c.h.b16 %v6297
      %v6334 = vunpack.c.l.b16 %v6298
      %v6335 = vunpack.c.h.b16 %v6298
      %v6336 = vunpack.c.l.b16 %v6299
      %v6337 = vunpack.c.h.b16 %v6299
      %v6338 = vunpack.c.l.b16 %v6300
      %v6339 = vunpack.c.h.b16 %v6300
      %v6340 = vunpack.c.l.b16 %v6301
      %v6341 = vunpack.c.h.b16 %v6301
      %v6342 = vunpack.c.l.b16 %v6302
      %v6343 = vunpack.c.h.b16 %v6302
      %v6344 = vunpack.c.l.b16 %v6303
      %v6345 = vunpack.c.h.b16 %v6303
      %v6346 = vunpack.c.l.b16 %v6304
      %v6347 = vunpack.c.h.b16 %v6304
      %v6348 = vunpack.c.l.b16 %v6305
      %v6349 = vunpack.c.h.b16 %v6305
      %v6350 = vunpack.c.l.b16 %v6306
      %v6351 = vunpack.c.h.b16 %v6306
      %v6352 = vunpack.c.l.b16 %v6307
      %v6353 = vunpack.c.h.b16 %v6307
      %v6354 = vunpack.c.l.b16 %v6308
      %v6355 = vunpack.c.h.b16 %v6308
      %v6356 = vunpack.c.l.b16 %v6309
      %v6357 = vunpack.c.h.b16 %v6309
      %v6358 = vpack.c.b16 %v6328, %v6326
      %v6359 = vpack.c.b16 %v6329, %v6327
      %v6360 = vpack.c.b16 %v6332, %v6330
      %v6361 = vpack.c.b16 %v6333, %v6331
      %v6362 = vpack.c.b16 %v6336, %v6334
      %v6363 = vpack.c.b16 %v6337, %v6335
      %v6364 = vpack.c.b16 %v6340, %v6338
      %v6365 = vpack.c.b16 %v6341, %v6339
      %v6366 = vpack.c.b16 %v6344, %v6342
      %v6367 = vpack.c.b16 %v6345, %v6343
      %v6368 = vpack.c.b16 %v6348, %v6346
      %v6369 = vpack.c.b16 %v6349, %v6347
      %v6370 = vpack.c.b16 %v6352, %v6350
      %v6371 = vpack.c.b16 %v6353, %v6351
      %v6372 = vpack.c.b16 %v6356, %v6354
      %v6373 = vpack.c.b16 %v6357, %v6355
      %6390 = vmatprep.subr.bf16.mxu0 %v6359
      %6391 = vmatpush1.bf16.msra.mxu0 %v6358
      %6392 = vmatprep.subr.bf16.mxu0 %v6361
      %6393 = vmatpush1.bf16.msra.mxu0 %v6360
      %6394 = vmatprep.subr.bf16.mxu0 %v6363
      %6395 = vmatpush1.bf16.msra.mxu0 %v6362
      %6396 = vmatprep.subr.bf16.mxu0 %v6365
      %6397 = vmatpush1.bf16.msra.mxu0 %v6364
      %6398 = vmatprep.subr.bf16.mxu0 %v6367
      %6399 = vmatpush1.bf16.msra.mxu0 %v6366
      %6400 = vmatprep.subr.bf16.mxu0 %v6369
      %6401 = vmatpush1.bf16.msra.mxu0 %v6368
      %6402 = vmatprep.subr.bf16.mxu0 %v6371
      %6403 = vmatpush1.bf16.msra.mxu0 %v6370
      %6404 = vmatprep.subr.bf16.mxu0 %v6373
      %6405 = vmatpush1.bf16.msra.mxu0 %v6372
      %6406 = vmatprep.subr.bf16.mxu0 0
      %6407 = vmatpush1.bf16.msra.mxu0 0
      %6408 = vmatprep.subr.bf16.mxu0 0
      %6409 = vmatpush1.bf16.msra.mxu0 0
      %6410 = vmatprep.subr.bf16.mxu0 0
      %6411 = vmatpush1.bf16.msra.mxu0 0
      %6412 = vmatprep.subr.bf16.mxu0 0
      %6413 = vmatpush1.bf16.msra.mxu0 0
      %6414 = vmatprep.subr.bf16.mxu0 0
      %6415 = vmatpush1.bf16.msra.mxu0 0
      %6416 = vmatprep.subr.bf16.mxu0 0
      %6417 = vmatpush1.bf16.msra.mxu0 0
      %6418 = vmatprep.subr.bf16.mxu0 0
      %6419 = vmatpush1.bf16.msra.mxu0 0
      %6420 = vmatprep.subr.bf16.mxu0 0
      %6421 = vmatpush1.bf16.msra.mxu0 0
      %6422 = vmatprep.mubr.bf16.mxu0 0
      %6423 = vmatmul.mubr.bf16.gmra.mrb[0].mxu0 %v6286
      %v6424 = vpop.f32.mrb[0].mxu0
      %v6425 = vadd.f32 0.0, %v6424
      %v6426 = vpop.f32.mrb[0].mxu0
      %v6427 = vadd.f32 0.0, %v6426
      %v6428 = vpop.f32.mrb[0].mxu0
      %v6429 = vadd.f32 0.0, %v6428
      %v6430 = vpop.f32.mrb[0].mxu0
      %v6431 = vadd.f32 0.0, %v6430
      %6432 = vmatprep.mubr.bf16.mxu0 0
      %6433 = vmatmul.mubr.bf16.gmra.mrb[0].mxu0 %v6287
      %v6434 = vpop.f32.mrb[0].mxu0
      %v6435 = vadd.f32 0.0, %v6434
      %v6436 = vpop.f32.mrb[0].mxu0
      %v6437 = vadd.f32 0.0, %v6436
      %v6438 = vpop.f32.mrb[0].mxu0
      %v6439 = vadd.f32 0.0, %v6438
      %v6440 = vpop.f32.mrb[0].mxu0
      %v6441 = vadd.f32 0.0, %v6440
      %6442 = vmatprep.mubr.bf16.mxu0 0
      %6443 = vmatmul.mubr.bf16.gmra.mrb[0].mxu0 %v6288
      %v6444 = vpop.f32.mrb[0].mxu0
      %v6445 = vadd.f32 0.0, %v6444
      %v6446 = vpop.f32.mrb[0].mxu0
      %v6447 = vadd.f32 0.0, %v6446
      %v6448 = vpop.f32.mrb[0].mxu0
      %v6449 = vadd.f32 0.0, %v6448
      %v6450 = vpop.f32.mrb[0].mxu0
      %v6451 = vadd.f32 0.0, %v6450
      %6452 = vmatprep.mubr.bf16.mxu0 0
      %6453 = vmatmul.mubr.bf16.gmra.mrb[0].mxu0 %v6289
      %v6454 = vpop.f32.mrb[0].mxu0
      %v6455 = vadd.f32 0.0, %v6454
      %v6456 = vpop.f32.mrb[0].mxu0
      %v6457 = vadd.f32 0.0, %v6456
      %v6458 = vpop.f32.mrb[0].mxu0
      %v6459 = vadd.f32 0.0, %v6458
      %v6460 = vpop.f32.mrb[0].mxu0
      %v6461 = vadd.f32 0.0, %v6460
      %6462 = vmatprep.mubr.bf16.mxu0 0
      %6463 = vmatmul.mubr.bf16.gmra.mrb[0].mxu0 %v6290
      %v6464 = vpop.f32.mrb[0].mxu0
      %v6465 = vadd.f32 0.0, %v6464
      %v6466 = vpop.f32.mrb[0].mxu0
      %v6467 = vadd.f32 0.0, %v6466
      %v6468 = vpop.f32.mrb[0].mxu0
      %v6469 = vadd.f32 0.0, %v6468
      %v6470 = vpop.f32.mrb[0].mxu0
      %v6471 = vadd.f32 0.0, %v6470
      %6472 = vmatprep.mubr.bf16.mxu0 0
      %6473 = vmatmul.mubr.bf16.gmra.mrb[0].mxu0 %v6291
      %v6474 = vpop.f32.mrb[0].mxu0
      %v6475 = vadd.f32 0.0, %v6474
      %v6476 = vpop.f32.mrb[0].mxu0
      %v6477 = vadd.f32 0.0, %v6476
      %v6478 = vpop.f32.mrb[0].mxu0
      %v6479 = vadd.f32 0.0, %v6478
      %v6480 = vpop.f32.mrb[0].mxu0
      %v6481 = vadd.f32 0.0, %v6480
      %6482 = vmatprep.mubr.bf16.mxu0 0
      %6483 = vmatmul.mubr.bf16.gmra.mrb[0].mxu0 %v6292
      %v6484 = vpop.f32.mrb[0].mxu0
      %v6485 = vadd.f32 0.0, %v6484
      %v6486 = vpop.f32.mrb[0].mxu0
      %v6487 = vadd.f32 0.0, %v6486
      %v6488 = vpop.f32.mrb[0].mxu0
      %v6489 = vadd.f32 0.0, %v6488
      %v6490 = vpop.f32.mrb[0].mxu0
      %v6491 = vadd.f32 0.0, %v6490
      %6492 = vmatprep.mubr.bf16.mxu0 0
      %6493 = vmatmul.mubr.bf16.gmra.mrb[0].mxu0 %v6293
      %v6494 = vpop.f32.mrb[0].mxu0
      %v6495 = vadd.f32 0.0, %v6494
      %v6496 = vpop.f32.mrb[0].mxu0
      %v6497 = vadd.f32 0.0, %v6496
      %v6498 = vpop.f32.mrb[0].mxu0
      %v6499 = vadd.f32 0.0, %v6498
      %v6500 = vpop.f32.mrb[0].mxu0
      %v6501 = vadd.f32 0.0, %v6500
      %6502 = vdwg.mxu0
      %v6503 = vmul.f32 %v5895, %v6425
      %v6504 = vmul.f32 %v5897, %v6427
      %v6505 = vmul.f32 %v5899, %v6429
      %v6506 = vmul.f32 %v5901, %v6431
      %v6507 = vmul.f32 %v5903, %v6435
      %v6508 = vmul.f32 %v5905, %v6437
      %v6509 = vmul.f32 %v5907, %v6439
      %v6510 = vmul.f32 %v5909, %v6441
      %v6511 = vmul.f32 %v5911, %v6445
      %v6512 = vmul.f32 %v5913, %v6447
      %v6513 = vmul.f32 %v5915, %v6449
      %v6514 = vmul.f32 %v5917, %v6451
      %v6515 = vmul.f32 %v5919, %v6455
      %v6516 = vmul.f32 %v5921, %v6457
      %v6517 = vmul.f32 %v5923, %v6459
      %v6518 = vmul.f32 %v5925, %v6461
      %v6519 = vmul.f32 %v5927, %v6465
      %v6520 = vmul.f32 %v5929, %v6467
      %v6521 = vmul.f32 %v5931, %v6469
      %v6522 = vmul.f32 %v5933, %v6471
      %v6523 = vmul.f32 %v5935, %v6475
      %v6524 = vmul.f32 %v5937, %v6477
      %v6525 = vmul.f32 %v5939, %v6479
      %v6526 = vmul.f32 %v5941, %v6481
      %v6527 = vmul.f32 %v5943, %v6485
      %v6528 = vmul.f32 %v5945, %v6487
      %v6529 = vmul.f32 %v5947, %v6489
      %v6530 = vmul.f32 %v5949, %v6491
      %v6531 = vmul.f32 %v5951, %v6495
      %v6532 = vmul.f32 %v5953, %v6497
      %v6533 = vmul.f32 %v5955, %v6499
      %v6534 = vmul.f32 %v5957, %v6501
      %v6535 = vmul.f32 %v5975, %v6270
      %v6536 = vmul.f32 %v5977, %v6271
      %v6537 = vmul.f32 %v5979, %v6272
      %v6538 = vmul.f32 %v5981, %v6273
      %v6539 = vmul.f32 %v5983, %v6274
      %v6540 = vmul.f32 %v5985, %v6275
      %v6541 = vmul.f32 %v5987, %v6276
      %v6542 = vmul.f32 %v5989, %v6277
      %v6543 = vmul.f32 %v5991, %v6278
      %v6544 = vmul.f32 %v5993, %v6279
      %v6545 = vmul.f32 %v5995, %v6280
      %v6546 = vmul.f32 %v5997, %v6281
      %v6547 = vmul.f32 %v5999, %v6282
      %v6548 = vmul.f32 %v6001, %v6283
      %v6549 = vmul.f32 %v6003, %v6284
      %v6550 = vmul.f32 %v6005, %v6285
      %v6551 = vpack.c.bf16 %v6505, %v6503
      %v6552 = vpack.c.bf16 %v6506, %v6504
      %v6553 = vpack.c.bf16 %v6509, %v6507
      %v6554 = vpack.c.bf16 %v6510, %v6508
      %v6555 = vpack.c.bf16 %v6513, %v6511
      %v6556 = vpack.c.bf16 %v6514, %v6512
      %v6557 = vpack.c.bf16 %v6517, %v6515
      %v6558 = vpack.c.bf16 %v6518, %v6516
      %v6559 = vpack.c.bf16 %v6521, %v6519
      %v6560 = vpack.c.bf16 %v6522, %v6520
      %v6561 = vpack.c.bf16 %v6525, %v6523
      %v6562 = vpack.c.bf16 %v6526, %v6524
      %v6563 = vpack.c.bf16 %v6529, %v6527
      %v6564 = vpack.c.bf16 %v6530, %v6528
      %v6565 = vpack.c.bf16 %v6533, %v6531
      %v6566 = vpack.c.bf16 %v6534, %v6532
      %v6567 = vld [vmem:[%s11] sm:$0xff]
      %v6568 = vld [vmem:[%s11 + $0x8] sm:$0xff]
      %v6569 = vld [vmem:[%s11 + $0x10] sm:$0xff]
      %v6570 = vld [vmem:[%s11 + $0x18] sm:$0xff]
      %v6571 = vld [vmem:[%s11 + $0x20] sm:$0xff]
      %v6572 = vld [vmem:[%s11 + $0x28] sm:$0xff]
      %v6573 = vld [vmem:[%s11 + $0x30] sm:$0xff]
      %v6574 = vld [vmem:[%s11 + $0x38] sm:$0xff]
      %v6575 = vld [vmem:[%s11 + $0x40] sm:$0xff]
      %v6576 = vld [vmem:[%s11 + $0x48] sm:$0xff]
      %v6577 = vld [vmem:[%s11 + $0x50] sm:$0xff]
      %v6578 = vld [vmem:[%s11 + $0x58] sm:$0xff]
      %v6579 = vld [vmem:[%s11 + $0x60] sm:$0xff]
      %v6580 = vld [vmem:[%s11 + $0x68] sm:$0xff]
      %v6581 = vld [vmem:[%s11 + $0x70] sm:$0xff]
      %v6582 = vld [vmem:[%s11 + $0x78] sm:$0xff]
      %v6583 = vld [vmem:[%s11 + $0x80] sm:$0xff]
      %v6584 = vld [vmem:[%s11 + $0x88] sm:$0xff]
      %v6585 = vld [vmem:[%s11 + $0x90] sm:$0xff]
      %v6586 = vld [vmem:[%s11 + $0x98] sm:$0xff]
      %v6587 = vld [vmem:[%s11 + $0xa0] sm:$0xff]
      %v6588 = vld [vmem:[%s11 + $0xa8] sm:$0xff]
      %v6589 = vld [vmem:[%s11 + $0xb0] sm:$0xff]
      %v6590 = vld [vmem:[%s11 + $0xb8] sm:$0xff]
      %v6591 = vld [vmem:[%s11 + $0xc0] sm:$0xff]
      %v6592 = vld [vmem:[%s11 + $0xc8] sm:$0xff]
      %v6593 = vld [vmem:[%s11 + $0xd0] sm:$0xff]
      %v6594 = vld [vmem:[%s11 + $0xd8] sm:$0xff]
      %v6595 = vld [vmem:[%s11 + $0xe0] sm:$0xff]
      %v6596 = vld [vmem:[%s11 + $0xe8] sm:$0xff]
      %v6597 = vld [vmem:[%s11 + $0xf0] sm:$0xff]
      %v6598 = vld [vmem:[%s11 + $0xf8] sm:$0xff]
      %v6599 = vld [vmem:[%s11 + $0x100] sm:$0xff]
      %v6600 = vld [vmem:[%s11 + $0x108] sm:$0xff]
      %v6601 = vld [vmem:[%s11 + $0x110] sm:$0xff]
      %v6602 = vld [vmem:[%s11 + $0x118] sm:$0xff]
      %v6603 = vld [vmem:[%s11 + $0x120] sm:$0xff]
      %v6604 = vld [vmem:[%s11 + $0x128] sm:$0xff]
      %v6605 = vld [vmem:[%s11 + $0x130] sm:$0xff]
      %v6606 = vld [vmem:[%s11 + $0x138] sm:$0xff]
      %v6607 = vld [vmem:[%s11 + $0x140] sm:$0xff]
      %v6608 = vld [vmem:[%s11 + $0x148] sm:$0xff]
      %v6609 = vld [vmem:[%s11 + $0x150] sm:$0xff]
      %v6610 = vld [vmem:[%s11 + $0x158] sm:$0xff]
      %v6611 = vld [vmem:[%s11 + $0x160] sm:$0xff]
      %v6612 = vld [vmem:[%s11 + $0x168] sm:$0xff]
      %v6613 = vld [vmem:[%s11 + $0x170] sm:$0xff]
      %v6614 = vld [vmem:[%s11 + $0x178] sm:$0xff]
      %v6615 = vld [vmem:[%s11 + $0x180] sm:$0xff]
      %v6616 = vld [vmem:[%s11 + $0x188] sm:$0xff]
      %v6617 = vld [vmem:[%s11 + $0x190] sm:$0xff]
      %v6618 = vld [vmem:[%s11 + $0x198] sm:$0xff]
      %v6619 = vld [vmem:[%s11 + $0x1a0] sm:$0xff]
      %v6620 = vld [vmem:[%s11 + $0x1a8] sm:$0xff]
      %v6621 = vld [vmem:[%s11 + $0x1b0] sm:$0xff]
      %v6622 = vld [vmem:[%s11 + $0x1b8] sm:$0xff]
      %v6623 = vld [vmem:[%s11 + $0x1c0] sm:$0xff]
      %v6624 = vld [vmem:[%s11 + $0x1c8] sm:$0xff]
      %v6625 = vld [vmem:[%s11 + $0x1d0] sm:$0xff]
      %v6626 = vld [vmem:[%s11 + $0x1d8] sm:$0xff]
      %v6627 = vld [vmem:[%s11 + $0x1e0] sm:$0xff]
      %v6628 = vld [vmem:[%s11 + $0x1e8] sm:$0xff]
      %v6629 = vld [vmem:[%s11 + $0x1f0] sm:$0xff]
      %v6630 = vld [vmem:[%s11 + $0x1f8] sm:$0xff]
      %v6631 = vpack.c.bf16 %v6536, %v6535
      %v6632 = vpack.c.bf16 %v6538, %v6537
      %v6633 = vpack.c.bf16 %v6540, %v6539
      %v6634 = vpack.c.bf16 %v6542, %v6541
      %v6635 = vpack.c.bf16 %v6544, %v6543
      %v6636 = vpack.c.bf16 %v6546, %v6545
      %v6637 = vpack.c.bf16 %v6548, %v6547
      %v6638 = vpack.c.bf16 %v6550, %v6549
      %v6639 = vld [vmem:[%s12] sm:$0xff]
      %v6640 = vld [vmem:[%s12 + $0x8] sm:$0xff]
      %v6641 = vld [vmem:[%s12 + $0x10] sm:$0xff]
      %v6642 = vld [vmem:[%s12 + $0x18] sm:$0xff]
      %v6643 = vld [vmem:[%s12 + $0x20] sm:$0xff]
      %v6644 = vld [vmem:[%s12 + $0x28] sm:$0xff]
      %v6645 = vld [vmem:[%s12 + $0x30] sm:$0xff]
      %v6646 = vld [vmem:[%s12 + $0x38] sm:$0xff]
      %v6647 = vld [vmem:[%s12 + $0x40] sm:$0xff]
      %v6648 = vld [vmem:[%s12 + $0x48] sm:$0xff]
      %v6649 = vld [vmem:[%s12 + $0x50] sm:$0xff]
      %v6650 = vld [vmem:[%s12 + $0x58] sm:$0xff]
      %v6651 = vld [vmem:[%s12 + $0x60] sm:$0xff]
      %v6652 = vld [vmem:[%s12 + $0x68] sm:$0xff]
      %v6653 = vld [vmem:[%s12 + $0x70] sm:$0xff]
      %v6654 = vld [vmem:[%s12 + $0x78] sm:$0xff]
      %v6655 = vld [vmem:[%s12 + $0x80] sm:$0xff]
      %v6656 = vld [vmem:[%s12 + $0x88] sm:$0xff]
      %v6657 = vld [vmem:[%s12 + $0x90] sm:$0xff]
      %v6658 = vld [vmem:[%s12 + $0x98] sm:$0xff]
      %v6659 = vld [vmem:[%s12 + $0xa0] sm:$0xff]
      %v6660 = vld [vmem:[%s12 + $0xa8] sm:$0xff]
      %v6661 = vld [vmem:[%s12 + $0xb0] sm:$0xff]
      %v6662 = vld [vmem:[%s12 + $0xb8] sm:$0xff]
      %v6663 = vld [vmem:[%s12 + $0xc0] sm:$0xff]
      %v6664 = vld [vmem:[%s12 + $0xc8] sm:$0xff]
      %v6665 = vld [vmem:[%s12 + $0xd0] sm:$0xff]
      %v6666 = vld [vmem:[%s12 + $0xd8] sm:$0xff]
      %v6667 = vld [vmem:[%s12 + $0xe0] sm:$0xff]
      %v6668 = vld [vmem:[%s12 + $0xe8] sm:$0xff]
      %v6669 = vld [vmem:[%s12 + $0xf0] sm:$0xff]
      %v6670 = vld [vmem:[%s12 + $0xf8] sm:$0xff]
      %v6703 = vunpack.c.l.b16 %v6639
      %v6704 = vunpack.c.h.b16 %v6639
      %v6705 = vunpack.c.l.b16 %v6640
      %v6706 = vunpack.c.h.b16 %v6640
      %v6707 = vunpack.c.l.b16 %v6641
      %v6708 = vunpack.c.h.b16 %v6641
      %v6709 = vunpack.c.l.b16 %v6642
      %v6710 = vunpack.c.h.b16 %v6642
      %v6711 = vunpack.c.l.b16 %v6643
      %v6712 = vunpack.c.h.b16 %v6643
      %v6713 = vunpack.c.l.b16 %v6644
      %v6714 = vunpack.c.h.b16 %v6644
      %v6715 = vunpack.c.l.b16 %v6645
      %v6716 = vunpack.c.h.b16 %v6645
      %v6717 = vunpack.c.l.b16 %v6646
      %v6718 = vunpack.c.h.b16 %v6646
      %v6719 = vunpack.c.l.b16 %v6647
      %v6720 = vunpack.c.h.b16 %v6647
      %v6721 = vunpack.c.l.b16 %v6648
      %v6722 = vunpack.c.h.b16 %v6648
      %v6723 = vunpack.c.l.b16 %v6649
      %v6724 = vunpack.c.h.b16 %v6649
      %v6725 = vunpack.c.l.b16 %v6650
      %v6726 = vunpack.c.h.b16 %v6650
      %v6727 = vunpack.c.l.b16 %v6651
      %v6728 = vunpack.c.h.b16 %v6651
      %v6729 = vunpack.c.l.b16 %v6652
      %v6730 = vunpack.c.h.b16 %v6652
      %v6731 = vunpack.c.l.b16 %v6653
      %v6732 = vunpack.c.h.b16 %v6653
      %v6733 = vunpack.c.l.b16 %v6654
      %v6734 = vunpack.c.h.b16 %v6654
      %v6735 = vunpack.c.l.b16 %v6655
      %v6736 = vunpack.c.h.b16 %v6655
      %v6737 = vunpack.c.l.b16 %v6656
      %v6738 = vunpack.c.h.b16 %v6656
      %v6739 = vunpack.c.l.b16 %v6657
      %v6740 = vunpack.c.h.b16 %v6657
      %v6741 = vunpack.c.l.b16 %v6658
      %v6742 = vunpack.c.h.b16 %v6658
      %v6743 = vunpack.c.l.b16 %v6659
      %v6744 = vunpack.c.h.b16 %v6659
      %v6745 = vunpack.c.l.b16 %v6660
      %v6746 = vunpack.c.h.b16 %v6660
      %v6747 = vunpack.c.l.b16 %v6661
      %v6748 = vunpack.c.h.b16 %v6661
      %v6749 = vunpack.c.l.b16 %v6662
      %v6750 = vunpack.c.h.b16 %v6662
      %v6751 = vunpack.c.l.b16 %v6663
      %v6752 = vunpack.c.h.b16 %v6663
      %v6753 = vunpack.c.l.b16 %v6664
      %v6754 = vunpack.c.h.b16 %v6664
      %v6755 = vunpack.c.l.b16 %v6665
      %v6756 = vunpack.c.h.b16 %v6665
      %v6757 = vunpack.c.l.b16 %v6666
      %v6758 = vunpack.c.h.b16 %v6666
      %v6759 = vunpack.c.l.b16 %v6667
      %v6760 = vunpack.c.h.b16 %v6667
      %v6761 = vunpack.c.l.b16 %v6668
      %v6762 = vunpack.c.h.b16 %v6668
      %v6763 = vunpack.c.l.b16 %v6669
      %v6764 = vunpack.c.h.b16 %v6669
      %v6765 = vunpack.c.l.b16 %v6670
      %v6766 = vunpack.c.h.b16 %v6670
      %v6767 = vpack.c.b16 %v6707, %v6703
      %v6768 = vpack.c.b16 %v6708, %v6704
      %v6769 = vpack.c.b16 %v6709, %v6705
      %v6770 = vpack.c.b16 %v6710, %v6706
      %v6771 = vpack.c.b16 %v6715, %v6711
      %v6772 = vpack.c.b16 %v6716, %v6712
      %v6773 = vpack.c.b16 %v6717, %v6713
      %v6774 = vpack.c.b16 %v6718, %v6714
      %v6775 = vpack.c.b16 %v6723, %v6719
      %v6776 = vpack.c.b16 %v6724, %v6720
      %v6777 = vpack.c.b16 %v6725, %v6721
      %v6778 = vpack.c.b16 %v6726, %v6722
      %v6779 = vpack.c.b16 %v6731, %v6727
      %v6780 = vpack.c.b16 %v6732, %v6728
      %v6781 = vpack.c.b16 %v6733, %v6729
      %v6782 = vpack.c.b16 %v6734, %v6730
      %v6783 = vpack.c.b16 %v6739, %v6735
      %v6784 = vpack.c.b16 %v6740, %v6736
      %v6785 = vpack.c.b16 %v6741, %v6737
      %v6786 = vpack.c.b16 %v6742, %v6738
      %v6787 = vpack.c.b16 %v6747, %v6743
      %v6788 = vpack.c.b16 %v6748, %v6744
      %v6789 = vpack.c.b16 %v6749, %v6745
      %v6790 = vpack.c.b16 %v6750, %v6746
      %v6791 = vpack.c.b16 %v6755, %v6751
      %v6792 = vpack.c.b16 %v6756, %v6752
      %v6793 = vpack.c.b16 %v6757, %v6753
      %v6794 = vpack.c.b16 %v6758, %v6754
      %v6795 = vpack.c.b16 %v6763, %v6759
      %v6796 = vpack.c.b16 %v6764, %v6760
      %v6797 = vpack.c.b16 %v6765, %v6761
      %v6798 = vpack.c.b16 %v6766, %v6762
      %6831 = vmatprep.subr.bf16.mxu0 %v6768
      %6832 = vmatpush1.bf16.msra.mxu0 %v6767
      %6833 = vmatprep.subr.bf16.mxu0 %v6772
      %6834 = vmatpush1.bf16.msra.mxu0 %v6771
      %6835 = vmatprep.subr.bf16.mxu0 %v6776
      %6836 = vmatpush1.bf16.msra.mxu0 %v6775
      %6837 = vmatprep.subr.bf16.mxu0 %v6780
      %6838 = vmatpush1.bf16.msra.mxu0 %v6779
      %6839 = vmatprep.subr.bf16.mxu0 %v6784
      %6840 = vmatpush1.bf16.msra.mxu0 %v6783
      %6841 = vmatprep.subr.bf16.mxu0 %v6788
      %6842 = vmatpush1.bf16.msra.mxu0 %v6787
      %6843 = vmatprep.subr.bf16.mxu0 %v6792
      %6844 = vmatpush1.bf16.msra.mxu0 %v6791
      %6845 = vmatprep.subr.bf16.mxu0 %v6796
      %6846 = vmatpush1.bf16.msra.mxu0 %v6795
      %6847 = vmatprep.subr.bf16.mxu0 0
      %6848 = vmatpush1.bf16.msra.mxu0 0
      %6849 = vmatprep.subr.bf16.mxu0 0
      %6850 = vmatpush1.bf16.msra.mxu0 0
      %6851 = vmatprep.subr.bf16.mxu0 0
      %6852 = vmatpush1.bf16.msra.mxu0 0
      %6853 = vmatprep.subr.bf16.mxu0 0
      %6854 = vmatpush1.bf16.msra.mxu0 0
      %6855 = vmatprep.subr.bf16.mxu0 0
      %6856 = vmatpush1.bf16.msra.mxu0 0
      %6857 = vmatprep.subr.bf16.mxu0 0
      %6858 = vmatpush1.bf16.msra.mxu0 0
      %6859 = vmatprep.subr.bf16.mxu0 0
      %6860 = vmatpush1.bf16.msra.mxu0 0
      %6861 = vmatprep.subr.bf16.mxu0 0
      %6862 = vmatpush1.bf16.msra.mxu0 0
      %6863 = vmatprep.mubr.bf16.mxu0 0
      %6864 = vmatmul.mubr.bf16.gmra.mrb[0].mxu0 %v6631
      %v6865 = vpop.f32.mrb[0].mxu0
      %v6866 = vadd.f32 0.0, %v6865
      %v6867 = vpop.f32.mrb[0].mxu0
      %v6868 = vadd.f32 0.0, %v6867
      %v6869 = vpop.f32.mrb[0].mxu0
      %v6870 = vadd.f32 0.0, %v6869
      %v6871 = vpop.f32.mrb[0].mxu0
      %v6872 = vadd.f32 0.0, %v6871
      %6873 = vmatprep.mubr.bf16.mxu0 0
      %6874 = vmatmul.mubr.bf16.gmra.mrb[0].mxu0 %v6632
      %v6875 = vpop.f32.mrb[0].mxu0
      %v6876 = vadd.f32 0.0, %v6875
      %v6877 = vpop.f32.mrb[0].mxu0
      %v6878 = vadd.f32 0.0, %v6877
      %v6879 = vpop.f32.mrb[0].mxu0
      %v6880 = vadd.f32 0.0, %v6879
      %v6881 = vpop.f32.mrb[0].mxu0
      %v6882 = vadd.f32 0.0, %v6881
      %6883 = vmatprep.mubr.bf16.mxu0 0
      %6884 = vmatmul.mubr.bf16.gmra.mrb[0].mxu0 %v6633
      %v6885 = vpop.f32.mrb[0].mxu0
      %v6886 = vadd.f32 0.0, %v6885
      %v6887 = vpop.f32.mrb[0].mxu0
      %v6888 = vadd.f32 0.0, %v6887
      %v6889 = vpop.f32.mrb[0].mxu0
      %v6890 = vadd.f32 0.0, %v6889
      %v6891 = vpop.f32.mrb[0].mxu0
      %v6892 = vadd.f32 0.0, %v6891
      %6893 = vmatprep.mubr.bf16.mxu0 0
      %6894 = vmatmul.mubr.bf16.gmra.mrb[0].mxu0 %v6634
      %v6895 = vpop.f32.mrb[0].mxu0
      %v6896 = vadd.f32 0.0, %v6895
      %v6897 = vpop.f32.mrb[0].mxu0
      %v6898 = vadd.f32 0.0, %v6897
      %v6899 = vpop.f32.mrb[0].mxu0
      %v6900 = vadd.f32 0.0, %v6899
      %v6901 = vpop.f32.mrb[0].mxu0
      %v6902 = vadd.f32 0.0, %v6901
      %6903 = vmatprep.mubr.bf16.mxu0 0
      %6904 = vmatmul.mubr.bf16.gmra.mrb[0].mxu0 %v6635
      %v6905 = vpop.f32.mrb[0].mxu0
      %v6906 = vadd.f32 0.0, %v6905
      %v6907 = vpop.f32.mrb[0].mxu0
      %v6908 = vadd.f32 0.0, %v6907
      %v6909 = vpop.f32.mrb[0].mxu0
      %v6910 = vadd.f32 0.0, %v6909
      %v6911 = vpop.f32.mrb[0].mxu0
      %v6912 = vadd.f32 0.0, %v6911
      %6913 = vmatprep.mubr.bf16.mxu0 0
      %6914 = vmatmul.mubr.bf16.gmra.mrb[0].mxu0 %v6636
      %v6915 = vpop.f32.mrb[0].mxu0
      %v6916 = vadd.f32 0.0, %v6915
      %v6917 = vpop.f32.mrb[0].mxu0
      %v6918 = vadd.f32 0.0, %v6917
      %v6919 = vpop.f32.mrb[0].mxu0
      %v6920 = vadd.f32 0.0, %v6919
      %v6921 = vpop.f32.mrb[0].mxu0
      %v6922 = vadd.f32 0.0, %v6921
      %6923 = vmatprep.mubr.bf16.mxu0 0
      %6924 = vmatmul.mubr.bf16.gmra.mrb[0].mxu0 %v6637
      %v6925 = vpop.f32.mrb[0].mxu0
      %v6926 = vadd.f32 0.0, %v6925
      %v6927 = vpop.f32.mrb[0].mxu0
      %v6928 = vadd.f32 0.0, %v6927
      %v6929 = vpop.f32.mrb[0].mxu0
      %v6930 = vadd.f32 0.0, %v6929
      %v6931 = vpop.f32.mrb[0].mxu0
      %v6932 = vadd.f32 0.0, %v6931
      %6933 = vmatprep.mubr.bf16.mxu0 0
      %6934 = vmatmul.mubr.bf16.gmra.mrb[0].mxu0 %v6638
      %v6935 = vpop.f32.mrb[0].mxu0
      %v6936 = vadd.f32 0.0, %v6935
      %v6937 = vpop.f32.mrb[0].mxu0
      %v6938 = vadd.f32 0.0, %v6937
      %v6939 = vpop.f32.mrb[0].mxu0
      %v6940 = vadd.f32 0.0, %v6939
      %v6941 = vpop.f32.mrb[0].mxu0
      %v6942 = vadd.f32 0.0, %v6941
      %6943 = vdwg.mxu0
      %6944 = vmatprep.subr.bf16.mxu0 %v6770
      %6945 = vmatpush1.bf16.msra.mxu0 %v6769
      %6946 = vmatprep.subr.bf16.mxu0 %v6774
      %6947 = vmatpush1.bf16.msra.mxu0 %v6773
      %6948 = vmatprep.subr.bf16.mxu0 %v6778
      %6949 = vmatpush1.bf16.msra.mxu0 %v6777
      %6950 = vmatprep.subr.bf16.mxu0 %v6782
      %6951 = vmatpush1.bf16.msra.mxu0 %v6781
      %6952 = vmatprep.subr.bf16.mxu0 %v6786
      %6953 = vmatpush1.bf16.msra.mxu0 %v6785
      %6954 = vmatprep.subr.bf16.mxu0 %v6790
      %6955 = vmatpush1.bf16.msra.mxu0 %v6789
      %6956 = vmatprep.subr.bf16.mxu0 %v6794
      %6957 = vmatpush1.bf16.msra.mxu0 %v6793
      %6958 = vmatprep.subr.bf16.mxu0 %v6798
      %6959 = vmatpush1.bf16.msra.mxu0 %v6797
      %6960 = vmatprep.subr.bf16.mxu0 0
      %6961 = vmatpush1.bf16.msra.mxu0 0
      %6962 = vmatprep.subr.bf16.mxu0 0
      %6963 = vmatpush1.bf16.msra.mxu0 0
      %6964 = vmatprep.subr.bf16.mxu0 0
      %6965 = vmatpush1.bf16.msra.mxu0 0
      %6966 = vmatprep.subr.bf16.mxu0 0
      %6967 = vmatpush1.bf16.msra.mxu0 0
      %6968 = vmatprep.subr.bf16.mxu0 0
      %6969 = vmatpush1.bf16.msra.mxu0 0
      %6970 = vmatprep.subr.bf16.mxu0 0
      %6971 = vmatpush1.bf16.msra.mxu0 0
      %6972 = vmatprep.subr.bf16.mxu0 0
      %6973 = vmatpush1.bf16.msra.mxu0 0
      %6974 = vmatprep.subr.bf16.mxu0 0
      %6975 = vmatpush1.bf16.msra.mxu0 0
      %6976 = vmatprep.mubr.bf16.mxu0 0
      %6977 = vmatmul.mubr.bf16.gmra.mrb[0].mxu0 %v6631
      %v6978 = vpop.f32.mrb[0].mxu0
      %v6979 = vadd.f32 0.0, %v6978
      %v6980 = vpop.f32.mrb[0].mxu0
      %v6981 = vadd.f32 0.0, %v6980
      %v6982 = vpop.f32.mrb[0].mxu0
      %v6983 = vadd.f32 0.0, %v6982
      %v6984 = vpop.f32.mrb[0].mxu0
      %v6985 = vadd.f32 0.0, %v6984
      %6986 = vmatprep.mubr.bf16.mxu0 0
      %6987 = vmatmul.mubr.bf16.gmra.mrb[0].mxu0 %v6632
      %v6988 = vpop.f32.mrb[0].mxu0
      %v6989 = vadd.f32 0.0, %v6988
      %v6990 = vpop.f32.mrb[0].mxu0
      %v6991 = vadd.f32 0.0, %v6990
      %v6992 = vpop.f32.mrb[0].mxu0
      %v6993 = vadd.f32 0.0, %v6992
      %v6994 = vpop.f32.mrb[0].mxu0
      %v6995 = vadd.f32 0.0, %v6994
      %6996 = vmatprep.mubr.bf16.mxu0 0
      %6997 = vmatmul.mubr.bf16.gmra.mrb[0].mxu0 %v6633
      %v6998 = vpop.f32.mrb[0].mxu0
      %v6999 = vadd.f32 0.0, %v6998
      %v7000 = vpop.f32.mrb[0].mxu0
      %v7001 = vadd.f32 0.0, %v7000
      %v7002 = vpop.f32.mrb[0].mxu0
      %v7003 = vadd.f32 0.0, %v7002
      %v7004 = vpop.f32.mrb[0].mxu0
      %v7005 = vadd.f32 0.0, %v7004
      %7006 = vmatprep.mubr.bf16.mxu0 0
      %7007 = vmatmul.mubr.bf16.gmra.mrb[0].mxu0 %v6634
      %v7008 = vpop.f32.mrb[0].mxu0
      %v7009 = vadd.f32 0.0, %v7008
      %v7010 = vpop.f32.mrb[0].mxu0
      %v7011 = vadd.f32 0.0, %v7010
      %v7012 = vpop.f32.mrb[0].mxu0
      %v7013 = vadd.f32 0.0, %v7012
      %v7014 = vpop.f32.mrb[0].mxu0
      %v7015 = vadd.f32 0.0, %v7014
      %7016 = vmatprep.mubr.bf16.mxu0 0
      %7017 = vmatmul.mubr.bf16.gmra.mrb[0].mxu0 %v6635
      %v7018 = vpop.f32.mrb[0].mxu0
      %v7019 = vadd.f32 0.0, %v7018
      %v7020 = vpop.f32.mrb[0].mxu0
      %v7021 = vadd.f32 0.0, %v7020
      %v7022 = vpop.f32.mrb[0].mxu0
      %v7023 = vadd.f32 0.0, %v7022
      %v7024 = vpop.f32.mrb[0].mxu0
      %v7025 = vadd.f32 0.0, %v7024
      %7026 = vmatprep.mubr.bf16.mxu0 0
      %7027 = vmatmul.mubr.bf16.gmra.mrb[0].mxu0 %v6636
      %v7028 = vpop.f32.mrb[0].mxu0
      %v7029 = vadd.f32 0.0, %v7028
      %v7030 = vpop.f32.mrb[0].mxu0
      %v7031 = vadd.f32 0.0, %v7030
      %v7032 = vpop.f32.mrb[0].mxu0
      %v7033 = vadd.f32 0.0, %v7032
      %v7034 = vpop.f32.mrb[0].mxu0
      %v7035 = vadd.f32 0.0, %v7034
      %7036 = vmatprep.mubr.bf16.mxu0 0
      %7037 = vmatmul.mubr.bf16.gmra.mrb[0].mxu0 %v6637
      %v7038 = vpop.f32.mrb[0].mxu0
      %v7039 = vadd.f32 0.0, %v7038
      %v7040 = vpop.f32.mrb[0].mxu0
      %v7041 = vadd.f32 0.0, %v7040
      %v7042 = vpop.f32.mrb[0].mxu0
      %v7043 = vadd.f32 0.0, %v7042
      %v7044 = vpop.f32.mrb[0].mxu0
      %v7045 = vadd.f32 0.0, %v7044
      %7046 = vmatprep.mubr.bf16.mxu0 0
      %7047 = vmatmul.mubr.bf16.gmra.mrb[0].mxu0 %v6638
      %v7048 = vpop.f32.mrb[0].mxu0
      %v7049 = vadd.f32 0.0, %v7048
      %v7050 = vpop.f32.mrb[0].mxu0
      %v7051 = vadd.f32 0.0, %v7050
      %v7052 = vpop.f32.mrb[0].mxu0
      %v7053 = vadd.f32 0.0, %v7052
      %v7054 = vpop.f32.mrb[0].mxu0
      %v7055 = vadd.f32 0.0, %v7054
      %7056 = vdwg.mxu0
      %v7121 = vunpack.c.l.b16 %v6567
      %v7122 = vunpack.c.h.b16 %v6567
      %v7123 = vunpack.c.l.b16 %v6568
      %v7124 = vunpack.c.h.b16 %v6568
      %v7125 = vunpack.c.l.b16 %v6569
      %v7126 = vunpack.c.h.b16 %v6569
      %v7127 = vunpack.c.l.b16 %v6570
      %v7128 = vunpack.c.h.b16 %v6570
      %v7129 = vunpack.c.l.b16 %v6571
      %v7130 = vunpack.c.h.b16 %v6571
      %v7131 = vunpack.c.l.b16 %v6572
      %v7132 = vunpack.c.h.b16 %v6572
      %v7133 = vunpack.c.l.b16 %v6573
      %v7134 = vunpack.c.h.b16 %v6573
      %v7135 = vunpack.c.l.b16 %v6574
      %v7136 = vunpack.c.h.b16 %v6574
      %v7137 = vunpack.c.l.b16 %v6575
      %v7138 = vunpack.c.h.b16 %v6575
      %v7139 = vunpack.c.l.b16 %v6576
      %v7140 = vunpack.c.h.b16 %v6576
      %v7141 = vunpack.c.l.b16 %v6577
      %v7142 = vunpack.c.h.b16 %v6577
      %v7143 = vunpack.c.l.b16 %v6578
      %v7144 = vunpack.c.h.b16 %v6578
      %v7145 = vunpack.c.l.b16 %v6579
      %v7146 = vunpack.c.h.b16 %v6579
      %v7147 = vunpack.c.l.b16 %v6580
      %v7148 = vunpack.c.h.b16 %v6580
      %v7149 = vunpack.c.l.b16 %v6581
      %v7150 = vunpack.c.h.b16 %v6581
      %v7151 = vunpack.c.l.b16 %v6582
      %v7152 = vunpack.c.h.b16 %v6582
      %v7153 = vunpack.c.l.b16 %v6583
      %v7154 = vunpack.c.h.b16 %v6583
      %v7155 = vunpack.c.l.b16 %v6584
      %v7156 = vunpack.c.h.b16 %v6584
      %v7157 = vunpack.c.l.b16 %v6585
      %v7158 = vunpack.c.h.b16 %v6585
      %v7159 = vunpack.c.l.b16 %v6586
      %v7160 = vunpack.c.h.b16 %v6586
      %v7161 = vunpack.c.l.b16 %v6587
      %v7162 = vunpack.c.h.b16 %v6587
      %v7163 = vunpack.c.l.b16 %v6588
      %v7164 = vunpack.c.h.b16 %v6588
      %v7165 = vunpack.c.l.b16 %v6589
      %v7166 = vunpack.c.h.b16 %v6589
      %v7167 = vunpack.c.l.b16 %v6590
      %v7168 = vunpack.c.h.b16 %v6590
      %v7169 = vunpack.c.l.b16 %v6591
      %v7170 = vunpack.c.h.b16 %v6591
      %v7171 = vunpack.c.l.b16 %v6592
      %v7172 = vunpack.c.h.b16 %v6592
      %v7173 = vunpack.c.l.b16 %v6593
      %v7174 = vunpack.c.h.b16 %v6593
      %v7175 = vunpack.c.l.b16 %v6594
      %v7176 = vunpack.c.h.b16 %v6594
      %v7177 = vunpack.c.l.b16 %v6595
      %v7178 = vunpack.c.h.b16 %v6595
      %v7179 = vunpack.c.l.b16 %v6596
      %v7180 = vunpack.c.h.b16 %v6596
      %v7181 = vunpack.c.l.b16 %v6597
      %v7182 = vunpack.c.h.b16 %v6597
      %v7183 = vunpack.c.l.b16 %v6598
      %v7184 = vunpack.c.h.b16 %v6598
      %v7185 = vunpack.c.l.b16 %v6599
      %v7186 = vunpack.c.h.b16 %v6599
      %v7187 = vunpack.c.l.b16 %v6600
      %v7188 = vunpack.c.h.b16 %v6600
      %v7189 = vunpack.c.l.b16 %v6601
      %v7190 = vunpack.c.h.b16 %v6601
      %v7191 = vunpack.c.l.b16 %v6602
      %v7192 = vunpack.c.h.b16 %v6602
      %v7193 = vunpack.c.l.b16 %v6603
      %v7194 = vunpack.c.h.b16 %v6603
      %v7195 = vunpack.c.l.b16 %v6604
      %v7196 = vunpack.c.h.b16 %v6604
      %v7197 = vunpack.c.l.b16 %v6605
      %v7198 = vunpack.c.h.b16 %v6605
      %v7199 = vunpack.c.l.b16 %v6606
      %v7200 = vunpack.c.h.b16 %v6606
      %v7201 = vunpack.c.l.b16 %v6607
      %v7202 = vunpack.c.h.b16 %v6607
      %v7203 = vunpack.c.l.b16 %v6608
      %v7204 = vunpack.c.h.b16 %v6608
      %v7205 = vunpack.c.l.b16 %v6609
      %v7206 = vunpack.c.h.b16 %v6609
      %v7207 = vunpack.c.l.b16 %v6610
      %v7208 = vunpack.c.h.b16 %v6610
      %v7209 = vunpack.c.l.b16 %v6611
      %v7210 = vunpack.c.h.b16 %v6611
      %v7211 = vunpack.c.l.b16 %v6612
      %v7212 = vunpack.c.h.b16 %v6612
      %v7213 = vunpack.c.l.b16 %v6613
      %v7214 = vunpack.c.h.b16 %v6613
      %v7215 = vunpack.c.l.b16 %v6614
      %v7216 = vunpack.c.h.b16 %v6614
      %v7217 = vunpack.c.l.b16 %v6615
      %v7218 = vunpack.c.h.b16 %v6615
      %v7219 = vunpack.c.l.b16 %v6616
      %v7220 = vunpack.c.h.b16 %v6616
      %v7221 = vunpack.c.l.b16 %v6617
      %v7222 = vunpack.c.h.b16 %v6617
      %v7223 = vunpack.c.l.b16 %v6618
      %v7224 = vunpack.c.h.b16 %v6618
      %v7225 = vunpack.c.l.b16 %v6619
      %v7226 = vunpack.c.h.b16 %v6619
      %v7227 = vunpack.c.l.b16 %v6620
      %v7228 = vunpack.c.h.b16 %v6620
      %v7229 = vunpack.c.l.b16 %v6621
      %v7230 = vunpack.c.h.b16 %v6621
      %v7231 = vunpack.c.l.b16 %v6622
      %v7232 = vunpack.c.h.b16 %v6622
      %v7233 = vunpack.c.l.b16 %v6623
      %v7234 = vunpack.c.h.b16 %v6623
      %v7235 = vunpack.c.l.b16 %v6624
      %v7236 = vunpack.c.h.b16 %v6624
      %v7237 = vunpack.c.l.b16 %v6625
      %v7238 = vunpack.c.h.b16 %v6625
      %v7239 = vunpack.c.l.b16 %v6626
      %v7240 = vunpack.c.h.b16 %v6626
      %v7241 = vunpack.c.l.b16 %v6627
      %v7242 = vunpack.c.h.b16 %v6627
      %v7243 = vunpack.c.l.b16 %v6628
      %v7244 = vunpack.c.h.b16 %v6628
      %v7245 = vunpack.c.l.b16 %v6629
      %v7246 = vunpack.c.h.b16 %v6629
      %v7247 = vunpack.c.l.b16 %v6630
      %v7248 = vunpack.c.h.b16 %v6630
      %v7249 = vpack.c.b16 %v7125, %v7121
      %v7250 = vpack.c.b16 %v7126, %v7122
      %v7251 = vpack.c.b16 %v7127, %v7123
      %v7252 = vpack.c.b16 %v7128, %v7124
      %v7253 = vpack.c.b16 %v7133, %v7129
      %v7254 = vpack.c.b16 %v7134, %v7130
      %v7255 = vpack.c.b16 %v7135, %v7131
      %v7256 = vpack.c.b16 %v7136, %v7132
      %v7257 = vpack.c.b16 %v7141, %v7137
      %v7258 = vpack.c.b16 %v7142, %v7138
      %v7259 = vpack.c.b16 %v7143, %v7139
      %v7260 = vpack.c.b16 %v7144, %v7140
      %v7261 = vpack.c.b16 %v7149, %v7145
      %v7262 = vpack.c.b16 %v7150, %v7146
      %v7263 = vpack.c.b16 %v7151, %v7147
      %v7264 = vpack.c.b16 %v7152, %v7148
      %v7265 = vpack.c.b16 %v7157, %v7153
      %v7266 = vpack.c.b16 %v7158, %v7154
      %v7267 = vpack.c.b16 %v7159, %v7155
      %v7268 = vpack.c.b16 %v7160, %v7156
      %v7269 = vpack.c.b16 %v7165, %v7161
      %v7270 = vpack.c.b16 %v7166, %v7162
      %v7271 = vpack.c.b16 %v7167, %v7163
      %v7272 = vpack.c.b16 %v7168, %v7164
      %v7273 = vpack.c.b16 %v7173, %v7169
      %v7274 = vpack.c.b16 %v7174, %v7170
      %v7275 = vpack.c.b16 %v7175, %v7171
      %v7276 = vpack.c.b16 %v7176, %v7172
      %v7277 = vpack.c.b16 %v7181, %v7177
      %v7278 = vpack.c.b16 %v7182, %v7178
      %v7279 = vpack.c.b16 %v7183, %v7179
      %v7280 = vpack.c.b16 %v7184, %v7180
      %v7281 = vpack.c.b16 %v7189, %v7185
      %v7282 = vpack.c.b16 %v7190, %v7186
      %v7283 = vpack.c.b16 %v7191, %v7187
      %v7284 = vpack.c.b16 %v7192, %v7188
      %v7285 = vpack.c.b16 %v7197, %v7193
      %v7286 = vpack.c.b16 %v7198, %v7194
      %v7287 = vpack.c.b16 %v7199, %v7195
      %v7288 = vpack.c.b16 %v7200, %v7196
      %v7289 = vpack.c.b16 %v7205, %v7201
      %v7290 = vpack.c.b16 %v7206, %v7202
      %v7291 = vpack.c.b16 %v7207, %v7203
      %v7292 = vpack.c.b16 %v7208, %v7204
      %v7293 = vpack.c.b16 %v7213, %v7209
      %v7294 = vpack.c.b16 %v7214, %v7210
      %v7295 = vpack.c.b16 %v7215, %v7211
      %v7296 = vpack.c.b16 %v7216, %v7212
      %v7297 = vpack.c.b16 %v7221, %v7217
      %v7298 = vpack.c.b16 %v7222, %v7218
      %v7299 = vpack.c.b16 %v7223, %v7219
      %v7300 = vpack.c.b16 %v7224, %v7220
      %v7301 = vpack.c.b16 %v7229, %v7225
      %v7302 = vpack.c.b16 %v7230, %v7226
      %v7303 = vpack.c.b16 %v7231, %v7227
      %v7304 = vpack.c.b16 %v7232, %v7228
      %v7305 = vpack.c.b16 %v7237, %v7233
      %v7306 = vpack.c.b16 %v7238, %v7234
      %v7307 = vpack.c.b16 %v7239, %v7235
      %v7308 = vpack.c.b16 %v7240, %v7236
      %v7309 = vpack.c.b16 %v7245, %v7241
      %v7310 = vpack.c.b16 %v7246, %v7242
      %v7311 = vpack.c.b16 %v7247, %v7243
      %v7312 = vpack.c.b16 %v7248, %v7244
      %7377 = vmatprep.subr.bf16.mxu0 %v7250
      %7378 = vmatpush1.bf16.msra.mxu0 %v7249
      %7379 = vmatprep.subr.bf16.mxu0 %v7254
      %7380 = vmatpush1.bf16.msra.mxu0 %v7253
      %7381 = vmatprep.subr.bf16.mxu0 %v7258
      %7382 = vmatpush1.bf16.msra.mxu0 %v7257
      %7383 = vmatprep.subr.bf16.mxu0 %v7262
      %7384 = vmatpush1.bf16.msra.mxu0 %v7261
      %7385 = vmatprep.subr.bf16.mxu0 %v7266
      %7386 = vmatpush1.bf16.msra.mxu0 %v7265
      %7387 = vmatprep.subr.bf16.mxu0 %v7270
      %7388 = vmatpush1.bf16.msra.mxu0 %v7269
      %7389 = vmatprep.subr.bf16.mxu0 %v7274
      %7390 = vmatpush1.bf16.msra.mxu0 %v7273
      %7391 = vmatprep.subr.bf16.mxu0 %v7278
      %7392 = vmatpush1.bf16.msra.mxu0 %v7277
      %7393 = vmatprep.subr.bf16.mxu0 %v7282
      %7394 = vmatpush1.bf16.msra.mxu0 %v7281
      %7395 = vmatprep.subr.bf16.mxu0 %v7286
      %7396 = vmatpush1.bf16.msra.mxu0 %v7285
      %7397 = vmatprep.subr.bf16.mxu0 %v7290
      %7398 = vmatpush1.bf16.msra.mxu0 %v7289
      %7399 = vmatprep.subr.bf16.mxu0 %v7294
      %7400 = vmatpush1.bf16.msra.mxu0 %v7293
      %7401 = vmatprep.subr.bf16.mxu0 %v7298
      %7402 = vmatpush1.bf16.msra.mxu0 %v7297
      %7403 = vmatprep.subr.bf16.mxu0 %v7302
      %7404 = vmatpush1.bf16.msra.mxu0 %v7301
      %7405 = vmatprep.subr.bf16.mxu0 %v7306
      %7406 = vmatpush1.bf16.msra.mxu0 %v7305
      %7407 = vmatprep.subr.bf16.mxu0 %v7310
      %7408 = vmatpush1.bf16.msra.mxu0 %v7309
      %7409 = vmatprep.mubr.bf16.mxu0 %v6552
      %7410 = vmatmul.mubr.bf16.gmra.mrb[0].mxu0 %v6551
      %v7411 = vpop.f32.mrb[0].mxu0
      %v7412 = vadd.f32 %v6866, %v7411
      %v7413 = vpop.f32.mrb[0].mxu0
      %v7414 = vadd.f32 %v6868, %v7413
      %v7415 = vpop.f32.mrb[0].mxu0
      %v7416 = vadd.f32 %v6870, %v7415
      %v7417 = vpop.f32.mrb[0].mxu0
      %v7418 = vadd.f32 %v6872, %v7417
      %7419 = vmatprep.mubr.bf16.mxu0 %v6554
      %7420 = vmatmul.mubr.bf16.gmra.mrb[0].mxu0 %v6553
      %v7421 = vpop.f32.mrb[0].mxu0
      %v7422 = vadd.f32 %v6876, %v7421
      %v7423 = vpop.f32.mrb[0].mxu0
      %v7424 = vadd.f32 %v6878, %v7423
      %v7425 = vpop.f32.mrb[0].mxu0
      %v7426 = vadd.f32 %v6880, %v7425
      %v7427 = vpop.f32.mrb[0].mxu0
      %v7428 = vadd.f32 %v6882, %v7427
      %7429 = vmatprep.mubr.bf16.mxu0 %v6556
      %7430 = vmatmul.mubr.bf16.gmra.mrb[0].mxu0 %v6555
      %v7431 = vpop.f32.mrb[0].mxu0
      %v7432 = vadd.f32 %v6886, %v7431
      %v7433 = vpop.f32.mrb[0].mxu0
      %v7434 = vadd.f32 %v6888, %v7433
      %v7435 = vpop.f32.mrb[0].mxu0
      %v7436 = vadd.f32 %v6890, %v7435
      %v7437 = vpop.f32.mrb[0].mxu0
      %v7438 = vadd.f32 %v6892, %v7437
      %7439 = vmatprep.mubr.bf16.mxu0 %v6558
      %7440 = vmatmul.mubr.bf16.gmra.mrb[0].mxu0 %v6557
      %v7441 = vpop.f32.mrb[0].mxu0
      %v7442 = vadd.f32 %v6896, %v7441
      %v7443 = vpop.f32.mrb[0].mxu0
      %v7444 = vadd.f32 %v6898, %v7443
      %v7445 = vpop.f32.mrb[0].mxu0
      %v7446 = vadd.f32 %v6900, %v7445
      %v7447 = vpop.f32.mrb[0].mxu0
      %v7448 = vadd.f32 %v6902, %v7447
      %7449 = vmatprep.mubr.bf16.mxu0 %v6560
      %7450 = vmatmul.mubr.bf16.gmra.mrb[0].mxu0 %v6559
      %v7451 = vpop.f32.mrb[0].mxu0
      %v7452 = vadd.f32 %v6906, %v7451
      %v7453 = vpop.f32.mrb[0].mxu0
      %v7454 = vadd.f32 %v6908, %v7453
      %v7455 = vpop.f32.mrb[0].mxu0
      %v7456 = vadd.f32 %v6910, %v7455
      %v7457 = vpop.f32.mrb[0].mxu0
      %v7458 = vadd.f32 %v6912, %v7457
      %7459 = vmatprep.mubr.bf16.mxu0 %v6562
      %7460 = vmatmul.mubr.bf16.gmra.mrb[0].mxu0 %v6561
      %v7461 = vpop.f32.mrb[0].mxu0
      %v7462 = vadd.f32 %v6916, %v7461
      %v7463 = vpop.f32.mrb[0].mxu0
      %v7464 = vadd.f32 %v6918, %v7463
      %v7465 = vpop.f32.mrb[0].mxu0
      %v7466 = vadd.f32 %v6920, %v7465
      %v7467 = vpop.f32.mrb[0].mxu0
      %v7468 = vadd.f32 %v6922, %v7467
      %7469 = vmatprep.mubr.bf16.mxu0 %v6564
      %7470 = vmatmul.mubr.bf16.gmra.mrb[0].mxu0 %v6563
      %v7471 = vpop.f32.mrb[0].mxu0
      %v7472 = vadd.f32 %v6926, %v7471
      %v7473 = vpop.f32.mrb[0].mxu0
      %v7474 = vadd.f32 %v6928, %v7473
      %v7475 = vpop.f32.mrb[0].mxu0
      %v7476 = vadd.f32 %v6930, %v7475
      %v7477 = vpop.f32.mrb[0].mxu0
      %v7478 = vadd.f32 %v6932, %v7477
      %7479 = vmatprep.mubr.bf16.mxu0 %v6566
      %7480 = vmatmul.mubr.bf16.gmra.mrb[0].mxu0 %v6565
      %v7481 = vpop.f32.mrb[0].mxu0
      %v7482 = vadd.f32 %v6936, %v7481
      %v7483 = vpop.f32.mrb[0].mxu0
      %v7484 = vadd.f32 %v6938, %v7483
      %v7485 = vpop.f32.mrb[0].mxu0
      %v7486 = vadd.f32 %v6940, %v7485
      %v7487 = vpop.f32.mrb[0].mxu0
      %v7488 = vadd.f32 %v6942, %v7487
      %7489 = vdwg.mxu0
      %7490 = vmatprep.subr.bf16.mxu0 %v7252
      %7491 = vmatpush1.bf16.msra.mxu0 %v7251
      %7492 = vmatprep.subr.bf16.mxu0 %v7256
      %7493 = vmatpush1.bf16.msra.mxu0 %v7255
      %7494 = vmatprep.subr.bf16.mxu0 %v7260
      %7495 = vmatpush1.bf16.msra.mxu0 %v7259
      %7496 = vmatprep.subr.bf16.mxu0 %v7264
      %7497 = vmatpush1.bf16.msra.mxu0 %v7263
      %7498 = vmatprep.subr.bf16.mxu0 %v7268
      %7499 = vmatpush1.bf16.msra.mxu0 %v7267
      %7500 = vmatprep.subr.bf16.mxu0 %v7272
      %7501 = vmatpush1.bf16.msra.mxu0 %v7271
      %7502 = vmatprep.subr.bf16.mxu0 %v7276
      %7503 = vmatpush1.bf16.msra.mxu0 %v7275
      %7504 = vmatprep.subr.bf16.mxu0 %v7280
      %7505 = vmatpush1.bf16.msra.mxu0 %v7279
      %7506 = vmatprep.subr.bf16.mxu0 %v7284
      %7507 = vmatpush1.bf16.msra.mxu0 %v7283
      %7508 = vmatprep.subr.bf16.mxu0 %v7288
      %7509 = vmatpush1.bf16.msra.mxu0 %v7287
      %7510 = vmatprep.subr.bf16.mxu0 %v7292
      %7511 = vmatpush1.bf16.msra.mxu0 %v7291
      %7512 = vmatprep.subr.bf16.mxu0 %v7296
      %7513 = vmatpush1.bf16.msra.mxu0 %v7295
      %7514 = vmatprep.subr.bf16.mxu0 %v7300
      %7515 = vmatpush1.bf16.msra.mxu0 %v7299
      %7516 = vmatprep.subr.bf16.mxu0 %v7304
      %7517 = vmatpush1.bf16.msra.mxu0 %v7303
      %7518 = vmatprep.subr.bf16.mxu0 %v7308
      %7519 = vmatpush1.bf16.msra.mxu0 %v7307
      %7520 = vmatprep.subr.bf16.mxu0 %v7312
      %7521 = vmatpush1.bf16.msra.mxu0 %v7311
      %7522 = vmatprep.mubr.bf16.mxu0 %v6552
      %7523 = vmatmul.mubr.bf16.gmra.mrb[0].mxu0 %v6551
      %v7524 = vpop.f32.mrb[0].mxu0
      %v7525 = vadd.f32 %v6979, %v7524
      %v7526 = vpop.f32.mrb[0].mxu0
      %v7527 = vadd.f32 %v6981, %v7526
      %v7528 = vpop.f32.mrb[0].mxu0
      %v7529 = vadd.f32 %v6983, %v7528
      %v7530 = vpop.f32.mrb[0].mxu0
      %v7531 = vadd.f32 %v6985, %v7530
      %7532 = vmatprep.mubr.bf16.mxu0 %v6554
      %7533 = vmatmul.mubr.bf16.gmra.mrb[0].mxu0 %v6553
      %v7534 = vpop.f32.mrb[0].mxu0
      %v7535 = vadd.f32 %v6989, %v7534
      %v7536 = vpop.f32.mrb[0].mxu0
      %v7537 = vadd.f32 %v6991, %v7536
      %v7538 = vpop.f32.mrb[0].mxu0
      %v7539 = vadd.f32 %v6993, %v7538
      %v7540 = vpop.f32.mrb[0].mxu0
      %v7541 = vadd.f32 %v6995, %v7540
      %7542 = vmatprep.mubr.bf16.mxu0 %v6556
      %7543 = vmatmul.mubr.bf16.gmra.mrb[0].mxu0 %v6555
      %v7544 = vpop.f32.mrb[0].mxu0
      %v7545 = vadd.f32 %v6999, %v7544
      %v7546 = vpop.f32.mrb[0].mxu0
      %v7547 = vadd.f32 %v7001, %v7546
      %v7548 = vpop.f32.mrb[0].mxu0
      %v7549 = vadd.f32 %v7003, %v7548
      %v7550 = vpop.f32.mrb[0].mxu0
      %v7551 = vadd.f32 %v7005, %v7550
      %7552 = vmatprep.mubr.bf16.mxu0 %v6558
      %7553 = vmatmul.mubr.bf16.gmra.mrb[0].mxu0 %v6557
      %v7554 = vpop.f32.mrb[0].mxu0
      %v7555 = vadd.f32 %v7009, %v7554
      %v7556 = vpop.f32.mrb[0].mxu0
      %v7557 = vadd.f32 %v7011, %v7556
      %v7558 = vpop.f32.mrb[0].mxu0
      %v7559 = vadd.f32 %v7013, %v7558
      %v7560 = vpop.f32.mrb[0].mxu0
      %v7561 = vadd.f32 %v7015, %v7560
      %7562 = vmatprep.mubr.bf16.mxu0 %v6560
      %7563 = vmatmul.mubr.bf16.gmra.mrb[0].mxu0 %v6559
      %v7564 = vpop.f32.mrb[0].mxu0
      %v7565 = vadd.f32 %v7019, %v7564
      %v7566 = vpop.f32.mrb[0].mxu0
      %v7567 = vadd.f32 %v7021, %v7566
      %v7568 = vpop.f32.mrb[0].mxu0
      %v7569 = vadd.f32 %v7023, %v7568
      %v7570 = vpop.f32.mrb[0].mxu0
      %v7571 = vadd.f32 %v7025, %v7570
      %7572 = vmatprep.mubr.bf16.mxu0 %v6562
      %7573 = vmatmul.mubr.bf16.gmra.mrb[0].mxu0 %v6561
      %v7574 = vpop.f32.mrb[0].mxu0
      %v7575 = vadd.f32 %v7029, %v7574
      %v7576 = vpop.f32.mrb[0].mxu0
      %v7577 = vadd.f32 %v7031, %v7576
      %v7578 = vpop.f32.mrb[0].mxu0
      %v7579 = vadd.f32 %v7033, %v7578
      %v7580 = vpop.f32.mrb[0].mxu0
      %v7581 = vadd.f32 %v7035, %v7580
      %7582 = vmatprep.mubr.bf16.mxu0 %v6564
      %7583 = vmatmul.mubr.bf16.gmra.mrb[0].mxu0 %v6563
      %v7584 = vpop.f32.mrb[0].mxu0
      %v7585 = vadd.f32 %v7039, %v7584
      %v7586 = vpop.f32.mrb[0].mxu0
      %v7587 = vadd.f32 %v7041, %v7586
      %v7588 = vpop.f32.mrb[0].mxu0
      %v7589 = vadd.f32 %v7043, %v7588
      %v7590 = vpop.f32.mrb[0].mxu0
      %v7591 = vadd.f32 %v7045, %v7590
      %7592 = vmatprep.mubr.bf16.mxu0 %v6566
      %7593 = vmatmul.mubr.bf16.gmra.mrb[0].mxu0 %v6565
      %v7594 = vpop.f32.mrb[0].mxu0
      %v7595 = vadd.f32 %v7049, %v7594
      %v7596 = vpop.f32.mrb[0].mxu0
      %v7597 = vadd.f32 %v7051, %v7596
      %v7598 = vpop.f32.mrb[0].mxu0
      %v7599 = vadd.f32 %v7053, %v7598
      %v7600 = vpop.f32.mrb[0].mxu0
      %v7601 = vadd.f32 %v7055, %v7600
      %7602 = vdwg.mxu0
      %v7603 = vld [vmem:[%s13] sm:$0xf]
      %v7605 = vlaneseq
      %v7606 = vshrl.u32 %v7605, 7
      %v7607 = vsub.s32 0, %v7606
      %v7608 = vrot.slane %v7603, %v7607
      %v7609 = vlaneseq
      %v7610 = vshrl.u32 %v7609, 7
      %v7611 = vsub.s32 1, %v7610
      %v7612 = vrot.slane %v7603, %v7611
      %v7613 = vlaneseq
      %v7614 = vshrl.u32 %v7613, 7
      %v7615 = vsub.s32 2, %v7614
      %v7616 = vrot.slane %v7603, %v7615
      %v7617 = vlaneseq
      %v7618 = vshrl.u32 %v7617, 7
      %v7619 = vsub.s32 3, %v7618
      %v7620 = vrot.slane %v7603, %v7619
      %v7625 = vadd.f32 %v7412, %v7608
      %v7626 = vadd.f32 %v7414, %v7612
      %v7627 = vadd.f32 %v7525, %v7616
      %v7628 = vadd.f32 %v7527, %v7620
      %v7629 = vadd.f32 %v7416, %v7608
      %v7630 = vadd.f32 %v7418, %v7612
      %v7631 = vadd.f32 %v7529, %v7616
      %v7632 = vadd.f32 %v7531, %v7620
      %v7633 = vadd.f32 %v7422, %v7608
      %v7634 = vadd.f32 %v7424, %v7612
      %v7635 = vadd.f32 %v7535, %v7616
      %v7636 = vadd.f32 %v7537, %v7620
      %v7637 = vadd.f32 %v7426, %v7608
      %v7638 = vadd.f32 %v7428, %v7612
      %v7639 = vadd.f32 %v7539, %v7616
      %v7640 = vadd.f32 %v7541, %v7620
      %v7641 = vadd.f32 %v7432, %v7608
      %v7642 = vadd.f32 %v7434, %v7612
      %v7643 = vadd.f32 %v7545, %v7616
      %v7644 = vadd.f32 %v7547, %v7620
      %v7645 = vadd.f32 %v7436, %v7608
      %v7646 = vadd.f32 %v7438, %v7612
      %v7647 = vadd.f32 %v7549, %v7616
      %v7648 = vadd.f32 %v7551, %v7620
      %v7649 = vadd.f32 %v7442, %v7608
      %v7650 = vadd.f32 %v7444, %v7612
      %v7651 = vadd.f32 %v7555, %v7616
      %v7652 = vadd.f32 %v7557, %v7620
      %v7653 = vadd.f32 %v7446, %v7608
      %v7654 = vadd.f32 %v7448, %v7612
      %v7655 = vadd.f32 %v7559, %v7616
      %v7656 = vadd.f32 %v7561, %v7620
      %v7657 = vadd.f32 %v7452, %v7608
      %v7658 = vadd.f32 %v7454, %v7612
      %v7659 = vadd.f32 %v7565, %v7616
      %v7660 = vadd.f32 %v7567, %v7620
      %v7661 = vadd.f32 %v7456, %v7608
      %v7662 = vadd.f32 %v7458, %v7612
      %v7663 = vadd.f32 %v7569, %v7616
      %v7664 = vadd.f32 %v7571, %v7620
      %v7665 = vadd.f32 %v7462, %v7608
      %v7666 = vadd.f32 %v7464, %v7612
      %v7667 = vadd.f32 %v7575, %v7616
      %v7668 = vadd.f32 %v7577, %v7620
      %v7669 = vadd.f32 %v7466, %v7608
      %v7670 = vadd.f32 %v7468, %v7612
      %v7671 = vadd.f32 %v7579, %v7616
      %v7672 = vadd.f32 %v7581, %v7620
      %v7673 = vadd.f32 %v7472, %v7608
      %v7674 = vadd.f32 %v7474, %v7612
      %v7675 = vadd.f32 %v7585, %v7616
      %v7676 = vadd.f32 %v7587, %v7620
      %v7677 = vadd.f32 %v7476, %v7608
      %v7678 = vadd.f32 %v7478, %v7612
      %v7679 = vadd.f32 %v7589, %v7616
      %v7680 = vadd.f32 %v7591, %v7620
      %v7681 = vadd.f32 %v7482, %v7608
      %v7682 = vadd.f32 %v7484, %v7612
      %v7683 = vadd.f32 %v7595, %v7616
      %v7684 = vadd.f32 %v7597, %v7620
      %v7685 = vadd.f32 %v7486, %v7608
      %v7686 = vadd.f32 %v7488, %v7612
      %v7687 = vadd.f32 %v7599, %v7616
      %v7688 = vadd.f32 %v7601, %v7620
      %v7689 = vmax.f32 %v7625, 0.0
      %v7690 = vmax.f32 %v7626, 0.0
      %v7691 = vmax.f32 %v7627, 0.0
      %v7692 = vmax.f32 %v7628, 0.0
      %v7693 = vmax.f32 %v7629, 0.0
      %v7694 = vmax.f32 %v7630, 0.0
      %v7695 = vmax.f32 %v7631, 0.0
      %v7696 = vmax.f32 %v7632, 0.0
      %v7697 = vmax.f32 %v7633, 0.0
      %v7698 = vmax.f32 %v7634, 0.0
      %v7699 = vmax.f32 %v7635, 0.0
      %v7700 = vmax.f32 %v7636, 0.0
      %v7701 = vmax.f32 %v7637, 0.0
      %v7702 = vmax.f32 %v7638, 0.0
      %v7703 = vmax.f32 %v7639, 0.0
      %v7704 = vmax.f32 %v7640, 0.0
      %v7705 = vmax.f32 %v7641, 0.0
      %v7706 = vmax.f32 %v7642, 0.0
      %v7707 = vmax.f32 %v7643, 0.0
      %v7708 = vmax.f32 %v7644, 0.0
      %v7709 = vmax.f32 %v7645, 0.0
      %v7710 = vmax.f32 %v7646, 0.0
      %v7711 = vmax.f32 %v7647, 0.0
      %v7712 = vmax.f32 %v7648, 0.0
      %v7713 = vmax.f32 %v7649, 0.0
      %v7714 = vmax.f32 %v7650, 0.0
      %v7715 = vmax.f32 %v7651, 0.0
      %v7716 = vmax.f32 %v7652, 0.0
      %v7717 = vmax.f32 %v7653, 0.0
      %v7718 = vmax.f32 %v7654, 0.0
      %v7719 = vmax.f32 %v7655, 0.0
      %v7720 = vmax.f32 %v7656, 0.0
      %v7721 = vmax.f32 %v7657, 0.0
      %v7722 = vmax.f32 %v7658, 0.0
      %v7723 = vmax.f32 %v7659, 0.0
      %v7724 = vmax.f32 %v7660, 0.0
      %v7725 = vmax.f32 %v7661, 0.0
      %v7726 = vmax.f32 %v7662, 0.0
      %v7727 = vmax.f32 %v7663, 0.0
      %v7728 = vmax.f32 %v7664, 0.0
      %v7729 = vmax.f32 %v7665, 0.0
      %v7730 = vmax.f32 %v7666, 0.0
      %v7731 = vmax.f32 %v7667, 0.0
      %v7732 = vmax.f32 %v7668, 0.0
      %v7733 = vmax.f32 %v7669, 0.0
      %v7734 = vmax.f32 %v7670, 0.0
      %v7735 = vmax.f32 %v7671, 0.0
      %v7736 = vmax.f32 %v7672, 0.0
      %v7737 = vmax.f32 %v7673, 0.0
      %v7738 = vmax.f32 %v7674, 0.0
      %v7739 = vmax.f32 %v7675, 0.0
      %v7740 = vmax.f32 %v7676, 0.0
      %v7741 = vmax.f32 %v7677, 0.0
      %v7742 = vmax.f32 %v7678, 0.0
      %v7743 = vmax.f32 %v7679, 0.0
      %v7744 = vmax.f32 %v7680, 0.0
      %v7745 = vmax.f32 %v7681, 0.0
      %v7746 = vmax.f32 %v7682, 0.0
      %v7747 = vmax.f32 %v7683, 0.0
      %v7748 = vmax.f32 %v7684, 0.0
      %v7749 = vmax.f32 %v7685, 0.0
      %v7750 = vmax.f32 %v7686, 0.0
      %v7751 = vmax.f32 %v7687, 0.0
      %v7752 = vmax.f32 %v7688, 0.0
      %v7753 = vpack.c.bf16 %v7693, %v7689
      %v7754 = vpack.c.bf16 %v7694, %v7690
      %v7755 = vpack.c.bf16 %v7695, %v7691
      %v7756 = vpack.c.bf16 %v7696, %v7692
      %v7757 = vpack.c.bf16 %v7701, %v7697
      %v7758 = vpack.c.bf16 %v7702, %v7698
      %v7759 = vpack.c.bf16 %v7703, %v7699
      %v7760 = vpack.c.bf16 %v7704, %v7700
      %v7761 = vpack.c.bf16 %v7709, %v7705
      %v7762 = vpack.c.bf16 %v7710, %v7706
      %v7763 = vpack.c.bf16 %v7711, %v7707
      %v7764 = vpack.c.bf16 %v7712, %v7708
      %v7765 = vpack.c.bf16 %v7717, %v7713
      %v7766 = vpack.c.bf16 %v7718, %v7714
      %v7767 = vpack.c.bf16 %v7719, %v7715
      %v7768 = vpack.c.bf16 %v7720, %v7716
      %v7769 = vpack.c.bf16 %v7725, %v7721
      %v7770 = vpack.c.bf16 %v7726, %v7722
      %v7771 = vpack.c.bf16 %v7727, %v7723
      %v7772 = vpack.c.bf16 %v7728, %v7724
      %v7773 = vpack.c.bf16 %v7733, %v7729
      %v7774 = vpack.c.bf16 %v7734, %v7730
      %v7775 = vpack.c.bf16 %v7735, %v7731
      %v7776 = vpack.c.bf16 %v7736, %v7732
      %v7777 = vpack.c.bf16 %v7741, %v7737
      %v7778 = vpack.c.bf16 %v7742, %v7738
      %v7779 = vpack.c.bf16 %v7743, %v7739
      %v7780 = vpack.c.bf16 %v7744, %v7740
      %v7781 = vpack.c.bf16 %v7749, %v7745
      %v7782 = vpack.c.bf16 %v7750, %v7746
      %v7783 = vpack.c.bf16 %v7751, %v7747
      %v7784 = vpack.c.bf16 %v7752, %v7748
      %v7785 = vld [vmem:[%s14] sm:$0xff]
      %v7786 = vld [vmem:[%s14 + $0x8] sm:$0xff]
      %v7787 = vld [vmem:[%s14 + $0x10] sm:$0xff]
      %v7788 = vld [vmem:[%s14 + $0x18] sm:$0xf]
      %v7789 = vld [vmem:[%s14 + $0x1c] sm:$0xff]
      %v7790 = vld [vmem:[%s14 + $0x24] sm:$0xff]
      %v7791 = vld [vmem:[%s14 + $0x2c] sm:$0xff]
      %v7792 = vld [vmem:[%s14 + $0x34] sm:$0xf]
      %v7793 = vld [vmem:[%s14 + $0x38] sm:$0xff]
      %v7794 = vld [vmem:[%s14 + $0x40] sm:$0xff]
      %v7795 = vld [vmem:[%s14 + $0x48] sm:$0xff]
      %v7796 = vld [vmem:[%s14 + $0x50] sm:$0xf]
      %v7797 = vld [vmem:[%s14 + $0x54] sm:$0xff]
      %v7798 = vld [vmem:[%s14 + $0x5c] sm:$0xff]
      %v7799 = vld [vmem:[%s14 + $0x64] sm:$0xff]
      %v7800 = vld [vmem:[%s14 + $0x6c] sm:$0xf]
      %v7801 = vld [vmem:[%s14 + $0x70] sm:$0xff]
      %v7802 = vld [vmem:[%s14 + $0x78] sm:$0xff]
      %v7803 = vld [vmem:[%s14 + $0x80] sm:$0xff]
      %v7804 = vld [vmem:[%s14 + $0x88] sm:$0xf]
      %v7805 = vld [vmem:[%s14 + $0x8c] sm:$0xff]
      %v7806 = vld [vmem:[%s14 + $0x94] sm:$0xff]
      %v7807 = vld [vmem:[%s14 + $0x9c] sm:$0xff]
      %v7808 = vld [vmem:[%s14 + $0xa4] sm:$0xf]
      %v7809 = vld [vmem:[%s14 + $0xa8] sm:$0xff]
      %v7810 = vld [vmem:[%s14 + $0xb0] sm:$0xff]
      %v7811 = vld [vmem:[%s14 + $0xb8] sm:$0xff]
      %v7812 = vld [vmem:[%s14 + $0xc0] sm:$0xf]
      %v7813 = vld [vmem:[%s14 + $0xc4] sm:$0xff]
      %v7814 = vld [vmem:[%s14 + $0xcc] sm:$0xff]
      %v7815 = vld [vmem:[%s14 + $0xd4] sm:$0xff]
      %v7816 = vld [vmem:[%s14 + $0xdc] sm:$0xf]
      %v7817 = vld [vmem:[%s14 + $0xe0] sm:$0xff]
      %v7818 = vld [vmem:[%s14 + $0xe8] sm:$0xff]
      %v7819 = vld [vmem:[%s14 + $0xf0] sm:$0xff]
      %v7820 = vld [vmem:[%s14 + $0xf8] sm:$0xf]
      %v7821 = vld [vmem:[%s14 + $0xfc] sm:$0xff]
      %v7822 = vld [vmem:[%s14 + $0x104] sm:$0xff]
      %v7823 = vld [vmem:[%s14 + $0x10c] sm:$0xff]
      %v7824 = vld [vmem:[%s14 + $0x114] sm:$0xf]
      %v7825 = vld [vmem:[%s14 + $0x118] sm:$0xff]
      %v7826 = vld [vmem:[%s14 + $0x120] sm:$0xff]
      %v7827 = vld [vmem:[%s14 + $0x128] sm:$0xff]
      %v7828 = vld [vmem:[%s14 + $0x130] sm:$0xf]
      %v7829 = vld [vmem:[%s14 + $0x134] sm:$0xff]
      %v7830 = vld [vmem:[%s14 + $0x13c] sm:$0xff]
      %v7831 = vld [vmem:[%s14 + $0x144] sm:$0xff]
      %v7832 = vld [vmem:[%s14 + $0x14c] sm:$0xf]
      %v7833 = vld [vmem:[%s14 + $0x150] sm:$0xff]
      %v7834 = vld [vmem:[%s14 + $0x158] sm:$0xff]
      %v7835 = vld [vmem:[%s14 + $0x160] sm:$0xff]
      %v7836 = vld [vmem:[%s14 + $0x168] sm:$0xf]
      %v7837 = vld [vmem:[%s14 + $0x16c] sm:$0xff]
      %v7838 = vld [vmem:[%s14 + $0x174] sm:$0xff]
      %v7839 = vld [vmem:[%s14 + $0x17c] sm:$0xff]
      %v7840 = vld [vmem:[%s14 + $0x184] sm:$0xf]
      %v7841 = vld [vmem:[%s14 + $0x188] sm:$0xff]
      %v7842 = vld [vmem:[%s14 + $0x190] sm:$0xff]
      %v7843 = vld [vmem:[%s14 + $0x198] sm:$0xff]
      %v7844 = vld [vmem:[%s14 + $0x1a0] sm:$0xf]
      %v7845 = vld [vmem:[%s14 + $0x1a4] sm:$0xff]
      %v7846 = vld [vmem:[%s14 + $0x1ac] sm:$0xff]
      %v7847 = vld [vmem:[%s14 + $0x1b4] sm:$0xff]
      %v7848 = vld [vmem:[%s14 + $0x1bc] sm:$0xf]
      %v7849 = vld [vmem:[%s14 + $0x1c0] sm:$0xff]
      %v7850 = vld [vmem:[%s14 + $0x1c8] sm:$0xff]
      %v7851 = vld [vmem:[%s14 + $0x1d0] sm:$0xff]
      %v7852 = vld [vmem:[%s14 + $0x1d8] sm:$0xf]
      %v7853 = vld [vmem:[%s14 + $0x1dc] sm:$0xff]
      %v7854 = vld [vmem:[%s14 + $0x1e4] sm:$0xff]
      %v7855 = vld [vmem:[%s14 + $0x1ec] sm:$0xff]
      %v7856 = vld [vmem:[%s14 + $0x1f4] sm:$0xf]
      %v7857 = vld [vmem:[%s14 + $0x1f8] sm:$0xff]
      %v7858 = vld [vmem:[%s14 + $0x200] sm:$0xff]
      %v7859 = vld [vmem:[%s14 + $0x208] sm:$0xff]
      %v7860 = vld [vmem:[%s14 + $0x210] sm:$0xf]
      %v7861 = vld [vmem:[%s14 + $0x214] sm:$0xff]
      %v7862 = vld [vmem:[%s14 + $0x21c] sm:$0xff]
      %v7863 = vld [vmem:[%s14 + $0x224] sm:$0xff]
      %v7864 = vld [vmem:[%s14 + $0x22c] sm:$0xf]
      %v7865 = vld [vmem:[%s14 + $0x230] sm:$0xff]
      %v7866 = vld [vmem:[%s14 + $0x238] sm:$0xff]
      %v7867 = vld [vmem:[%s14 + $0x240] sm:$0xff]
      %v7868 = vld [vmem:[%s14 + $0x248] sm:$0xf]
      %v7869 = vld [vmem:[%s14 + $0x24c] sm:$0xff]
      %v7870 = vld [vmem:[%s14 + $0x254] sm:$0xff]
      %v7871 = vld [vmem:[%s14 + $0x25c] sm:$0xff]
      %v7872 = vld [vmem:[%s14 + $0x264] sm:$0xf]
      %v7873 = vld [vmem:[%s14 + $0x268] sm:$0xff]
      %v7874 = vld [vmem:[%s14 + $0x270] sm:$0xff]
      %v7875 = vld [vmem:[%s14 + $0x278] sm:$0xff]
      %v7876 = vld [vmem:[%s14 + $0x280] sm:$0xf]
      %v7877 = vld [vmem:[%s14 + $0x284] sm:$0xff]
      %v7878 = vld [vmem:[%s14 + $0x28c] sm:$0xff]
      %v7879 = vld [vmem:[%s14 + $0x294] sm:$0xff]
      %v7880 = vld [vmem:[%s14 + $0x29c] sm:$0xf]
      %v7881 = vld [vmem:[%s14 + $0x2a0] sm:$0xff]
      %v7882 = vld [vmem:[%s14 + $0x2a8] sm:$0xff]
      %v7883 = vld [vmem:[%s14 + $0x2b0] sm:$0xff]
      %v7884 = vld [vmem:[%s14 + $0x2b8] sm:$0xf]
      %v7885 = vld [vmem:[%s14 + $0x2bc] sm:$0xff]
      %v7886 = vld [vmem:[%s14 + $0x2c4] sm:$0xff]
      %v7887 = vld [vmem:[%s14 + $0x2cc] sm:$0xff]
      %v7888 = vld [vmem:[%s14 + $0x2d4] sm:$0xf]
      %v7889 = vld [vmem:[%s14 + $0x2d8] sm:$0xff]
      %v7890 = vld [vmem:[%s14 + $0x2e0] sm:$0xff]
      %v7891 = vld [vmem:[%s14 + $0x2e8] sm:$0xff]
      %v7892 = vld [vmem:[%s14 + $0x2f0] sm:$0xf]
      %v7893 = vld [vmem:[%s14 + $0x2f4] sm:$0xff]
      %v7894 = vld [vmem:[%s14 + $0x2fc] sm:$0xff]
      %v7895 = vld [vmem:[%s14 + $0x304] sm:$0xff]
      %v7896 = vld [vmem:[%s14 + $0x30c] sm:$0xf]
      %v7897 = vld [vmem:[%s14 + $0x310] sm:$0xff]
      %v7898 = vld [vmem:[%s14 + $0x318] sm:$0xff]
      %v7899 = vld [vmem:[%s14 + $0x320] sm:$0xff]
      %v7900 = vld [vmem:[%s14 + $0x328] sm:$0xf]
      %v7901 = vld [vmem:[%s14 + $0x32c] sm:$0xff]
      %v7902 = vld [vmem:[%s14 + $0x334] sm:$0xff]
      %v7903 = vld [vmem:[%s14 + $0x33c] sm:$0xff]
      %v7904 = vld [vmem:[%s14 + $0x344] sm:$0xf]
      %v7905 = vld [vmem:[%s14 + $0x348] sm:$0xff]
      %v7906 = vld [vmem:[%s14 + $0x350] sm:$0xff]
      %v7907 = vld [vmem:[%s14 + $0x358] sm:$0xff]
      %v7908 = vld [vmem:[%s14 + $0x360] sm:$0xf]
      %v7909 = vld [vmem:[%s14 + $0x364] sm:$0xff]
      %v7910 = vld [vmem:[%s14 + $0x36c] sm:$0xff]
      %v7911 = vld [vmem:[%s14 + $0x374] sm:$0xff]
      %v7912 = vld [vmem:[%s14 + $0x37c] sm:$0xf]
      %v7913 = vld [vmem:[%s14 + $0x380] sm:$0xff]
      %v7914 = vld [vmem:[%s14 + $0x388] sm:$0xff]
      %v7915 = vld [vmem:[%s14 + $0x390] sm:$0xff]
      %v7916 = vld [vmem:[%s14 + $0x398] sm:$0xf]
      %v7917 = vld [vmem:[%s14 + $0x39c] sm:$0xff]
      %v7918 = vld [vmem:[%s14 + $0x3a4] sm:$0xff]
      %v7919 = vld [vmem:[%s14 + $0x3ac] sm:$0xff]
      %v7920 = vld [vmem:[%s14 + $0x3b4] sm:$0xf]
      %v7921 = vld [vmem:[%s14 + $0x3b8] sm:$0xff]
      %v7922 = vld [vmem:[%s14 + $0x3c0] sm:$0xff]
      %v7923 = vld [vmem:[%s14 + $0x3c8] sm:$0xff]
      %v7924 = vld [vmem:[%s14 + $0x3d0] sm:$0xf]
      %v7925 = vld [vmem:[%s14 + $0x3d4] sm:$0xff]
      %v7926 = vld [vmem:[%s14 + $0x3dc] sm:$0xff]
      %v7927 = vld [vmem:[%s14 + $0x3e4] sm:$0xff]
      %v7928 = vld [vmem:[%s14 + $0x3ec] sm:$0xf]
      %v7929 = vld [vmem:[%s14 + $0x3f0] sm:$0xff]
      %v7930 = vld [vmem:[%s14 + $0x3f8] sm:$0xff]
      %v7931 = vld [vmem:[%s14 + $0x400] sm:$0xff]
      %v7932 = vld [vmem:[%s14 + $0x408] sm:$0xf]
      %v7933 = vld [vmem:[%s14 + $0x40c] sm:$0xff]
      %v7934 = vld [vmem:[%s14 + $0x414] sm:$0xff]
      %v7935 = vld [vmem:[%s14 + $0x41c] sm:$0xff]
      %v7936 = vld [vmem:[%s14 + $0x424] sm:$0xf]
      %v7937 = vld [vmem:[%s14 + $0x428] sm:$0xff]
      %v7938 = vld [vmem:[%s14 + $0x430] sm:$0xff]
      %v7939 = vld [vmem:[%s14 + $0x438] sm:$0xff]
      %v7940 = vld [vmem:[%s14 + $0x440] sm:$0xf]
      %v7941 = vld [vmem:[%s14 + $0x444] sm:$0xff]
      %v7942 = vld [vmem:[%s14 + $0x44c] sm:$0xff]
      %v7943 = vld [vmem:[%s14 + $0x454] sm:$0xff]
      %v7944 = vld [vmem:[%s14 + $0x45c] sm:$0xf]
      %v7945 = vld [vmem:[%s14 + $0x460] sm:$0xff]
      %v7946 = vld [vmem:[%s14 + $0x468] sm:$0xff]
      %v7947 = vld [vmem:[%s14 + $0x470] sm:$0xff]
      %v7948 = vld [vmem:[%s14 + $0x478] sm:$0xf]
      %v7949 = vld [vmem:[%s14 + $0x47c] sm:$0xff]
      %v7950 = vld [vmem:[%s14 + $0x484] sm:$0xff]
      %v7951 = vld [vmem:[%s14 + $0x48c] sm:$0xff]
      %v7952 = vld [vmem:[%s14 + $0x494] sm:$0xf]
      %v7953 = vld [vmem:[%s14 + $0x498] sm:$0xff]
      %v7954 = vld [vmem:[%s14 + $0x4a0] sm:$0xff]
      %v7955 = vld [vmem:[%s14 + $0x4a8] sm:$0xff]
      %v7956 = vld [vmem:[%s14 + $0x4b0] sm:$0xf]
      %v7957 = vld [vmem:[%s14 + $0x4b4] sm:$0xff]
      %v7958 = vld [vmem:[%s14 + $0x4bc] sm:$0xff]
      %v7959 = vld [vmem:[%s14 + $0x4c4] sm:$0xff]
      %v7960 = vld [vmem:[%s14 + $0x4cc] sm:$0xf]
      %v7961 = vld [vmem:[%s14 + $0x4d0] sm:$0xff]
      %v7962 = vld [vmem:[%s14 + $0x4d8] sm:$0xff]
      %v7963 = vld [vmem:[%s14 + $0x4e0] sm:$0xff]
      %v7964 = vld [vmem:[%s14 + $0x4e8] sm:$0xf]
      %v7965 = vld [vmem:[%s14 + $0x4ec] sm:$0xff]
      %v7966 = vld [vmem:[%s14 + $0x4f4] sm:$0xff]
      %v7967 = vld [vmem:[%s14 + $0x4fc] sm:$0xff]
      %v7968 = vld [vmem:[%s14 + $0x504] sm:$0xf]
      %v7969 = vld [vmem:[%s14 + $0x508] sm:$0xff]
      %v7970 = vld [vmem:[%s14 + $0x510] sm:$0xff]
      %v7971 = vld [vmem:[%s14 + $0x518] sm:$0xff]
      %v7972 = vld [vmem:[%s14 + $0x520] sm:$0xf]
      %v7973 = vld [vmem:[%s14 + $0x524] sm:$0xff]
      %v7974 = vld [vmem:[%s14 + $0x52c] sm:$0xff]
      %v7975 = vld [vmem:[%s14 + $0x534] sm:$0xff]
      %v7976 = vld [vmem:[%s14 + $0x53c] sm:$0xf]
      %v7977 = vld [vmem:[%s14 + $0x540] sm:$0xff]
      %v7978 = vld [vmem:[%s14 + $0x548] sm:$0xff]
      %v7979 = vld [vmem:[%s14 + $0x550] sm:$0xff]
      %v7980 = vld [vmem:[%s14 + $0x558] sm:$0xf]
      %v7981 = vld [vmem:[%s14 + $0x55c] sm:$0xff]
      %v7982 = vld [vmem:[%s14 + $0x564] sm:$0xff]
      %v7983 = vld [vmem:[%s14 + $0x56c] sm:$0xff]
      %v7984 = vld [vmem:[%s14 + $0x574] sm:$0xf]
      %v7985 = vld [vmem:[%s14 + $0x578] sm:$0xff]
      %v7986 = vld [vmem:[%s14 + $0x580] sm:$0xff]
      %v7987 = vld [vmem:[%s14 + $0x588] sm:$0xff]
      %v7988 = vld [vmem:[%s14 + $0x590] sm:$0xf]
      %v7989 = vld [vmem:[%s14 + $0x594] sm:$0xff]
      %v7990 = vld [vmem:[%s14 + $0x59c] sm:$0xff]
      %v7991 = vld [vmem:[%s14 + $0x5a4] sm:$0xff]
      %v7992 = vld [vmem:[%s14 + $0x5ac] sm:$0xf]
      %v7993 = vld [vmem:[%s14 + $0x5b0] sm:$0xff]
      %v7994 = vld [vmem:[%s14 + $0x5b8] sm:$0xff]
      %v7995 = vld [vmem:[%s14 + $0x5c0] sm:$0xff]
      %v7996 = vld [vmem:[%s14 + $0x5c8] sm:$0xf]
      %v7997 = vld [vmem:[%s14 + $0x5cc] sm:$0xff]
      %v7998 = vld [vmem:[%s14 + $0x5d4] sm:$0xff]
      %v7999 = vld [vmem:[%s14 + $0x5dc] sm:$0xff]
      %v8000 = vld [vmem:[%s14 + $0x5e4] sm:$0xf]
      %v8001 = vld [vmem:[%s14 + $0x5e8] sm:$0xff]
      %v8002 = vld [vmem:[%s14 + $0x5f0] sm:$0xff]
      %v8003 = vld [vmem:[%s14 + $0x5f8] sm:$0xff]
      %v8004 = vld [vmem:[%s14 + $0x600] sm:$0xf]
      %v8005 = vld [vmem:[%s14 + $0x604] sm:$0xff]
      %v8006 = vld [vmem:[%s14 + $0x60c] sm:$0xff]
      %v8007 = vld [vmem:[%s14 + $0x614] sm:$0xff]
      %v8008 = vld [vmem:[%s14 + $0x61c] sm:$0xf]
      %v8009 = vld [vmem:[%s14 + $0x620] sm:$0xff]
      %v8010 = vld [vmem:[%s14 + $0x628] sm:$0xff]
      %v8011 = vld [vmem:[%s14 + $0x630] sm:$0xff]
      %v8012 = vld [vmem:[%s14 + $0x638] sm:$0xf]
      %v8013 = vld [vmem:[%s14 + $0x63c] sm:$0xff]
      %v8014 = vld [vmem:[%s14 + $0x644] sm:$0xff]
      %v8015 = vld [vmem:[%s14 + $0x64c] sm:$0xff]
      %v8016 = vld [vmem:[%s14 + $0x654] sm:$0xf]
      %v8017 = vld [vmem:[%s14 + $0x658] sm:$0xff]
      %v8018 = vld [vmem:[%s14 + $0x660] sm:$0xff]
      %v8019 = vld [vmem:[%s14 + $0x668] sm:$0xff]
      %v8020 = vld [vmem:[%s14 + $0x670] sm:$0xf]
      %v8021 = vld [vmem:[%s14 + $0x674] sm:$0xff]
      %v8022 = vld [vmem:[%s14 + $0x67c] sm:$0xff]
      %v8023 = vld [vmem:[%s14 + $0x684] sm:$0xff]
      %v8024 = vld [vmem:[%s14 + $0x68c] sm:$0xf]
      %v8025 = vld [vmem:[%s14 + $0x690] sm:$0xff]
      %v8026 = vld [vmem:[%s14 + $0x698] sm:$0xff]
      %v8027 = vld [vmem:[%s14 + $0x6a0] sm:$0xff]
      %v8028 = vld [vmem:[%s14 + $0x6a8] sm:$0xf]
      %v8029 = vld [vmem:[%s14 + $0x6ac] sm:$0xff]
      %v8030 = vld [vmem:[%s14 + $0x6b4] sm:$0xff]
      %v8031 = vld [vmem:[%s14 + $0x6bc] sm:$0xff]
      %v8032 = vld [vmem:[%s14 + $0x6c4] sm:$0xf]
      %v8033 = vld [vmem:[%s14 + $0x6c8] sm:$0xff]
      %v8034 = vld [vmem:[%s14 + $0x6d0] sm:$0xff]
      %v8035 = vld [vmem:[%s14 + $0x6d8] sm:$0xff]
      %v8036 = vld [vmem:[%s14 + $0x6e0] sm:$0xf]
      %v8037 = vld [vmem:[%s14 + $0x6e4] sm:$0xff]
      %v8038 = vld [vmem:[%s14 + $0x6ec] sm:$0xff]
      %v8039 = vld [vmem:[%s14 + $0x6f4] sm:$0xff]
      %v8040 = vld [vmem:[%s14 + $0x6fc] sm:$0xf]
      %v8041 = vld [vmem:[%s15] sm:$0x7f]
      %v8043 = vlaneseq
      %v8044 = vshrl.u32 %v8043, 7
      %v8045 = vsub.s32 0, %v8044
      %v8046 = vrot.slane %v8041, %v8045
      %v8047 = vlaneseq
      %v8048 = vshrl.u32 %v8047, 7
      %v8049 = vsub.s32 1, %v8048
      %v8050 = vrot.slane %v8041, %v8049
      %v8051 = vlaneseq
      %v8052 = vshrl.u32 %v8051, 7
      %v8053 = vsub.s32 2, %v8052
      %v8054 = vrot.slane %v8041, %v8053
      %v8055 = vlaneseq
      %v8056 = vshrl.u32 %v8055, 7
      %v8057 = vsub.s32 3, %v8056
      %v8058 = vrot.slane %v8041, %v8057
      %v8059 = vlaneseq
      %v8060 = vshrl.u32 %v8059, 7
      %v8061 = vsub.s32 4, %v8060
      %v8062 = vrot.slane %v8041, %v8061
      %v8063 = vlaneseq
      %v8064 = vshrl.u32 %v8063, 7
      %v8065 = vsub.s32 5, %v8064
      %v8066 = vrot.slane %v8041, %v8065
      %v8067 = vlaneseq
      %v8068 = vshrl.u32 %v8067, 7
      %v8069 = vsub.s32 6, %v8068
      %v8070 = vrot.slane %v8041, %v8069
      %v8334 = vunpack.c.l.b16 %v7785
      %v8335 = vunpack.c.h.b16 %v7785
      %v8336 = vunpack.c.l.b16 %v7786
      %v8337 = vunpack.c.h.b16 %v7786
      %v8338 = vunpack.c.l.b16 %v7787
      %v8339 = vunpack.c.h.b16 %v7787
      %v8340 = vunpack.c.l.b16 %v7788
      %v8341 = vunpack.c.l.b16 %v7789
      %v8342 = vunpack.c.h.b16 %v7789
      %v8343 = vunpack.c.l.b16 %v7790
      %v8344 = vunpack.c.h.b16 %v7790
      %v8345 = vunpack.c.l.b16 %v7791
      %v8346 = vunpack.c.h.b16 %v7791
      %v8347 = vunpack.c.l.b16 %v7792
      %v8348 = vunpack.c.l.b16 %v7793
      %v8349 = vunpack.c.h.b16 %v7793
      %v8350 = vunpack.c.l.b16 %v7794
      %v8351 = vunpack.c.h.b16 %v7794
      %v8352 = vunpack.c.l.b16 %v7795
      %v8353 = vunpack.c.h.b16 %v7795
      %v8354 = vunpack.c.l.b16 %v7796
      %v8355 = vunpack.c.l.b16 %v7797
      %v8356 = vunpack.c.h.b16 %v7797
      %v8357 = vunpack.c.l.b16 %v7798
      %v8358 = vunpack.c.h.b16 %v7798
      %v8359 = vunpack.c.l.b16 %v7799
      %v8360 = vunpack.c.h.b16 %v7799
      %v8361 = vunpack.c.l.b16 %v7800
      %v8362 = vunpack.c.l.b16 %v7801
      %v8363 = vunpack.c.h.b16 %v7801
      %v8364 = vunpack.c.l.b16 %v7802
      %v8365 = vunpack.c.h.b16 %v7802
      %v8366 = vunpack.c.l.b16 %v7803
      %v8367 = vunpack.c.h.b16 %v7803
      %v8368 = vunpack.c.l.b16 %v7804
      %v8369 = vunpack.c.l.b16 %v7805
      %v8370 = vunpack.c.h.b16 %v7805
      %v8371 = vunpack.c.l.b16 %v7806
      %v8372 = vunpack.c.h.b16 %v7806
      %v8373 = vunpack.c.l.b16 %v7807
      %v8374 = vunpack.c.h.b16 %v7807
      %v8375 = vunpack.c.l.b16 %v7808
      %v8376 = vunpack.c.l.b16 %v7809
      %v8377 = vunpack.c.h.b16 %v7809
      %v8378 = vunpack.c.l.b16 %v7810
      %v8379 = vunpack.c.h.b16 %v7810
      %v8380 = vunpack.c.l.b16 %v7811
      %v8381 = vunpack.c.h.b16 %v7811
      %v8382 = vunpack.c.l.b16 %v7812
      %v8383 = vunpack.c.l.b16 %v7813
      %v8384 = vunpack.c.h.b16 %v7813
      %v8385 = vunpack.c.l.b16 %v7814
      %v8386 = vunpack.c.h.b16 %v7814
      %v8387 = vunpack.c.l.b16 %v7815
      %v8388 = vunpack.c.h.b16 %v7815
      %v8389 = vunpack.c.l.b16 %v7816
      %v8390 = vunpack.c.l.b16 %v7817
      %v8391 = vunpack.c.h.b16 %v7817
      %v8392 = vunpack.c.l.b16 %v7818
      %v8393 = vunpack.c.h.b16 %v7818
      %v8394 = vunpack.c.l.b16 %v7819
      %v8395 = vunpack.c.h.b16 %v7819
      %v8396 = vunpack.c.l.b16 %v7820
      %v8397 = vunpack.c.l.b16 %v7821
      %v8398 = vunpack.c.h.b16 %v7821
      %v8399 = vunpack.c.l.b16 %v7822
      %v8400 = vunpack.c.h.b16 %v7822
      %v8401 = vunpack.c.l.b16 %v7823
      %v8402 = vunpack.c.h.b16 %v7823
      %v8403 = vunpack.c.l.b16 %v7824
      %v8404 = vunpack.c.l.b16 %v7825
      %v8405 = vunpack.c.h.b16 %v7825
      %v8406 = vunpack.c.l.b16 %v7826
      %v8407 = vunpack.c.h.b16 %v7826
      %v8408 = vunpack.c.l.b16 %v7827
      %v8409 = vunpack.c.h.b16 %v7827
      %v8410 = vunpack.c.l.b16 %v7828
      %v8411 = vunpack.c.l.b16 %v7829
      %v8412 = vunpack.c.h.b16 %v7829
      %v8413 = vunpack.c.l.b16 %v7830
      %v8414 = vunpack.c.h.b16 %v7830
      %v8415 = vunpack.c.l.b16 %v7831
      %v8416 = vunpack.c.h.b16 %v7831
      %v8417 = vunpack.c.l.b16 %v7832
      %v8418 = vunpack.c.l.b16 %v7833
      %v8419 = vunpack.c.h.b16 %v7833
      %v8420 = vunpack.c.l.b16 %v7834
      %v8421 = vunpack.c.h.b16 %v7834
      %v8422 = vunpack.c.l.b16 %v7835
      %v8423 = vunpack.c.h.b16 %v7835
      %v8424 = vunpack.c.l.b16 %v7836
      %v8425 = vunpack.c.l.b16 %v7837
      %v8426 = vunpack.c.h.b16 %v7837
      %v8427 = vunpack.c.l.b16 %v7838
      %v8428 = vunpack.c.h.b16 %v7838
      %v8429 = vunpack.c.l.b16 %v7839
      %v8430 = vunpack.c.h.b16 %v7839
      %v8431 = vunpack.c.l.b16 %v7840
      %v8432 = vunpack.c.l.b16 %v7841
      %v8433 = vunpack.c.h.b16 %v7841
      %v8434 = vunpack.c.l.b16 %v7842
      %v8435 = vunpack.c.h.b16 %v7842
      %v8436 = vunpack.c.l.b16 %v7843
      %v8437 = vunpack.c.h.b16 %v7843
      %v8438 = vunpack.c.l.b16 %v7844
      %v8439 = vunpack.c.l.b16 %v7845
      %v8440 = vunpack.c.h.b16 %v7845
      %v8441 = vunpack.c.l.b16 %v7846
      %v8442 = vunpack.c.h.b16 %v7846
      %v8443 = vunpack.c.l.b16 %v7847
      %v8444 = vunpack.c.h.b16 %v7847
      %v8445 = vunpack.c.l.b16 %v7848
      %v8446 = vunpack.c.l.b16 %v7849
      %v8447 = vunpack.c.h.b16 %v7849
      %v8448 = vunpack.c.l.b16 %v7850
      %v8449 = vunpack.c.h.b16 %v7850
      %v8450 = vunpack.c.l.b16 %v7851
      %v8451 = vunpack.c.h.b16 %v7851
      %v8452 = vunpack.c.l.b16 %v7852
      %v8453 = vunpack.c.l.b16 %v7853
      %v8454 = vunpack.c.h.b16 %v7853
      %v8455 = vunpack.c.l.b16 %v7854
      %v8456 = vunpack.c.h.b16 %v7854
      %v8457 = vunpack.c.l.b16 %v7855
      %v8458 = vunpack.c.h.b16 %v7855
      %v8459 = vunpack.c.l.b16 %v7856
      %v8460 = vunpack.c.l.b16 %v7857
      %v8461 = vunpack.c.h.b16 %v7857
      %v8462 = vunpack.c.l.b16 %v7858
      %v8463 = vunpack.c.h.b16 %v7858
      %v8464 = vunpack.c.l.b16 %v7859
      %v8465 = vunpack.c.h.b16 %v7859
      %v8466 = vunpack.c.l.b16 %v7860
      %v8467 = vunpack.c.l.b16 %v7861
      %v8468 = vunpack.c.h.b16 %v7861
      %v8469 = vunpack.c.l.b16 %v7862
      %v8470 = vunpack.c.h.b16 %v7862
      %v8471 = vunpack.c.l.b16 %v7863
      %v8472 = vunpack.c.h.b16 %v7863
      %v8473 = vunpack.c.l.b16 %v7864
      %v8474 = vunpack.c.l.b16 %v7865
      %v8475 = vunpack.c.h.b16 %v7865
      %v8476 = vunpack.c.l.b16 %v7866
      %v8477 = vunpack.c.h.b16 %v7866
      %v8478 = vunpack.c.l.b16 %v7867
      %v8479 = vunpack.c.h.b16 %v7867
      %v8480 = vunpack.c.l.b16 %v7868
      %v8481 = vunpack.c.l.b16 %v7869
      %v8482 = vunpack.c.h.b16 %v7869
      %v8483 = vunpack.c.l.b16 %v7870
      %v8484 = vunpack.c.h.b16 %v7870
      %v8485 = vunpack.c.l.b16 %v7871
      %v8486 = vunpack.c.h.b16 %v7871
      %v8487 = vunpack.c.l.b16 %v7872
      %v8488 = vunpack.c.l.b16 %v7873
      %v8489 = vunpack.c.h.b16 %v7873
      %v8490 = vunpack.c.l.b16 %v7874
      %v8491 = vunpack.c.h.b16 %v7874
      %v8492 = vunpack.c.l.b16 %v7875
      %v8493 = vunpack.c.h.b16 %v7875
      %v8494 = vunpack.c.l.b16 %v7876
      %v8495 = vunpack.c.l.b16 %v7877
      %v8496 = vunpack.c.h.b16 %v7877
      %v8497 = vunpack.c.l.b16 %v7878
      %v8498 = vunpack.c.h.b16 %v7878
      %v8499 = vunpack.c.l.b16 %v7879
      %v8500 = vunpack.c.h.b16 %v7879
      %v8501 = vunpack.c.l.b16 %v7880
      %v8502 = vunpack.c.l.b16 %v7881
      %v8503 = vunpack.c.h.b16 %v7881
      %v8504 = vunpack.c.l.b16 %v7882
      %v8505 = vunpack.c.h.b16 %v7882
      %v8506 = vunpack.c.l.b16 %v7883
      %v8507 = vunpack.c.h.b16 %v7883
      %v8508 = vunpack.c.l.b16 %v7884
      %v8509 = vunpack.c.l.b16 %v7885
      %v8510 = vunpack.c.h.b16 %v7885
      %v8511 = vunpack.c.l.b16 %v7886
      %v8512 = vunpack.c.h.b16 %v7886
      %v8513 = vunpack.c.l.b16 %v7887
      %v8514 = vunpack.c.h.b16 %v7887
      %v8515 = vunpack.c.l.b16 %v7888
      %v8516 = vunpack.c.l.b16 %v7889
      %v8517 = vunpack.c.h.b16 %v7889
      %v8518 = vunpack.c.l.b16 %v7890
      %v8519 = vunpack.c.h.b16 %v7890
      %v8520 = vunpack.c.l.b16 %v7891
      %v8521 = vunpack.c.h.b16 %v7891
      %v8522 = vunpack.c.l.b16 %v7892
      %v8523 = vunpack.c.l.b16 %v7893
      %v8524 = vunpack.c.h.b16 %v7893
      %v8525 = vunpack.c.l.b16 %v7894
      %v8526 = vunpack.c.h.b16 %v7894
      %v8527 = vunpack.c.l.b16 %v7895
      %v8528 = vunpack.c.h.b16 %v7895
      %v8529 = vunpack.c.l.b16 %v7896
      %v8530 = vunpack.c.l.b16 %v7897
      %v8531 = vunpack.c.h.b16 %v7897
      %v8532 = vunpack.c.l.b16 %v7898
      %v8533 = vunpack.c.h.b16 %v7898
      %v8534 = vunpack.c.l.b16 %v7899
      %v8535 = vunpack.c.h.b16 %v7899
      %v8536 = vunpack.c.l.b16 %v7900
      %v8537 = vunpack.c.l.b16 %v7901
      %v8538 = vunpack.c.h.b16 %v7901
      %v8539 = vunpack.c.l.b16 %v7902
      %v8540 = vunpack.c.h.b16 %v7902
      %v8541 = vunpack.c.l.b16 %v7903
      %v8542 = vunpack.c.h.b16 %v7903
      %v8543 = vunpack.c.l.b16 %v7904
      %v8544 = vunpack.c.l.b16 %v7905
      %v8545 = vunpack.c.h.b16 %v7905
      %v8546 = vunpack.c.l.b16 %v7906
      %v8547 = vunpack.c.h.b16 %v7906
      %v8548 = vunpack.c.l.b16 %v7907
      %v8549 = vunpack.c.h.b16 %v7907
      %v8550 = vunpack.c.l.b16 %v7908
      %v8551 = vunpack.c.l.b16 %v7909
      %v8552 = vunpack.c.h.b16 %v7909
      %v8553 = vunpack.c.l.b16 %v7910
      %v8554 = vunpack.c.h.b16 %v7910
      %v8555 = vunpack.c.l.b16 %v7911
      %v8556 = vunpack.c.h.b16 %v7911
      %v8557 = vunpack.c.l.b16 %v7912
      %v8558 = vunpack.c.l.b16 %v7913
      %v8559 = vunpack.c.h.b16 %v7913
      %v8560 = vunpack.c.l.b16 %v7914
      %v8561 = vunpack.c.h.b16 %v7914
      %v8562 = vunpack.c.l.b16 %v7915
      %v8563 = vunpack.c.h.b16 %v7915
      %v8564 = vunpack.c.l.b16 %v7916
      %v8565 = vunpack.c.l.b16 %v7917
      %v8566 = vunpack.c.h.b16 %v7917
      %v8567 = vunpack.c.l.b16 %v7918
      %v8568 = vunpack.c.h.b16 %v7918
      %v8569 = vunpack.c.l.b16 %v7919
      %v8570 = vunpack.c.h.b16 %v7919
      %v8571 = vunpack.c.l.b16 %v7920
      %v8572 = vunpack.c.l.b16 %v7921
      %v8573 = vunpack.c.h.b16 %v7921
      %v8574 = vunpack.c.l.b16 %v7922
      %v8575 = vunpack.c.h.b16 %v7922
      %v8576 = vunpack.c.l.b16 %v7923
      %v8577 = vunpack.c.h.b16 %v7923
      %v8578 = vunpack.c.l.b16 %v7924
      %v8579 = vunpack.c.l.b16 %v7925
      %v8580 = vunpack.c.h.b16 %v7925
      %v8581 = vunpack.c.l.b16 %v7926
      %v8582 = vunpack.c.h.b16 %v7926
      %v8583 = vunpack.c.l.b16 %v7927
      %v8584 = vunpack.c.h.b16 %v7927
      %v8585 = vunpack.c.l.b16 %v7928
      %v8586 = vunpack.c.l.b16 %v7929
      %v8587 = vunpack.c.h.b16 %v7929
      %v8588 = vunpack.c.l.b16 %v7930
      %v8589 = vunpack.c.h.b16 %v7930
      %v8590 = vunpack.c.l.b16 %v7931
      %v8591 = vunpack.c.h.b16 %v7931
      %v8592 = vunpack.c.l.b16 %v7932
      %v8593 = vunpack.c.l.b16 %v7933
      %v8594 = vunpack.c.h.b16 %v7933
      %v8595 = vunpack.c.l.b16 %v7934
      %v8596 = vunpack.c.h.b16 %v7934
      %v8597 = vunpack.c.l.b16 %v7935
      %v8598 = vunpack.c.h.b16 %v7935
      %v8599 = vunpack.c.l.b16 %v7936
      %v8600 = vunpack.c.l.b16 %v7937
      %v8601 = vunpack.c.h.b16 %v7937
      %v8602 = vunpack.c.l.b16 %v7938
      %v8603 = vunpack.c.h.b16 %v7938
      %v8604 = vunpack.c.l.b16 %v7939
      %v8605 = vunpack.c.h.b16 %v7939
      %v8606 = vunpack.c.l.b16 %v7940
      %v8607 = vunpack.c.l.b16 %v7941
      %v8608 = vunpack.c.h.b16 %v7941
      %v8609 = vunpack.c.l.b16 %v7942
      %v8610 = vunpack.c.h.b16 %v7942
      %v8611 = vunpack.c.l.b16 %v7943
      %v8612 = vunpack.c.h.b16 %v7943
      %v8613 = vunpack.c.l.b16 %v7944
      %v8614 = vunpack.c.l.b16 %v7945
      %v8615 = vunpack.c.h.b16 %v7945
      %v8616 = vunpack.c.l.b16 %v7946
      %v8617 = vunpack.c.h.b16 %v7946
      %v8618 = vunpack.c.l.b16 %v7947
      %v8619 = vunpack.c.h.b16 %v7947
      %v8620 = vunpack.c.l.b16 %v7948
      %v8621 = vunpack.c.l.b16 %v7949
      %v8622 = vunpack.c.h.b16 %v7949
      %v8623 = vunpack.c.l.b16 %v7950
      %v8624 = vunpack.c.h.b16 %v7950
      %v8625 = vunpack.c.l.b16 %v7951
      %v8626 = vunpack.c.h.b16 %v7951
      %v8627 = vunpack.c.l.b16 %v7952
      %v8628 = vunpack.c.l.b16 %v7953
      %v8629 = vunpack.c.h.b16 %v7953
      %v8630 = vunpack.c.l.b16 %v7954
      %v8631 = vunpack.c.h.b16 %v7954
      %v8632 = vunpack.c.l.b16 %v7955
      %v8633 = vunpack.c.h.b16 %v7955
      %v8634 = vunpack.c.l.b16 %v7956
      %v8635 = vunpack.c.l.b16 %v7957
      %v8636 = vunpack.c.h.b16 %v7957
      %v8637 = vunpack.c.l.b16 %v7958
      %v8638 = vunpack.c.h.b16 %v7958
      %v8639 = vunpack.c.l.b16 %v7959
      %v8640 = vunpack.c.h.b16 %v7959
      %v8641 = vunpack.c.l.b16 %v7960
      %v8642 = vunpack.c.l.b16 %v7961
      %v8643 = vunpack.c.h.b16 %v7961
      %v8644 = vunpack.c.l.b16 %v7962
      %v8645 = vunpack.c.h.b16 %v7962
      %v8646 = vunpack.c.l.b16 %v7963
      %v8647 = vunpack.c.h.b16 %v7963
      %v8648 = vunpack.c.l.b16 %v7964
      %v8649 = vunpack.c.l.b16 %v7965
      %v8650 = vunpack.c.h.b16 %v7965
      %v8651 = vunpack.c.l.b16 %v7966
      %v8652 = vunpack.c.h.b16 %v7966
      %v8653 = vunpack.c.l.b16 %v7967
      %v8654 = vunpack.c.h.b16 %v7967
      %v8655 = vunpack.c.l.b16 %v7968
      %v8656 = vunpack.c.l.b16 %v7969
      %v8657 = vunpack.c.h.b16 %v7969
      %v8658 = vunpack.c.l.b16 %v7970
      %v8659 = vunpack.c.h.b16 %v7970
      %v8660 = vunpack.c.l.b16 %v7971
      %v8661 = vunpack.c.h.b16 %v7971
      %v8662 = vunpack.c.l.b16 %v7972
      %v8663 = vunpack.c.l.b16 %v7973
      %v8664 = vunpack.c.h.b16 %v7973
      %v8665 = vunpack.c.l.b16 %v7974
      %v8666 = vunpack.c.h.b16 %v7974
      %v8667 = vunpack.c.l.b16 %v7975
      %v8668 = vunpack.c.h.b16 %v7975
      %v8669 = vunpack.c.l.b16 %v7976
      %v8670 = vunpack.c.l.b16 %v7977
      %v8671 = vunpack.c.h.b16 %v7977
      %v8672 = vunpack.c.l.b16 %v7978
      %v8673 = vunpack.c.h.b16 %v7978
      %v8674 = vunpack.c.l.b16 %v7979
      %v8675 = vunpack.c.h.b16 %v7979
      %v8676 = vunpack.c.l.b16 %v7980
      %v8677 = vunpack.c.l.b16 %v7981
      %v8678 = vunpack.c.h.b16 %v7981
      %v8679 = vunpack.c.l.b16 %v7982
      %v8680 = vunpack.c.h.b16 %v7982
      %v8681 = vunpack.c.l.b16 %v7983
      %v8682 = vunpack.c.h.b16 %v7983
      %v8683 = vunpack.c.l.b16 %v7984
      %v8684 = vunpack.c.l.b16 %v7985
      %v8685 = vunpack.c.h.b16 %v7985
      %v8686 = vunpack.c.l.b16 %v7986
      %v8687 = vunpack.c.h.b16 %v7986
      %v8688 = vunpack.c.l.b16 %v7987
      %v8689 = vunpack.c.h.b16 %v7987
      %v8690 = vunpack.c.l.b16 %v7988
      %v8691 = vunpack.c.l.b16 %v7989
      %v8692 = vunpack.c.h.b16 %v7989
      %v8693 = vunpack.c.l.b16 %v7990
      %v8694 = vunpack.c.h.b16 %v7990
      %v8695 = vunpack.c.l.b16 %v7991
      %v8696 = vunpack.c.h.b16 %v7991
      %v8697 = vunpack.c.l.b16 %v7992
      %v8698 = vunpack.c.l.b16 %v7993
      %v8699 = vunpack.c.h.b16 %v7993
      %v8700 = vunpack.c.l.b16 %v7994
      %v8701 = vunpack.c.h.b16 %v7994
      %v8702 = vunpack.c.l.b16 %v7995
      %v8703 = vunpack.c.h.b16 %v7995
      %v8704 = vunpack.c.l.b16 %v7996
      %v8705 = vunpack.c.l.b16 %v7997
      %v8706 = vunpack.c.h.b16 %v7997
      %v8707 = vunpack.c.l.b16 %v7998
      %v8708 = vunpack.c.h.b16 %v7998
      %v8709 = vunpack.c.l.b16 %v7999
      %v8710 = vunpack.c.h.b16 %v7999
      %v8711 = vunpack.c.l.b16 %v8000
      %v8712 = vunpack.c.l.b16 %v8001
      %v8713 = vunpack.c.h.b16 %v8001
      %v8714 = vunpack.c.l.b16 %v8002
      %v8715 = vunpack.c.h.b16 %v8002
      %v8716 = vunpack.c.l.b16 %v8003
      %v8717 = vunpack.c.h.b16 %v8003
      %v8718 = vunpack.c.l.b16 %v8004
      %v8719 = vunpack.c.l.b16 %v8005
      %v8720 = vunpack.c.h.b16 %v8005
      %v8721 = vunpack.c.l.b16 %v8006
      %v8722 = vunpack.c.h.b16 %v8006
      %v8723 = vunpack.c.l.b16 %v8007
      %v8724 = vunpack.c.h.b16 %v8007
      %v8725 = vunpack.c.l.b16 %v8008
      %v8726 = vunpack.c.l.b16 %v8009
      %v8727 = vunpack.c.h.b16 %v8009
      %v8728 = vunpack.c.l.b16 %v8010
      %v8729 = vunpack.c.h.b16 %v8010
      %v8730 = vunpack.c.l.b16 %v8011
      %v8731 = vunpack.c.h.b16 %v8011
      %v8732 = vunpack.c.l.b16 %v8012
      %v8733 = vunpack.c.l.b16 %v8013
      %v8734 = vunpack.c.h.b16 %v8013
      %v8735 = vunpack.c.l.b16 %v8014
      %v8736 = vunpack.c.h.b16 %v8014
      %v8737 = vunpack.c.l.b16 %v8015
      %v8738 = vunpack.c.h.b16 %v8015
      %v8739 = vunpack.c.l.b16 %v8016
      %v8740 = vunpack.c.l.b16 %v8017
      %v8741 = vunpack.c.h.b16 %v8017
      %v8742 = vunpack.c.l.b16 %v8018
      %v8743 = vunpack.c.h.b16 %v8018
      %v8744 = vunpack.c.l.b16 %v8019
      %v8745 = vunpack.c.h.b16 %v8019
      %v8746 = vunpack.c.l.b16 %v8020
      %v8747 = vunpack.c.l.b16 %v8021
      %v8748 = vunpack.c.h.b16 %v8021
      %v8749 = vunpack.c.l.b16 %v8022
      %v8750 = vunpack.c.h.b16 %v8022
      %v8751 = vunpack.c.l.b16 %v8023
      %v8752 = vunpack.c.h.b16 %v8023
      %v8753 = vunpack.c.l.b16 %v8024
      %v8754 = vunpack.c.l.b16 %v8025
      %v8755 = vunpack.c.h.b16 %v8025
      %v8756 = vunpack.c.l.b16 %v8026
      %v8757 = vunpack.c.h.b16 %v8026
      %v8758 = vunpack.c.l.b16 %v8027
      %v8759 = vunpack.c.h.b16 %v8027
      %v8760 = vunpack.c.l.b16 %v8028
      %v8761 = vunpack.c.l.b16 %v8029
      %v8762 = vunpack.c.h.b16 %v8029
      %v8763 = vunpack.c.l.b16 %v8030
      %v8764 = vunpack.c.h.b16 %v8030
      %v8765 = vunpack.c.l.b16 %v8031
      %v8766 = vunpack.c.h.b16 %v8031
      %v8767 = vunpack.c.l.b16 %v8032
      %v8768 = vunpack.c.l.b16 %v8033
      %v8769 = vunpack.c.h.b16 %v8033
      %v8770 = vunpack.c.l.b16 %v8034
      %v8771 = vunpack.c.h.b16 %v8034
      %v8772 = vunpack.c.l.b16 %v8035
      %v8773 = vunpack.c.h.b16 %v8035
      %v8774 = vunpack.c.l.b16 %v8036
      %v8775 = vunpack.c.l.b16 %v8037
      %v8776 = vunpack.c.h.b16 %v8037
      %v8777 = vunpack.c.l.b16 %v8038
      %v8778 = vunpack.c.h.b16 %v8038
      %v8779 = vunpack.c.l.b16 %v8039
      %v8780 = vunpack.c.h.b16 %v8039
      %v8781 = vunpack.c.l.b16 %v8040
      %v8782 = vpack.c.b16 %v8341, %v8334
      %v8783 = vpack.c.b16 %v8342, %v8335
      %v8784 = vpack.c.b16 %v8343, %v8336
      %v8785 = vpack.c.b16 %v8344, %v8337
      %v8786 = vpack.c.b16 %v8345, %v8338
      %v8787 = vpack.c.b16 %v8346, %v8339
      %v8788 = vpack.c.b16 %v8347, %v8340
      %v8789 = vpack.c.b16 %v8355, %v8348
      %v8790 = vpack.c.b16 %v8356, %v8349
      %v8791 = vpack.c.b16 %v8357, %v8350
      %v8792 = vpack.c.b16 %v8358, %v8351
      %v8793 = vpack.c.b16 %v8359, %v8352
      %v8794 = vpack.c.b16 %v8360, %v8353
      %v8795 = vpack.c.b16 %v8361, %v8354
      %v8796 = vpack.c.b16 %v8369, %v8362
      %v8797 = vpack.c.b16 %v8370, %v8363
      %v8798 = vpack.c.b16 %v8371, %v8364
      %v8799 = vpack.c.b16 %v8372, %v8365
      %v8800 = vpack.c.b16 %v8373, %v8366
      %v8801 = vpack.c.b16 %v8374, %v8367
      %v8802 = vpack.c.b16 %v8375, %v8368
      %v8803 = vpack.c.b16 %v8383, %v8376
      %v8804 = vpack.c.b16 %v8384, %v8377
      %v8805 = vpack.c.b16 %v8385, %v8378
      %v8806 = vpack.c.b16 %v8386, %v8379
      %v8807 = vpack.c.b16 %v8387, %v8380
      %v8808 = vpack.c.b16 %v8388, %v8381
      %v8809 = vpack.c.b16 %v8389, %v8382
      %v8810 = vpack.c.b16 %v8397, %v8390
      %v8811 = vpack.c.b16 %v8398, %v8391
      %v8812 = vpack.c.b16 %v8399, %v8392
      %v8813 = vpack.c.b16 %v8400, %v8393
      %v8814 = vpack.c.b16 %v8401, %v8394
      %v8815 = vpack.c.b16 %v8402, %v8395
      %v8816 = vpack.c.b16 %v8403, %v8396
      %v8817 = vpack.c.b16 %v8411, %v8404
      %v8818 = vpack.c.b16 %v8412, %v8405
      %v8819 = vpack.c.b16 %v8413, %v8406
      %v8820 = vpack.c.b16 %v8414, %v8407
      %v8821 = vpack.c.b16 %v8415, %v8408
      %v8822 = vpack.c.b16 %v8416, %v8409
      %v8823 = vpack.c.b16 %v8417, %v8410
      %v8824 = vpack.c.b16 %v8425, %v8418
      %v8825 = vpack.c.b16 %v8426, %v8419
      %v8826 = vpack.c.b16 %v8427, %v8420
      %v8827 = vpack.c.b16 %v8428, %v8421
      %v8828 = vpack.c.b16 %v8429, %v8422
      %v8829 = vpack.c.b16 %v8430, %v8423
      %v8830 = vpack.c.b16 %v8431, %v8424
      %v8831 = vpack.c.b16 %v8439, %v8432
      %v8832 = vpack.c.b16 %v8440, %v8433
      %v8833 = vpack.c.b16 %v8441, %v8434
      %v8834 = vpack.c.b16 %v8442, %v8435
      %v8835 = vpack.c.b16 %v8443, %v8436
      %v8836 = vpack.c.b16 %v8444, %v8437
      %v8837 = vpack.c.b16 %v8445, %v8438
      %v8838 = vpack.c.b16 %v8453, %v8446
      %v8839 = vpack.c.b16 %v8454, %v8447
      %v8840 = vpack.c.b16 %v8455, %v8448
      %v8841 = vpack.c.b16 %v8456, %v8449
      %v8842 = vpack.c.b16 %v8457, %v8450
      %v8843 = vpack.c.b16 %v8458, %v8451
      %v8844 = vpack.c.b16 %v8459, %v8452
      %v8845 = vpack.c.b16 %v8467, %v8460
      %v8846 = vpack.c.b16 %v8468, %v8461
      %v8847 = vpack.c.b16 %v8469, %v8462
      %v8848 = vpack.c.b16 %v8470, %v8463
      %v8849 = vpack.c.b16 %v8471, %v8464
      %v8850 = vpack.c.b16 %v8472, %v8465
      %v8851 = vpack.c.b16 %v8473, %v8466
      %v8852 = vpack.c.b16 %v8481, %v8474
      %v8853 = vpack.c.b16 %v8482, %v8475
      %v8854 = vpack.c.b16 %v8483, %v8476
      %v8855 = vpack.c.b16 %v8484, %v8477
      %v8856 = vpack.c.b16 %v8485, %v8478
      %v8857 = vpack.c.b16 %v8486, %v8479
      %v8858 = vpack.c.b16 %v8487, %v8480
      %v8859 = vpack.c.b16 %v8495, %v8488
      %v8860 = vpack.c.b16 %v8496, %v8489
      %v8861 = vpack.c.b16 %v8497, %v8490
      %v8862 = vpack.c.b16 %v8498, %v8491
      %v8863 = vpack.c.b16 %v8499, %v8492
      %v8864 = vpack.c.b16 %v8500, %v8493
      %v8865 = vpack.c.b16 %v8501, %v8494
      %v8866 = vpack.c.b16 %v8509, %v8502
      %v8867 = vpack.c.b16 %v8510, %v8503
      %v8868 = vpack.c.b16 %v8511, %v8504
      %v8869 = vpack.c.b16 %v8512, %v8505
      %v8870 = vpack.c.b16 %v8513, %v8506
      %v8871 = vpack.c.b16 %v8514, %v8507
      %v8872 = vpack.c.b16 %v8515, %v8508
      %v8873 = vpack.c.b16 %v8523, %v8516
      %v8874 = vpack.c.b16 %v8524, %v8517
      %v8875 = vpack.c.b16 %v8525, %v8518
      %v8876 = vpack.c.b16 %v8526, %v8519
      %v8877 = vpack.c.b16 %v8527, %v8520
      %v8878 = vpack.c.b16 %v8528, %v8521
      %v8879 = vpack.c.b16 %v8529, %v8522
      %v8880 = vpack.c.b16 %v8537, %v8530
      %v8881 = vpack.c.b16 %v8538, %v8531
      %v8882 = vpack.c.b16 %v8539, %v8532
      %v8883 = vpack.c.b16 %v8540, %v8533
      %v8884 = vpack.c.b16 %v8541, %v8534
      %v8885 = vpack.c.b16 %v8542, %v8535
      %v8886 = vpack.c.b16 %v8543, %v8536
      %v8887 = vpack.c.b16 %v8551, %v8544
      %v8888 = vpack.c.b16 %v8552, %v8545
      %v8889 = vpack.c.b16 %v8553, %v8546
      %v8890 = vpack.c.b16 %v8554, %v8547
      %v8891 = vpack.c.b16 %v8555, %v8548
      %v8892 = vpack.c.b16 %v8556, %v8549
      %v8893 = vpack.c.b16 %v8557, %v8550
      %v8894 = vpack.c.b16 %v8565, %v8558
      %v8895 = vpack.c.b16 %v8566, %v8559
      %v8896 = vpack.c.b16 %v8567, %v8560
      %v8897 = vpack.c.b16 %v8568, %v8561
      %v8898 = vpack.c.b16 %v8569, %v8562
      %v8899 = vpack.c.b16 %v8570, %v8563
      %v8900 = vpack.c.b16 %v8571, %v8564
      %v8901 = vpack.c.b16 %v8579, %v8572
      %v8902 = vpack.c.b16 %v8580, %v8573
      %v8903 = vpack.c.b16 %v8581, %v8574
      %v8904 = vpack.c.b16 %v8582, %v8575
      %v8905 = vpack.c.b16 %v8583, %v8576
      %v8906 = vpack.c.b16 %v8584, %v8577
      %v8907 = vpack.c.b16 %v8585, %v8578
      %v8908 = vpack.c.b16 %v8593, %v8586
      %v8909 = vpack.c.b16 %v8594, %v8587
      %v8910 = vpack.c.b16 %v8595, %v8588
      %v8911 = vpack.c.b16 %v8596, %v8589
      %v8912 = vpack.c.b16 %v8597, %v8590
      %v8913 = vpack.c.b16 %v8598, %v8591
      %v8914 = vpack.c.b16 %v8599, %v8592
      %v8915 = vpack.c.b16 %v8607, %v8600
      %v8916 = vpack.c.b16 %v8608, %v8601
      %v8917 = vpack.c.b16 %v8609, %v8602
      %v8918 = vpack.c.b16 %v8610, %v8603
      %v8919 = vpack.c.b16 %v8611, %v8604
      %v8920 = vpack.c.b16 %v8612, %v8605
      %v8921 = vpack.c.b16 %v8613, %v8606
      %v8922 = vpack.c.b16 %v8621, %v8614
      %v8923 = vpack.c.b16 %v8622, %v8615
      %v8924 = vpack.c.b16 %v8623, %v8616
      %v8925 = vpack.c.b16 %v8624, %v8617
      %v8926 = vpack.c.b16 %v8625, %v8618
      %v8927 = vpack.c.b16 %v8626, %v8619
      %v8928 = vpack.c.b16 %v8627, %v8620
      %v8929 = vpack.c.b16 %v8635, %v8628
      %v8930 = vpack.c.b16 %v8636, %v8629
      %v8931 = vpack.c.b16 %v8637, %v8630
      %v8932 = vpack.c.b16 %v8638, %v8631
      %v8933 = vpack.c.b16 %v8639, %v8632
      %v8934 = vpack.c.b16 %v8640, %v8633
      %v8935 = vpack.c.b16 %v8641, %v8634
      %v8936 = vpack.c.b16 %v8649, %v8642
      %v8937 = vpack.c.b16 %v8650, %v8643
      %v8938 = vpack.c.b16 %v8651, %v8644
      %v8939 = vpack.c.b16 %v8652, %v8645
      %v8940 = vpack.c.b16 %v8653, %v8646
      %v8941 = vpack.c.b16 %v8654, %v8647
      %v8942 = vpack.c.b16 %v8655, %v8648
      %v8943 = vpack.c.b16 %v8663, %v8656
      %v8944 = vpack.c.b16 %v8664, %v8657
      %v8945 = vpack.c.b16 %v8665, %v8658
      %v8946 = vpack.c.b16 %v8666, %v8659
      %v8947 = vpack.c.b16 %v8667, %v8660
      %v8948 = vpack.c.b16 %v8668, %v8661
      %v8949 = vpack.c.b16 %v8669, %v8662
      %v8950 = vpack.c.b16 %v8677, %v8670
      %v8951 = vpack.c.b16 %v8678, %v8671
      %v8952 = vpack.c.b16 %v8679, %v8672
      %v8953 = vpack.c.b16 %v8680, %v8673
      %v8954 = vpack.c.b16 %v8681, %v8674
      %v8955 = vpack.c.b16 %v8682, %v8675
      %v8956 = vpack.c.b16 %v8683, %v8676
      %v8957 = vpack.c.b16 %v8691, %v8684
      %v8958 = vpack.c.b16 %v8692, %v8685
      %v8959 = vpack.c.b16 %v8693, %v8686
      %v8960 = vpack.c.b16 %v8694, %v8687
      %v8961 = vpack.c.b16 %v8695, %v8688
      %v8962 = vpack.c.b16 %v8696, %v8689
      %v8963 = vpack.c.b16 %v8697, %v8690
      %v8964 = vpack.c.b16 %v8705, %v8698
      %v8965 = vpack.c.b16 %v8706, %v8699
      %v8966 = vpack.c.b16 %v8707, %v8700
      %v8967 = vpack.c.b16 %v8708, %v8701
      %v8968 = vpack.c.b16 %v8709, %v8702
      %v8969 = vpack.c.b16 %v8710, %v8703
      %v8970 = vpack.c.b16 %v8711, %v8704
      %v8971 = vpack.c.b16 %v8719, %v8712
      %v8972 = vpack.c.b16 %v8720, %v8713
      %v8973 = vpack.c.b16 %v8721, %v8714
      %v8974 = vpack.c.b16 %v8722, %v8715
      %v8975 = vpack.c.b16 %v8723, %v8716
      %v8976 = vpack.c.b16 %v8724, %v8717
      %v8977 = vpack.c.b16 %v8725, %v8718
      %v8978 = vpack.c.b16 %v8733, %v8726
      %v8979 = vpack.c.b16 %v8734, %v8727
      %v8980 = vpack.c.b16 %v8735, %v8728
      %v8981 = vpack.c.b16 %v8736, %v8729
      %v8982 = vpack.c.b16 %v8737, %v8730
      %v8983 = vpack.c.b16 %v8738, %v8731
      %v8984 = vpack.c.b16 %v8739, %v8732
      %v8985 = vpack.c.b16 %v8747, %v8740
      %v8986 = vpack.c.b16 %v8748, %v8741
      %v8987 = vpack.c.b16 %v8749, %v8742
      %v8988 = vpack.c.b16 %v8750, %v8743
      %v8989 = vpack.c.b16 %v8751, %v8744
      %v8990 = vpack.c.b16 %v8752, %v8745
      %v8991 = vpack.c.b16 %v8753, %v8746
      %v8992 = vpack.c.b16 %v8761, %v8754
      %v8993 = vpack.c.b16 %v8762, %v8755
      %v8994 = vpack.c.b16 %v8763, %v8756
      %v8995 = vpack.c.b16 %v8764, %v8757
      %v8996 = vpack.c.b16 %v8765, %v8758
      %v8997 = vpack.c.b16 %v8766, %v8759
      %v8998 = vpack.c.b16 %v8767, %v8760
      %v8999 = vpack.c.b16 %v8775, %v8768
      %v9000 = vpack.c.b16 %v8776, %v8769
      %v9001 = vpack.c.b16 %v8777, %v8770
      %v9002 = vpack.c.b16 %v8778, %v8771
      %v9003 = vpack.c.b16 %v8779, %v8772
      %v9004 = vpack.c.b16 %v8780, %v8773
      %v9005 = vpack.c.b16 %v8781, %v8774
      %9230 = vmatprep.subr.bf16.mxu0 %v8783
      %9231 = vmatpush1.bf16.msra.mxu0 %v8782
      %9232 = vmatprep.subr.bf16.mxu0 %v8790
      %9233 = vmatpush1.bf16.msra.mxu0 %v8789
      %9234 = vmatprep.subr.bf16.mxu0 %v8797
      %9235 = vmatpush1.bf16.msra.mxu0 %v8796
      %9236 = vmatprep.subr.bf16.mxu0 %v8804
      %9237 = vmatpush1.bf16.msra.mxu0 %v8803
      %9238 = vmatprep.subr.bf16.mxu0 %v8811
      %9239 = vmatpush1.bf16.msra.mxu0 %v8810
      %9240 = vmatprep.subr.bf16.mxu0 %v8818
      %9241 = vmatpush1.bf16.msra.mxu0 %v8817
      %9242 = vmatprep.subr.bf16.mxu0 %v8825
      %9243 = vmatpush1.bf16.msra.mxu0 %v8824
      %9244 = vmatprep.subr.bf16.mxu0 %v8832
      %9245 = vmatpush1.bf16.msra.mxu0 %v8831
      %9246 = vmatprep.subr.bf16.mxu0 %v8839
      %9247 = vmatpush1.bf16.msra.mxu0 %v8838
      %9248 = vmatprep.subr.bf16.mxu0 %v8846
      %9249 = vmatpush1.bf16.msra.mxu0 %v8845
      %9250 = vmatprep.subr.bf16.mxu0 %v8853
      %9251 = vmatpush1.bf16.msra.mxu0 %v8852
      %9252 = vmatprep.subr.bf16.mxu0 %v8860
      %9253 = vmatpush1.bf16.msra.mxu0 %v8859
      %9254 = vmatprep.subr.bf16.mxu0 %v8867
      %9255 = vmatpush1.bf16.msra.mxu0 %v8866
      %9256 = vmatprep.subr.bf16.mxu0 %v8874
      %9257 = vmatpush1.bf16.msra.mxu0 %v8873
      %9258 = vmatprep.subr.bf16.mxu0 %v8881
      %9259 = vmatpush1.bf16.msra.mxu0 %v8880
      %9260 = vmatprep.subr.bf16.mxu0 %v8888
      %9261 = vmatpush1.bf16.msra.mxu0 %v8887
      %9262 = vmatprep.mubr.bf16.mxu0 %v7754
      %9263 = vmatmul.mubr.bf16.gmra.mrb[0].mxu0 %v7753
      %v9264 = vpop.f32.mrb[0].mxu0
      %v9265 = vadd.f32 %v8046, %v9264
      %v9266 = vpop.f32.mrb[0].mxu0
      %v9267 = vadd.f32 %v8050, %v9266
      %v9268 = vpop.f32.mrb[0].mxu0
      %v9269 = vadd.f32 %v8046, %v9268
      %v9270 = vpop.f32.mrb[0].mxu0
      %v9271 = vadd.f32 %v8050, %v9270
      %9272 = vmatprep.mubr.bf16.mxu0 %v7758
      %9273 = vmatmul.mubr.bf16.gmra.mrb[0].mxu0 %v7757
      %v9274 = vpop.f32.mrb[0].mxu0
      %v9275 = vadd.f32 %v8046, %v9274
      %v9276 = vpop.f32.mrb[0].mxu0
      %v9277 = vadd.f32 %v8050, %v9276
      %v9278 = vpop.f32.mrb[0].mxu0
      %v9279 = vadd.f32 %v8046, %v9278
      %v9280 = vpop.f32.mrb[0].mxu0
      %v9281 = vadd.f32 %v8050, %v9280
      %9282 = vmatprep.mubr.bf16.mxu0 %v7762
      %9283 = vmatmul.mubr.bf16.gmra.mrb[0].mxu0 %v7761
      %v9284 = vpop.f32.mrb[0].mxu0
      %v9285 = vadd.f32 %v8046, %v9284
      %v9286 = vpop.f32.mrb[0].mxu0
      %v9287 = vadd.f32 %v8050, %v9286
      %v9288 = vpop.f32.mrb[0].mxu0
      %v9289 = vadd.f32 %v8046, %v9288
      %v9290 = vpop.f32.mrb[0].mxu0
      %v9291 = vadd.f32 %v8050, %v9290
      %9292 = vmatprep.mubr.bf16.mxu0 %v7766
      %9293 = vmatmul.mubr.bf16.gmra.mrb[0].mxu0 %v7765
      %v9294 = vpop.f32.mrb[0].mxu0
      %v9295 = vadd.f32 %v8046, %v9294
      %v9296 = vpop.f32.mrb[0].mxu0
      %v9297 = vadd.f32 %v8050, %v9296
      %v9298 = vpop.f32.mrb[0].mxu0
      %v9299 = vadd.f32 %v8046, %v9298
      %v9300 = vpop.f32.mrb[0].mxu0
      %v9301 = vadd.f32 %v8050, %v9300
      %9302 = vmatprep.mubr.bf16.mxu0 %v7770
      %9303 = vmatmul.mubr.bf16.gmra.mrb[0].mxu0 %v7769
      %v9304 = vpop.f32.mrb[0].mxu0
      %v9305 = vadd.f32 %v8046, %v9304
      %v9306 = vpop.f32.mrb[0].mxu0
      %v9307 = vadd.f32 %v8050, %v9306
      %v9308 = vpop.f32.mrb[0].mxu0
      %v9309 = vadd.f32 %v8046, %v9308
      %v9310 = vpop.f32.mrb[0].mxu0
      %v9311 = vadd.f32 %v8050, %v9310
      %9312 = vmatprep.mubr.bf16.mxu0 %v7774
      %9313 = vmatmul.mubr.bf16.gmra.mrb[0].mxu0 %v7773
      %v9314 = vpop.f32.mrb[0].mxu0
      %v9315 = vadd.f32 %v8046, %v9314
      %v9316 = vpop.f32.mrb[0].mxu0
      %v9317 = vadd.f32 %v8050, %v9316
      %v9318 = vpop.f32.mrb[0].mxu0
      %v9319 = vadd.f32 %v8046, %v9318
      %v9320 = vpop.f32.mrb[0].mxu0
      %v9321 = vadd.f32 %v8050, %v9320
      %9322 = vmatprep.mubr.bf16.mxu0 %v7778
      %9323 = vmatmul.mubr.bf16.gmra.mrb[0].mxu0 %v7777
      %v9324 = vpop.f32.mrb[0].mxu0
      %v9325 = vadd.f32 %v8046, %v9324
      %v9326 = vpop.f32.mrb[0].mxu0
      %v9327 = vadd.f32 %v8050, %v9326
      %v9328 = vpop.f32.mrb[0].mxu0
      %v9329 = vadd.f32 %v8046, %v9328
      %v9330 = vpop.f32.mrb[0].mxu0
      %v9331 = vadd.f32 %v8050, %v9330
      %9332 = vmatprep.mubr.bf16.mxu0 %v7782
      %9333 = vmatmul.mubr.bf16.gmra.mrb[0].mxu0 %v7781
      %v9334 = vpop.f32.mrb[0].mxu0
      %v9335 = vadd.f32 %v8046, %v9334
      %v9336 = vpop.f32.mrb[0].mxu0
      %v9337 = vadd.f32 %v8050, %v9336
      %v9338 = vpop.f32.mrb[0].mxu0
      %v9339 = vadd.f32 %v8046, %v9338
      %v9340 = vpop.f32.mrb[0].mxu0
      %v9341 = vadd.f32 %v8050, %v9340
      %9342 = vdwg.mxu0
      %9343 = vmatprep.subr.bf16.mxu0 %v8895
      %9344 = vmatpush1.bf16.msra.mxu0 %v8894
      %9345 = vmatprep.subr.bf16.mxu0 %v8902
      %9346 = vmatpush1.bf16.msra.mxu0 %v8901
      %9347 = vmatprep.subr.bf16.mxu0 %v8909
      %9348 = vmatpush1.bf16.msra.mxu0 %v8908
      %9349 = vmatprep.subr.bf16.mxu0 %v8916
      %9350 = vmatpush1.bf16.msra.mxu0 %v8915
      %9351 = vmatprep.subr.bf16.mxu0 %v8923
      %9352 = vmatpush1.bf16.msra.mxu0 %v8922
      %9353 = vmatprep.subr.bf16.mxu0 %v8930
      %9354 = vmatpush1.bf16.msra.mxu0 %v8929
      %9355 = vmatprep.subr.bf16.mxu0 %v8937
      %9356 = vmatpush1.bf16.msra.mxu0 %v8936
      %9357 = vmatprep.subr.bf16.mxu0 %v8944
      %9358 = vmatpush1.bf16.msra.mxu0 %v8943
      %9359 = vmatprep.subr.bf16.mxu0 %v8951
      %9360 = vmatpush1.bf16.msra.mxu0 %v8950
      %9361 = vmatprep.subr.bf16.mxu0 %v8958
      %9362 = vmatpush1.bf16.msra.mxu0 %v8957
      %9363 = vmatprep.subr.bf16.mxu0 %v8965
      %9364 = vmatpush1.bf16.msra.mxu0 %v8964
      %9365 = vmatprep.subr.bf16.mxu0 %v8972
      %9366 = vmatpush1.bf16.msra.mxu0 %v8971
      %9367 = vmatprep.subr.bf16.mxu0 %v8979
      %9368 = vmatpush1.bf16.msra.mxu0 %v8978
      %9369 = vmatprep.subr.bf16.mxu0 %v8986
      %9370 = vmatpush1.bf16.msra.mxu0 %v8985
      %9371 = vmatprep.subr.bf16.mxu0 %v8993
      %9372 = vmatpush1.bf16.msra.mxu0 %v8992
      %9373 = vmatprep.subr.bf16.mxu0 %v9000
      %9374 = vmatpush1.bf16.msra.mxu0 %v8999
      %9375 = vmatprep.mubr.bf16.mxu0 %v7756
      %9376 = vmatmul.mubr.bf16.gmra.mrb[0].mxu0 %v7755
      %v9377 = vpop.f32.mrb[0].mxu0
      %v9378 = vadd.f32 %v9265, %v9377
      %v9379 = vpop.f32.mrb[0].mxu0
      %v9380 = vadd.f32 %v9267, %v9379
      %v9381 = vpop.f32.mrb[0].mxu0
      %v9382 = vadd.f32 %v9269, %v9381
      %v9383 = vpop.f32.mrb[0].mxu0
      %v9384 = vadd.f32 %v9271, %v9383
      %9385 = vmatprep.mubr.bf16.mxu0 %v7760
      %9386 = vmatmul.mubr.bf16.gmra.mrb[0].mxu0 %v7759
      %v9387 = vpop.f32.mrb[0].mxu0
      %v9388 = vadd.f32 %v9275, %v9387
      %v9389 = vpop.f32.mrb[0].mxu0
      %v9390 = vadd.f32 %v9277, %v9389
      %v9391 = vpop.f32.mrb[0].mxu0
      %v9392 = vadd.f32 %v9279, %v9391
      %v9393 = vpop.f32.mrb[0].mxu0
      %v9394 = vadd.f32 %v9281, %v9393
      %9395 = vmatprep.mubr.bf16.mxu0 %v7764
      %9396 = vmatmul.mubr.bf16.gmra.mrb[0].mxu0 %v7763
      %v9397 = vpop.f32.mrb[0].mxu0
      %v9398 = vadd.f32 %v9285, %v9397
      %v9399 = vpop.f32.mrb[0].mxu0
      %v9400 = vadd.f32 %v9287, %v9399
      %v9401 = vpop.f32.mrb[0].mxu0
      %v9402 = vadd.f32 %v9289, %v9401
      %v9403 = vpop.f32.mrb[0].mxu0
      %v9404 = vadd.f32 %v9291, %v9403
      %9405 = vmatprep.mubr.bf16.mxu0 %v7768
      %9406 = vmatmul.mubr.bf16.gmra.mrb[0].mxu0 %v7767
      %v9407 = vpop.f32.mrb[0].mxu0
      %v9408 = vadd.f32 %v9295, %v9407
      %v9409 = vpop.f32.mrb[0].mxu0
      %v9410 = vadd.f32 %v9297, %v9409
      %v9411 = vpop.f32.mrb[0].mxu0
      %v9412 = vadd.f32 %v9299, %v9411
      %v9413 = vpop.f32.mrb[0].mxu0
      %v9414 = vadd.f32 %v9301, %v9413
      %9415 = vmatprep.mubr.bf16.mxu0 %v7772
      %9416 = vmatmul.mubr.bf16.gmra.mrb[0].mxu0 %v7771
      %v9417 = vpop.f32.mrb[0].mxu0
      %v9418 = vadd.f32 %v9305, %v9417
      %v9419 = vpop.f32.mrb[0].mxu0
      %v9420 = vadd.f32 %v9307, %v9419
      %v9421 = vpop.f32.mrb[0].mxu0
      %v9422 = vadd.f32 %v9309, %v9421
      %v9423 = vpop.f32.mrb[0].mxu0
      %v9424 = vadd.f32 %v9311, %v9423
      %9425 = vmatprep.mubr.bf16.mxu0 %v7776
      %9426 = vmatmul.mubr.bf16.gmra.mrb[0].mxu0 %v7775
      %v9427 = vpop.f32.mrb[0].mxu0
      %v9428 = vadd.f32 %v9315, %v9427
      %v9429 = vpop.f32.mrb[0].mxu0
      %v9430 = vadd.f32 %v9317, %v9429
      %v9431 = vpop.f32.mrb[0].mxu0
      %v9432 = vadd.f32 %v9319, %v9431
      %v9433 = vpop.f32.mrb[0].mxu0
      %v9434 = vadd.f32 %v9321, %v9433
      %9435 = vmatprep.mubr.bf16.mxu0 %v7780
      %9436 = vmatmul.mubr.bf16.gmra.mrb[0].mxu0 %v7779
      %v9437 = vpop.f32.mrb[0].mxu0
      %v9438 = vadd.f32 %v9325, %v9437
      %v9439 = vpop.f32.mrb[0].mxu0
      %v9440 = vadd.f32 %v9327, %v9439
      %v9441 = vpop.f32.mrb[0].mxu0
      %v9442 = vadd.f32 %v9329, %v9441
      %v9443 = vpop.f32.mrb[0].mxu0
      %v9444 = vadd.f32 %v9331, %v9443
      %9445 = vmatprep.mubr.bf16.mxu0 %v7784
      %9446 = vmatmul.mubr.bf16.gmra.mrb[0].mxu0 %v7783
      %v9447 = vpop.f32.mrb[0].mxu0
      %v9448 = vadd.f32 %v9335, %v9447
      %v9449 = vpop.f32.mrb[0].mxu0
      %v9450 = vadd.f32 %v9337, %v9449
      %v9451 = vpop.f32.mrb[0].mxu0
      %v9452 = vadd.f32 %v9339, %v9451
      %v9453 = vpop.f32.mrb[0].mxu0
      %v9454 = vadd.f32 %v9341, %v9453
      %9455 = vdwg.mxu0
      %9456 = vmatprep.subr.bf16.mxu0 %v8785
      %9457 = vmatpush1.bf16.msra.mxu0 %v8784
      %9458 = vmatprep.subr.bf16.mxu0 %v8792
      %9459 = vmatpush1.bf16.msra.mxu0 %v8791
      %9460 = vmatprep.subr.bf16.mxu0 %v8799
      %9461 = vmatpush1.bf16.msra.mxu0 %v8798
      %9462 = vmatprep.subr.bf16.mxu0 %v8806
      %9463 = vmatpush1.bf16.msra.mxu0 %v8805
      %9464 = vmatprep.subr.bf16.mxu0 %v8813
      %9465 = vmatpush1.bf16.msra.mxu0 %v8812
      %9466 = vmatprep.subr.bf16.mxu0 %v8820
      %9467 = vmatpush1.bf16.msra.mxu0 %v8819
      %9468 = vmatprep.subr.bf16.mxu0 %v8827
      %9469 = vmatpush1.bf16.msra.mxu0 %v8826
      %9470 = vmatprep.subr.bf16.mxu0 %v8834
      %9471 = vmatpush1.bf16.msra.mxu0 %v8833
      %9472 = vmatprep.subr.bf16.mxu0 %v8841
      %9473 = vmatpush1.bf16.msra.mxu0 %v8840
      %9474 = vmatprep.subr.bf16.mxu0 %v8848
      %9475 = vmatpush1.bf16.msra.mxu0 %v8847
      %9476 = vmatprep.subr.bf16.mxu0 %v8855
      %9477 = vmatpush1.bf16.msra.mxu0 %v8854
      %9478 = vmatprep.subr.bf16.mxu0 %v8862
      %9479 = vmatpush1.bf16.msra.mxu0 %v8861
      %9480 = vmatprep.subr.bf16.mxu0 %v8869
      %9481 = vmatpush1.bf16.msra.mxu0 %v8868
      %9482 = vmatprep.subr.bf16.mxu0 %v8876
      %9483 = vmatpush1.bf16.msra.mxu0 %v8875
      %9484 = vmatprep.subr.bf16.mxu0 %v8883
      %9485 = vmatpush1.bf16.msra.mxu0 %v8882
      %9486 = vmatprep.subr.bf16.mxu0 %v8890
      %9487 = vmatpush1.bf16.msra.mxu0 %v8889
      %9488 = vmatprep.mubr.bf16.mxu0 %v7754
      %9489 = vmatmul.mubr.bf16.gmra.mrb[0].mxu0 %v7753
      %v9490 = vpop.f32.mrb[0].mxu0
      %v9491 = vadd.f32 %v8054, %v9490
      %v9492 = vpop.f32.mrb[0].mxu0
      %v9493 = vadd.f32 %v8058, %v9492
      %v9494 = vpop.f32.mrb[0].mxu0
      %v9495 = vadd.f32 %v8054, %v9494
      %v9496 = vpop.f32.mrb[0].mxu0
      %v9497 = vadd.f32 %v8058, %v9496
      %9498 = vmatprep.mubr.bf16.mxu0 %v7758
      %9499 = vmatmul.mubr.bf16.gmra.mrb[0].mxu0 %v7757
      %v9500 = vpop.f32.mrb[0].mxu0
      %v9501 = vadd.f32 %v8054, %v9500
      %v9502 = vpop.f32.mrb[0].mxu0
      %v9503 = vadd.f32 %v8058, %v9502
      %v9504 = vpop.f32.mrb[0].mxu0
      %v9505 = vadd.f32 %v8054, %v9504
      %v9506 = vpop.f32.mrb[0].mxu0
      %v9507 = vadd.f32 %v8058, %v9506
      %9508 = vmatprep.mubr.bf16.mxu0 %v7762
      %9509 = vmatmul.mubr.bf16.gmra.mrb[0].mxu0 %v7761
      %v9510 = vpop.f32.mrb[0].mxu0
      %v9511 = vadd.f32 %v8054, %v9510
      %v9512 = vpop.f32.mrb[0].mxu0
      %v9513 = vadd.f32 %v8058, %v9512
      %v9514 = vpop.f32.mrb[0].mxu0
      %v9515 = vadd.f32 %v8054, %v9514
      %v9516 = vpop.f32.mrb[0].mxu0
      %v9517 = vadd.f32 %v8058, %v9516
      %9518 = vmatprep.mubr.bf16.mxu0 %v7766
      %9519 = vmatmul.mubr.bf16.gmra.mrb[0].mxu0 %v7765
      %v9520 = vpop.f32.mrb[0].mxu0
      %v9521 = vadd.f32 %v8054, %v9520
      %v9522 = vpop.f32.mrb[0].mxu0
      %v9523 = vadd.f32 %v8058, %v9522
      %v9524 = vpop.f32.mrb[0].mxu0
      %v9525 = vadd.f32 %v8054, %v9524
      %v9526 = vpop.f32.mrb[0].mxu0
      %v9527 = vadd.f32 %v8058, %v9526
      %9528 = vmatprep.mubr.bf16.mxu0 %v7770
      %9529 = vmatmul.mubr.bf16.gmra.mrb[0].mxu0 %v7769
      %v9530 = vpop.f32.mrb[0].mxu0
      %v9531 = vadd.f32 %v8054, %v9530
      %v9532 = vpop.f32.mrb[0].mxu0
      %v9533 = vadd.f32 %v8058, %v9532
      %v9534 = vpop.f32.mrb[0].mxu0
      %v9535 = vadd.f32 %v8054, %v9534
      %v9536 = vpop.f32.mrb[0].mxu0
      %v9537 = vadd.f32 %v8058, %v9536
      %9538 = vmatprep.mubr.bf16.mxu0 %v7774
      %9539 = vmatmul.mubr.bf16.gmra.mrb[0].mxu0 %v7773
      %v9540 = vpop.f32.mrb[0].mxu0
      %v9541 = vadd.f32 %v8054, %v9540
      %v9542 = vpop.f32.mrb[0].mxu0
      %v9543 = vadd.f32 %v8058, %v9542
      %v9544 = vpop.f32.mrb[0].mxu0
      %v9545 = vadd.f32 %v8054, %v9544
      %v9546 = vpop.f32.mrb[0].mxu0
      %v9547 = vadd.f32 %v8058, %v9546
      %9548 = vmatprep.mubr.bf16.mxu0 %v7778
      %9549 = vmatmul.mubr.bf16.gmra.mrb[0].mxu0 %v7777
      %v9550 = vpop.f32.mrb[0].mxu0
      %v9551 = vadd.f32 %v8054, %v9550
      %v9552 = vpop.f32.mrb[0].mxu0
      %v9553 = vadd.f32 %v8058, %v9552
      %v9554 = vpop.f32.mrb[0].mxu0
      %v9555 = vadd.f32 %v8054, %v9554
      %v9556 = vpop.f32.mrb[0].mxu0
      %v9557 = vadd.f32 %v8058, %v9556
      %9558 = vmatprep.mubr.bf16.mxu0 %v7782
      %9559 = vmatmul.mubr.bf16.gmra.mrb[0].mxu0 %v7781
      %v9560 = vpop.f32.mrb[0].mxu0
      %v9561 = vadd.f32 %v8054, %v9560
      %v9562 = vpop.f32.mrb[0].mxu0
      %v9563 = vadd.f32 %v8058, %v9562
      %v9564 = vpop.f32.mrb[0].mxu0
      %v9565 = vadd.f32 %v8054, %v9564
      %v9566 = vpop.f32.mrb[0].mxu0
      %v9567 = vadd.f32 %v8058, %v9566
      %9568 = vdwg.mxu0
      %9569 = vmatprep.subr.bf16.mxu0 %v8897
      %9570 = vmatpush1.bf16.msra.mxu0 %v8896
      %9571 = vmatprep.subr.bf16.mxu0 %v8904
      %9572 = vmatpush1.bf16.msra.mxu0 %v8903
      %9573 = vmatprep.subr.bf16.mxu0 %v8911
      %9574 = vmatpush1.bf16.msra.mxu0 %v8910
      %9575 = vmatprep.subr.bf16.mxu0 %v8918
      %9576 = vmatpush1.bf16.msra.mxu0 %v8917
      %9577 = vmatprep.subr.bf16.mxu0 %v8925
      %9578 = vmatpush1.bf16.msra.mxu0 %v8924
      %9579 = vmatprep.subr.bf16.mxu0 %v8932
      %9580 = vmatpush1.bf16.msra.mxu0 %v8931
      %9581 = vmatprep.subr.bf16.mxu0 %v8939
      %9582 = vmatpush1.bf16.msra.mxu0 %v8938
      %9583 = vmatprep.subr.bf16.mxu0 %v8946
      %9584 = vmatpush1.bf16.msra.mxu0 %v8945
      %9585 = vmatprep.subr.bf16.mxu0 %v8953
      %9586 = vmatpush1.bf16.msra.mxu0 %v8952
      %9587 = vmatprep.subr.bf16.mxu0 %v8960
      %9588 = vmatpush1.bf16.msra.mxu0 %v8959
      %9589 = vmatprep.subr.bf16.mxu0 %v8967
      %9590 = vmatpush1.bf16.msra.mxu0 %v8966
      %9591 = vmatprep.subr.bf16.mxu0 %v8974
      %9592 = vmatpush1.bf16.msra.mxu0 %v8973
      %9593 = vmatprep.subr.bf16.mxu0 %v8981
      %9594 = vmatpush1.bf16.msra.mxu0 %v8980
      %9595 = vmatprep.subr.bf16.mxu0 %v8988
      %9596 = vmatpush1.bf16.msra.mxu0 %v8987
      %9597 = vmatprep.subr.bf16.mxu0 %v8995
      %9598 = vmatpush1.bf16.msra.mxu0 %v8994
      %9599 = vmatprep.subr.bf16.mxu0 %v9002
      %9600 = vmatpush1.bf16.msra.mxu0 %v9001
      %9601 = vmatprep.mubr.bf16.mxu0 %v7756
      %9602 = vmatmul.mubr.bf16.gmra.mrb[0].mxu0 %v7755
      %v9603 = vpop.f32.mrb[0].mxu0
      %v9604 = vadd.f32 %v9491, %v9603
      %v9605 = vpop.f32.mrb[0].mxu0
      %v9606 = vadd.f32 %v9493, %v9605
      %v9607 = vpop.f32.mrb[0].mxu0
      %v9608 = vadd.f32 %v9495, %v9607
      %v9609 = vpop.f32.mrb[0].mxu0
      %v9610 = vadd.f32 %v9497, %v9609
      %9611 = vmatprep.mubr.bf16.mxu0 %v7760
      %9612 = vmatmul.mubr.bf16.gmra.mrb[0].mxu0 %v7759
      %v9613 = vpop.f32.mrb[0].mxu0
      %v9614 = vadd.f32 %v9501, %v9613
      %v9615 = vpop.f32.mrb[0].mxu0
      %v9616 = vadd.f32 %v9503, %v9615
      %v9617 = vpop.f32.mrb[0].mxu0
      %v9618 = vadd.f32 %v9505, %v9617
      %v9619 = vpop.f32.mrb[0].mxu0
      %v9620 = vadd.f32 %v9507, %v9619
      %9621 = vmatprep.mubr.bf16.mxu0 %v7764
      %9622 = vmatmul.mubr.bf16.gmra.mrb[0].mxu0 %v7763
      %v9623 = vpop.f32.mrb[0].mxu0
      %v9624 = vadd.f32 %v9511, %v9623
      %v9625 = vpop.f32.mrb[0].mxu0
      %v9626 = vadd.f32 %v9513, %v9625
      %v9627 = vpop.f32.mrb[0].mxu0
      %v9628 = vadd.f32 %v9515, %v9627
      %v9629 = vpop.f32.mrb[0].mxu0
      %v9630 = vadd.f32 %v9517, %v9629
      %9631 = vmatprep.mubr.bf16.mxu0 %v7768
      %9632 = vmatmul.mubr.bf16.gmra.mrb[0].mxu0 %v7767
      %v9633 = vpop.f32.mrb[0].mxu0
      %v9634 = vadd.f32 %v9521, %v9633
      %v9635 = vpop.f32.mrb[0].mxu0
      %v9636 = vadd.f32 %v9523, %v9635
      %v9637 = vpop.f32.mrb[0].mxu0
      %v9638 = vadd.f32 %v9525, %v9637
      %v9639 = vpop.f32.mrb[0].mxu0
      %v9640 = vadd.f32 %v9527, %v9639
      %9641 = vmatprep.mubr.bf16.mxu0 %v7772
      %9642 = vmatmul.mubr.bf16.gmra.mrb[0].mxu0 %v7771
      %v9643 = vpop.f32.mrb[0].mxu0
      %v9644 = vadd.f32 %v9531, %v9643
      %v9645 = vpop.f32.mrb[0].mxu0
      %v9646 = vadd.f32 %v9533, %v9645
      %v9647 = vpop.f32.mrb[0].mxu0
      %v9648 = vadd.f32 %v9535, %v9647
      %v9649 = vpop.f32.mrb[0].mxu0
      %v9650 = vadd.f32 %v9537, %v9649
      %9651 = vmatprep.mubr.bf16.mxu0 %v7776
      %9652 = vmatmul.mubr.bf16.gmra.mrb[0].mxu0 %v7775
      %v9653 = vpop.f32.mrb[0].mxu0
      %v9654 = vadd.f32 %v9541, %v9653
      %v9655 = vpop.f32.mrb[0].mxu0
      %v9656 = vadd.f32 %v9543, %v9655
      %v9657 = vpop.f32.mrb[0].mxu0
      %v9658 = vadd.f32 %v9545, %v9657
      %v9659 = vpop.f32.mrb[0].mxu0
      %v9660 = vadd.f32 %v9547, %v9659
      %9661 = vmatprep.mubr.bf16.mxu0 %v7780
      %9662 = vmatmul.mubr.bf16.gmra.mrb[0].mxu0 %v7779
      %v9663 = vpop.f32.mrb[0].mxu0
      %v9664 = vadd.f32 %v9551, %v9663
      %v9665 = vpop.f32.mrb[0].mxu0
      %v9666 = vadd.f32 %v9553, %v9665
      %v9667 = vpop.f32.mrb[0].mxu0
      %v9668 = vadd.f32 %v9555, %v9667
      %v9669 = vpop.f32.mrb[0].mxu0
      %v9670 = vadd.f32 %v9557, %v9669
      %9671 = vmatprep.mubr.bf16.mxu0 %v7784
      %9672 = vmatmul.mubr.bf16.gmra.mrb[0].mxu0 %v7783
      %v9673 = vpop.f32.mrb[0].mxu0
      %v9674 = vadd.f32 %v9561, %v9673
      %v9675 = vpop.f32.mrb[0].mxu0
      %v9676 = vadd.f32 %v9563, %v9675
      %v9677 = vpop.f32.mrb[0].mxu0
      %v9678 = vadd.f32 %v9565, %v9677
      %v9679 = vpop.f32.mrb[0].mxu0
      %v9680 = vadd.f32 %v9567, %v9679
      %9681 = vdwg.mxu0
      %9682 = vmatprep.subr.bf16.mxu0 %v8787
      %9683 = vmatpush1.bf16.msra.mxu0 %v8786
      %9684 = vmatprep.subr.bf16.mxu0 %v8794
      %9685 = vmatpush1.bf16.msra.mxu0 %v8793
      %9686 = vmatprep.subr.bf16.mxu0 %v8801
      %9687 = vmatpush1.bf16.msra.mxu0 %v8800
      %9688 = vmatprep.subr.bf16.mxu0 %v8808
      %9689 = vmatpush1.bf16.msra.mxu0 %v8807
      %9690 = vmatprep.subr.bf16.mxu0 %v8815
      %9691 = vmatpush1.bf16.msra.mxu0 %v8814
      %9692 = vmatprep.subr.bf16.mxu0 %v8822
      %9693 = vmatpush1.bf16.msra.mxu0 %v8821
      %9694 = vmatprep.subr.bf16.mxu0 %v8829
      %9695 = vmatpush1.bf16.msra.mxu0 %v8828
      %9696 = vmatprep.subr.bf16.mxu0 %v8836
      %9697 = vmatpush1.bf16.msra.mxu0 %v8835
      %9698 = vmatprep.subr.bf16.mxu0 %v8843
      %9699 = vmatpush1.bf16.msra.mxu0 %v8842
      %9700 = vmatprep.subr.bf16.mxu0 %v8850
      %9701 = vmatpush1.bf16.msra.mxu0 %v8849
      %9702 = vmatprep.subr.bf16.mxu0 %v8857
      %9703 = vmatpush1.bf16.msra.mxu0 %v8856
      %9704 = vmatprep.subr.bf16.mxu0 %v8864
      %9705 = vmatpush1.bf16.msra.mxu0 %v8863
      %9706 = vmatprep.subr.bf16.mxu0 %v8871
      %9707 = vmatpush1.bf16.msra.mxu0 %v8870
      %9708 = vmatprep.subr.bf16.mxu0 %v8878
      %9709 = vmatpush1.bf16.msra.mxu0 %v8877
      %9710 = vmatprep.subr.bf16.mxu0 %v8885
      %9711 = vmatpush1.bf16.msra.mxu0 %v8884
      %9712 = vmatprep.subr.bf16.mxu0 %v8892
      %9713 = vmatpush1.bf16.msra.mxu0 %v8891
      %9714 = vmatprep.mubr.bf16.mxu0 %v7754
      %9715 = vmatmul.mubr.bf16.gmra.mrb[0].mxu0 %v7753
      %v9716 = vpop.f32.mrb[0].mxu0
      %v9717 = vadd.f32 %v8062, %v9716
      %v9718 = vpop.f32.mrb[0].mxu0
      %v9719 = vadd.f32 %v8066, %v9718
      %v9720 = vpop.f32.mrb[0].mxu0
      %v9721 = vadd.f32 %v8062, %v9720
      %v9722 = vpop.f32.mrb[0].mxu0
      %v9723 = vadd.f32 %v8066, %v9722
      %9724 = vmatprep.mubr.bf16.mxu0 %v7758
      %9725 = vmatmul.mubr.bf16.gmra.mrb[0].mxu0 %v7757
      %v9726 = vpop.f32.mrb[0].mxu0
      %v9727 = vadd.f32 %v8062, %v9726
      %v9728 = vpop.f32.mrb[0].mxu0
      %v9729 = vadd.f32 %v8066, %v9728
      %v9730 = vpop.f32.mrb[0].mxu0
      %v9731 = vadd.f32 %v8062, %v9730
      %v9732 = vpop.f32.mrb[0].mxu0
      %v9733 = vadd.f32 %v8066, %v9732
      %9734 = vmatprep.mubr.bf16.mxu0 %v7762
      %9735 = vmatmul.mubr.bf16.gmra.mrb[0].mxu0 %v7761
      %v9736 = vpop.f32.mrb[0].mxu0
      %v9737 = vadd.f32 %v8062, %v9736
      %v9738 = vpop.f32.mrb[0].mxu0
      %v9739 = vadd.f32 %v8066, %v9738
      %v9740 = vpop.f32.mrb[0].mxu0
      %v9741 = vadd.f32 %v8062, %v9740
      %v9742 = vpop.f32.mrb[0].mxu0
      %v9743 = vadd.f32 %v8066, %v9742
      %9744 = vmatprep.mubr.bf16.mxu0 %v7766
      %9745 = vmatmul.mubr.bf16.gmra.mrb[0].mxu0 %v7765
      %v9746 = vpop.f32.mrb[0].mxu0
      %v9747 = vadd.f32 %v8062, %v9746
      %v9748 = vpop.f32.mrb[0].mxu0
      %v9749 = vadd.f32 %v8066, %v9748
      %v9750 = vpop.f32.mrb[0].mxu0
      %v9751 = vadd.f32 %v8062, %v9750
      %v9752 = vpop.f32.mrb[0].mxu0
      %v9753 = vadd.f32 %v8066, %v9752
      %9754 = vmatprep.mubr.bf16.mxu0 %v7770
      %9755 = vmatmul.mubr.bf16.gmra.mrb[0].mxu0 %v7769
      %v9756 = vpop.f32.mrb[0].mxu0
      %v9757 = vadd.f32 %v8062, %v9756
      %v9758 = vpop.f32.mrb[0].mxu0
      %v9759 = vadd.f32 %v8066, %v9758
      %v9760 = vpop.f32.mrb[0].mxu0
      %v9761 = vadd.f32 %v8062, %v9760
      %v9762 = vpop.f32.mrb[0].mxu0
      %v9763 = vadd.f32 %v8066, %v9762
      %9764 = vmatprep.mubr.bf16.mxu0 %v7774
      %9765 = vmatmul.mubr.bf16.gmra.mrb[0].mxu0 %v7773
      %v9766 = vpop.f32.mrb[0].mxu0
      %v9767 = vadd.f32 %v8062, %v9766
      %v9768 = vpop.f32.mrb[0].mxu0
      %v9769 = vadd.f32 %v8066, %v9768
      %v9770 = vpop.f32.mrb[0].mxu0
      %v9771 = vadd.f32 %v8062, %v9770
      %v9772 = vpop.f32.mrb[0].mxu0
      %v9773 = vadd.f32 %v8066, %v9772
      %9774 = vmatprep.mubr.bf16.mxu0 %v7778
      %9775 = vmatmul.mubr.bf16.gmra.mrb[0].mxu0 %v7777
      %v9776 = vpop.f32.mrb[0].mxu0
      %v9777 = vadd.f32 %v8062, %v9776
      %v9778 = vpop.f32.mrb[0].mxu0
      %v9779 = vadd.f32 %v8066, %v9778
      %v9780 = vpop.f32.mrb[0].mxu0
      %v9781 = vadd.f32 %v8062, %v9780
      %v9782 = vpop.f32.mrb[0].mxu0
      %v9783 = vadd.f32 %v8066, %v9782
      %9784 = vmatprep.mubr.bf16.mxu0 %v7782
      %9785 = vmatmul.mubr.bf16.gmra.mrb[0].mxu0 %v7781
      %v9786 = vpop.f32.mrb[0].mxu0
      %v9787 = vadd.f32 %v8062, %v9786
      %v9788 = vpop.f32.mrb[0].mxu0
      %v9789 = vadd.f32 %v8066, %v9788
      %v9790 = vpop.f32.mrb[0].mxu0
      %v9791 = vadd.f32 %v8062, %v9790
      %v9792 = vpop.f32.mrb[0].mxu0
      %v9793 = vadd.f32 %v8066, %v9792
      %9794 = vdwg.mxu0
      %9795 = vmatprep.subr.bf16.mxu0 %v8899
      %9796 = vmatpush1.bf16.msra.mxu0 %v8898
      %9797 = vmatprep.subr.bf16.mxu0 %v8906
      %9798 = vmatpush1.bf16.msra.mxu0 %v8905
      %9799 = vmatprep.subr.bf16.mxu0 %v8913
      %9800 = vmatpush1.bf16.msra.mxu0 %v8912
      %9801 = vmatprep.subr.bf16.mxu0 %v8920
      %9802 = vmatpush1.bf16.msra.mxu0 %v8919
      %9803 = vmatprep.subr.bf16.mxu0 %v8927
      %9804 = vmatpush1.bf16.msra.mxu0 %v8926
      %9805 = vmatprep.subr.bf16.mxu0 %v8934
      %9806 = vmatpush1.bf16.msra.mxu0 %v8933
      %9807 = vmatprep.subr.bf16.mxu0 %v8941
      %9808 = vmatpush1.bf16.msra.mxu0 %v8940
      %9809 = vmatprep.subr.bf16.mxu0 %v8948
      %9810 = vmatpush1.bf16.msra.mxu0 %v8947
      %9811 = vmatprep.subr.bf16.mxu0 %v8955
      %9812 = vmatpush1.bf16.msra.mxu0 %v8954
      %9813 = vmatprep.subr.bf16.mxu0 %v8962
      %9814 = vmatpush1.bf16.msra.mxu0 %v8961
      %9815 = vmatprep.subr.bf16.mxu0 %v8969
      %9816 = vmatpush1.bf16.msra.mxu0 %v8968
      %9817 = vmatprep.subr.bf16.mxu0 %v8976
      %9818 = vmatpush1.bf16.msra.mxu0 %v8975
      %9819 = vmatprep.subr.bf16.mxu0 %v8983
      %9820 = vmatpush1.bf16.msra.mxu0 %v8982
      %9821 = vmatprep.subr.bf16.mxu0 %v8990
      %9822 = vmatpush1.bf16.msra.mxu0 %v8989
      %9823 = vmatprep.subr.bf16.mxu0 %v8997
      %9824 = vmatpush1.bf16.msra.mxu0 %v8996
      %9825 = vmatprep.subr.bf16.mxu0 %v9004
      %9826 = vmatpush1.bf16.msra.mxu0 %v9003
      %9827 = vmatprep.mubr.bf16.mxu0 %v7756
      %9828 = vmatmul.mubr.bf16.gmra.mrb[0].mxu0 %v7755
      %v9829 = vpop.f32.mrb[0].mxu0
      %v9830 = vadd.f32 %v9717, %v9829
      %v9831 = vpop.f32.mrb[0].mxu0
      %v9832 = vadd.f32 %v9719, %v9831
      %v9833 = vpop.f32.mrb[0].mxu0
      %v9834 = vadd.f32 %v9721, %v9833
      %v9835 = vpop.f32.mrb[0].mxu0
      %v9836 = vadd.f32 %v9723, %v9835
      %9837 = vmatprep.mubr.bf16.mxu0 %v7760
      %9838 = vmatmul.mubr.bf16.gmra.mrb[0].mxu0 %v7759
      %v9839 = vpop.f32.mrb[0].mxu0
      %v9840 = vadd.f32 %v9727, %v9839
      %v9841 = vpop.f32.mrb[0].mxu0
      %v9842 = vadd.f32 %v9729, %v9841
      %v9843 = vpop.f32.mrb[0].mxu0
      %v9844 = vadd.f32 %v9731, %v9843
      %v9845 = vpop.f32.mrb[0].mxu0
      %v9846 = vadd.f32 %v9733, %v9845
      %9847 = vmatprep.mubr.bf16.mxu0 %v7764
      %9848 = vmatmul.mubr.bf16.gmra.mrb[0].mxu0 %v7763
      %v9849 = vpop.f32.mrb[0].mxu0
      %v9850 = vadd.f32 %v9737, %v9849
      %v9851 = vpop.f32.mrb[0].mxu0
      %v9852 = vadd.f32 %v9739, %v9851
      %v9853 = vpop.f32.mrb[0].mxu0
      %v9854 = vadd.f32 %v9741, %v9853
      %v9855 = vpop.f32.mrb[0].mxu0
      %v9856 = vadd.f32 %v9743, %v9855
      %9857 = vmatprep.mubr.bf16.mxu0 %v7768
      %9858 = vmatmul.mubr.bf16.gmra.mrb[0].mxu0 %v7767
      %v9859 = vpop.f32.mrb[0].mxu0
      %v9860 = vadd.f32 %v9747, %v9859
      %v9861 = vpop.f32.mrb[0].mxu0
      %v9862 = vadd.f32 %v9749, %v9861
      %v9863 = vpop.f32.mrb[0].mxu0
      %v9864 = vadd.f32 %v9751, %v9863
      %v9865 = vpop.f32.mrb[0].mxu0
      %v9866 = vadd.f32 %v9753, %v9865
      %9867 = vmatprep.mubr.bf16.mxu0 %v7772
      %9868 = vmatmul.mubr.bf16.gmra.mrb[0].mxu0 %v7771
      %v9869 = vpop.f32.mrb[0].mxu0
      %v9870 = vadd.f32 %v9757, %v9869
      %v9871 = vpop.f32.mrb[0].mxu0
      %v9872 = vadd.f32 %v9759, %v9871
      %v9873 = vpop.f32.mrb[0].mxu0
      %v9874 = vadd.f32 %v9761, %v9873
      %v9875 = vpop.f32.mrb[0].mxu0
      %v9876 = vadd.f32 %v9763, %v9875
      %9877 = vmatprep.mubr.bf16.mxu0 %v7776
      %9878 = vmatmul.mubr.bf16.gmra.mrb[0].mxu0 %v7775
      %v9879 = vpop.f32.mrb[0].mxu0
      %v9880 = vadd.f32 %v9767, %v9879
      %v9881 = vpop.f32.mrb[0].mxu0
      %v9882 = vadd.f32 %v9769, %v9881
      %v9883 = vpop.f32.mrb[0].mxu0
      %v9884 = vadd.f32 %v9771, %v9883
      %v9885 = vpop.f32.mrb[0].mxu0
      %v9886 = vadd.f32 %v9773, %v9885
      %9887 = vmatprep.mubr.bf16.mxu0 %v7780
      %9888 = vmatmul.mubr.bf16.gmra.mrb[0].mxu0 %v7779
      %v9889 = vpop.f32.mrb[0].mxu0
      %v9890 = vadd.f32 %v9777, %v9889
      %v9891 = vpop.f32.mrb[0].mxu0
      %v9892 = vadd.f32 %v9779, %v9891
      %v9893 = vpop.f32.mrb[0].mxu0
      %v9894 = vadd.f32 %v9781, %v9893
      %v9895 = vpop.f32.mrb[0].mxu0
      %v9896 = vadd.f32 %v9783, %v9895
      %9897 = vmatprep.mubr.bf16.mxu0 %v7784
      %9898 = vmatmul.mubr.bf16.gmra.mrb[0].mxu0 %v7783
      %v9899 = vpop.f32.mrb[0].mxu0
      %v9900 = vadd.f32 %v9787, %v9899
      %v9901 = vpop.f32.mrb[0].mxu0
      %v9902 = vadd.f32 %v9789, %v9901
      %v9903 = vpop.f32.mrb[0].mxu0
      %v9904 = vadd.f32 %v9791, %v9903
      %v9905 = vpop.f32.mrb[0].mxu0
      %v9906 = vadd.f32 %v9793, %v9905
      %9907 = vdwg.mxu0
      %9908 = vmatprep.subr.bf16.mxu0 0
      %9909 = vmatpush1.bf16.msra.mxu0 %v8788
      %9910 = vmatprep.subr.bf16.mxu0 0
      %9911 = vmatpush1.bf16.msra.mxu0 %v8795
      %9912 = vmatprep.subr.bf16.mxu0 0
      %9913 = vmatpush1.bf16.msra.mxu0 %v8802
      %9914 = vmatprep.subr.bf16.mxu0 0
      %9915 = vmatpush1.bf16.msra.mxu0 %v8809
      %9916 = vmatprep.subr.bf16.mxu0 0
      %9917 = vmatpush1.bf16.msra.mxu0 %v8816
      %9918 = vmatprep.subr.bf16.mxu0 0
      %9919 = vmatpush1.bf16.msra.mxu0 %v8823
      %9920 = vmatprep.subr.bf16.mxu0 0
      %9921 = vmatpush1.bf16.msra.mxu0 %v8830
      %9922 = vmatprep.subr.bf16.mxu0 0
      %9923 = vmatpush1.bf16.msra.mxu0 %v8837
      %9924 = vmatprep.subr.bf16.mxu0 0
      %9925 = vmatpush1.bf16.msra.mxu0 %v8844
      %9926 = vmatprep.subr.bf16.mxu0 0
      %9927 = vmatpush1.bf16.msra.mxu0 %v8851
      %9928 = vmatprep.subr.bf16.mxu0 0
      %9929 = vmatpush1.bf16.msra.mxu0 %v8858
      %9930 = vmatprep.subr.bf16.mxu0 0
      %9931 = vmatpush1.bf16.msra.mxu0 %v8865
      %9932 = vmatprep.subr.bf16.mxu0 0
      %9933 = vmatpush1.bf16.msra.mxu0 %v8872
      %9934 = vmatprep.subr.bf16.mxu0 0
      %9935 = vmatpush1.bf16.msra.mxu0 %v8879
      %9936 = vmatprep.subr.bf16.mxu0 0
      %9937 = vmatpush1.bf16.msra.mxu0 %v8886
      %9938 = vmatprep.subr.bf16.mxu0 0
      %9939 = vmatpush1.bf16.msra.mxu0 %v8893
      %9940 = vmatprep.mubr.bf16.mxu0 %v7754
      %9941 = vmatmul.mubr.bf16.gmra.mrb[0].mxu0 %v7753
      %v9942 = vpop.f32.mrb[0].mxu0
      %v9943 = vadd.f32 %v8070, %v9942
      %v9944 = vpop.f32.mrb[0].mxu0
      %v9945 = vpop.f32.mrb[0].mxu0
      %v9946 = vadd.f32 %v8070, %v9945
      %v9947 = vpop.f32.mrb[0].mxu0
      %9948 = vmatprep.mubr.bf16.mxu0 %v7758
      %9949 = vmatmul.mubr.bf16.gmra.mrb[0].mxu0 %v7757
      %v9950 = vpop.f32.mrb[0].mxu0
      %v9951 = vadd.f32 %v8070, %v9950
      %v9952 = vpop.f32.mrb[0].mxu0
      %v9953 = vpop.f32.mrb[0].mxu0
      %v9954 = vadd.f32 %v8070, %v9953
      %v9955 = vpop.f32.mrb[0].mxu0
      %9956 = vmatprep.mubr.bf16.mxu0 %v7762
      %9957 = vmatmul.mubr.bf16.gmra.mrb[0].mxu0 %v7761
      %v9958 = vpop.f32.mrb[0].mxu0
      %v9959 = vadd.f32 %v8070, %v9958
      %v9960 = vpop.f32.mrb[0].mxu0
      %v9961 = vpop.f32.mrb[0].mxu0
      %v9962 = vadd.f32 %v8070, %v9961
      %v9963 = vpop.f32.mrb[0].mxu0
      %9964 = vmatprep.mubr.bf16.mxu0 %v7766
      %9965 = vmatmul.mubr.bf16.gmra.mrb[0].mxu0 %v7765
      %v9966 = vpop.f32.mrb[0].mxu0
      %v9967 = vadd.f32 %v8070, %v9966
      %v9968 = vpop.f32.mrb[0].mxu0
      %v9969 = vpop.f32.mrb[0].mxu0
      %v9970 = vadd.f32 %v8070, %v9969
      %v9971 = vpop.f32.mrb[0].mxu0
      %9972 = vmatprep.mubr.bf16.mxu0 %v7770
      %9973 = vmatmul.mubr.bf16.gmra.mrb[0].mxu0 %v7769
      %v9974 = vpop.f32.mrb[0].mxu0
      %v9975 = vadd.f32 %v8070, %v9974
      %v9976 = vpop.f32.mrb[0].mxu0
      %v9977 = vpop.f32.mrb[0].mxu0
      %v9978 = vadd.f32 %v8070, %v9977
      %v9979 = vpop.f32.mrb[0].mxu0
      %9980 = vmatprep.mubr.bf16.mxu0 %v7774
      %9981 = vmatmul.mubr.bf16.gmra.mrb[0].mxu0 %v7773
      %v9982 = vpop.f32.mrb[0].mxu0
      %v9983 = vadd.f32 %v8070, %v9982
      %v9984 = vpop.f32.mrb[0].mxu0
      %v9985 = vpop.f32.mrb[0].mxu0
      %v9986 = vadd.f32 %v8070, %v9985
      %v9987 = vpop.f32.mrb[0].mxu0
      %9988 = vmatprep.mubr.bf16.mxu0 %v7778
      %9989 = vmatmul.mubr.bf16.gmra.mrb[0].mxu0 %v7777
      %v9990 = vpop.f32.mrb[0].mxu0
      %v9991 = vadd.f32 %v8070, %v9990
      %v9992 = vpop.f32.mrb[0].mxu0
      %v9993 = vpop.f32.mrb[0].mxu0
      %v9994 = vadd.f32 %v8070, %v9993
      %v9995 = vpop.f32.mrb[0].mxu0
      %9996 = vmatprep.mubr.bf16.mxu0 %v7782
      %9997 = vmatmul.mubr.bf16.gmra.mrb[0].mxu0 %v7781
      %v9998 = vpop.f32.mrb[0].mxu0
      %v9999 = vadd.f32 %v8070, %v9998
      %v10000 = vpop.f32.mrb[0].mxu0
      %v10001 = vpop.f32.mrb[0].mxu0
      %v10002 = vadd.f32 %v8070, %v10001
      %v10003 = vpop.f32.mrb[0].mxu0
      %10004 = vdwg.mxu0
      %10005 = vmatprep.subr.bf16.mxu0 0
      %10006 = vmatpush1.bf16.msra.mxu0 %v8900
      %10007 = vmatprep.subr.bf16.mxu0 0
      %10008 = vmatpush1.bf16.msra.mxu0 %v8907
      %10009 = vmatprep.subr.bf16.mxu0 0
      %10010 = vmatpush1.bf16.msra.mxu0 %v8914
      %10011 = vmatprep.subr.bf16.mxu0 0
      %10012 = vmatpush1.bf16.msra.mxu0 %v8921
      %10013 = vmatprep.subr.bf16.mxu0 0
      %10014 = vmatpush1.bf16.msra.mxu0 %v8928
      %10015 = vmatprep.subr.bf16.mxu0 0
      %10016 = vmatpush1.bf16.msra.mxu0 %v8935
      %10017 = vmatprep.subr.bf16.mxu0 0
      %10018 = vmatpush1.bf16.msra.mxu0 %v8942
      %10019 = vmatprep.subr.bf16.mxu0 0
      %10020 = vmatpush1.bf16.msra.mxu0 %v8949
      %10021 = vmatprep.subr.bf16.mxu0 0
      %10022 = vmatpush1.bf16.msra.mxu0 %v8956
      %10023 = vmatprep.subr.bf16.mxu0 0
      %10024 = vmatpush1.bf16.msra.mxu0 %v8963
      %10025 = vmatprep.subr.bf16.mxu0 0
      %10026 = vmatpush1.bf16.msra.mxu0 %v8970
      %10027 = vmatprep.subr.bf16.mxu0 0
      %10028 = vmatpush1.bf16.msra.mxu0 %v8977
      %10029 = vmatprep.subr.bf16.mxu0 0
      %10030 = vmatpush1.bf16.msra.mxu0 %v8984
      %10031 = vmatprep.subr.bf16.mxu0 0
      %10032 = vmatpush1.bf16.msra.mxu0 %v8991
      %10033 = vmatprep.subr.bf16.mxu0 0
      %10034 = vmatpush1.bf16.msra.mxu0 %v8998
      %10035 = vmatprep.subr.bf16.mxu0 0
      %10036 = vmatpush1.bf16.msra.mxu0 %v9005
      %10037 = vmatprep.mubr.bf16.mxu0 %v7756
      %10038 = vmatmul.mubr.bf16.gmra.mrb[0].mxu0 %v7755
      %v10039 = vpop.f32.mrb[0].mxu0
      %v10040 = vadd.f32 %v9943, %v10039
      %v10041 = vpop.f32.mrb[0].mxu0
      %v10042 = vpop.f32.mrb[0].mxu0
      %v10043 = vadd.f32 %v9946, %v10042
      %v10044 = vpop.f32.mrb[0].mxu0
      %10045 = vmatprep.mubr.bf16.mxu0 %v7760
      %10046 = vmatmul.mubr.bf16.gmra.mrb[0].mxu0 %v7759
      %v10047 = vpop.f32.mrb[0].mxu0
      %v10048 = vadd.f32 %v9951, %v10047
      %v10049 = vpop.f32.mrb[0].mxu0
      %v10050 = vpop.f32.mrb[0].mxu0
      %v10051 = vadd.f32 %v9954, %v10050
      %v10052 = vpop.f32.mrb[0].mxu0
      %10053 = vmatprep.mubr.bf16.mxu0 %v7764
      %10054 = vmatmul.mubr.bf16.gmra.mrb[0].mxu0 %v7763
      %v10055 = vpop.f32.mrb[0].mxu0
      %v10056 = vadd.f32 %v9959, %v10055
      %v10057 = vpop.f32.mrb[0].mxu0
      %v10058 = vpop.f32.mrb[0].mxu0
      %v10059 = vadd.f32 %v9962, %v10058
      %v10060 = vpop.f32.mrb[0].mxu0
      %10061 = vmatprep.mubr.bf16.mxu0 %v7768
      %10062 = vmatmul.mubr.bf16.gmra.mrb[0].mxu0 %v7767
      %v10063 = vpop.f32.mrb[0].mxu0
      %v10064 = vadd.f32 %v9967, %v10063
      %v10065 = vpop.f32.mrb[0].mxu0
      %v10066 = vpop.f32.mrb[0].mxu0
      %v10067 = vadd.f32 %v9970, %v10066
      %v10068 = vpop.f32.mrb[0].mxu0
      %10069 = vmatprep.mubr.bf16.mxu0 %v7772
      %10070 = vmatmul.mubr.bf16.gmra.mrb[0].mxu0 %v7771
      %v10071 = vpop.f32.mrb[0].mxu0
      %v10072 = vadd.f32 %v9975, %v10071
      %v10073 = vpop.f32.mrb[0].mxu0
      %v10074 = vpop.f32.mrb[0].mxu0
      %v10075 = vadd.f32 %v9978, %v10074
      %v10076 = vpop.f32.mrb[0].mxu0
      %10077 = vmatprep.mubr.bf16.mxu0 %v7776
      %10078 = vmatmul.mubr.bf16.gmra.mrb[0].mxu0 %v7775
      %v10079 = vpop.f32.mrb[0].mxu0
      %v10080 = vadd.f32 %v9983, %v10079
      %v10081 = vpop.f32.mrb[0].mxu0
      %v10082 = vpop.f32.mrb[0].mxu0
      %v10083 = vadd.f32 %v9986, %v10082
      %v10084 = vpop.f32.mrb[0].mxu0
      %10085 = vmatprep.mubr.bf16.mxu0 %v7780
      %10086 = vmatmul.mubr.bf16.gmra.mrb[0].mxu0 %v7779
      %v10087 = vpop.f32.mrb[0].mxu0
      %v10088 = vadd.f32 %v9991, %v10087
      %v10089 = vpop.f32.mrb[0].mxu0
      %v10090 = vpop.f32.mrb[0].mxu0
      %v10091 = vadd.f32 %v9994, %v10090
      %v10092 = vpop.f32.mrb[0].mxu0
      %10093 = vmatprep.mubr.bf16.mxu0 %v7784
      %10094 = vmatmul.mubr.bf16.gmra.mrb[0].mxu0 %v7783
      %v10095 = vpop.f32.mrb[0].mxu0
      %v10096 = vadd.f32 %v9999, %v10095
      %v10097 = vpop.f32.mrb[0].mxu0
      %v10098 = vpop.f32.mrb[0].mxu0
      %v10099 = vadd.f32 %v10002, %v10098
      %v10100 = vpop.f32.mrb[0].mxu0
      %10101 = vdwg.mxu0
      %v10102 = vmul.f32 %v9378, 0.5
      %v10103 = vmul.f32 %v9380, 0.5
      %v10104 = vmul.f32 %v9604, 0.5
      %v10105 = vmul.f32 %v9606, 0.5
      %v10106 = vmul.f32 %v9830, 0.5
      %v10107 = vmul.f32 %v9832, 0.5
      %v10108 = vmul.f32 %v10040, 0.5
      %v10109 = vmul.f32 %v9382, 0.5
      %v10110 = vmul.f32 %v9384, 0.5
      %v10111 = vmul.f32 %v9608, 0.5
      %v10112 = vmul.f32 %v9610, 0.5
      %v10113 = vmul.f32 %v9834, 0.5
      %v10114 = vmul.f32 %v9836, 0.5
      %v10115 = vmul.f32 %v10043, 0.5
      %v10116 = vmul.f32 %v9388, 0.5
      %v10117 = vmul.f32 %v9390, 0.5
      %v10118 = vmul.f32 %v9614, 0.5
      %v10119 = vmul.f32 %v9616, 0.5
      %v10120 = vmul.f32 %v9840, 0.5
      %v10121 = vmul.f32 %v9842, 0.5
      %v10122 = vmul.f32 %v10048, 0.5
      %v10123 = vmul.f32 %v9392, 0.5
      %v10124 = vmul.f32 %v9394, 0.5
      %v10125 = vmul.f32 %v9618, 0.5
      %v10126 = vmul.f32 %v9620, 0.5
      %v10127 = vmul.f32 %v9844, 0.5
      %v10128 = vmul.f32 %v9846, 0.5
      %v10129 = vmul.f32 %v10051, 0.5
      %v10130 = vmul.f32 %v9398, 0.5
      %v10131 = vmul.f32 %v9400, 0.5
      %v10132 = vmul.f32 %v9624, 0.5
      %v10133 = vmul.f32 %v9626, 0.5
      %v10134 = vmul.f32 %v9850, 0.5
      %v10135 = vmul.f32 %v9852, 0.5
      %v10136 = vmul.f32 %v10056, 0.5
      %v10137 = vmul.f32 %v9402, 0.5
      %v10138 = vmul.f32 %v9404, 0.5
      %v10139 = vmul.f32 %v9628, 0.5
      %v10140 = vmul.f32 %v9630, 0.5
      %v10141 = vmul.f32 %v9854, 0.5
      %v10142 = vmul.f32 %v9856, 0.5
      %v10143 = vmul.f32 %v10059, 0.5
      %v10144 = vmul.f32 %v9408, 0.5
      %v10145 = vmul.f32 %v9410, 0.5
      %v10146 = vmul.f32 %v9634, 0.5
      %v10147 = vmul.f32 %v9636, 0.5
      %v10148 = vmul.f32 %v9860, 0.5
      %v10149 = vmul.f32 %v9862, 0.5
      %v10150 = vmul.f32 %v10064, 0.5
      %v10151 = vmul.f32 %v9412, 0.5
      %v10152 = vmul.f32 %v9414, 0.5
      %v10153 = vmul.f32 %v9638, 0.5
      %v10154 = vmul.f32 %v9640, 0.5
      %v10155 = vmul.f32 %v9864, 0.5
      %v10156 = vmul.f32 %v9866, 0.5
      %v10157 = vmul.f32 %v10067, 0.5
      %v10158 = vmul.f32 %v9418, 0.5
      %v10159 = vmul.f32 %v9420, 0.5
      %v10160 = vmul.f32 %v9644, 0.5
      %v10161 = vmul.f32 %v9646, 0.5
      %v10162 = vmul.f32 %v9870, 0.5
      %v10163 = vmul.f32 %v9872, 0.5
      %v10164 = vmul.f32 %v10072, 0.5
      %v10165 = vmul.f32 %v9422, 0.5
      %v10166 = vmul.f32 %v9424, 0.5
      %v10167 = vmul.f32 %v9648, 0.5
      %v10168 = vmul.f32 %v9650, 0.5
      %v10169 = vmul.f32 %v9874, 0.5
      %v10170 = vmul.f32 %v9876, 0.5
      %v10171 = vmul.f32 %v10075, 0.5
      %v10172 = vmul.f32 %v9428, 0.5
      %v10173 = vmul.f32 %v9430, 0.5
      %v10174 = vmul.f32 %v9654, 0.5
      %v10175 = vmul.f32 %v9656, 0.5
      %v10176 = vmul.f32 %v9880, 0.5
      %v10177 = vmul.f32 %v9882, 0.5
      %v10178 = vmul.f32 %v10080, 0.5
      %v10179 = vmul.f32 %v9432, 0.5
      %v10180 = vmul.f32 %v9434, 0.5
      %v10181 = vmul.f32 %v9658, 0.5
      %v10182 = vmul.f32 %v9660, 0.5
      %v10183 = vmul.f32 %v9884, 0.5
      %v10184 = vmul.f32 %v9886, 0.5
      %v10185 = vmul.f32 %v10083, 0.5
      %v10186 = vmul.f32 %v9438, 0.5
      %v10187 = vmul.f32 %v9440, 0.5
      %v10188 = vmul.f32 %v9664, 0.5
      %v10189 = vmul.f32 %v9666, 0.5
      %v10190 = vmul.f32 %v9890, 0.5
      %v10191 = vmul.f32 %v9892, 0.5
      %v10192 = vmul.f32 %v10088, 0.5
      %v10193 = vmul.f32 %v9442, 0.5
      %v10194 = vmul.f32 %v9444, 0.5
      %v10195 = vmul.f32 %v9668, 0.5
      %v10196 = vmul.f32 %v9670, 0.5
      %v10197 = vmul.f32 %v9894, 0.5
      %v10198 = vmul.f32 %v9896, 0.5
      %v10199 = vmul.f32 %v10091, 0.5
      %v10200 = vmul.f32 %v9448, 0.5
      %v10201 = vmul.f32 %v9450, 0.5
      %v10202 = vmul.f32 %v9674, 0.5
      %v10203 = vmul.f32 %v9676, 0.5
      %v10204 = vmul.f32 %v9900, 0.5
      %v10205 = vmul.f32 %v9902, 0.5
      %v10206 = vmul.f32 %v10096, 0.5
      %v10207 = vmul.f32 %v9452, 0.5
      %v10208 = vmul.f32 %v9454, 0.5
      %v10209 = vmul.f32 %v9678, 0.5
      %v10210 = vmul.f32 %v9680, 0.5
      %v10211 = vmul.f32 %v9904, 0.5
      %v10212 = vmul.f32 %v9906, 0.5
      %v10213 = vmul.f32 %v10099, 0.5
      %v10214 = vtanh.pop %v10102
      %v10215 = vtanh.pop %v10103
      %v10216 = vtanh.pop %v10104
      %v10217 = vtanh.pop %v10105
      %v10218 = vtanh.pop %v10106
      %v10219 = vtanh.pop %v10107
      %v10220 = vtanh.pop %v10108
      %v10221 = vtanh.pop %v10109
      %v10222 = vtanh.pop %v10110
      %v10223 = vtanh.pop %v10111
      %v10224 = vtanh.pop %v10112
      %v10225 = vtanh.pop %v10113
      %v10226 = vtanh.pop %v10114
      %v10227 = vtanh.pop %v10115
      %v10228 = vtanh.pop %v10116
      %v10229 = vtanh.pop %v10117
      %v10230 = vtanh.pop %v10118
      %v10231 = vtanh.pop %v10119
      %v10232 = vtanh.pop %v10120
      %v10233 = vtanh.pop %v10121
      %v10234 = vtanh.pop %v10122
      %v10235 = vtanh.pop %v10123
      %v10236 = vtanh.pop %v10124
      %v10237 = vtanh.pop %v10125
      %v10238 = vtanh.pop %v10126
      %v10239 = vtanh.pop %v10127
      %v10240 = vtanh.pop %v10128
      %v10241 = vtanh.pop %v10129
      %v10242 = vtanh.pop %v10130
      %v10243 = vtanh.pop %v10131
      %v10244 = vtanh.pop %v10132
      %v10245 = vtanh.pop %v10133
      %v10246 = vtanh.pop %v10134
      %v10247 = vtanh.pop %v10135
      %v10248 = vtanh.pop %v10136
      %v10249 = vtanh.pop %v10137
      %v10250 = vtanh.pop %v10138
      %v10251 = vtanh.pop %v10139
      %v10252 = vtanh.pop %v10140
      %v10253 = vtanh.pop %v10141
      %v10254 = vtanh.pop %v10142
      %v10255 = vtanh.pop %v10143
      %v10256 = vtanh.pop %v10144
      %v10257 = vtanh.pop %v10145
      %v10258 = vtanh.pop %v10146
      %v10259 = vtanh.pop %v10147
      %v10260 = vtanh.pop %v10148
      %v10261 = vtanh.pop %v10149
      %v10262 = vtanh.pop %v10150
      %v10263 = vtanh.pop %v10151
      %v10264 = vtanh.pop %v10152
      %v10265 = vtanh.pop %v10153
      %v10266 = vtanh.pop %v10154
      %v10267 = vtanh.pop %v10155
      %v10268 = vtanh.pop %v10156
      %v10269 = vtanh.pop %v10157
      %v10270 = vtanh.pop %v10158
      %v10271 = vtanh.pop %v10159
      %v10272 = vtanh.pop %v10160
      %v10273 = vtanh.pop %v10161
      %v10274 = vtanh.pop %v10162
      %v10275 = vtanh.pop %v10163
      %v10276 = vtanh.pop %v10164
      %v10277 = vtanh.pop %v10165
      %v10278 = vtanh.pop %v10166
      %v10279 = vtanh.pop %v10167
      %v10280 = vtanh.pop %v10168
      %v10281 = vtanh.pop %v10169
      %v10282 = vtanh.pop %v10170
      %v10283 = vtanh.pop %v10171
      %v10284 = vtanh.pop %v10172
      %v10285 = vtanh.pop %v10173
      %v10286 = vtanh.pop %v10174
      %v10287 = vtanh.pop %v10175
      %v10288 = vtanh.pop %v10176
      %v10289 = vtanh.pop %v10177
      %v10290 = vtanh.pop %v10178
      %v10291 = vtanh.pop %v10179
      %v10292 = vtanh.pop %v10180
      %v10293 = vtanh.pop %v10181
      %v10294 = vtanh.pop %v10182
      %v10295 = vtanh.pop %v10183
      %v10296 = vtanh.pop %v10184
      %v10297 = vtanh.pop %v10185
      %v10298 = vtanh.pop %v10186
      %v10299 = vtanh.pop %v10187
      %v10300 = vtanh.pop %v10188
      %v10301 = vtanh.pop %v10189
      %v10302 = vtanh.pop %v10190
      %v10303 = vtanh.pop %v10191
      %v10304 = vtanh.pop %v10192
      %v10305 = vtanh.pop %v10193
      %v10306 = vtanh.pop %v10194
      %v10307 = vtanh.pop %v10195
      %v10308 = vtanh.pop %v10196
      %v10309 = vtanh.pop %v10197
      %v10310 = vtanh.pop %v10198
      %v10311 = vtanh.pop %v10199
      %v10312 = vtanh.pop %v10200
      %v10313 = vtanh.pop %v10201
      %v10314 = vtanh.pop %v10202
      %v10315 = vtanh.pop %v10203
      %v10316 = vtanh.pop %v10204
      %v10317 = vtanh.pop %v10205
      %v10318 = vtanh.pop %v10206
      %v10319 = vtanh.pop %v10207
      %v10320 = vtanh.pop %v10208
      %v10321 = vtanh.pop %v10209
      %v10322 = vtanh.pop %v10210
      %v10323 = vtanh.pop %v10211
      %v10324 = vtanh.pop %v10212
      %v10325 = vtanh.pop %v10213
      %v10326 = vmul.f32 %v10214, 0.5
      %v10327 = vmul.f32 %v10215, 0.5
      %v10328 = vmul.f32 %v10216, 0.5
      %v10329 = vmul.f32 %v10217, 0.5
      %v10330 = vmul.f32 %v10218, 0.5
      %v10331 = vmul.f32 %v10219, 0.5
      %v10332 = vmul.f32 %v10220, 0.5
      %v10333 = vmul.f32 %v10221, 0.5
      %v10334 = vmul.f32 %v10222, 0.5
      %v10335 = vmul.f32 %v10223, 0.5
      %v10336 = vmul.f32 %v10224, 0.5
      %v10337 = vmul.f32 %v10225, 0.5
      %v10338 = vmul.f32 %v10226, 0.5
      %v10339 = vmul.f32 %v10227, 0.5
      %v10340 = vmul.f32 %v10228, 0.5
      %v10341 = vmul.f32 %v10229, 0.5
      %v10342 = vmul.f32 %v10230, 0.5
      %v10343 = vmul.f32 %v10231, 0.5
      %v10344 = vmul.f32 %v10232, 0.5
      %v10345 = vmul.f32 %v10233, 0.5
      %v10346 = vmul.f32 %v10234, 0.5
      %v10347 = vmul.f32 %v10235, 0.5
      %v10348 = vmul.f32 %v10236, 0.5
      %v10349 = vmul.f32 %v10237, 0.5
      %v10350 = vmul.f32 %v10238, 0.5
      %v10351 = vmul.f32 %v10239, 0.5
      %v10352 = vmul.f32 %v10240, 0.5
      %v10353 = vmul.f32 %v10241, 0.5
      %v10354 = vmul.f32 %v10242, 0.5
      %v10355 = vmul.f32 %v10243, 0.5
      %v10356 = vmul.f32 %v10244, 0.5
      %v10357 = vmul.f32 %v10245, 0.5
      %v10358 = vmul.f32 %v10246, 0.5
      %v10359 = vmul.f32 %v10247, 0.5
      %v10360 = vmul.f32 %v10248, 0.5
      %v10361 = vmul.f32 %v10249, 0.5
      %v10362 = vmul.f32 %v10250, 0.5
      %v10363 = vmul.f32 %v10251, 0.5
      %v10364 = vmul.f32 %v10252, 0.5
      %v10365 = vmul.f32 %v10253, 0.5
      %v10366 = vmul.f32 %v10254, 0.5
      %v10367 = vmul.f32 %v10255, 0.5
      %v10368 = vmul.f32 %v10256, 0.5
      %v10369 = vmul.f32 %v10257, 0.5
      %v10370 = vmul.f32 %v10258, 0.5
      %v10371 = vmul.f32 %v10259, 0.5
      %v10372 = vmul.f32 %v10260, 0.5
      %v10373 = vmul.f32 %v10261, 0.5
      %v10374 = vmul.f32 %v10262, 0.5
      %v10375 = vmul.f32 %v10263, 0.5
      %v10376 = vmul.f32 %v10264, 0.5
      %v10377 = vmul.f32 %v10265, 0.5
      %v10378 = vmul.f32 %v10266, 0.5
      %v10379 = vmul.f32 %v10267, 0.5
      %v10380 = vmul.f32 %v10268, 0.5
      %v10381 = vmul.f32 %v10269, 0.5
      %v10382 = vmul.f32 %v10270, 0.5
      %v10383 = vmul.f32 %v10271, 0.5
      %v10384 = vmul.f32 %v10272, 0.5
      %v10385 = vmul.f32 %v10273, 0.5
      %v10386 = vmul.f32 %v10274, 0.5
      %v10387 = vmul.f32 %v10275, 0.5
      %v10388 = vmul.f32 %v10276, 0.5
      %v10389 = vmul.f32 %v10277, 0.5
      %v10390 = vmul.f32 %v10278, 0.5
      %v10391 = vmul.f32 %v10279, 0.5
      %v10392 = vmul.f32 %v10280, 0.5
      %v10393 = vmul.f32 %v10281, 0.5
      %v10394 = vmul.f32 %v10282, 0.5
      %v10395 = vmul.f32 %v10283, 0.5
      %v10396 = vmul.f32 %v10284, 0.5
      %v10397 = vmul.f32 %v10285, 0.5
      %v10398 = vmul.f32 %v10286, 0.5
      %v10399 = vmul.f32 %v10287, 0.5
      %v10400 = vmul.f32 %v10288, 0.5
      %v10401 = vmul.f32 %v10289, 0.5
      %v10402 = vmul.f32 %v10290, 0.5
      %v10403 = vmul.f32 %v10291, 0.5
      %v10404 = vmul.f32 %v10292, 0.5
      %v10405 = vmul.f32 %v10293, 0.5
      %v10406 = vmul.f32 %v10294, 0.5
      %v10407 = vmul.f32 %v10295, 0.5
      %v10408 = vmul.f32 %v10296, 0.5
      %v10409 = vmul.f32 %v10297, 0.5
      %v10410 = vmul.f32 %v10298, 0.5
      %v10411 = vmul.f32 %v10299, 0.5
      %v10412 = vmul.f32 %v10300, 0.5
      %v10413 = vmul.f32 %v10301, 0.5
      %v10414 = vmul.f32 %v10302, 0.5
      %v10415 = vmul.f32 %v10303, 0.5
      %v10416 = vmul.f32 %v10304, 0.5
      %v10417 = vmul.f32 %v10305, 0.5
      %v10418 = vmul.f32 %v10306, 0.5
      %v10419 = vmul.f32 %v10307, 0.5
      %v10420 = vmul.f32 %v10308, 0.5
      %v10421 = vmul.f32 %v10309, 0.5
      %v10422 = vmul.f32 %v10310, 0.5
      %v10423 = vmul.f32 %v10311, 0.5
      %v10424 = vmul.f32 %v10312, 0.5
      %v10425 = vmul.f32 %v10313, 0.5
      %v10426 = vmul.f32 %v10314, 0.5
      %v10427 = vmul.f32 %v10315, 0.5
      %v10428 = vmul.f32 %v10316, 0.5
      %v10429 = vmul.f32 %v10317, 0.5
      %v10430 = vmul.f32 %v10318, 0.5
      %v10431 = vmul.f32 %v10319, 0.5
      %v10432 = vmul.f32 %v10320, 0.5
      %v10433 = vmul.f32 %v10321, 0.5
      %v10434 = vmul.f32 %v10322, 0.5
      %v10435 = vmul.f32 %v10323, 0.5
      %v10436 = vmul.f32 %v10324, 0.5
      %v10437 = vmul.f32 %v10325, 0.5
      %v10438 = vadd.f32 %v10326, 0.5
      %v10439 = vadd.f32 %v10327, 0.5
      %v10440 = vadd.f32 %v10328, 0.5
      %v10441 = vadd.f32 %v10329, 0.5
      %v10442 = vadd.f32 %v10330, 0.5
      %v10443 = vadd.f32 %v10331, 0.5
      %v10444 = vadd.f32 %v10332, 0.5
      %v10445 = vadd.f32 %v10333, 0.5
      %v10446 = vadd.f32 %v10334, 0.5
      %v10447 = vadd.f32 %v10335, 0.5
      %v10448 = vadd.f32 %v10336, 0.5
      %v10449 = vadd.f32 %v10337, 0.5
      %v10450 = vadd.f32 %v10338, 0.5
      %v10451 = vadd.f32 %v10339, 0.5
      %v10452 = vadd.f32 %v10340, 0.5
      %v10453 = vadd.f32 %v10341, 0.5
      %v10454 = vadd.f32 %v10342, 0.5
      %v10455 = vadd.f32 %v10343, 0.5
      %v10456 = vadd.f32 %v10344, 0.5
      %v10457 = vadd.f32 %v10345, 0.5
      %v10458 = vadd.f32 %v10346, 0.5
      %v10459 = vadd.f32 %v10347, 0.5
      %v10460 = vadd.f32 %v10348, 0.5
      %v10461 = vadd.f32 %v10349, 0.5
      %v10462 = vadd.f32 %v10350, 0.5
      %v10463 = vadd.f32 %v10351, 0.5
      %v10464 = vadd.f32 %v10352, 0.5
      %v10465 = vadd.f32 %v10353, 0.5
      %v10466 = vadd.f32 %v10354, 0.5
      %v10467 = vadd.f32 %v10355, 0.5
      %v10468 = vadd.f32 %v10356, 0.5
      %v10469 = vadd.f32 %v10357, 0.5
      %v10470 = vadd.f32 %v10358, 0.5
      %v10471 = vadd.f32 %v10359, 0.5
      %v10472 = vadd.f32 %v10360, 0.5
      %v10473 = vadd.f32 %v10361, 0.5
      %v10474 = vadd.f32 %v10362, 0.5
      %v10475 = vadd.f32 %v10363, 0.5
      %v10476 = vadd.f32 %v10364, 0.5
      %v10477 = vadd.f32 %v10365, 0.5
      %v10478 = vadd.f32 %v10366, 0.5
      %v10479 = vadd.f32 %v10367, 0.5
      %v10480 = vadd.f32 %v10368, 0.5
      %v10481 = vadd.f32 %v10369, 0.5
      %v10482 = vadd.f32 %v10370, 0.5
      %v10483 = vadd.f32 %v10371, 0.5
      %v10484 = vadd.f32 %v10372, 0.5
      %v10485 = vadd.f32 %v10373, 0.5
      %v10486 = vadd.f32 %v10374, 0.5
      %v10487 = vadd.f32 %v10375, 0.5
      %v10488 = vadd.f32 %v10376, 0.5
      %v10489 = vadd.f32 %v10377, 0.5
      %v10490 = vadd.f32 %v10378, 0.5
      %v10491 = vadd.f32 %v10379, 0.5
      %v10492 = vadd.f32 %v10380, 0.5
      %v10493 = vadd.f32 %v10381, 0.5
      %v10494 = vadd.f32 %v10382, 0.5
      %v10495 = vadd.f32 %v10383, 0.5
      %v10496 = vadd.f32 %v10384, 0.5
      %v10497 = vadd.f32 %v10385, 0.5
      %v10498 = vadd.f32 %v10386, 0.5
      %v10499 = vadd.f32 %v10387, 0.5
      %v10500 = vadd.f32 %v10388, 0.5
      %v10501 = vadd.f32 %v10389, 0.5
      %v10502 = vadd.f32 %v10390, 0.5
      %v10503 = vadd.f32 %v10391, 0.5
      %v10504 = vadd.f32 %v10392, 0.5
      %v10505 = vadd.f32 %v10393, 0.5
      %v10506 = vadd.f32 %v10394, 0.5
      %v10507 = vadd.f32 %v10395, 0.5
      %v10508 = vadd.f32 %v10396, 0.5
      %v10509 = vadd.f32 %v10397, 0.5
      %v10510 = vadd.f32 %v10398, 0.5
      %v10511 = vadd.f32 %v10399, 0.5
      %v10512 = vadd.f32 %v10400, 0.5
      %v10513 = vadd.f32 %v10401, 0.5
      %v10514 = vadd.f32 %v10402, 0.5
      %v10515 = vadd.f32 %v10403, 0.5
      %v10516 = vadd.f32 %v10404, 0.5
      %v10517 = vadd.f32 %v10405, 0.5
      %v10518 = vadd.f32 %v10406, 0.5
      %v10519 = vadd.f32 %v10407, 0.5
      %v10520 = vadd.f32 %v10408, 0.5
      %v10521 = vadd.f32 %v10409, 0.5
      %v10522 = vadd.f32 %v10410, 0.5
      %v10523 = vadd.f32 %v10411, 0.5
      %v10524 = vadd.f32 %v10412, 0.5
      %v10525 = vadd.f32 %v10413, 0.5
      %v10526 = vadd.f32 %v10414, 0.5
      %v10527 = vadd.f32 %v10415, 0.5
      %v10528 = vadd.f32 %v10416, 0.5
      %v10529 = vadd.f32 %v10417, 0.5
      %v10530 = vadd.f32 %v10418, 0.5
      %v10531 = vadd.f32 %v10419, 0.5
      %v10532 = vadd.f32 %v10420, 0.5
      %v10533 = vadd.f32 %v10421, 0.5
      %v10534 = vadd.f32 %v10422, 0.5
      %v10535 = vadd.f32 %v10423, 0.5
      %v10536 = vadd.f32 %v10424, 0.5
      %v10537 = vadd.f32 %v10425, 0.5
      %v10538 = vadd.f32 %v10426, 0.5
      %v10539 = vadd.f32 %v10427, 0.5
      %v10540 = vadd.f32 %v10428, 0.5
      %v10541 = vadd.f32 %v10429, 0.5
      %v10542 = vadd.f32 %v10430, 0.5
      %v10543 = vadd.f32 %v10431, 0.5
      %v10544 = vadd.f32 %v10432, 0.5
      %v10545 = vadd.f32 %v10433, 0.5
      %v10546 = vadd.f32 %v10434, 0.5
      %v10547 = vadd.f32 %v10435, 0.5
      %v10548 = vadd.f32 %v10436, 0.5
      %v10549 = vadd.f32 %v10437, 0.5
      %10550 = vst [vmem:[%s710] sm:$0xff] %v10438
      %10551 = vst [vmem:[%s710 + $0x8] sm:$0xff] %v10439
      %10552 = vst [vmem:[%s710 + $0x10] sm:$0xff] %v10440
      %10553 = vst [vmem:[%s710 + $0x18] sm:$0xff] %v10441
      %10554 = vst [vmem:[%s710 + $0x20] sm:$0xff] %v10442
      %10555 = vst [vmem:[%s710 + $0x28] sm:$0xff] %v10443
      %10556 = vst.msk [vmem:[%s710 + $0x30] sm:$0xff] %vm2138, %v10444
      %10557 = vst [vmem:[%s710 + $0x38] sm:$0xff] %v10445
      %10558 = vst [vmem:[%s710 + $0x40] sm:$0xff] %v10446
      %10559 = vst [vmem:[%s710 + $0x48] sm:$0xff] %v10447
      %10560 = vst [vmem:[%s710 + $0x50] sm:$0xff] %v10448
      %10561 = vst [vmem:[%s710 + $0x58] sm:$0xff] %v10449
      %10562 = vst [vmem:[%s710 + $0x60] sm:$0xff] %v10450
      %10563 = vst.msk [vmem:[%s710 + $0x68] sm:$0xff] %vm2138, %v10451
      %10564 = vst [vmem:[%s710 + $0x70] sm:$0xff] %v10452
      %10565 = vst [vmem:[%s710 + $0x78] sm:$0xff] %v10453
      %10566 = vst [vmem:[%s710 + $0x80] sm:$0xff] %v10454
      %10567 = vst [vmem:[%s710 + $0x88] sm:$0xff] %v10455
      %10568 = vst [vmem:[%s710 + $0x90] sm:$0xff] %v10456
      %10569 = vst [vmem:[%s710 + $0x98] sm:$0xff] %v10457
      %10570 = vst.msk [vmem:[%s710 + $0xa0] sm:$0xff] %vm2138, %v10458
      %10571 = vst [vmem:[%s710 + $0xa8] sm:$0xff] %v10459
      %10572 = vst [vmem:[%s710 + $0xb0] sm:$0xff] %v10460
      %10573 = vst [vmem:[%s710 + $0xb8] sm:$0xff] %v10461
      %10574 = vst [vmem:[%s710 + $0xc0] sm:$0xff] %v10462
      %10575 = vst [vmem:[%s710 + $0xc8] sm:$0xff] %v10463
      %10576 = vst [vmem:[%s710 + $0xd0] sm:$0xff] %v10464
      %10577 = vst.msk [vmem:[%s710 + $0xd8] sm:$0xff] %vm2138, %v10465
      %10578 = vst [vmem:[%s710 + $0xe0] sm:$0xff] %v10466
      %10579 = vst [vmem:[%s710 + $0xe8] sm:$0xff] %v10467
      %10580 = vst [vmem:[%s710 + $0xf0] sm:$0xff] %v10468
      %10581 = vst [vmem:[%s710 + $0xf8] sm:$0xff] %v10469
      %10582 = vst [vmem:[%s710 + $0x100] sm:$0xff] %v10470
      %10583 = vst [vmem:[%s710 + $0x108] sm:$0xff] %v10471
      %10584 = vst.msk [vmem:[%s710 + $0x110] sm:$0xff] %vm2138, %v10472
      %10585 = vst [vmem:[%s710 + $0x118] sm:$0xff] %v10473
      %10586 = vst [vmem:[%s710 + $0x120] sm:$0xff] %v10474
      %10587 = vst [vmem:[%s710 + $0x128] sm:$0xff] %v10475
      %10588 = vst [vmem:[%s710 + $0x130] sm:$0xff] %v10476
      %10589 = vst [vmem:[%s710 + $0x138] sm:$0xff] %v10477
      %10590 = vst [vmem:[%s710 + $0x140] sm:$0xff] %v10478
      %10591 = vst.msk [vmem:[%s710 + $0x148] sm:$0xff] %vm2138, %v10479
      %10592 = vst [vmem:[%s710 + $0x150] sm:$0xff] %v10480
      %10593 = vst [vmem:[%s710 + $0x158] sm:$0xff] %v10481
      %10594 = vst [vmem:[%s710 + $0x160] sm:$0xff] %v10482
      %10595 = vst [vmem:[%s710 + $0x168] sm:$0xff] %v10483
      %10596 = vst [vmem:[%s710 + $0x170] sm:$0xff] %v10484
      %10597 = vst [vmem:[%s710 + $0x178] sm:$0xff] %v10485
      %10598 = vst.msk [vmem:[%s710 + $0x180] sm:$0xff] %vm2138, %v10486
      %10599 = vst [vmem:[%s710 + $0x188] sm:$0xff] %v10487
      %10600 = vst [vmem:[%s710 + $0x190] sm:$0xff] %v10488
      %10601 = vst [vmem:[%s710 + $0x198] sm:$0xff] %v10489
      %10602 = vst [vmem:[%s710 + $0x1a0] sm:$0xff] %v10490
      %10603 = vst [vmem:[%s710 + $0x1a8] sm:$0xff] %v10491
      %10604 = vst [vmem:[%s710 + $0x1b0] sm:$0xff] %v10492
      %10605 = vst.msk [vmem:[%s710 + $0x1b8] sm:$0xff] %vm2138, %v10493
      %10606 = vst [vmem:[%s710 + $0x1c0] sm:$0xff] %v10494
      %10607 = vst [vmem:[%s710 + $0x1c8] sm:$0xff] %v10495
      %10608 = vst [vmem:[%s710 + $0x1d0] sm:$0xff] %v10496
      %10609 = vst [vmem:[%s710 + $0x1d8] sm:$0xff] %v10497
      %10610 = vst [vmem:[%s710 + $0x1e0] sm:$0xff] %v10498
      %10611 = vst [vmem:[%s710 + $0x1e8] sm:$0xff] %v10499
      %10612 = vst.msk [vmem:[%s710 + $0x1f0] sm:$0xff] %vm2138, %v10500
      %10613 = vst [vmem:[%s710 + $0x1f8] sm:$0xff] %v10501
      %10614 = vst [vmem:[%s710 + $0x200] sm:$0xff] %v10502
      %10615 = vst [vmem:[%s710 + $0x208] sm:$0xff] %v10503
      %10616 = vst [vmem:[%s710 + $0x210] sm:$0xff] %v10504
      %10617 = vst [vmem:[%s710 + $0x218] sm:$0xff] %v10505
      %10618 = vst [vmem:[%s710 + $0x220] sm:$0xff] %v10506
      %10619 = vst.msk [vmem:[%s710 + $0x228] sm:$0xff] %vm2138, %v10507
      %10620 = vst [vmem:[%s710 + $0x230] sm:$0xff] %v10508
      %10621 = vst [vmem:[%s710 + $0x238] sm:$0xff] %v10509
      %10622 = vst [vmem:[%s710 + $0x240] sm:$0xff] %v10510
      %10623 = vst [vmem:[%s710 + $0x248] sm:$0xff] %v10511
      %10624 = vst [vmem:[%s710 + $0x250] sm:$0xff] %v10512
      %10625 = vst [vmem:[%s710 + $0x258] sm:$0xff] %v10513
      %10626 = vst.msk [vmem:[%s710 + $0x260] sm:$0xff] %vm2138, %v10514
      %10627 = vst [vmem:[%s710 + $0x268] sm:$0xff] %v10515
      %10628 = vst [vmem:[%s710 + $0x270] sm:$0xff] %v10516
      %10629 = vst [vmem:[%s710 + $0x278] sm:$0xff] %v10517
      %10630 = vst [vmem:[%s710 + $0x280] sm:$0xff] %v10518
      %10631 = vst [vmem:[%s710 + $0x288] sm:$0xff] %v10519
      %10632 = vst [vmem:[%s710 + $0x290] sm:$0xff] %v10520
      %10633 = vst.msk [vmem:[%s710 + $0x298] sm:$0xff] %vm2138, %v10521
      %10634 = vst [vmem:[%s710 + $0x2a0] sm:$0xff] %v10522
      %10635 = vst [vmem:[%s710 + $0x2a8] sm:$0xff] %v10523
      %10636 = vst [vmem:[%s710 + $0x2b0] sm:$0xff] %v10524
      %10637 = vst [vmem:[%s710 + $0x2b8] sm:$0xff] %v10525
      %10638 = vst [vmem:[%s710 + $0x2c0] sm:$0xff] %v10526
      %10639 = vst [vmem:[%s710 + $0x2c8] sm:$0xff] %v10527
      %10640 = vst.msk [vmem:[%s710 + $0x2d0] sm:$0xff] %vm2138, %v10528
      %10641 = vst [vmem:[%s710 + $0x2d8] sm:$0xff] %v10529
      %10642 = vst [vmem:[%s710 + $0x2e0] sm:$0xff] %v10530
      %10643 = vst [vmem:[%s710 + $0x2e8] sm:$0xff] %v10531
      %10644 = vst [vmem:[%s710 + $0x2f0] sm:$0xff] %v10532
      %10645 = vst [vmem:[%s710 + $0x2f8] sm:$0xff] %v10533
      %10646 = vst [vmem:[%s710 + $0x300] sm:$0xff] %v10534
      %10647 = vst.msk [vmem:[%s710 + $0x308] sm:$0xff] %vm2138, %v10535
      %10648 = vst [vmem:[%s710 + $0x310] sm:$0xff] %v10536
      %10649 = vst [vmem:[%s710 + $0x318] sm:$0xff] %v10537
      %10650 = vst [vmem:[%s710 + $0x320] sm:$0xff] %v10538
      %10651 = vst [vmem:[%s710 + $0x328] sm:$0xff] %v10539
      %10652 = vst [vmem:[%s710 + $0x330] sm:$0xff] %v10540
      %10653 = vst [vmem:[%s710 + $0x338] sm:$0xff] %v10541
      %10654 = vst.msk [vmem:[%s710 + $0x340] sm:$0xff] %vm2138, %v10542
      %10655 = vst [vmem:[%s710 + $0x348] sm:$0xff] %v10543
      %10656 = vst [vmem:[%s710 + $0x350] sm:$0xff] %v10544
      %10657 = vst [vmem:[%s710 + $0x358] sm:$0xff] %v10545
      %10658 = vst [vmem:[%s710 + $0x360] sm:$0xff] %v10546
      %10659 = vst [vmem:[%s710 + $0x368] sm:$0xff] %v10547
      %10660 = vst [vmem:[%s710 + $0x370] sm:$0xff] %v10548
      %10661 = vst.msk [vmem:[%s710 + $0x378] sm:$0xff] %vm2138, %v10549
      %s10662 = smul.u32 16, %s32
      %p10663 = scmp.lt.s32.totalorder %s10662, 63
      %s10664 = scalar_select %p10663, %s10662, 63
      %s10665 = smul.addr %s10664, 7
      %s10666 = smul.addr %s10665, 8
      %s10667 = scalar_lea.vmem %s18, %s10666
      %s10668 = smul.u32 16, %s32
      %p10669 = scmp.lt.s32.totalorder %s10668, 63
      %s10670 = scalar_select %p10669, %s10668, 63
      %s10671 = smul.addr %s10670, 2
      %s10672 = smul.addr %s10671, 8
      %s10673 = scalar_lea.vmem %s19, %s10672
      %s10674 = smul.u32 16, %s32
      %p10675 = scmp.lt.s32.totalorder %s10674, 63
      %s10676 = scalar_select %p10675, %s10674, 63
      %s10677 = smul.addr %s10676, 2
      %s10678 = smul.addr %s10677, 8
      %s10679 = scalar_lea.vmem %s20, %s10678
      // Predicated region
      $region93: #{vae_forward.1} parent=91 // pred_check
        %p10680 = pneg %p445
      $region94: #{vae_forward.1} parent=91 // pred_check_branch
        %10682 = sbr.rel (%p10680) target = $region96
      $region95: #{vae_forward.1} parent=91 // pred_region
        %s10683 = smul.u32 16, %s32
      $region96: #{vae_forward.1} parent=91 // pred_fallthru
        _
      // Predicated region
      $region97: #{vae_forward.1} parent=91 // pred_check
        %p10684 = pneg %p471
      $region98: #{vae_forward.1} parent=91 // pred_check_branch
        %10686 = sbr.rel (%p10684) target = $region100
      $region99: #{vae_forward.1} parent=91 // pred_region
        %s10687 = smul.u32 16, %s32
      $region100: #{vae_forward.1} parent=91 // pred_fallthru
        _
      // Predicated region
      $region101: #{vae_forward.1} parent=91 // pred_check
        %p10688 = pneg %p497
      $region102: #{vae_forward.1} parent=91 // pred_check_branch
        %10690 = sbr.rel (%p10688) target = $region104
      $region103: #{vae_forward.1} parent=91 // pred_region
        %s10691 = smul.u32 16, %s32
      $region104: #{vae_forward.1} parent=91 // pred_fallthru
        _
    $region92: #{vae_forward.1} parent=5 // pred_fallthru
      _
    %p10692 = scmp.le.s32.totalorder 2, %s27
    // Predicated region
    $region105: #{vae_forward.1} parent=5 // pred_check
      %p10693 = pneg %p10692
    $region106: #{vae_forward.1} parent=5 // pred_check_branch
      %10695 = sbr.rel (%p10693) target = $region108
    $region107: #{vae_forward.1} parent=5 // pred_region
      %s10696 = ssub.s32 %s27, 2
      // Predicated region
      $region109: #{vae_forward.1} parent=107 // pred_check
        %p10697 = pneg %p451
      $region110: #{vae_forward.1} parent=107 // pred_check_branch
        %10699 = sbr.rel (%p10697) target = $region112
      $region111: #{vae_forward.1} parent=107 // pred_region
        %s10700 = smul.u32 16, %s33
        %p10701 = scmp.lt.s32.totalorder %s10700, 63
        %s10702 = scalar_select %p10701, %s10700, 63
        %s10703 = smul.addr %s10702, 7
        %s10704 = smul.addr %s10703, 8
        %s10705 = scalar_lea.vmem %s18, %s10704
      $region112: #{vae_forward.1} parent=107 // pred_fallthru
        _
      // Predicated region
      $region113: #{vae_forward.1} parent=107 // pred_check
        %p10706 = pneg %p477
      $region114: #{vae_forward.1} parent=107 // pred_check_branch
        %10708 = sbr.rel (%p10706) target = $region116
      $region115: #{vae_forward.1} parent=107 // pred_region
        %s10709 = smul.u32 16, %s33
        %p10710 = scmp.lt.s32.totalorder %s10709, 63
        %s10711 = scalar_select %p10710, %s10709, 63
        %s10712 = smul.addr %s10711, 2
        %s10713 = smul.addr %s10712, 8
        %s10714 = scalar_lea.vmem %s19, %s10713
      $region116: #{vae_forward.1} parent=107 // pred_fallthru
        _
      // Predicated region
      $region117: #{vae_forward.1} parent=107 // pred_check
        %p10715 = pneg %p503
      $region118: #{vae_forward.1} parent=107 // pred_check_branch
        %10717 = sbr.rel (%p10715) target = $region120
      $region119: #{vae_forward.1} parent=107 // pred_region
        %s10718 = smul.u32 16, %s33
        %p10719 = scmp.lt.s32.totalorder %s10718, 63
        %s10720 = scalar_select %p10719, %s10718, 63
        %s10721 = smul.addr %s10720, 2
        %s10722 = smul.addr %s10721, 8
        %s10723 = scalar_lea.vmem %s20, %s10722
      $region120: #{vae_forward.1} parent=107 // pred_fallthru
        _
    $region108: #{vae_forward.1} parent=5 // pred_fallthru
      _
  $region6: #{vae_forward.1} parent=0 // loop_footer
    %s31 = sadd.s32 1, %s27
  $region7: #{vae_forward.1} parent=0 // loop_footer_branch
    %26 = sbr.rel target = $region3
  $region8: #{vae_forward.1} parent=0 // loop_exit
    _

</llo_original>
